<compile_context>
chip_gen: v7x
topology: tpu7x:2x2x1
jax: 0.10.0
libtpu: 0.0.40
codegen_flags: <defaults>
</compile_context>

<pallas_src>
import math
import functools

import jax
import jax.numpy as jnp
from jax import lax
from jax.experimental import pallas as pl
from jax.experimental.pallas import tpu as pltpu

D = 768  # hidden size of the MLP


def _gelu(x, approx):
    if approx:
        # tanh-approx GELU: 1 EUP transcendental + ~6 VALU ops per element.
        c = math.sqrt(2.0 / math.pi)
        return 0.5 * x * (1.0 + jnp.tanh(c * (x + 0.044715 * (x * x * x))))
    # Exact erf GELU (nn.GELU() default).
    return 0.5 * x * (1.0 + lax.erf(x * (1.0 / math.sqrt(2.0))))


def mlp_kernel(x_ref,
               w1_ref, b1_ref, w2_ref, b2_ref,
               w3_ref, b3_ref, w4_ref, b4_ref,
               o_ref, *, approx_gelu):
    # x_ref: (tm, D) f32 token tile; w*_ref: (D, D) bf16; b*_ref: (1, D) f32.
    # In-kernel f32->bf16 cast: hidden under the MXU instead of a separate
    # XLA pass over x in HBM.
    h = x_ref[...].astype(jnp.bfloat16)

    def layer(h_bf16, w_ref, b_ref, last=False):
        acc = jnp.dot(h_bf16, w_ref[...], preferred_element_type=jnp.float32)
        acc = acc + b_ref[...]                      # bias add in f32
        if last:
            return acc
        return _gelu(acc, approx_gelu).astype(jnp.bfloat16)

    h = layer(h, w1_ref, b1_ref)
    h = layer(h, w2_ref, b2_ref)
    h = layer(h, w3_ref, b3_ref)
    h = layer(h, w4_ref, b4_ref, last=True)

    o_ref[...] = h.astype(o_ref.dtype)


def _pick_tile(n, tm_max):
    """Choose the token row tile.

    Prefers tiles (multiples of 128, <= tm_max) that divide n exactly so no
    padding / output slice is needed, and that give a >= 2-step grid so the
    'parallel' axis can be split across both v7x TensorCores. Small inputs get
    a single sublane-aligned tile. Only truly ragged large N falls back to a
    padded 256-row tile.
    Returns (tm, n_pad).
    """
    cands = [c for c in (512, 256, 128) if c <= tm_max]
    for c in cands:                       # exact divisor, >= 2 grid steps
        if n % c == 0 and n // c >= 2:
            return c, n
    for c in cands:                       # exact divisor, single step
        if n % c == 0:
            return c, n
    if n <= tm_max:                       # small input: one tile, pad to sublane
        tm = pl.cdiv(n, 8) * 8
        return tm, tm
    tm = min(256, tm_max)                 # ragged large N: pad (perf fallback)
    return tm, pl.cdiv(n, tm) * tm


@functools.partial(jax.jit, static_argnames=("tm_max", "approx_gelu"))
def mlp_forward(x, params, *, tm_max=512, approx_gelu=True):
    """x: [..., 768] float32.

    params: w1..w4 as (768, 768) bf16 stored (in, out); b1..b4 as (1, 768) f32.
    tm_max: 512 recommended on v6e/v7x, 256 on v5e.
    approx_gelu: True -> tanh-approx GELU (EUP), False -> exact erf (nn.GELU).
    """
    orig_shape = x.shape
    x2d = x.reshape(-1, D)
    n = x2d.shape[0]

    tm, n_pad = _pick_tile(n, tm_max)
    if n_pad != n:  # rare fallback path (ragged N); common case has no pad/slice
        x2d = jnp.pad(x2d, ((0, n_pad - n), (0, 0)))

    x_spec = pl.BlockSpec((tm, D), lambda i: (i, 0))
    o_spec = pl.BlockSpec((tm, D), lambda i: (i, 0))
    # Constant index_map: weights/biases are DMA'd once and stay resident.
    w_spec = pl.BlockSpec((D, D), lambda i: (0, 0))
    b_spec = pl.BlockSpec((1, D), lambda i: (0, 0))

    flops = 2 * n_pad * D * D * 4                      # 4 GEMMs
    bytes_accessed = (n_pad * D * 4                    # x in (f32)
                      + n_pad * D * 4                  # out (f32)
                      + 4 * D * D * 2                  # weights (bf16)
                      + 4 * D * 4)                     # biases (f32)
    cost = pl.CostEstimate(flops=flops,
                           transcendentals=3 * n_pad * D,   # one per GELU element
                           bytes_accessed=bytes_accessed)

    kernel = functools.partial(mlp_kernel, approx_gelu=approx_gelu)

    out = pl.pallas_call(
        kernel,
        out_shape=jax.ShapeDtypeStruct((n_pad, D), x.dtype),
        grid_spec=pltpu.PrefetchScalarGridSpec(
            num_scalar_prefetch=0,
            grid=(n_pad // tm,),
            in_specs=[x_spec,
                      w_spec, b_spec, w_spec, b_spec,
                      w_spec, b_spec, w_spec, b_spec],
            out_specs=o_spec,
        ),
        compiler_params=pltpu.CompilerParams(
            dimension_semantics=("parallel",),   # token tiles split across TCs (v7x)
            vmem_limit_bytes=48 << 20,           # headroom on v7x's 64 MiB physical VMEM
        ),
        cost_estimate=cost,
    )(x2d,
      params["w1"], params["b1"], params["w2"], params["b2"],
      params["w3"], params["b3"], params["w4"], params["b4"])

    if n_pad != n:
        out = out[:n]
    return out.reshape(orig_shape)


def init_params(key):
    """Deterministic init matching the PyTorch module's __init__.

    Kaiming-normal (fan_in, relu gain) weights, PyTorch Linear default
    uniform(-1/sqrt(fan_in), 1/sqrt(fan_in)) biases.
    Weights are stored pre-transposed (in, out) and pre-cast to bf16 once here
    (no per-call cast traffic); biases stay f32 and are stored as (1, 768).
    """
    keys = jax.random.split(key, 8)
    std = math.sqrt(2.0 / D)          # kaiming_normal_, nonlinearity='relu', fan_in=768
    bound = 1.0 / math.sqrt(D)
    params = {}
    for li in range(4):
        wt = std * jax.random.normal(keys[2 * li], (D, D), dtype=jnp.float32)  # (out, in)
        bias = jax.random.uniform(keys[2 * li + 1], (D,), dtype=jnp.float32,
                                  minval=-bound, maxval=bound)
        params[f"w{li + 1}"] = wt.T.astype(jnp.bfloat16)        # (in, out), bf16
        params[f"b{li + 1}"] = bias.reshape(1, D)                # (1, D), f32
    return params


def mlp_reference(x, params, *, approx_gelu=True):
    """Pure-JAX reference with the same precision recipe as the kernel:
    bf16 matmul operands, f32 accumulation, f32 bias + GELU."""
    h = x.reshape(-1, D).astype(jnp.bfloat16)
    for li in range(1, 5):
        acc = jnp.dot(h, params[f"w{li}"],
                      preferred_element_type=jnp.float32) + params[f"b{li}"]
        if li < 4:
            h = _gelu(acc, approx_gelu).astype(jnp.bfloat16)
        else:
            h = acc
    return h.reshape(x.shape).astype(x.dtype)


if __name__ == "__main__":
    key = jax.random.PRNGKey(0)
    pkey, xkey = jax.random.split(key)

    params = init_params(pkey)

    # Small example: batch=2, seq=8, hidden=768 (N=16 tokens -> one 16-row tile,
    # no padding, no output slice).
    x = jax.random.normal(xkey, (2, 8, D), dtype=jnp.float32)

    # Generation-aware defaults (per review): v5e keeps exact erf GELU and a
    # smaller max tile; v6e/v7x use tm up to 512 and the EUP-friendly tanh GELU.
    try:
        kind = jax.devices()[0].device_kind.lower()
    except Exception:
        kind = ""
    is_v5 = "v5" in kind
    tm_max = 256 if is_v5 else 512
    approx_gelu = not is_v5

    out = jax.block_until_ready(
        mlp_forward(x, params, tm_max=tm_max, approx_gelu=approx_gelu))

    ref = mlp_reference(x, params, approx_gelu=approx_gelu)
    assert out.shape == x.shape and out.dtype == x.dtype
    assert jnp.allclose(out, ref, atol=1e-2, rtol=1e-2), "mismatch vs reference"

    print("KERNEL_OK")
</pallas_src>

<mosaic_0001>
module attributes {stable_mosaic.version = 11 : i64} {
  func.func @mlp_kernel(%arg0: i32, %arg1: memref<16x768xf32, #tpu.memory_space<vmem>>, %arg2: memref<768x768xbf16, #tpu.memory_space<vmem>>, %arg3: memref<1x768xf32, #tpu.memory_space<vmem>>, %arg4: memref<768x768xbf16, #tpu.memory_space<vmem>>, %arg5: memref<1x768xf32, #tpu.memory_space<vmem>>, %arg6: memref<768x768xbf16, #tpu.memory_space<vmem>>, %arg7: memref<1x768xf32, #tpu.memory_space<vmem>>, %arg8: memref<768x768xbf16, #tpu.memory_space<vmem>>, %arg9: memref<1x768xf32, #tpu.memory_space<vmem>>, %arg10: memref<16x768xf32, #tpu.memory_space<vmem>>) attributes {dimension_semantics = [#tpu.dimension_semantics<parallel>], iteration_bounds = array<i64: 1>, scalar_prefetch = 0 : i64, scratch_operands = 0 : i64, tpu.core_type = #tpu.core_type<tc>, window_params = [{transform_indices = @transform_0, window_bounds = array<i64: 16, 768>}, {pipeline_mode = #tpu.pipeline_mode<synchronous>, transform_indices = @transform_1, window_bounds = array<i64: 768, 768>}, {pipeline_mode = #tpu.pipeline_mode<synchronous>, transform_indices = @transform_2, window_bounds = array<i64: 1, 768>}, {pipeline_mode = #tpu.pipeline_mode<synchronous>, transform_indices = @transform_3, window_bounds = array<i64: 768, 768>}, {pipeline_mode = #tpu.pipeline_mode<synchronous>, transform_indices = @transform_4, window_bounds = array<i64: 1, 768>}, {pipeline_mode = #tpu.pipeline_mode<synchronous>, transform_indices = @transform_5, window_bounds = array<i64: 768, 768>}, {pipeline_mode = #tpu.pipeline_mode<synchronous>, transform_indices = @transform_6, window_bounds = array<i64: 1, 768>}, {pipeline_mode = #tpu.pipeline_mode<synchronous>, transform_indices = @transform_7, window_bounds = array<i64: 768, 768>}, {pipeline_mode = #tpu.pipeline_mode<synchronous>, transform_indices = @transform_8, window_bounds = array<i64: 1, 768>}, {transform_indices = @transform_9, window_bounds = array<i64: 16, 768>}]} {
    %c0 = arith.constant 0 : index
    %c0_0 = arith.constant 0 : index
    %0 = vector.load %arg1[%c0, %c0_0] : memref<16x768xf32, #tpu.memory_space<vmem>>, vector<16x768xf32>
    %1 = arith.truncf %0 : vector<16x768xf32> to vector<16x768xbf16>
    %c0_1 = arith.constant 0 : index
    %c0_2 = arith.constant 0 : index
    %2 = vector.load %arg2[%c0_1, %c0_2] : memref<768x768xbf16, #tpu.memory_space<vmem>>, vector<768x768xbf16>
    %cst = arith.constant dense<0.000000e+00> : vector<16x768xf32>
    %3 = tpu.matmul %1, %2, %cst {dimension_numbers = #tpu.dot_dimension_numbers<[1], [0], [0], [1], [0, 0, 1, 1], [], []>} : vector<16x768xbf16>, vector<768x768xbf16>, vector<16x768xf32> -> vector<16x768xf32>
    %c0_3 = arith.constant 0 : index
    %c0_4 = arith.constant 0 : index
    %4 = vector.load %arg3[%c0_3, %c0_4] : memref<1x768xf32, #tpu.memory_space<vmem>>, vector<1x768xf32>
    %5 = vector.broadcast %4 : vector<1x768xf32> to vector<16x768xf32>
    %6 = arith.addf %3, %5 : vector<16x768xf32>
    %cst_5 = arith.constant 5.000000e-01 : f32
    %7 = vector.broadcast %cst_5 : f32 to vector<16x768xf32>
    %8 = arith.mulf %7, %6 : vector<16x768xf32>
    %9 = arith.mulf %6, %6 : vector<16x768xf32>
    %10 = arith.mulf %9, %6 : vector<16x768xf32>
    %cst_6 = arith.constant 4.471500e-02 : f32
    %11 = vector.broadcast %cst_6 : f32 to vector<16x768xf32>
    %12 = arith.mulf %11, %10 : vector<16x768xf32>
    %13 = arith.addf %6, %12 : vector<16x768xf32>
    %cst_7 = arith.constant 0.797884583 : f32
    %14 = vector.broadcast %cst_7 : f32 to vector<16x768xf32>
    %15 = arith.mulf %14, %13 : vector<16x768xf32>
    %16 = math.tanh %15 : vector<16x768xf32>
    %cst_8 = arith.constant 1.000000e+00 : f32
    %17 = vector.broadcast %cst_8 : f32 to vector<16x768xf32>
    %18 = arith.addf %17, %16 : vector<16x768xf32>
    %19 = arith.mulf %8, %18 : vector<16x768xf32>
    %20 = arith.truncf %19 : vector<16x768xf32> to vector<16x768xbf16>
    %c0_9 = arith.constant 0 : index
    %c0_10 = arith.constant 0 : index
    %21 = vector.load %arg4[%c0_9, %c0_10] : memref<768x768xbf16, #tpu.memory_space<vmem>>, vector<768x768xbf16>
    %cst_11 = arith.constant dense<0.000000e+00> : vector<16x768xf32>
    %22 = tpu.matmul %20, %21, %cst_11 {dimension_numbers = #tpu.dot_dimension_numbers<[1], [0], [0], [1], [0, 0, 1, 1], [], []>} : vector<16x768xbf16>, vector<768x768xbf16>, vector<16x768xf32> -> vector<16x768xf32>
    %c0_12 = arith.constant 0 : index
    %c0_13 = arith.constant 0 : index
    %23 = vector.load %arg5[%c0_12, %c0_13] : memref<1x768xf32, #tpu.memory_space<vmem>>, vector<1x768xf32>
    %24 = vector.broadcast %23 : vector<1x768xf32> to vector<16x768xf32>
    %25 = arith.addf %22, %24 : vector<16x768xf32>
    %cst_14 = arith.constant 5.000000e-01 : f32
    %26 = vector.broadcast %cst_14 : f32 to vector<16x768xf32>
    %27 = arith.mulf %26, %25 : vector<16x768xf32>
    %28 = arith.mulf %25, %25 : vector<16x768xf32>
    %29 = arith.mulf %28, %25 : vector<16x768xf32>
    %cst_15 = arith.constant 4.471500e-02 : f32
    %30 = vector.broadcast %cst_15 : f32 to vector<16x768xf32>
    %31 = arith.mulf %30, %29 : vector<16x768xf32>
    %32 = arith.addf %25, %31 : vector<16x768xf32>
    %cst_16 = arith.constant 0.797884583 : f32
    %33 = vector.broadcast %cst_16 : f32 to vector<16x768xf32>
    %34 = arith.mulf %33, %32 : vector<16x768xf32>
    %35 = math.tanh %34 : vector<16x768xf32>
    %cst_17 = arith.constant 1.000000e+00 : f32
    %36 = vector.broadcast %cst_17 : f32 to vector<16x768xf32>
    %37 = arith.addf %36, %35 : vector<16x768xf32>
    %38 = arith.mulf %27, %37 : vector<16x768xf32>
    %39 = arith.truncf %38 : vector<16x768xf32> to vector<16x768xbf16>
    %c0_18 = arith.constant 0 : index
    %c0_19 = arith.constant 0 : index
    %40 = vector.load %arg6[%c0_18, %c0_19] : memref<768x768xbf16, #tpu.memory_space<vmem>>, vector<768x768xbf16>
    %cst_20 = arith.constant dense<0.000000e+00> : vector<16x768xf32>
    %41 = tpu.matmul %39, %40, %cst_20 {dimension_numbers = #tpu.dot_dimension_numbers<[1], [0], [0], [1], [0, 0, 1, 1], [], []>} : vector<16x768xbf16>, vector<768x768xbf16>, vector<16x768xf32> -> vector<16x768xf32>
    %c0_21 = arith.constant 0 : index
    %c0_22 = arith.constant 0 : index
    %42 = vector.load %arg7[%c0_21, %c0_22] : memref<1x768xf32, #tpu.memory_space<vmem>>, vector<1x768xf32>
    %43 = vector.broadcast %42 : vector<1x768xf32> to vector<16x768xf32>
    %44 = arith.addf %41, %43 : vector<16x768xf32>
    %cst_23 = arith.constant 5.000000e-01 : f32
    %45 = vector.broadcast %cst_23 : f32 to vector<16x768xf32>
    %46 = arith.mulf %45, %44 : vector<16x768xf32>
    %47 = arith.mulf %44, %44 : vector<16x768xf32>
    %48 = arith.mulf %47, %44 : vector<16x768xf32>
    %cst_24 = arith.constant 4.471500e-02 : f32
    %49 = vector.broadcast %cst_24 : f32 to vector<16x768xf32>
    %50 = arith.mulf %49, %48 : vector<16x768xf32>
    %51 = arith.addf %44, %50 : vector<16x768xf32>
    %cst_25 = arith.constant 0.797884583 : f32
    %52 = vector.broadcast %cst_25 : f32 to vector<16x768xf32>
    %53 = arith.mulf %52, %51 : vector<16x768xf32>
    %54 = math.tanh %53 : vector<16x768xf32>
    %cst_26 = arith.constant 1.000000e+00 : f32
    %55 = vector.broadcast %cst_26 : f32 to vector<16x768xf32>
    %56 = arith.addf %55, %54 : vector<16x768xf32>
    %57 = arith.mulf %46, %56 : vector<16x768xf32>
    %58 = arith.truncf %57 : vector<16x768xf32> to vector<16x768xbf16>
    %c0_27 = arith.constant 0 : index
    %c0_28 = arith.constant 0 : index
    %59 = vector.load %arg8[%c0_27, %c0_28] : memref<768x768xbf16, #tpu.memory_space<vmem>>, vector<768x768xbf16>
    %cst_29 = arith.constant dense<0.000000e+00> : vector<16x768xf32>
    %60 = tpu.matmul %58, %59, %cst_29 {dimension_numbers = #tpu.dot_dimension_numbers<[1], [0], [0], [1], [0, 0, 1, 1], [], []>} : vector<16x768xbf16>, vector<768x768xbf16>, vector<16x768xf32> -> vector<16x768xf32>
    %c0_30 = arith.constant 0 : index
    %c0_31 = arith.constant 0 : index
    %61 = vector.load %arg9[%c0_30, %c0_31] : memref<1x768xf32, #tpu.memory_space<vmem>>, vector<1x768xf32>
    %62 = vector.broadcast %61 : vector<1x768xf32> to vector<16x768xf32>
    %63 = arith.addf %60, %62 : vector<16x768xf32>
    %c0_32 = arith.constant 0 : index
    %c0_33 = arith.constant 0 : index
    %64 = vector.load %arg10[%c0_32, %c0_33] : memref<16x768xf32, #tpu.memory_space<vmem>>, vector<16x768xf32>
    tpu.vector_store %arg10[%c0_32, %c0_33], %63 {strides = array<i32>} : memref<16x768xf32, #tpu.memory_space<vmem>>, vector<16x768xf32>,
    return
  }
  func.func @transform_0(%arg0: i32) -> (i32, i32) {
    %c0_i32 = arith.constant 0 : i32
    %c0_i32_0 = arith.constant 0 : i32
    return %arg0, %c0_i32 : i32, i32
  }
  func.func @transform_1(%arg0: i32) -> (i32, i32) {
    %c0_i32 = arith.constant 0 : i32
    %c0_i32_0 = arith.constant 0 : i32
    %c0_i32_1 = arith.constant 0 : i32
    return %c0_i32, %c0_i32_0 : i32, i32
  }
  func.func @transform_2(%arg0: i32) -> (i32, i32) {
    %c0_i32 = arith.constant 0 : i32
    %c0_i32_0 = arith.constant 0 : i32
    %c0_i32_1 = arith.constant 0 : i32
    return %c0_i32, %c0_i32_0 : i32, i32
  }
  func.func @transform_3(%arg0: i32) -> (i32, i32) {
    %c0_i32 = arith.constant 0 : i32
    %c0_i32_0 = arith.constant 0 : i32
    %c0_i32_1 = arith.constant 0 : i32
    return %c0_i32, %c0_i32_0 : i32, i32
  }
  func.func @transform_4(%arg0: i32) -> (i32, i32) {
    %c0_i32 = arith.constant 0 : i32
    %c0_i32_0 = arith.constant 0 : i32
    %c0_i32_1 = arith.constant 0 : i32
    return %c0_i32, %c0_i32_0 : i32, i32
  }
  func.func @transform_5(%arg0: i32) -> (i32, i32) {
    %c0_i32 = arith.constant 0 : i32
    %c0_i32_0 = arith.constant 0 : i32
    %c0_i32_1 = arith.constant 0 : i32
    return %c0_i32, %c0_i32_0 : i32, i32
  }
  func.func @transform_6(%arg0: i32) -> (i32, i32) {
    %c0_i32 = arith.constant 0 : i32
    %c0_i32_0 = arith.constant 0 : i32
    %c0_i32_1 = arith.constant 0 : i32
    return %c0_i32, %c0_i32_0 : i32, i32
  }
  func.func @transform_7(%arg0: i32) -> (i32, i32) {
    %c0_i32 = arith.constant 0 : i32
    %c0_i32_0 = arith.constant 0 : i32
    %c0_i32_1 = arith.constant 0 : i32
    return %c0_i32, %c0_i32_0 : i32, i32
  }
  func.func @transform_8(%arg0: i32) -> (i32, i32) {
    %c0_i32 = arith.constant 0 : i32
    %c0_i32_0 = arith.constant 0 : i32
    %c0_i32_1 = arith.constant 0 : i32
    return %c0_i32, %c0_i32_0 : i32, i32
  }
  func.func @transform_9(%arg0: i32) -> (i32, i32) {
    %c0_i32 = arith.constant 0 : i32
    %c0_i32_0 = arith.constant 0 : i32
    return %arg0, %c0_i32 : i32, i32
  }
}

</mosaic_0001>

<llo_original>
// kernel: mlp_forward.1
$region0: #{mlp_forward.1}
  #allocation0 [shape = 'u32[]', space=smem, size = 0x4, offset = 0x4, fixed_abs, tag = 'smem constant byte address 0x4 - core index']
  #allocation1 [shape = 'u32[144,128]{1,0:T(1,128)}', space=vmem, size = 0x12000, scoped, tag = 'internal scratch']
  %s0 = inlined_call_operand.hbm [shape: f32[16,768], index: 0, kind: input, shape index: {}]
  %s1 = inlined_call_operand.hbm [shape: bf16[768,768], index: 1, kind: input, shape index: {}]
  %s2 = inlined_call_operand.hbm [shape: f32[1,768], index: 2, kind: input, shape index: {}]
  %s3 = inlined_call_operand.hbm [shape: bf16[768,768], index: 3, kind: input, shape index: {}]
  %s4 = inlined_call_operand.hbm [shape: f32[1,768], index: 4, kind: input, shape index: {}]
  %s5 = inlined_call_operand.hbm [shape: bf16[768,768], index: 5, kind: input, shape index: {}]
  %s6 = inlined_call_operand.hbm [shape: f32[1,768], index: 6, kind: input, shape index: {}]
  %s7 = inlined_call_operand.hbm [shape: bf16[768,768], index: 7, kind: input, shape index: {}]
  %s8 = inlined_call_operand.hbm [shape: f32[1,768], index: 8, kind: input, shape index: {}]
  %s9 = inlined_call_operand.hbm [shape: f32[16,768], index: 9, kind: output, shape index: {}]
  %s10 = sld [smem:[#allocation0]]
  $region82: #{mlp_forward.1} parent=0
    _
  %s12 = ssub.s32 1, %s10
  %s13 = scalar_select 0, %s12, %s10
  $region1: #{mlp_forward.1} parent=0
    #allocation2 [shape = 'u8[49152]{0}', space=vmem, size = 0xc000, scoped, tag = 'input window, operand 0, single buffered']
    #allocation3 [shape = 's32[1]{0}', space=sflag, size = 0x4, scoped, tag = 'scoped memory for mlp_forward.1']
    #allocation4 [shape = 's32[1]{0}', space=sflag, size = 0x4, scoped, tag = 'scoped memory for mlp_forward.1']
    #allocation5 [shape = 'u8[1179648]{0}', space=vmem, size = 0x120000, scoped, tag = 'input window, operand 1, single buffered']
    #allocation6 [shape = 's32[1]{0}', space=sflag, size = 0x4, scoped, tag = 'scoped memory for mlp_forward.1']
    #allocation7 [shape = 'u8[3072]{0}', space=vmem, size = 0xc00, scoped, tag = 'input window, operand 2, single buffered']
    #allocation8 [shape = 'u8[1179648]{0}', space=vmem, size = 0x120000, scoped, tag = 'input window, operand 3, single buffered']
    #allocation9 [shape = 's32[1]{0}', space=sflag, size = 0x4, scoped, tag = 'scoped memory for mlp_forward.1']
    #allocation10 [shape = 'u8[3072]{0}', space=vmem, size = 0xc00, scoped, tag = 'input window, operand 4, single buffered']
    #allocation11 [shape = 'u8[1179648]{0}', space=vmem, size = 0x120000, scoped, tag = 'input window, operand 5, single buffered']
    #allocation12 [shape = 's32[1]{0}', space=sflag, size = 0x4, scoped, tag = 'scoped memory for mlp_forward.1']
    #allocation13 [shape = 'u8[3072]{0}', space=vmem, size = 0xc00, scoped, tag = 'input window, operand 6, single buffered']
    #allocation14 [shape = 'u8[1179648]{0}', space=vmem, size = 0x120000, scoped, tag = 'input window, operand 7, single buffered']
    #allocation15 [shape = 's32[1]{0}', space=sflag, size = 0x4, scoped, tag = 'scoped memory for mlp_forward.1']
    #allocation16 [shape = 'u8[3072]{0}', space=vmem, size = 0xc00, scoped, tag = 'input window, operand 8, single buffered']
    #allocation17 [shape = 'u8[49152]{0}', space=vmem, size = 0xc000, scoped, tag = 'output window, operand 0, single buffered']
    %14 = vsyncpa [#allocation3], 0
    %15 = vsyncpa [#allocation6], 0
    %16 = vsyncpa [#allocation9], 0
    %17 = vsyncpa [#allocation12], 0
    %18 = vsyncpa [#allocation15], 0
    %19 = vsyncpa [#allocation4], 0
    // Predicated region
    $region2: #{mlp_forward.1} parent=1 // pred_check
      _
    $region3: #{mlp_forward.1} parent=1 // pred_check_branch
      %21 = sbr.rel (0) target = $region5
    $region4: #{mlp_forward.1} parent=1 // pred_region
      %s23 = ssub.s32 1536, 1536
      %24 = vsyncadd [#allocation3], %s23
      %s25 = sshll.u32 [#allocation2], 4
      %s26 = int_to_ptr.vmem [resolvable:$true] %s25
      %31 = dma.hbm_to_vmem [thread:$0]  %s0, 1536, %s26, [#allocation3], 768, 768, 48
    $region5: #{mlp_forward.1} parent=1 // pred_fallthru
      _
    // Predicated region
    $region6: #{mlp_forward.1} parent=1 // pred_check
      _
    $region7: #{mlp_forward.1} parent=1 // pred_check_branch
      %33 = sbr.rel (0) target = $region9
    $region8: #{mlp_forward.1} parent=1 // pred_region
      %s35 = ssub.s32 36864, 36864
      %36 = vsyncadd [#allocation6], %s35
      %s37 = sshll.u32 [#allocation5], 4
      %s38 = int_to_ptr.vmem [resolvable:$true] %s37
      %43 = dma.hbm_to_vmem [thread:$0]  %s1, 36864, %s38, [#allocation6], 384, 384, 24
    $region9: #{mlp_forward.1} parent=1 // pred_fallthru
      _
    // Predicated region
    $region10: #{mlp_forward.1} parent=1 // pred_check
      _
    $region11: #{mlp_forward.1} parent=1 // pred_check_branch
      %45 = sbr.rel (0) target = $region13
    $region12: #{mlp_forward.1} parent=1 // pred_region
      %s47 = ssub.s32 96, 96
      %48 = vsyncadd [#allocation6], %s47
      %s50 = sshll.u32 [#allocation7], 4
      %s51 = int_to_ptr.vmem [resolvable:$true] %s50
      %53 = dma.hbm_to_vmem [thread:$0]  %s2, 96, %s51, [#allocation6]
    $region13: #{mlp_forward.1} parent=1 // pred_fallthru
      _
    // Predicated region
    $region14: #{mlp_forward.1} parent=1 // pred_check
      _
    $region15: #{mlp_forward.1} parent=1 // pred_check_branch
      %55 = sbr.rel (0) target = $region17
    $region16: #{mlp_forward.1} parent=1 // pred_region
      %s57 = ssub.s32 36864, 36864
      %58 = vsyncadd [#allocation9], %s57
      %s59 = sshll.u32 [#allocation8], 4
      %s60 = int_to_ptr.vmem [resolvable:$true] %s59
      %65 = dma.hbm_to_vmem [thread:$0]  %s3, 36864, %s60, [#allocation9], 384, 384, 24
    $region17: #{mlp_forward.1} parent=1 // pred_fallthru
      _
    // Predicated region
    $region18: #{mlp_forward.1} parent=1 // pred_check
      _
    $region19: #{mlp_forward.1} parent=1 // pred_check_branch
      %67 = sbr.rel (0) target = $region21
    $region20: #{mlp_forward.1} parent=1 // pred_region
      %s69 = ssub.s32 96, 96
      %70 = vsyncadd [#allocation9], %s69
      %s72 = sshll.u32 [#allocation10], 4
      %s73 = int_to_ptr.vmem [resolvable:$true] %s72
      %75 = dma.hbm_to_vmem [thread:$0]  %s4, 96, %s73, [#allocation9]
    $region21: #{mlp_forward.1} parent=1 // pred_fallthru
      _
    // Predicated region
    $region22: #{mlp_forward.1} parent=1 // pred_check
      _
    $region23: #{mlp_forward.1} parent=1 // pred_check_branch
      %77 = sbr.rel (0) target = $region25
    $region24: #{mlp_forward.1} parent=1 // pred_region
      %s79 = ssub.s32 36864, 36864
      %80 = vsyncadd [#allocation12], %s79
      %s81 = sshll.u32 [#allocation11], 4
      %s82 = int_to_ptr.vmem [resolvable:$true] %s81
      %87 = dma.hbm_to_vmem [thread:$0]  %s5, 36864, %s82, [#allocation12], 384, 384, 24
    $region25: #{mlp_forward.1} parent=1 // pred_fallthru
      _
    // Predicated region
    $region26: #{mlp_forward.1} parent=1 // pred_check
      _
    $region27: #{mlp_forward.1} parent=1 // pred_check_branch
      %89 = sbr.rel (0) target = $region29
    $region28: #{mlp_forward.1} parent=1 // pred_region
      %s91 = ssub.s32 96, 96
      %92 = vsyncadd [#allocation12], %s91
      %s94 = sshll.u32 [#allocation13], 4
      %s95 = int_to_ptr.vmem [resolvable:$true] %s94
      %97 = dma.hbm_to_vmem [thread:$0]  %s6, 96, %s95, [#allocation12]
    $region29: #{mlp_forward.1} parent=1 // pred_fallthru
      _
    // Predicated region
    $region30: #{mlp_forward.1} parent=1 // pred_check
      _
    $region31: #{mlp_forward.1} parent=1 // pred_check_branch
      %99 = sbr.rel (0) target = $region33
    $region32: #{mlp_forward.1} parent=1 // pred_region
      %s101 = ssub.s32 36864, 36864
      %102 = vsyncadd [#allocation15], %s101
      %s103 = sshll.u32 [#allocation14], 4
      %s104 = int_to_ptr.vmem [resolvable:$true] %s103
      %109 = dma.hbm_to_vmem [thread:$0]  %s7, 36864, %s104, [#allocation15], 384, 384, 24
    $region33: #{mlp_forward.1} parent=1 // pred_fallthru
      _
    // Predicated region
    $region34: #{mlp_forward.1} parent=1 // pred_check
      _
    $region35: #{mlp_forward.1} parent=1 // pred_check_branch
      %111 = sbr.rel (0) target = $region37
    $region36: #{mlp_forward.1} parent=1 // pred_region
      %s113 = ssub.s32 96, 96
      %114 = vsyncadd [#allocation15], %s113
      %s116 = sshll.u32 [#allocation16], 4
      %s117 = int_to_ptr.vmem [resolvable:$true] %s116
      %119 = dma.hbm_to_vmem [thread:$0]  %s8, 96, %s117, [#allocation15]
    $region37: #{mlp_forward.1} parent=1 // pred_fallthru
      _
    // Predicated region
    $region38: #{mlp_forward.1} parent=1 // pred_check
      _
    $region39: #{mlp_forward.1} parent=1 // pred_check_branch
      %121 = sbr.rel (0) target = $region41
    $region40: #{mlp_forward.1} parent=1 // pred_region
      %122 = dma.done [#allocation3], 1536
    $region41: #{mlp_forward.1} parent=1 // pred_fallthru
      _
    // Predicated region
    $region42: #{mlp_forward.1} parent=1 // pred_check
      _
    $region43: #{mlp_forward.1} parent=1 // pred_check_branch
      %124 = sbr.rel (0) target = $region45
    $region44: #{mlp_forward.1} parent=1 // pred_region
      %125 = dma.done [#allocation6], 36864
    $region45: #{mlp_forward.1} parent=1 // pred_fallthru
      _
    // Predicated region
    $region46: #{mlp_forward.1} parent=1 // pred_check
      _
    $region47: #{mlp_forward.1} parent=1 // pred_check_branch
      %127 = sbr.rel (0) target = $region49
    $region48: #{mlp_forward.1} parent=1 // pred_region
      %128 = dma.done [#allocation6], 96
    $region49: #{mlp_forward.1} parent=1 // pred_fallthru
      _
    // Predicated region
    $region50: #{mlp_forward.1} parent=1 // pred_check
      _
    $region51: #{mlp_forward.1} parent=1 // pred_check_branch
      %130 = sbr.rel (0) target = $region53
    $region52: #{mlp_forward.1} parent=1 // pred_region
      %131 = dma.done [#allocation9], 36864
    $region53: #{mlp_forward.1} parent=1 // pred_fallthru
      _
    // Predicated region
    $region54: #{mlp_forward.1} parent=1 // pred_check
      _
    $region55: #{mlp_forward.1} parent=1 // pred_check_branch
      %133 = sbr.rel (0) target = $region57
    $region56: #{mlp_forward.1} parent=1 // pred_region
      %134 = dma.done [#allocation9], 96
    $region57: #{mlp_forward.1} parent=1 // pred_fallthru
      _
    // Predicated region
    $region58: #{mlp_forward.1} parent=1 // pred_check
      _
    $region59: #{mlp_forward.1} parent=1 // pred_check_branch
      %136 = sbr.rel (0) target = $region61
    $region60: #{mlp_forward.1} parent=1 // pred_region
      %137 = dma.done [#allocation12], 36864
    $region61: #{mlp_forward.1} parent=1 // pred_fallthru
      _
    // Predicated region
    $region62: #{mlp_forward.1} parent=1 // pred_check
      _
    $region63: #{mlp_forward.1} parent=1 // pred_check_branch
      %139 = sbr.rel (0) target = $region65
    $region64: #{mlp_forward.1} parent=1 // pred_region
      %140 = dma.done [#allocation12], 96
    $region65: #{mlp_forward.1} parent=1 // pred_fallthru
      _
    // Predicated region
    $region66: #{mlp_forward.1} parent=1 // pred_check
      _
    $region67: #{mlp_forward.1} parent=1 // pred_check_branch
      %142 = sbr.rel (0) target = $region69
    $region68: #{mlp_forward.1} parent=1 // pred_region
      %143 = dma.done [#allocation15], 36864
    $region69: #{mlp_forward.1} parent=1 // pred_fallthru
      _
    // Predicated region
    $region70: #{mlp_forward.1} parent=1 // pred_check
      _
    $region71: #{mlp_forward.1} parent=1 // pred_check_branch
      %145 = sbr.rel (0) target = $region73
    $region72: #{mlp_forward.1} parent=1 // pred_region
      %146 = dma.done [#allocation15], 96
    $region73: #{mlp_forward.1} parent=1 // pred_fallthru
      _
    %v147 = vld [vmem:[#allocation2] sm:$0xff]
    %v148 = vld [vmem:[#allocation2 + $0x8] sm:$0xff]
    %v149 = vld [vmem:[#allocation2 + $0x10] sm:$0xff]
    %v150 = vld [vmem:[#allocation2 + $0x18] sm:$0xff]
    %v151 = vld [vmem:[#allocation2 + $0x20] sm:$0xff]
    %v152 = vld [vmem:[#allocation2 + $0x28] sm:$0xff]
    %v153 = vld [vmem:[#allocation2 + $0x30] sm:$0xff]
    %v154 = vld [vmem:[#allocation2 + $0x38] sm:$0xff]
    %v155 = vld [vmem:[#allocation2 + $0x40] sm:$0xff]
    %v156 = vld [vmem:[#allocation2 + $0x48] sm:$0xff]
    %v157 = vld [vmem:[#allocation2 + $0x50] sm:$0xff]
    %v158 = vld [vmem:[#allocation2 + $0x58] sm:$0xff]
    %v159 = vpack.c.bf16 %v153, %v147
    %v160 = vpack.c.bf16 %v154, %v148
    %v161 = vpack.c.bf16 %v155, %v149
    %v162 = vpack.c.bf16 %v156, %v150
    %v163 = vpack.c.bf16 %v157, %v151
    %v164 = vpack.c.bf16 %v158, %v152
    %v165 = vld [vmem:[#allocation5] sm:$0xff]
    %v166 = vld [vmem:[#allocation5 + $0x8] sm:$0xff]
    %v167 = vld [vmem:[#allocation5 + $0x10] sm:$0xff]
    %v168 = vld [vmem:[#allocation5 + $0x18] sm:$0xff]
    %v169 = vld [vmem:[#allocation5 + $0x20] sm:$0xff]
    %v170 = vld [vmem:[#allocation5 + $0x28] sm:$0xff]
    %v171 = vld [vmem:[#allocation5 + $0x30] sm:$0xff]
    %v172 = vld [vmem:[#allocation5 + $0x38] sm:$0xff]
    %v173 = vld [vmem:[#allocation5 + $0x40] sm:$0xff]
    %v174 = vld [vmem:[#allocation5 + $0x48] sm:$0xff]
    %v175 = vld [vmem:[#allocation5 + $0x50] sm:$0xff]
    %v176 = vld [vmem:[#allocation5 + $0x58] sm:$0xff]
    %v177 = vld [vmem:[#allocation5 + $0x60] sm:$0xff]
    %v178 = vld [vmem:[#allocation5 + $0x68] sm:$0xff]
    %v179 = vld [vmem:[#allocation5 + $0x70] sm:$0xff]
    %v180 = vld [vmem:[#allocation5 + $0x78] sm:$0xff]
    %v181 = vld [vmem:[#allocation5 + $0x80] sm:$0xff]
    %v182 = vld [vmem:[#allocation5 + $0x88] sm:$0xff]
    %v183 = vld [vmem:[#allocation5 + $0x90] sm:$0xff]
    %v184 = vld [vmem:[#allocation5 + $0x98] sm:$0xff]
    %v185 = vld [vmem:[#allocation5 + $0xa0] sm:$0xff]
    %v186 = vld [vmem:[#allocation5 + $0xa8] sm:$0xff]
    %v187 = vld [vmem:[#allocation5 + $0xb0] sm:$0xff]
    %v188 = vld [vmem:[#allocation5 + $0xb8] sm:$0xff]
    %v189 = vld [vmem:[#allocation5 + $0xc0] sm:$0xff]
    %v190 = vld [vmem:[#allocation5 + $0xc8] sm:$0xff]
    %v191 = vld [vmem:[#allocation5 + $0xd0] sm:$0xff]
    %v192 = vld [vmem:[#allocation5 + $0xd8] sm:$0xff]
    %v193 = vld [vmem:[#allocation5 + $0xe0] sm:$0xff]
    %v194 = vld [vmem:[#allocation5 + $0xe8] sm:$0xff]
    %v195 = vld [vmem:[#allocation5 + $0xf0] sm:$0xff]
    %v196 = vld [vmem:[#allocation5 + $0xf8] sm:$0xff]
    %v197 = vld [vmem:[#allocation5 + $0x100] sm:$0xff]
    %v198 = vld [vmem:[#allocation5 + $0x108] sm:$0xff]
    %v199 = vld [vmem:[#allocation5 + $0x110] sm:$0xff]
    %v200 = vld [vmem:[#allocation5 + $0x118] sm:$0xff]
    %v201 = vld [vmem:[#allocation5 + $0x120] sm:$0xff]
    %v202 = vld [vmem:[#allocation5 + $0x128] sm:$0xff]
    %v203 = vld [vmem:[#allocation5 + $0x130] sm:$0xff]
    %v204 = vld [vmem:[#allocation5 + $0x138] sm:$0xff]
    %v205 = vld [vmem:[#allocation5 + $0x140] sm:$0xff]
    %v206 = vld [vmem:[#allocation5 + $0x148] sm:$0xff]
    %v207 = vld [vmem:[#allocation5 + $0x150] sm:$0xff]
    %v208 = vld [vmem:[#allocation5 + $0x158] sm:$0xff]
    %v209 = vld [vmem:[#allocation5 + $0x160] sm:$0xff]
    %v210 = vld [vmem:[#allocation5 + $0x168] sm:$0xff]
    %v211 = vld [vmem:[#allocation5 + $0x170] sm:$0xff]
    %v212 = vld [vmem:[#allocation5 + $0x178] sm:$0xff]
    %v213 = vld [vmem:[#allocation5 + $0x180] sm:$0xff]
    %v214 = vld [vmem:[#allocation5 + $0x188] sm:$0xff]
    %v215 = vld [vmem:[#allocation5 + $0x190] sm:$0xff]
    %v216 = vld [vmem:[#allocation5 + $0x198] sm:$0xff]
    %v217 = vld [vmem:[#allocation5 + $0x1a0] sm:$0xff]
    %v218 = vld [vmem:[#allocation5 + $0x1a8] sm:$0xff]
    %v219 = vld [vmem:[#allocation5 + $0x1b0] sm:$0xff]
    %v220 = vld [vmem:[#allocation5 + $0x1b8] sm:$0xff]
    %v221 = vld [vmem:[#allocation5 + $0x1c0] sm:$0xff]
    %v222 = vld [vmem:[#allocation5 + $0x1c8] sm:$0xff]
    %v223 = vld [vmem:[#allocation5 + $0x1d0] sm:$0xff]
    %v224 = vld [vmem:[#allocation5 + $0x1d8] sm:$0xff]
    %v225 = vld [vmem:[#allocation5 + $0x1e0] sm:$0xff]
    %v226 = vld [vmem:[#allocation5 + $0x1e8] sm:$0xff]
    %v227 = vld [vmem:[#allocation5 + $0x1f0] sm:$0xff]
    %v228 = vld [vmem:[#allocation5 + $0x1f8] sm:$0xff]
    %v229 = vld [vmem:[#allocation5 + $0x200] sm:$0xff]
    %v230 = vld [vmem:[#allocation5 + $0x208] sm:$0xff]
    %v231 = vld [vmem:[#allocation5 + $0x210] sm:$0xff]
    %v232 = vld [vmem:[#allocation5 + $0x218] sm:$0xff]
    %v233 = vld [vmem:[#allocation5 + $0x220] sm:$0xff]
    %v234 = vld [vmem:[#allocation5 + $0x228] sm:$0xff]
    %v235 = vld [vmem:[#allocation5 + $0x230] sm:$0xff]
    %v236 = vld [vmem:[#allocation5 + $0x238] sm:$0xff]
    %v237 = vld [vmem:[#allocation5 + $0x240] sm:$0xff]
    %v238 = vld [vmem:[#allocation5 + $0x248] sm:$0xff]
    %v239 = vld [vmem:[#allocation5 + $0x250] sm:$0xff]
    %v240 = vld [vmem:[#allocation5 + $0x258] sm:$0xff]
    %v241 = vld [vmem:[#allocation5 + $0x260] sm:$0xff]
    %v242 = vld [vmem:[#allocation5 + $0x268] sm:$0xff]
    %v243 = vld [vmem:[#allocation5 + $0x270] sm:$0xff]
    %v244 = vld [vmem:[#allocation5 + $0x278] sm:$0xff]
    %v245 = vld [vmem:[#allocation5 + $0x280] sm:$0xff]
    %v246 = vld [vmem:[#allocation5 + $0x288] sm:$0xff]
    %v247 = vld [vmem:[#allocation5 + $0x290] sm:$0xff]
    %v248 = vld [vmem:[#allocation5 + $0x298] sm:$0xff]
    %v249 = vld [vmem:[#allocation5 + $0x2a0] sm:$0xff]
    %v250 = vld [vmem:[#allocation5 + $0x2a8] sm:$0xff]
    %v251 = vld [vmem:[#allocation5 + $0x2b0] sm:$0xff]
    %v252 = vld [vmem:[#allocation5 + $0x2b8] sm:$0xff]
    %v253 = vld [vmem:[#allocation5 + $0x2c0] sm:$0xff]
    %v254 = vld [vmem:[#allocation5 + $0x2c8] sm:$0xff]
    %v255 = vld [vmem:[#allocation5 + $0x2d0] sm:$0xff]
    %v256 = vld [vmem:[#allocation5 + $0x2d8] sm:$0xff]
    %v257 = vld [vmem:[#allocation5 + $0x2e0] sm:$0xff]
    %v258 = vld [vmem:[#allocation5 + $0x2e8] sm:$0xff]
    %v259 = vld [vmem:[#allocation5 + $0x2f0] sm:$0xff]
    %v260 = vld [vmem:[#allocation5 + $0x2f8] sm:$0xff]
    %v261 = vld [vmem:[#allocation5 + $0x300] sm:$0xff]
    %v262 = vld [vmem:[#allocation5 + $0x308] sm:$0xff]
    %v263 = vld [vmem:[#allocation5 + $0x310] sm:$0xff]
    %v264 = vld [vmem:[#allocation5 + $0x318] sm:$0xff]
    %v265 = vld [vmem:[#allocation5 + $0x320] sm:$0xff]
    %v266 = vld [vmem:[#allocation5 + $0x328] sm:$0xff]
    %v267 = vld [vmem:[#allocation5 + $0x330] sm:$0xff]
    %v268 = vld [vmem:[#allocation5 + $0x338] sm:$0xff]
    %v269 = vld [vmem:[#allocation5 + $0x340] sm:$0xff]
    %v270 = vld [vmem:[#allocation5 + $0x348] sm:$0xff]
    %v271 = vld [vmem:[#allocation5 + $0x350] sm:$0xff]
    %v272 = vld [vmem:[#allocation5 + $0x358] sm:$0xff]
    %v273 = vld [vmem:[#allocation5 + $0x360] sm:$0xff]
    %v274 = vld [vmem:[#allocation5 + $0x368] sm:$0xff]
    %v275 = vld [vmem:[#allocation5 + $0x370] sm:$0xff]
    %v276 = vld [vmem:[#allocation5 + $0x378] sm:$0xff]
    %v277 = vld [vmem:[#allocation5 + $0x380] sm:$0xff]
    %v278 = vld [vmem:[#allocation5 + $0x388] sm:$0xff]
    %v279 = vld [vmem:[#allocation5 + $0x390] sm:$0xff]
    %v280 = vld [vmem:[#allocation5 + $0x398] sm:$0xff]
    %v281 = vld [vmem:[#allocation5 + $0x3a0] sm:$0xff]
    %v282 = vld [vmem:[#allocation5 + $0x3a8] sm:$0xff]
    %v283 = vld [vmem:[#allocation5 + $0x3b0] sm:$0xff]
    %v284 = vld [vmem:[#allocation5 + $0x3b8] sm:$0xff]
    %v285 = vld [vmem:[#allocation5 + $0x3c0] sm:$0xff]
    %v286 = vld [vmem:[#allocation5 + $0x3c8] sm:$0xff]
    %v287 = vld [vmem:[#allocation5 + $0x3d0] sm:$0xff]
    %v288 = vld [vmem:[#allocation5 + $0x3d8] sm:$0xff]
    %v289 = vld [vmem:[#allocation5 + $0x3e0] sm:$0xff]
    %v290 = vld [vmem:[#allocation5 + $0x3e8] sm:$0xff]
    %v291 = vld [vmem:[#allocation5 + $0x3f0] sm:$0xff]
    %v292 = vld [vmem:[#allocation5 + $0x3f8] sm:$0xff]
    %v293 = vld [vmem:[#allocation5 + $0x400] sm:$0xff]
    %v294 = vld [vmem:[#allocation5 + $0x408] sm:$0xff]
    %v295 = vld [vmem:[#allocation5 + $0x410] sm:$0xff]
    %v296 = vld [vmem:[#allocation5 + $0x418] sm:$0xff]
    %v297 = vld [vmem:[#allocation5 + $0x420] sm:$0xff]
    %v298 = vld [vmem:[#allocation5 + $0x428] sm:$0xff]
    %v299 = vld [vmem:[#allocation5 + $0x430] sm:$0xff]
    %v300 = vld [vmem:[#allocation5 + $0x438] sm:$0xff]
    %v301 = vld [vmem:[#allocation5 + $0x440] sm:$0xff]
    %v302 = vld [vmem:[#allocation5 + $0x448] sm:$0xff]
    %v303 = vld [vmem:[#allocation5 + $0x450] sm:$0xff]
    %v304 = vld [vmem:[#allocation5 + $0x458] sm:$0xff]
    %v305 = vld [vmem:[#allocation5 + $0x460] sm:$0xff]
    %v306 = vld [vmem:[#allocation5 + $0x468] sm:$0xff]
    %v307 = vld [vmem:[#allocation5 + $0x470] sm:$0xff]
    %v308 = vld [vmem:[#allocation5 + $0x478] sm:$0xff]
    %v309 = vld [vmem:[#allocation5 + $0x480] sm:$0xff]
    %v310 = vld [vmem:[#allocation5 + $0x488] sm:$0xff]
    %v311 = vld [vmem:[#allocation5 + $0x490] sm:$0xff]
    %v312 = vld [vmem:[#allocation5 + $0x498] sm:$0xff]
    %v313 = vld [vmem:[#allocation5 + $0x4a0] sm:$0xff]
    %v314 = vld [vmem:[#allocation5 + $0x4a8] sm:$0xff]
    %v315 = vld [vmem:[#allocation5 + $0x4b0] sm:$0xff]
    %v316 = vld [vmem:[#allocation5 + $0x4b8] sm:$0xff]
    %v317 = vld [vmem:[#allocation5 + $0x4c0] sm:$0xff]
    %v318 = vld [vmem:[#allocation5 + $0x4c8] sm:$0xff]
    %v319 = vld [vmem:[#allocation5 + $0x4d0] sm:$0xff]
    %v320 = vld [vmem:[#allocation5 + $0x4d8] sm:$0xff]
    %v321 = vld [vmem:[#allocation5 + $0x4e0] sm:$0xff]
    %v322 = vld [vmem:[#allocation5 + $0x4e8] sm:$0xff]
    %v323 = vld [vmem:[#allocation5 + $0x4f0] sm:$0xff]
    %v324 = vld [vmem:[#allocation5 + $0x4f8] sm:$0xff]
    %v325 = vld [vmem:[#allocation5 + $0x500] sm:$0xff]
    %v326 = vld [vmem:[#allocation5 + $0x508] sm:$0xff]
    %v327 = vld [vmem:[#allocation5 + $0x510] sm:$0xff]
    %v328 = vld [vmem:[#allocation5 + $0x518] sm:$0xff]
    %v329 = vld [vmem:[#allocation5 + $0x520] sm:$0xff]
    %v330 = vld [vmem:[#allocation5 + $0x528] sm:$0xff]
    %v331 = vld [vmem:[#allocation5 + $0x530] sm:$0xff]
    %v332 = vld [vmem:[#allocation5 + $0x538] sm:$0xff]
    %v333 = vld [vmem:[#allocation5 + $0x540] sm:$0xff]
    %v334 = vld [vmem:[#allocation5 + $0x548] sm:$0xff]
    %v335 = vld [vmem:[#allocation5 + $0x550] sm:$0xff]
    %v336 = vld [vmem:[#allocation5 + $0x558] sm:$0xff]
    %v337 = vld [vmem:[#allocation5 + $0x560] sm:$0xff]
    %v338 = vld [vmem:[#allocation5 + $0x568] sm:$0xff]
    %v339 = vld [vmem:[#allocation5 + $0x570] sm:$0xff]
    %v340 = vld [vmem:[#allocation5 + $0x578] sm:$0xff]
    %v341 = vld [vmem:[#allocation5 + $0x580] sm:$0xff]
    %v342 = vld [vmem:[#allocation5 + $0x588] sm:$0xff]
    %v343 = vld [vmem:[#allocation5 + $0x590] sm:$0xff]
    %v344 = vld [vmem:[#allocation5 + $0x598] sm:$0xff]
    %v345 = vld [vmem:[#allocation5 + $0x5a0] sm:$0xff]
    %v346 = vld [vmem:[#allocation5 + $0x5a8] sm:$0xff]
    %v347 = vld [vmem:[#allocation5 + $0x5b0] sm:$0xff]
    %v348 = vld [vmem:[#allocation5 + $0x5b8] sm:$0xff]
    %v349 = vld [vmem:[#allocation5 + $0x5c0] sm:$0xff]
    %v350 = vld [vmem:[#allocation5 + $0x5c8] sm:$0xff]
    %v351 = vld [vmem:[#allocation5 + $0x5d0] sm:$0xff]
    %v352 = vld [vmem:[#allocation5 + $0x5d8] sm:$0xff]
    %v353 = vld [vmem:[#allocation5 + $0x5e0] sm:$0xff]
    %v354 = vld [vmem:[#allocation5 + $0x5e8] sm:$0xff]
    %v355 = vld [vmem:[#allocation5 + $0x5f0] sm:$0xff]
    %v356 = vld [vmem:[#allocation5 + $0x5f8] sm:$0xff]
    %v357 = vld [vmem:[#allocation5 + $0x600] sm:$0xff]
    %v358 = vld [vmem:[#allocation5 + $0x608] sm:$0xff]
    %v359 = vld [vmem:[#allocation5 + $0x610] sm:$0xff]
    %v360 = vld [vmem:[#allocation5 + $0x618] sm:$0xff]
    %v361 = vld [vmem:[#allocation5 + $0x620] sm:$0xff]
    %v362 = vld [vmem:[#allocation5 + $0x628] sm:$0xff]
    %v363 = vld [vmem:[#allocation5 + $0x630] sm:$0xff]
    %v364 = vld [vmem:[#allocation5 + $0x638] sm:$0xff]
    %v365 = vld [vmem:[#allocation5 + $0x640] sm:$0xff]
    %v366 = vld [vmem:[#allocation5 + $0x648] sm:$0xff]
    %v367 = vld [vmem:[#allocation5 + $0x650] sm:$0xff]
    %v368 = vld [vmem:[#allocation5 + $0x658] sm:$0xff]
    %v369 = vld [vmem:[#allocation5 + $0x660] sm:$0xff]
    %v370 = vld [vmem:[#allocation5 + $0x668] sm:$0xff]
    %v371 = vld [vmem:[#allocation5 + $0x670] sm:$0xff]
    %v372 = vld [vmem:[#allocation5 + $0x678] sm:$0xff]
    %v373 = vld [vmem:[#allocation5 + $0x680] sm:$0xff]
    %v374 = vld [vmem:[#allocation5 + $0x688] sm:$0xff]
    %v375 = vld [vmem:[#allocation5 + $0x690] sm:$0xff]
    %v376 = vld [vmem:[#allocation5 + $0x698] sm:$0xff]
    %v377 = vld [vmem:[#allocation5 + $0x6a0] sm:$0xff]
    %v378 = vld [vmem:[#allocation5 + $0x6a8] sm:$0xff]
    %v379 = vld [vmem:[#allocation5 + $0x6b0] sm:$0xff]
    %v380 = vld [vmem:[#allocation5 + $0x6b8] sm:$0xff]
    %v381 = vld [vmem:[#allocation5 + $0x6c0] sm:$0xff]
    %v382 = vld [vmem:[#allocation5 + $0x6c8] sm:$0xff]
    %v383 = vld [vmem:[#allocation5 + $0x6d0] sm:$0xff]
    %v384 = vld [vmem:[#allocation5 + $0x6d8] sm:$0xff]
    %v385 = vld [vmem:[#allocation5 + $0x6e0] sm:$0xff]
    %v386 = vld [vmem:[#allocation5 + $0x6e8] sm:$0xff]
    %v387 = vld [vmem:[#allocation5 + $0x6f0] sm:$0xff]
    %v388 = vld [vmem:[#allocation5 + $0x6f8] sm:$0xff]
    %v389 = vld [vmem:[#allocation5 + $0x700] sm:$0xff]
    %v390 = vld [vmem:[#allocation5 + $0x708] sm:$0xff]
    %v391 = vld [vmem:[#allocation5 + $0x710] sm:$0xff]
    %v392 = vld [vmem:[#allocation5 + $0x718] sm:$0xff]
    %v393 = vld [vmem:[#allocation5 + $0x720] sm:$0xff]
    %v394 = vld [vmem:[#allocation5 + $0x728] sm:$0xff]
    %v395 = vld [vmem:[#allocation5 + $0x730] sm:$0xff]
    %v396 = vld [vmem:[#allocation5 + $0x738] sm:$0xff]
    %v397 = vld [vmem:[#allocation5 + $0x740] sm:$0xff]
    %v398 = vld [vmem:[#allocation5 + $0x748] sm:$0xff]
    %v399 = vld [vmem:[#allocation5 + $0x750] sm:$0xff]
    %v400 = vld [vmem:[#allocation5 + $0x758] sm:$0xff]
    %v401 = vld [vmem:[#allocation5 + $0x760] sm:$0xff]
    %v402 = vld [vmem:[#allocation5 + $0x768] sm:$0xff]
    %v403 = vld [vmem:[#allocation5 + $0x770] sm:$0xff]
    %v404 = vld [vmem:[#allocation5 + $0x778] sm:$0xff]
    %v405 = vld [vmem:[#allocation5 + $0x780] sm:$0xff]
    %v406 = vld [vmem:[#allocation5 + $0x788] sm:$0xff]
    %v407 = vld [vmem:[#allocation5 + $0x790] sm:$0xff]
    %v408 = vld [vmem:[#allocation5 + $0x798] sm:$0xff]
    %v409 = vld [vmem:[#allocation5 + $0x7a0] sm:$0xff]
    %v410 = vld [vmem:[#allocation5 + $0x7a8] sm:$0xff]
    %v411 = vld [vmem:[#allocation5 + $0x7b0] sm:$0xff]
    %v412 = vld [vmem:[#allocation5 + $0x7b8] sm:$0xff]
    %v413 = vld [vmem:[#allocation5 + $0x7c0] sm:$0xff]
    %v414 = vld [vmem:[#allocation5 + $0x7c8] sm:$0xff]
    %v415 = vld [vmem:[#allocation5 + $0x7d0] sm:$0xff]
    %v416 = vld [vmem:[#allocation5 + $0x7d8] sm:$0xff]
    %v417 = vld [vmem:[#allocation5 + $0x7e0] sm:$0xff]
    %v418 = vld [vmem:[#allocation5 + $0x7e8] sm:$0xff]
    %v419 = vld [vmem:[#allocation5 + $0x7f0] sm:$0xff]
    %v420 = vld [vmem:[#allocation5 + $0x7f8] sm:$0xff]
    %v421 = vld [vmem:[#allocation5 + $0x800] sm:$0xff]
    %v422 = vld [vmem:[#allocation5 + $0x808] sm:$0xff]
    %v423 = vld [vmem:[#allocation5 + $0x810] sm:$0xff]
    %v424 = vld [vmem:[#allocation5 + $0x818] sm:$0xff]
    %v425 = vld [vmem:[#allocation5 + $0x820] sm:$0xff]
    %v426 = vld [vmem:[#allocation5 + $0x828] sm:$0xff]
    %v427 = vld [vmem:[#allocation5 + $0x830] sm:$0xff]
    %v428 = vld [vmem:[#allocation5 + $0x838] sm:$0xff]
    %v429 = vld [vmem:[#allocation5 + $0x840] sm:$0xff]
    %v430 = vld [vmem:[#allocation5 + $0x848] sm:$0xff]
    %v431 = vld [vmem:[#allocation5 + $0x850] sm:$0xff]
    %v432 = vld [vmem:[#allocation5 + $0x858] sm:$0xff]
    %v433 = vld [vmem:[#allocation5 + $0x860] sm:$0xff]
    %v434 = vld [vmem:[#allocation5 + $0x868] sm:$0xff]
    %v435 = vld [vmem:[#allocation5 + $0x870] sm:$0xff]
    %v436 = vld [vmem:[#allocation5 + $0x878] sm:$0xff]
    %v437 = vld [vmem:[#allocation5 + $0x880] sm:$0xff]
    %v438 = vld [vmem:[#allocation5 + $0x888] sm:$0xff]
    %v439 = vld [vmem:[#allocation5 + $0x890] sm:$0xff]
    %v440 = vld [vmem:[#allocation5 + $0x898] sm:$0xff]
    %v441 = vld [vmem:[#allocation5 + $0x8a0] sm:$0xff]
    %v442 = vld [vmem:[#allocation5 + $0x8a8] sm:$0xff]
    %v443 = vld [vmem:[#allocation5 + $0x8b0] sm:$0xff]
    %v444 = vld [vmem:[#allocation5 + $0x8b8] sm:$0xff]
    %v445 = vld [vmem:[#allocation5 + $0x8c0] sm:$0xff]
    %v446 = vld [vmem:[#allocation5 + $0x8c8] sm:$0xff]
    %v447 = vld [vmem:[#allocation5 + $0x8d0] sm:$0xff]
    %v448 = vld [vmem:[#allocation5 + $0x8d8] sm:$0xff]
    %v449 = vld [vmem:[#allocation5 + $0x8e0] sm:$0xff]
    %v450 = vld [vmem:[#allocation5 + $0x8e8] sm:$0xff]
    %v451 = vld [vmem:[#allocation5 + $0x8f0] sm:$0xff]
    %v452 = vld [vmem:[#allocation5 + $0x8f8] sm:$0xff]
    %v453 = vld [vmem:[#allocation7] sm:$0x3f]
    %v455 = vlaneseq
    %v456 = vshrl.u32 %v455, 7
    %v457 = vsub.s32 0, %v456
    %v458 = vrot.slane %v453, %v457
    %v459 = vlaneseq
    %v460 = vshrl.u32 %v459, 7
    %v461 = vsub.s32 1, %v460
    %v462 = vrot.slane %v453, %v461
    %v463 = vlaneseq
    %v464 = vshrl.u32 %v463, 7
    %v465 = vsub.s32 2, %v464
    %v466 = vrot.slane %v453, %v465
    %v467 = vlaneseq
    %v468 = vshrl.u32 %v467, 7
    %v469 = vsub.s32 3, %v468
    %v470 = vrot.slane %v453, %v469
    %v471 = vlaneseq
    %v472 = vshrl.u32 %v471, 7
    %v473 = vsub.s32 4, %v472
    %v474 = vrot.slane %v453, %v473
    %v475 = vlaneseq
    %v476 = vshrl.u32 %v475, 7
    %v477 = vsub.s32 5, %v476
    %v478 = vrot.slane %v453, %v477
    %v773 = vunpack.c.l.b16 %v165
    %v774 = vunpack.c.h.b16 %v165
    %v775 = vunpack.c.l.b16 %v166
    %v776 = vunpack.c.h.b16 %v166
    %v777 = vunpack.c.l.b16 %v167
    %v778 = vunpack.c.h.b16 %v167
    %v779 = vunpack.c.l.b16 %v168
    %v780 = vunpack.c.h.b16 %v168
    %v781 = vunpack.c.l.b16 %v169
    %v782 = vunpack.c.h.b16 %v169
    %v783 = vunpack.c.l.b16 %v170
    %v784 = vunpack.c.h.b16 %v170
    %v785 = vunpack.c.l.b16 %v171
    %v786 = vunpack.c.h.b16 %v171
    %v787 = vunpack.c.l.b16 %v172
    %v788 = vunpack.c.h.b16 %v172
    %v789 = vunpack.c.l.b16 %v173
    %v790 = vunpack.c.h.b16 %v173
    %v791 = vunpack.c.l.b16 %v174
    %v792 = vunpack.c.h.b16 %v174
    %v793 = vunpack.c.l.b16 %v175
    %v794 = vunpack.c.h.b16 %v175
    %v795 = vunpack.c.l.b16 %v176
    %v796 = vunpack.c.h.b16 %v176
    %v797 = vunpack.c.l.b16 %v177
    %v798 = vunpack.c.h.b16 %v177
    %v799 = vunpack.c.l.b16 %v178
    %v800 = vunpack.c.h.b16 %v178
    %v801 = vunpack.c.l.b16 %v179
    %v802 = vunpack.c.h.b16 %v179
    %v803 = vunpack.c.l.b16 %v180
    %v804 = vunpack.c.h.b16 %v180
    %v805 = vunpack.c.l.b16 %v181
    %v806 = vunpack.c.h.b16 %v181
    %v807 = vunpack.c.l.b16 %v182
    %v808 = vunpack.c.h.b16 %v182
    %v809 = vunpack.c.l.b16 %v183
    %v810 = vunpack.c.h.b16 %v183
    %v811 = vunpack.c.l.b16 %v184
    %v812 = vunpack.c.h.b16 %v184
    %v813 = vunpack.c.l.b16 %v185
    %v814 = vunpack.c.h.b16 %v185
    %v815 = vunpack.c.l.b16 %v186
    %v816 = vunpack.c.h.b16 %v186
    %v817 = vunpack.c.l.b16 %v187
    %v818 = vunpack.c.h.b16 %v187
    %v819 = vunpack.c.l.b16 %v188
    %v820 = vunpack.c.h.b16 %v188
    %v821 = vunpack.c.l.b16 %v189
    %v822 = vunpack.c.h.b16 %v189
    %v823 = vunpack.c.l.b16 %v190
    %v824 = vunpack.c.h.b16 %v190
    %v825 = vunpack.c.l.b16 %v191
    %v826 = vunpack.c.h.b16 %v191
    %v827 = vunpack.c.l.b16 %v192
    %v828 = vunpack.c.h.b16 %v192
    %v829 = vunpack.c.l.b16 %v193
    %v830 = vunpack.c.h.b16 %v193
    %v831 = vunpack.c.l.b16 %v194
    %v832 = vunpack.c.h.b16 %v194
    %v833 = vunpack.c.l.b16 %v195
    %v834 = vunpack.c.h.b16 %v195
    %v835 = vunpack.c.l.b16 %v196
    %v836 = vunpack.c.h.b16 %v196
    %v837 = vunpack.c.l.b16 %v197
    %v838 = vunpack.c.h.b16 %v197
    %v839 = vunpack.c.l.b16 %v198
    %v840 = vunpack.c.h.b16 %v198
    %v841 = vunpack.c.l.b16 %v199
    %v842 = vunpack.c.h.b16 %v199
    %v843 = vunpack.c.l.b16 %v200
    %v844 = vunpack.c.h.b16 %v200
    %v845 = vunpack.c.l.b16 %v201
    %v846 = vunpack.c.h.b16 %v201
    %v847 = vunpack.c.l.b16 %v202
    %v848 = vunpack.c.h.b16 %v202
    %v849 = vunpack.c.l.b16 %v203
    %v850 = vunpack.c.h.b16 %v203
    %v851 = vunpack.c.l.b16 %v204
    %v852 = vunpack.c.h.b16 %v204
    %v853 = vunpack.c.l.b16 %v205
    %v854 = vunpack.c.h.b16 %v205
    %v855 = vunpack.c.l.b16 %v206
    %v856 = vunpack.c.h.b16 %v206
    %v857 = vunpack.c.l.b16 %v207
    %v858 = vunpack.c.h.b16 %v207
    %v859 = vunpack.c.l.b16 %v208
    %v860 = vunpack.c.h.b16 %v208
    %v861 = vunpack.c.l.b16 %v209
    %v862 = vunpack.c.h.b16 %v209
    %v863 = vunpack.c.l.b16 %v210
    %v864 = vunpack.c.h.b16 %v210
    %v865 = vunpack.c.l.b16 %v211
    %v866 = vunpack.c.h.b16 %v211
    %v867 = vunpack.c.l.b16 %v212
    %v868 = vunpack.c.h.b16 %v212
    %v869 = vunpack.c.l.b16 %v213
    %v870 = vunpack.c.h.b16 %v213
    %v871 = vunpack.c.l.b16 %v214
    %v872 = vunpack.c.h.b16 %v214
    %v873 = vunpack.c.l.b16 %v215
    %v874 = vunpack.c.h.b16 %v215
    %v875 = vunpack.c.l.b16 %v216
    %v876 = vunpack.c.h.b16 %v216
    %v877 = vunpack.c.l.b16 %v217
    %v878 = vunpack.c.h.b16 %v217
    %v879 = vunpack.c.l.b16 %v218
    %v880 = vunpack.c.h.b16 %v218
    %v881 = vunpack.c.l.b16 %v219
    %v882 = vunpack.c.h.b16 %v219
    %v883 = vunpack.c.l.b16 %v220
    %v884 = vunpack.c.h.b16 %v220
    %v885 = vunpack.c.l.b16 %v221
    %v886 = vunpack.c.h.b16 %v221
    %v887 = vunpack.c.l.b16 %v222
    %v888 = vunpack.c.h.b16 %v222
    %v889 = vunpack.c.l.b16 %v223
    %v890 = vunpack.c.h.b16 %v223
    %v891 = vunpack.c.l.b16 %v224
    %v892 = vunpack.c.h.b16 %v224
    %v893 = vunpack.c.l.b16 %v225
    %v894 = vunpack.c.h.b16 %v225
    %v895 = vunpack.c.l.b16 %v226
    %v896 = vunpack.c.h.b16 %v226
    %v897 = vunpack.c.l.b16 %v227
    %v898 = vunpack.c.h.b16 %v227
    %v899 = vunpack.c.l.b16 %v228
    %v900 = vunpack.c.h.b16 %v228
    %v901 = vunpack.c.l.b16 %v229
    %v902 = vunpack.c.h.b16 %v229
    %v903 = vunpack.c.l.b16 %v230
    %v904 = vunpack.c.h.b16 %v230
    %v905 = vunpack.c.l.b16 %v231
    %v906 = vunpack.c.h.b16 %v231
    %v907 = vunpack.c.l.b16 %v232
    %v908 = vunpack.c.h.b16 %v232
    %v909 = vunpack.c.l.b16 %v233
    %v910 = vunpack.c.h.b16 %v233
    %v911 = vunpack.c.l.b16 %v234
    %v912 = vunpack.c.h.b16 %v234
    %v913 = vunpack.c.l.b16 %v235
    %v914 = vunpack.c.h.b16 %v235
    %v915 = vunpack.c.l.b16 %v236
    %v916 = vunpack.c.h.b16 %v236
    %v917 = vunpack.c.l.b16 %v237
    %v918 = vunpack.c.h.b16 %v237
    %v919 = vunpack.c.l.b16 %v238
    %v920 = vunpack.c.h.b16 %v238
    %v921 = vunpack.c.l.b16 %v239
    %v922 = vunpack.c.h.b16 %v239
    %v923 = vunpack.c.l.b16 %v240
    %v924 = vunpack.c.h.b16 %v240
    %v925 = vunpack.c.l.b16 %v241
    %v926 = vunpack.c.h.b16 %v241
    %v927 = vunpack.c.l.b16 %v242
    %v928 = vunpack.c.h.b16 %v242
    %v929 = vunpack.c.l.b16 %v243
    %v930 = vunpack.c.h.b16 %v243
    %v931 = vunpack.c.l.b16 %v244
    %v932 = vunpack.c.h.b16 %v244
    %v933 = vunpack.c.l.b16 %v245
    %v934 = vunpack.c.h.b16 %v245
    %v935 = vunpack.c.l.b16 %v246
    %v936 = vunpack.c.h.b16 %v246
    %v937 = vunpack.c.l.b16 %v247
    %v938 = vunpack.c.h.b16 %v247
    %v939 = vunpack.c.l.b16 %v248
    %v940 = vunpack.c.h.b16 %v248
    %v941 = vunpack.c.l.b16 %v249
    %v942 = vunpack.c.h.b16 %v249
    %v943 = vunpack.c.l.b16 %v250
    %v944 = vunpack.c.h.b16 %v250
    %v945 = vunpack.c.l.b16 %v251
    %v946 = vunpack.c.h.b16 %v251
    %v947 = vunpack.c.l.b16 %v252
    %v948 = vunpack.c.h.b16 %v252
    %v949 = vunpack.c.l.b16 %v253
    %v950 = vunpack.c.h.b16 %v253
    %v951 = vunpack.c.l.b16 %v254
    %v952 = vunpack.c.h.b16 %v254
    %v953 = vunpack.c.l.b16 %v255
    %v954 = vunpack.c.h.b16 %v255
    %v955 = vunpack.c.l.b16 %v256
    %v956 = vunpack.c.h.b16 %v256
    %v957 = vunpack.c.l.b16 %v257
    %v958 = vunpack.c.h.b16 %v257
    %v959 = vunpack.c.l.b16 %v258
    %v960 = vunpack.c.h.b16 %v258
    %v961 = vunpack.c.l.b16 %v259
    %v962 = vunpack.c.h.b16 %v259
    %v963 = vunpack.c.l.b16 %v260
    %v964 = vunpack.c.h.b16 %v260
    %v965 = vunpack.c.l.b16 %v261
    %v966 = vunpack.c.h.b16 %v261
    %v967 = vunpack.c.l.b16 %v262
    %v968 = vunpack.c.h.b16 %v262
    %v969 = vunpack.c.l.b16 %v263
    %v970 = vunpack.c.h.b16 %v263
    %v971 = vunpack.c.l.b16 %v264
    %v972 = vunpack.c.h.b16 %v264
    %v973 = vunpack.c.l.b16 %v265
    %v974 = vunpack.c.h.b16 %v265
    %v975 = vunpack.c.l.b16 %v266
    %v976 = vunpack.c.h.b16 %v266
    %v977 = vunpack.c.l.b16 %v267
    %v978 = vunpack.c.h.b16 %v267
    %v979 = vunpack.c.l.b16 %v268
    %v980 = vunpack.c.h.b16 %v268
    %v981 = vunpack.c.l.b16 %v269
    %v982 = vunpack.c.h.b16 %v269
    %v983 = vunpack.c.l.b16 %v270
    %v984 = vunpack.c.h.b16 %v270
    %v985 = vunpack.c.l.b16 %v271
    %v986 = vunpack.c.h.b16 %v271
    %v987 = vunpack.c.l.b16 %v272
    %v988 = vunpack.c.h.b16 %v272
    %v989 = vunpack.c.l.b16 %v273
    %v990 = vunpack.c.h.b16 %v273
    %v991 = vunpack.c.l.b16 %v274
    %v992 = vunpack.c.h.b16 %v274
    %v993 = vunpack.c.l.b16 %v275
    %v994 = vunpack.c.h.b16 %v275
    %v995 = vunpack.c.l.b16 %v276
    %v996 = vunpack.c.h.b16 %v276
    %v997 = vunpack.c.l.b16 %v277
    %v998 = vunpack.c.h.b16 %v277
    %v999 = vunpack.c.l.b16 %v278
    %v1000 = vunpack.c.h.b16 %v278
    %v1001 = vunpack.c.l.b16 %v279
    %v1002 = vunpack.c.h.b16 %v279
    %v1003 = vunpack.c.l.b16 %v280
    %v1004 = vunpack.c.h.b16 %v280
    %v1005 = vunpack.c.l.b16 %v281
    %v1006 = vunpack.c.h.b16 %v281
    %v1007 = vunpack.c.l.b16 %v282
    %v1008 = vunpack.c.h.b16 %v282
    %v1009 = vunpack.c.l.b16 %v283
    %v1010 = vunpack.c.h.b16 %v283
    %v1011 = vunpack.c.l.b16 %v284
    %v1012 = vunpack.c.h.b16 %v284
    %v1013 = vunpack.c.l.b16 %v285
    %v1014 = vunpack.c.h.b16 %v285
    %v1015 = vunpack.c.l.b16 %v286
    %v1016 = vunpack.c.h.b16 %v286
    %v1017 = vunpack.c.l.b16 %v287
    %v1018 = vunpack.c.h.b16 %v287
    %v1019 = vunpack.c.l.b16 %v288
    %v1020 = vunpack.c.h.b16 %v288
    %v1021 = vunpack.c.l.b16 %v289
    %v1022 = vunpack.c.h.b16 %v289
    %v1023 = vunpack.c.l.b16 %v290
    %v1024 = vunpack.c.h.b16 %v290
    %v1025 = vunpack.c.l.b16 %v291
    %v1026 = vunpack.c.h.b16 %v291
    %v1027 = vunpack.c.l.b16 %v292
    %v1028 = vunpack.c.h.b16 %v292
    %v1029 = vunpack.c.l.b16 %v293
    %v1030 = vunpack.c.h.b16 %v293
    %v1031 = vunpack.c.l.b16 %v294
    %v1032 = vunpack.c.h.b16 %v294
    %v1033 = vunpack.c.l.b16 %v295
    %v1034 = vunpack.c.h.b16 %v295
    %v1035 = vunpack.c.l.b16 %v296
    %v1036 = vunpack.c.h.b16 %v296
    %v1037 = vunpack.c.l.b16 %v297
    %v1038 = vunpack.c.h.b16 %v297
    %v1039 = vunpack.c.l.b16 %v298
    %v1040 = vunpack.c.h.b16 %v298
    %v1041 = vunpack.c.l.b16 %v299
    %v1042 = vunpack.c.h.b16 %v299
    %v1043 = vunpack.c.l.b16 %v300
    %v1044 = vunpack.c.h.b16 %v300
    %v1045 = vunpack.c.l.b16 %v301
    %v1046 = vunpack.c.h.b16 %v301
    %v1047 = vunpack.c.l.b16 %v302
    %v1048 = vunpack.c.h.b16 %v302
    %v1049 = vunpack.c.l.b16 %v303
    %v1050 = vunpack.c.h.b16 %v303
    %v1051 = vunpack.c.l.b16 %v304
    %v1052 = vunpack.c.h.b16 %v304
    %v1053 = vunpack.c.l.b16 %v305
    %v1054 = vunpack.c.h.b16 %v305
    %v1055 = vunpack.c.l.b16 %v306
    %v1056 = vunpack.c.h.b16 %v306
    %v1057 = vunpack.c.l.b16 %v307
    %v1058 = vunpack.c.h.b16 %v307
    %v1059 = vunpack.c.l.b16 %v308
    %v1060 = vunpack.c.h.b16 %v308
    %v1061 = vunpack.c.l.b16 %v309
    %v1062 = vunpack.c.h.b16 %v309
    %v1063 = vunpack.c.l.b16 %v310
    %v1064 = vunpack.c.h.b16 %v310
    %v1065 = vunpack.c.l.b16 %v311
    %v1066 = vunpack.c.h.b16 %v311
    %v1067 = vunpack.c.l.b16 %v312
    %v1068 = vunpack.c.h.b16 %v312
    %v1069 = vunpack.c.l.b16 %v313
    %v1070 = vunpack.c.h.b16 %v313
    %v1071 = vunpack.c.l.b16 %v314
    %v1072 = vunpack.c.h.b16 %v314
    %v1073 = vunpack.c.l.b16 %v315
    %v1074 = vunpack.c.h.b16 %v315
    %v1075 = vunpack.c.l.b16 %v316
    %v1076 = vunpack.c.h.b16 %v316
    %v1077 = vunpack.c.l.b16 %v317
    %v1078 = vunpack.c.h.b16 %v317
    %v1079 = vunpack.c.l.b16 %v318
    %v1080 = vunpack.c.h.b16 %v318
    %v1081 = vunpack.c.l.b16 %v319
    %v1082 = vunpack.c.h.b16 %v319
    %v1083 = vunpack.c.l.b16 %v320
    %v1084 = vunpack.c.h.b16 %v320
    %v1085 = vunpack.c.l.b16 %v321
    %v1086 = vunpack.c.h.b16 %v321
    %v1087 = vunpack.c.l.b16 %v322
    %v1088 = vunpack.c.h.b16 %v322
    %v1089 = vunpack.c.l.b16 %v323
    %v1090 = vunpack.c.h.b16 %v323
    %v1091 = vunpack.c.l.b16 %v324
    %v1092 = vunpack.c.h.b16 %v324
    %v1093 = vunpack.c.l.b16 %v325
    %v1094 = vunpack.c.h.b16 %v325
    %v1095 = vunpack.c.l.b16 %v326
    %v1096 = vunpack.c.h.b16 %v326
    %v1097 = vunpack.c.l.b16 %v327
    %v1098 = vunpack.c.h.b16 %v327
    %v1099 = vunpack.c.l.b16 %v328
    %v1100 = vunpack.c.h.b16 %v328
    %v1101 = vunpack.c.l.b16 %v329
    %v1102 = vunpack.c.h.b16 %v329
    %v1103 = vunpack.c.l.b16 %v330
    %v1104 = vunpack.c.h.b16 %v330
    %v1105 = vunpack.c.l.b16 %v331
    %v1106 = vunpack.c.h.b16 %v331
    %v1107 = vunpack.c.l.b16 %v332
    %v1108 = vunpack.c.h.b16 %v332
    %v1109 = vunpack.c.l.b16 %v333
    %v1110 = vunpack.c.h.b16 %v333
    %v1111 = vunpack.c.l.b16 %v334
    %v1112 = vunpack.c.h.b16 %v334
    %v1113 = vunpack.c.l.b16 %v335
    %v1114 = vunpack.c.h.b16 %v335
    %v1115 = vunpack.c.l.b16 %v336
    %v1116 = vunpack.c.h.b16 %v336
    %v1117 = vunpack.c.l.b16 %v337
    %v1118 = vunpack.c.h.b16 %v337
    %v1119 = vunpack.c.l.b16 %v338
    %v1120 = vunpack.c.h.b16 %v338
    %v1121 = vunpack.c.l.b16 %v339
    %v1122 = vunpack.c.h.b16 %v339
    %v1123 = vunpack.c.l.b16 %v340
    %v1124 = vunpack.c.h.b16 %v340
    %v1125 = vunpack.c.l.b16 %v341
    %v1126 = vunpack.c.h.b16 %v341
    %v1127 = vunpack.c.l.b16 %v342
    %v1128 = vunpack.c.h.b16 %v342
    %v1129 = vunpack.c.l.b16 %v343
    %v1130 = vunpack.c.h.b16 %v343
    %v1131 = vunpack.c.l.b16 %v344
    %v1132 = vunpack.c.h.b16 %v344
    %v1133 = vunpack.c.l.b16 %v345
    %v1134 = vunpack.c.h.b16 %v345
    %v1135 = vunpack.c.l.b16 %v346
    %v1136 = vunpack.c.h.b16 %v346
    %v1137 = vunpack.c.l.b16 %v347
    %v1138 = vunpack.c.h.b16 %v347
    %v1139 = vunpack.c.l.b16 %v348
    %v1140 = vunpack.c.h.b16 %v348
    %v1141 = vunpack.c.l.b16 %v349
    %v1142 = vunpack.c.h.b16 %v349
    %v1143 = vunpack.c.l.b16 %v350
    %v1144 = vunpack.c.h.b16 %v350
    %v1145 = vunpack.c.l.b16 %v351
    %v1146 = vunpack.c.h.b16 %v351
    %v1147 = vunpack.c.l.b16 %v352
    %v1148 = vunpack.c.h.b16 %v352
    %v1149 = vunpack.c.l.b16 %v353
    %v1150 = vunpack.c.h.b16 %v353
    %v1151 = vunpack.c.l.b16 %v354
    %v1152 = vunpack.c.h.b16 %v354
    %v1153 = vunpack.c.l.b16 %v355
    %v1154 = vunpack.c.h.b16 %v355
    %v1155 = vunpack.c.l.b16 %v356
    %v1156 = vunpack.c.h.b16 %v356
    %v1157 = vunpack.c.l.b16 %v357
    %v1158 = vunpack.c.h.b16 %v357
    %v1159 = vunpack.c.l.b16 %v358
    %v1160 = vunpack.c.h.b16 %v358
    %v1161 = vunpack.c.l.b16 %v359
    %v1162 = vunpack.c.h.b16 %v359
    %v1163 = vunpack.c.l.b16 %v360
    %v1164 = vunpack.c.h.b16 %v360
    %v1165 = vunpack.c.l.b16 %v361
    %v1166 = vunpack.c.h.b16 %v361
    %v1167 = vunpack.c.l.b16 %v362
    %v1168 = vunpack.c.h.b16 %v362
    %v1169 = vunpack.c.l.b16 %v363
    %v1170 = vunpack.c.h.b16 %v363
    %v1171 = vunpack.c.l.b16 %v364
    %v1172 = vunpack.c.h.b16 %v364
    %v1173 = vunpack.c.l.b16 %v365
    %v1174 = vunpack.c.h.b16 %v365
    %v1175 = vunpack.c.l.b16 %v366
    %v1176 = vunpack.c.h.b16 %v366
    %v1177 = vunpack.c.l.b16 %v367
    %v1178 = vunpack.c.h.b16 %v367
    %v1179 = vunpack.c.l.b16 %v368
    %v1180 = vunpack.c.h.b16 %v368
    %v1181 = vunpack.c.l.b16 %v369
    %v1182 = vunpack.c.h.b16 %v369
    %v1183 = vunpack.c.l.b16 %v370
    %v1184 = vunpack.c.h.b16 %v370
    %v1185 = vunpack.c.l.b16 %v371
    %v1186 = vunpack.c.h.b16 %v371
    %v1187 = vunpack.c.l.b16 %v372
    %v1188 = vunpack.c.h.b16 %v372
    %v1189 = vunpack.c.l.b16 %v373
    %v1190 = vunpack.c.h.b16 %v373
    %v1191 = vunpack.c.l.b16 %v374
    %v1192 = vunpack.c.h.b16 %v374
    %v1193 = vunpack.c.l.b16 %v375
    %v1194 = vunpack.c.h.b16 %v375
    %v1195 = vunpack.c.l.b16 %v376
    %v1196 = vunpack.c.h.b16 %v376
    %v1197 = vunpack.c.l.b16 %v377
    %v1198 = vunpack.c.h.b16 %v377
    %v1199 = vunpack.c.l.b16 %v378
    %v1200 = vunpack.c.h.b16 %v378
    %v1201 = vunpack.c.l.b16 %v379
    %v1202 = vunpack.c.h.b16 %v379
    %v1203 = vunpack.c.l.b16 %v380
    %v1204 = vunpack.c.h.b16 %v380
    %v1205 = vunpack.c.l.b16 %v381
    %v1206 = vunpack.c.h.b16 %v381
    %v1207 = vunpack.c.l.b16 %v382
    %v1208 = vunpack.c.h.b16 %v382
    %v1209 = vunpack.c.l.b16 %v383
    %v1210 = vunpack.c.h.b16 %v383
    %v1211 = vunpack.c.l.b16 %v384
    %v1212 = vunpack.c.h.b16 %v384
    %v1213 = vunpack.c.l.b16 %v385
    %v1214 = vunpack.c.h.b16 %v385
    %v1215 = vunpack.c.l.b16 %v386
    %v1216 = vunpack.c.h.b16 %v386
    %v1217 = vunpack.c.l.b16 %v387
    %v1218 = vunpack.c.h.b16 %v387
    %v1219 = vunpack.c.l.b16 %v388
    %v1220 = vunpack.c.h.b16 %v388
    %v1221 = vunpack.c.l.b16 %v389
    %v1222 = vunpack.c.h.b16 %v389
    %v1223 = vunpack.c.l.b16 %v390
    %v1224 = vunpack.c.h.b16 %v390
    %v1225 = vunpack.c.l.b16 %v391
    %v1226 = vunpack.c.h.b16 %v391
    %v1227 = vunpack.c.l.b16 %v392
    %v1228 = vunpack.c.h.b16 %v392
    %v1229 = vunpack.c.l.b16 %v393
    %v1230 = vunpack.c.h.b16 %v393
    %v1231 = vunpack.c.l.b16 %v394
    %v1232 = vunpack.c.h.b16 %v394
    %v1233 = vunpack.c.l.b16 %v395
    %v1234 = vunpack.c.h.b16 %v395
    %v1235 = vunpack.c.l.b16 %v396
    %v1236 = vunpack.c.h.b16 %v396
    %v1237 = vunpack.c.l.b16 %v397
    %v1238 = vunpack.c.h.b16 %v397
    %v1239 = vunpack.c.l.b16 %v398
    %v1240 = vunpack.c.h.b16 %v398
    %v1241 = vunpack.c.l.b16 %v399
    %v1242 = vunpack.c.h.b16 %v399
    %v1243 = vunpack.c.l.b16 %v400
    %v1244 = vunpack.c.h.b16 %v400
    %v1245 = vunpack.c.l.b16 %v401
    %v1246 = vunpack.c.h.b16 %v401
    %v1247 = vunpack.c.l.b16 %v402
    %v1248 = vunpack.c.h.b16 %v402
    %v1249 = vunpack.c.l.b16 %v403
    %v1250 = vunpack.c.h.b16 %v403
    %v1251 = vunpack.c.l.b16 %v404
    %v1252 = vunpack.c.h.b16 %v404
    %v1253 = vunpack.c.l.b16 %v405
    %v1254 = vunpack.c.h.b16 %v405
    %v1255 = vunpack.c.l.b16 %v406
    %v1256 = vunpack.c.h.b16 %v406
    %v1257 = vunpack.c.l.b16 %v407
    %v1258 = vunpack.c.h.b16 %v407
    %v1259 = vunpack.c.l.b16 %v408
    %v1260 = vunpack.c.h.b16 %v408
    %v1261 = vunpack.c.l.b16 %v409
    %v1262 = vunpack.c.h.b16 %v409
    %v1263 = vunpack.c.l.b16 %v410
    %v1264 = vunpack.c.h.b16 %v410
    %v1265 = vunpack.c.l.b16 %v411
    %v1266 = vunpack.c.h.b16 %v411
    %v1267 = vunpack.c.l.b16 %v412
    %v1268 = vunpack.c.h.b16 %v412
    %v1269 = vunpack.c.l.b16 %v413
    %v1270 = vunpack.c.h.b16 %v413
    %v1271 = vunpack.c.l.b16 %v414
    %v1272 = vunpack.c.h.b16 %v414
    %v1273 = vunpack.c.l.b16 %v415
    %v1274 = vunpack.c.h.b16 %v415
    %v1275 = vunpack.c.l.b16 %v416
    %v1276 = vunpack.c.h.b16 %v416
    %v1277 = vunpack.c.l.b16 %v417
    %v1278 = vunpack.c.h.b16 %v417
    %v1279 = vunpack.c.l.b16 %v418
    %v1280 = vunpack.c.h.b16 %v418
    %v1281 = vunpack.c.l.b16 %v419
    %v1282 = vunpack.c.h.b16 %v419
    %v1283 = vunpack.c.l.b16 %v420
    %v1284 = vunpack.c.h.b16 %v420
    %v1285 = vunpack.c.l.b16 %v421
    %v1286 = vunpack.c.h.b16 %v421
    %v1287 = vunpack.c.l.b16 %v422
    %v1288 = vunpack.c.h.b16 %v422
    %v1289 = vunpack.c.l.b16 %v423
    %v1290 = vunpack.c.h.b16 %v423
    %v1291 = vunpack.c.l.b16 %v424
    %v1292 = vunpack.c.h.b16 %v424
    %v1293 = vunpack.c.l.b16 %v425
    %v1294 = vunpack.c.h.b16 %v425
    %v1295 = vunpack.c.l.b16 %v426
    %v1296 = vunpack.c.h.b16 %v426
    %v1297 = vunpack.c.l.b16 %v427
    %v1298 = vunpack.c.h.b16 %v427
    %v1299 = vunpack.c.l.b16 %v428
    %v1300 = vunpack.c.h.b16 %v428
    %v1301 = vunpack.c.l.b16 %v429
    %v1302 = vunpack.c.h.b16 %v429
    %v1303 = vunpack.c.l.b16 %v430
    %v1304 = vunpack.c.h.b16 %v430
    %v1305 = vunpack.c.l.b16 %v431
    %v1306 = vunpack.c.h.b16 %v431
    %v1307 = vunpack.c.l.b16 %v432
    %v1308 = vunpack.c.h.b16 %v432
    %v1309 = vunpack.c.l.b16 %v433
    %v1310 = vunpack.c.h.b16 %v433
    %v1311 = vunpack.c.l.b16 %v434
    %v1312 = vunpack.c.h.b16 %v434
    %v1313 = vunpack.c.l.b16 %v435
    %v1314 = vunpack.c.h.b16 %v435
    %v1315 = vunpack.c.l.b16 %v436
    %v1316 = vunpack.c.h.b16 %v436
    %v1317 = vunpack.c.l.b16 %v437
    %v1318 = vunpack.c.h.b16 %v437
    %v1319 = vunpack.c.l.b16 %v438
    %v1320 = vunpack.c.h.b16 %v438
    %v1321 = vunpack.c.l.b16 %v439
    %v1322 = vunpack.c.h.b16 %v439
    %v1323 = vunpack.c.l.b16 %v440
    %v1324 = vunpack.c.h.b16 %v440
    %v1325 = vunpack.c.l.b16 %v441
    %v1326 = vunpack.c.h.b16 %v441
    %v1327 = vunpack.c.l.b16 %v442
    %v1328 = vunpack.c.h.b16 %v442
    %v1329 = vunpack.c.l.b16 %v443
    %v1330 = vunpack.c.h.b16 %v443
    %v1331 = vunpack.c.l.b16 %v444
    %v1332 = vunpack.c.h.b16 %v444
    %v1333 = vunpack.c.l.b16 %v445
    %v1334 = vunpack.c.h.b16 %v445
    %v1335 = vunpack.c.l.b16 %v446
    %v1336 = vunpack.c.h.b16 %v446
    %v1337 = vunpack.c.l.b16 %v447
    %v1338 = vunpack.c.h.b16 %v447
    %v1339 = vunpack.c.l.b16 %v448
    %v1340 = vunpack.c.h.b16 %v448
    %v1341 = vunpack.c.l.b16 %v449
    %v1342 = vunpack.c.h.b16 %v449
    %v1343 = vunpack.c.l.b16 %v450
    %v1344 = vunpack.c.h.b16 %v450
    %v1345 = vunpack.c.l.b16 %v451
    %v1346 = vunpack.c.h.b16 %v451
    %v1347 = vunpack.c.l.b16 %v452
    %v1348 = vunpack.c.h.b16 %v452
    %v1349 = vpack.c.b16 %v779, %v773
    %v1350 = vpack.c.b16 %v780, %v774
    %v1351 = vpack.c.b16 %v781, %v775
    %v1352 = vpack.c.b16 %v782, %v776
    %v1353 = vpack.c.b16 %v783, %v777
    %v1354 = vpack.c.b16 %v784, %v778
    %v1355 = vpack.c.b16 %v791, %v785
    %v1356 = vpack.c.b16 %v792, %v786
    %v1357 = vpack.c.b16 %v793, %v787
    %v1358 = vpack.c.b16 %v794, %v788
    %v1359 = vpack.c.b16 %v795, %v789
    %v1360 = vpack.c.b16 %v796, %v790
    %v1361 = vpack.c.b16 %v803, %v797
    %v1362 = vpack.c.b16 %v804, %v798
    %v1363 = vpack.c.b16 %v805, %v799
    %v1364 = vpack.c.b16 %v806, %v800
    %v1365 = vpack.c.b16 %v807, %v801
    %v1366 = vpack.c.b16 %v808, %v802
    %v1367 = vpack.c.b16 %v815, %v809
    %v1368 = vpack.c.b16 %v816, %v810
    %v1369 = vpack.c.b16 %v817, %v811
    %v1370 = vpack.c.b16 %v818, %v812
    %v1371 = vpack.c.b16 %v819, %v813
    %v1372 = vpack.c.b16 %v820, %v814
    %v1373 = vpack.c.b16 %v827, %v821
    %v1374 = vpack.c.b16 %v828, %v822
    %v1375 = vpack.c.b16 %v829, %v823
    %v1376 = vpack.c.b16 %v830, %v824
    %v1377 = vpack.c.b16 %v831, %v825
    %v1378 = vpack.c.b16 %v832, %v826
    %v1379 = vpack.c.b16 %v839, %v833
    %v1380 = vpack.c.b16 %v840, %v834
    %v1381 = vpack.c.b16 %v841, %v835
    %v1382 = vpack.c.b16 %v842, %v836
    %v1383 = vpack.c.b16 %v843, %v837
    %v1384 = vpack.c.b16 %v844, %v838
    %v1385 = vpack.c.b16 %v851, %v845
    %v1386 = vpack.c.b16 %v852, %v846
    %v1387 = vpack.c.b16 %v853, %v847
    %v1388 = vpack.c.b16 %v854, %v848
    %v1389 = vpack.c.b16 %v855, %v849
    %v1390 = vpack.c.b16 %v856, %v850
    %v1391 = vpack.c.b16 %v863, %v857
    %v1392 = vpack.c.b16 %v864, %v858
    %v1393 = vpack.c.b16 %v865, %v859
    %v1394 = vpack.c.b16 %v866, %v860
    %v1395 = vpack.c.b16 %v867, %v861
    %v1396 = vpack.c.b16 %v868, %v862
    %v1397 = vpack.c.b16 %v875, %v869
    %v1398 = vpack.c.b16 %v876, %v870
    %v1399 = vpack.c.b16 %v877, %v871
    %v1400 = vpack.c.b16 %v878, %v872
    %v1401 = vpack.c.b16 %v879, %v873
    %v1402 = vpack.c.b16 %v880, %v874
    %v1403 = vpack.c.b16 %v887, %v881
    %v1404 = vpack.c.b16 %v888, %v882
    %v1405 = vpack.c.b16 %v889, %v883
    %v1406 = vpack.c.b16 %v890, %v884
    %v1407 = vpack.c.b16 %v891, %v885
    %v1408 = vpack.c.b16 %v892, %v886
    %v1409 = vpack.c.b16 %v899, %v893
    %v1410 = vpack.c.b16 %v900, %v894
    %v1411 = vpack.c.b16 %v901, %v895
    %v1412 = vpack.c.b16 %v902, %v896
    %v1413 = vpack.c.b16 %v903, %v897
    %v1414 = vpack.c.b16 %v904, %v898
    %v1415 = vpack.c.b16 %v911, %v905
    %v1416 = vpack.c.b16 %v912, %v906
    %v1417 = vpack.c.b16 %v913, %v907
    %v1418 = vpack.c.b16 %v914, %v908
    %v1419 = vpack.c.b16 %v915, %v909
    %v1420 = vpack.c.b16 %v916, %v910
    %v1421 = vpack.c.b16 %v923, %v917
    %v1422 = vpack.c.b16 %v924, %v918
    %v1423 = vpack.c.b16 %v925, %v919
    %v1424 = vpack.c.b16 %v926, %v920
    %v1425 = vpack.c.b16 %v927, %v921
    %v1426 = vpack.c.b16 %v928, %v922
    %v1427 = vpack.c.b16 %v935, %v929
    %v1428 = vpack.c.b16 %v936, %v930
    %v1429 = vpack.c.b16 %v937, %v931
    %v1430 = vpack.c.b16 %v938, %v932
    %v1431 = vpack.c.b16 %v939, %v933
    %v1432 = vpack.c.b16 %v940, %v934
    %v1433 = vpack.c.b16 %v947, %v941
    %v1434 = vpack.c.b16 %v948, %v942
    %v1435 = vpack.c.b16 %v949, %v943
    %v1436 = vpack.c.b16 %v950, %v944
    %v1437 = vpack.c.b16 %v951, %v945
    %v1438 = vpack.c.b16 %v952, %v946
    %v1439 = vpack.c.b16 %v959, %v953
    %v1440 = vpack.c.b16 %v960, %v954
    %v1441 = vpack.c.b16 %v961, %v955
    %v1442 = vpack.c.b16 %v962, %v956
    %v1443 = vpack.c.b16 %v963, %v957
    %v1444 = vpack.c.b16 %v964, %v958
    %v1445 = vpack.c.b16 %v971, %v965
    %v1446 = vpack.c.b16 %v972, %v966
    %v1447 = vpack.c.b16 %v973, %v967
    %v1448 = vpack.c.b16 %v974, %v968
    %v1449 = vpack.c.b16 %v975, %v969
    %v1450 = vpack.c.b16 %v976, %v970
    %v1451 = vpack.c.b16 %v983, %v977
    %v1452 = vpack.c.b16 %v984, %v978
    %v1453 = vpack.c.b16 %v985, %v979
    %v1454 = vpack.c.b16 %v986, %v980
    %v1455 = vpack.c.b16 %v987, %v981
    %v1456 = vpack.c.b16 %v988, %v982
    %v1457 = vpack.c.b16 %v995, %v989
    %v1458 = vpack.c.b16 %v996, %v990
    %v1459 = vpack.c.b16 %v997, %v991
    %v1460 = vpack.c.b16 %v998, %v992
    %v1461 = vpack.c.b16 %v999, %v993
    %v1462 = vpack.c.b16 %v1000, %v994
    %v1463 = vpack.c.b16 %v1007, %v1001
    %v1464 = vpack.c.b16 %v1008, %v1002
    %v1465 = vpack.c.b16 %v1009, %v1003
    %v1466 = vpack.c.b16 %v1010, %v1004
    %v1467 = vpack.c.b16 %v1011, %v1005
    %v1468 = vpack.c.b16 %v1012, %v1006
    %v1469 = vpack.c.b16 %v1019, %v1013
    %v1470 = vpack.c.b16 %v1020, %v1014
    %v1471 = vpack.c.b16 %v1021, %v1015
    %v1472 = vpack.c.b16 %v1022, %v1016
    %v1473 = vpack.c.b16 %v1023, %v1017
    %v1474 = vpack.c.b16 %v1024, %v1018
    %v1475 = vpack.c.b16 %v1031, %v1025
    %v1476 = vpack.c.b16 %v1032, %v1026
    %v1477 = vpack.c.b16 %v1033, %v1027
    %v1478 = vpack.c.b16 %v1034, %v1028
    %v1479 = vpack.c.b16 %v1035, %v1029
    %v1480 = vpack.c.b16 %v1036, %v1030
    %v1481 = vpack.c.b16 %v1043, %v1037
    %v1482 = vpack.c.b16 %v1044, %v1038
    %v1483 = vpack.c.b16 %v1045, %v1039
    %v1484 = vpack.c.b16 %v1046, %v1040
    %v1485 = vpack.c.b16 %v1047, %v1041
    %v1486 = vpack.c.b16 %v1048, %v1042
    %v1487 = vpack.c.b16 %v1055, %v1049
    %v1488 = vpack.c.b16 %v1056, %v1050
    %v1489 = vpack.c.b16 %v1057, %v1051
    %v1490 = vpack.c.b16 %v1058, %v1052
    %v1491 = vpack.c.b16 %v1059, %v1053
    %v1492 = vpack.c.b16 %v1060, %v1054
    %v1493 = vpack.c.b16 %v1067, %v1061
    %v1494 = vpack.c.b16 %v1068, %v1062
    %v1495 = vpack.c.b16 %v1069, %v1063
    %v1496 = vpack.c.b16 %v1070, %v1064
    %v1497 = vpack.c.b16 %v1071, %v1065
    %v1498 = vpack.c.b16 %v1072, %v1066
    %v1499 = vpack.c.b16 %v1079, %v1073
    %v1500 = vpack.c.b16 %v1080, %v1074
    %v1501 = vpack.c.b16 %v1081, %v1075
    %v1502 = vpack.c.b16 %v1082, %v1076
    %v1503 = vpack.c.b16 %v1083, %v1077
    %v1504 = vpack.c.b16 %v1084, %v1078
    %v1505 = vpack.c.b16 %v1091, %v1085
    %v1506 = vpack.c.b16 %v1092, %v1086
    %v1507 = vpack.c.b16 %v1093, %v1087
    %v1508 = vpack.c.b16 %v1094, %v1088
    %v1509 = vpack.c.b16 %v1095, %v1089
    %v1510 = vpack.c.b16 %v1096, %v1090
    %v1511 = vpack.c.b16 %v1103, %v1097
    %v1512 = vpack.c.b16 %v1104, %v1098
    %v1513 = vpack.c.b16 %v1105, %v1099
    %v1514 = vpack.c.b16 %v1106, %v1100
    %v1515 = vpack.c.b16 %v1107, %v1101
    %v1516 = vpack.c.b16 %v1108, %v1102
    %v1517 = vpack.c.b16 %v1115, %v1109
    %v1518 = vpack.c.b16 %v1116, %v1110
    %v1519 = vpack.c.b16 %v1117, %v1111
    %v1520 = vpack.c.b16 %v1118, %v1112
    %v1521 = vpack.c.b16 %v1119, %v1113
    %v1522 = vpack.c.b16 %v1120, %v1114
    %v1523 = vpack.c.b16 %v1127, %v1121
    %v1524 = vpack.c.b16 %v1128, %v1122
    %v1525 = vpack.c.b16 %v1129, %v1123
    %v1526 = vpack.c.b16 %v1130, %v1124
    %v1527 = vpack.c.b16 %v1131, %v1125
    %v1528 = vpack.c.b16 %v1132, %v1126
    %v1529 = vpack.c.b16 %v1139, %v1133
    %v1530 = vpack.c.b16 %v1140, %v1134
    %v1531 = vpack.c.b16 %v1141, %v1135
    %v1532 = vpack.c.b16 %v1142, %v1136
    %v1533 = vpack.c.b16 %v1143, %v1137
    %v1534 = vpack.c.b16 %v1144, %v1138
    %v1535 = vpack.c.b16 %v1151, %v1145
    %v1536 = vpack.c.b16 %v1152, %v1146
    %v1537 = vpack.c.b16 %v1153, %v1147
    %v1538 = vpack.c.b16 %v1154, %v1148
    %v1539 = vpack.c.b16 %v1155, %v1149
    %v1540 = vpack.c.b16 %v1156, %v1150
    %v1541 = vpack.c.b16 %v1163, %v1157
    %v1542 = vpack.c.b16 %v1164, %v1158
    %v1543 = vpack.c.b16 %v1165, %v1159
    %v1544 = vpack.c.b16 %v1166, %v1160
    %v1545 = vpack.c.b16 %v1167, %v1161
    %v1546 = vpack.c.b16 %v1168, %v1162
    %v1547 = vpack.c.b16 %v1175, %v1169
    %v1548 = vpack.c.b16 %v1176, %v1170
    %v1549 = vpack.c.b16 %v1177, %v1171
    %v1550 = vpack.c.b16 %v1178, %v1172
    %v1551 = vpack.c.b16 %v1179, %v1173
    %v1552 = vpack.c.b16 %v1180, %v1174
    %v1553 = vpack.c.b16 %v1187, %v1181
    %v1554 = vpack.c.b16 %v1188, %v1182
    %v1555 = vpack.c.b16 %v1189, %v1183
    %v1556 = vpack.c.b16 %v1190, %v1184
    %v1557 = vpack.c.b16 %v1191, %v1185
    %v1558 = vpack.c.b16 %v1192, %v1186
    %v1559 = vpack.c.b16 %v1199, %v1193
    %v1560 = vpack.c.b16 %v1200, %v1194
    %v1561 = vpack.c.b16 %v1201, %v1195
    %v1562 = vpack.c.b16 %v1202, %v1196
    %v1563 = vpack.c.b16 %v1203, %v1197
    %v1564 = vpack.c.b16 %v1204, %v1198
    %v1565 = vpack.c.b16 %v1211, %v1205
    %v1566 = vpack.c.b16 %v1212, %v1206
    %v1567 = vpack.c.b16 %v1213, %v1207
    %v1568 = vpack.c.b16 %v1214, %v1208
    %v1569 = vpack.c.b16 %v1215, %v1209
    %v1570 = vpack.c.b16 %v1216, %v1210
    %v1571 = vpack.c.b16 %v1223, %v1217
    %v1572 = vpack.c.b16 %v1224, %v1218
    %v1573 = vpack.c.b16 %v1225, %v1219
    %v1574 = vpack.c.b16 %v1226, %v1220
    %v1575 = vpack.c.b16 %v1227, %v1221
    %v1576 = vpack.c.b16 %v1228, %v1222
    %v1577 = vpack.c.b16 %v1235, %v1229
    %v1578 = vpack.c.b16 %v1236, %v1230
    %v1579 = vpack.c.b16 %v1237, %v1231
    %v1580 = vpack.c.b16 %v1238, %v1232
    %v1581 = vpack.c.b16 %v1239, %v1233
    %v1582 = vpack.c.b16 %v1240, %v1234
    %v1583 = vpack.c.b16 %v1247, %v1241
    %v1584 = vpack.c.b16 %v1248, %v1242
    %v1585 = vpack.c.b16 %v1249, %v1243
    %v1586 = vpack.c.b16 %v1250, %v1244
    %v1587 = vpack.c.b16 %v1251, %v1245
    %v1588 = vpack.c.b16 %v1252, %v1246
    %v1589 = vpack.c.b16 %v1259, %v1253
    %v1590 = vpack.c.b16 %v1260, %v1254
    %v1591 = vpack.c.b16 %v1261, %v1255
    %v1592 = vpack.c.b16 %v1262, %v1256
    %v1593 = vpack.c.b16 %v1263, %v1257
    %v1594 = vpack.c.b16 %v1264, %v1258
    %v1595 = vpack.c.b16 %v1271, %v1265
    %v1596 = vpack.c.b16 %v1272, %v1266
    %v1597 = vpack.c.b16 %v1273, %v1267
    %v1598 = vpack.c.b16 %v1274, %v1268
    %v1599 = vpack.c.b16 %v1275, %v1269
    %v1600 = vpack.c.b16 %v1276, %v1270
    %v1601 = vpack.c.b16 %v1283, %v1277
    %v1602 = vpack.c.b16 %v1284, %v1278
    %v1603 = vpack.c.b16 %v1285, %v1279
    %v1604 = vpack.c.b16 %v1286, %v1280
    %v1605 = vpack.c.b16 %v1287, %v1281
    %v1606 = vpack.c.b16 %v1288, %v1282
    %v1607 = vpack.c.b16 %v1295, %v1289
    %v1608 = vpack.c.b16 %v1296, %v1290
    %v1609 = vpack.c.b16 %v1297, %v1291
    %v1610 = vpack.c.b16 %v1298, %v1292
    %v1611 = vpack.c.b16 %v1299, %v1293
    %v1612 = vpack.c.b16 %v1300, %v1294
    %v1613 = vpack.c.b16 %v1307, %v1301
    %v1614 = vpack.c.b16 %v1308, %v1302
    %v1615 = vpack.c.b16 %v1309, %v1303
    %v1616 = vpack.c.b16 %v1310, %v1304
    %v1617 = vpack.c.b16 %v1311, %v1305
    %v1618 = vpack.c.b16 %v1312, %v1306
    %v1619 = vpack.c.b16 %v1319, %v1313
    %v1620 = vpack.c.b16 %v1320, %v1314
    %v1621 = vpack.c.b16 %v1321, %v1315
    %v1622 = vpack.c.b16 %v1322, %v1316
    %v1623 = vpack.c.b16 %v1323, %v1317
    %v1624 = vpack.c.b16 %v1324, %v1318
    %v1625 = vpack.c.b16 %v1331, %v1325
    %v1626 = vpack.c.b16 %v1332, %v1326
    %v1627 = vpack.c.b16 %v1333, %v1327
    %v1628 = vpack.c.b16 %v1334, %v1328
    %v1629 = vpack.c.b16 %v1335, %v1329
    %v1630 = vpack.c.b16 %v1336, %v1330
    %v1631 = vpack.c.b16 %v1343, %v1337
    %v1632 = vpack.c.b16 %v1344, %v1338
    %v1633 = vpack.c.b16 %v1345, %v1339
    %v1634 = vpack.c.b16 %v1346, %v1340
    %v1635 = vpack.c.b16 %v1347, %v1341
    %v1636 = vpack.c.b16 %v1348, %v1342
    %1925 = vmatprep.subr.bf16.mxu0 %v1350
    %1926 = vmatpush1.bf16.msra.mxu0 %v1349
    %1927 = vmatprep.subr.bf16.mxu0 %v1356
    %1928 = vmatpush1.bf16.msra.mxu0 %v1355
    %1929 = vmatprep.subr.bf16.mxu0 %v1362
    %1930 = vmatpush1.bf16.msra.mxu0 %v1361
    %1931 = vmatprep.subr.bf16.mxu0 %v1368
    %1932 = vmatpush1.bf16.msra.mxu0 %v1367
    %1933 = vmatprep.subr.bf16.mxu0 %v1374
    %1934 = vmatpush1.bf16.msra.mxu0 %v1373
    %1935 = vmatprep.subr.bf16.mxu0 %v1380
    %1936 = vmatpush1.bf16.msra.mxu0 %v1379
    %1937 = vmatprep.subr.bf16.mxu0 %v1386
    %1938 = vmatpush1.bf16.msra.mxu0 %v1385
    %1939 = vmatprep.subr.bf16.mxu0 %v1392
    %1940 = vmatpush1.bf16.msra.mxu0 %v1391
    %1941 = vmatprep.subr.bf16.mxu0 %v1398
    %1942 = vmatpush1.bf16.msra.mxu0 %v1397
    %1943 = vmatprep.subr.bf16.mxu0 %v1404
    %1944 = vmatpush1.bf16.msra.mxu0 %v1403
    %1945 = vmatprep.subr.bf16.mxu0 %v1410
    %1946 = vmatpush1.bf16.msra.mxu0 %v1409
    %1947 = vmatprep.subr.bf16.mxu0 %v1416
    %1948 = vmatpush1.bf16.msra.mxu0 %v1415
    %1949 = vmatprep.subr.bf16.mxu0 %v1422
    %1950 = vmatpush1.bf16.msra.mxu0 %v1421
    %1951 = vmatprep.subr.bf16.mxu0 %v1428
    %1952 = vmatpush1.bf16.msra.mxu0 %v1427
    %1953 = vmatprep.subr.bf16.mxu0 %v1434
    %1954 = vmatpush1.bf16.msra.mxu0 %v1433
    %1955 = vmatprep.subr.bf16.mxu0 %v1440
    %1956 = vmatpush1.bf16.msra.mxu0 %v1439
    %1957 = vmatprep.mubr.bf16.mxu0 %v160
    %1958 = vmatmul.mubr.bf16.gmra.mrb[0].mxu0 %v159
    %v1959 = vpop.f32.mrb[0].mxu0
    %v1960 = vadd.f32 %v458, %v1959
    %v1961 = vpop.f32.mrb[0].mxu0
    %v1962 = vadd.f32 %v462, %v1961
    %v1963 = vpop.f32.mrb[0].mxu0
    %v1964 = vadd.f32 %v458, %v1963
    %v1965 = vpop.f32.mrb[0].mxu0
    %v1966 = vadd.f32 %v462, %v1965
    %1967 = vdwg.mxu0
    %1968 = vmatprep.subr.bf16.mxu0 %v1446
    %1969 = vmatpush1.bf16.msra.mxu0 %v1445
    %1970 = vmatprep.subr.bf16.mxu0 %v1452
    %1971 = vmatpush1.bf16.msra.mxu0 %v1451
    %1972 = vmatprep.subr.bf16.mxu0 %v1458
    %1973 = vmatpush1.bf16.msra.mxu0 %v1457
    %1974 = vmatprep.subr.bf16.mxu0 %v1464
    %1975 = vmatpush1.bf16.msra.mxu0 %v1463
    %1976 = vmatprep.subr.bf16.mxu0 %v1470
    %1977 = vmatpush1.bf16.msra.mxu0 %v1469
    %1978 = vmatprep.subr.bf16.mxu0 %v1476
    %1979 = vmatpush1.bf16.msra.mxu0 %v1475
    %1980 = vmatprep.subr.bf16.mxu0 %v1482
    %1981 = vmatpush1.bf16.msra.mxu0 %v1481
    %1982 = vmatprep.subr.bf16.mxu0 %v1488
    %1983 = vmatpush1.bf16.msra.mxu0 %v1487
    %1984 = vmatprep.subr.bf16.mxu0 %v1494
    %1985 = vmatpush1.bf16.msra.mxu0 %v1493
    %1986 = vmatprep.subr.bf16.mxu0 %v1500
    %1987 = vmatpush1.bf16.msra.mxu0 %v1499
    %1988 = vmatprep.subr.bf16.mxu0 %v1506
    %1989 = vmatpush1.bf16.msra.mxu0 %v1505
    %1990 = vmatprep.subr.bf16.mxu0 %v1512
    %1991 = vmatpush1.bf16.msra.mxu0 %v1511
    %1992 = vmatprep.subr.bf16.mxu0 %v1518
    %1993 = vmatpush1.bf16.msra.mxu0 %v1517
    %1994 = vmatprep.subr.bf16.mxu0 %v1524
    %1995 = vmatpush1.bf16.msra.mxu0 %v1523
    %1996 = vmatprep.subr.bf16.mxu0 %v1530
    %1997 = vmatpush1.bf16.msra.mxu0 %v1529
    %1998 = vmatprep.subr.bf16.mxu0 %v1536
    %1999 = vmatpush1.bf16.msra.mxu0 %v1535
    %2000 = vmatprep.mubr.bf16.mxu0 %v162
    %2001 = vmatmul.mubr.bf16.gmra.mrb[0].mxu0 %v161
    %v2002 = vpop.f32.mrb[0].mxu0
    %v2003 = vadd.f32 %v1960, %v2002
    %v2004 = vpop.f32.mrb[0].mxu0
    %v2005 = vadd.f32 %v1962, %v2004
    %v2006 = vpop.f32.mrb[0].mxu0
    %v2007 = vadd.f32 %v1964, %v2006
    %v2008 = vpop.f32.mrb[0].mxu0
    %v2009 = vadd.f32 %v1966, %v2008
    %2010 = vdwg.mxu0
    %2011 = vmatprep.subr.bf16.mxu0 %v1542
    %2012 = vmatpush1.bf16.msra.mxu0 %v1541
    %2013 = vmatprep.subr.bf16.mxu0 %v1548
    %2014 = vmatpush1.bf16.msra.mxu0 %v1547
    %2015 = vmatprep.subr.bf16.mxu0 %v1554
    %2016 = vmatpush1.bf16.msra.mxu0 %v1553
    %2017 = vmatprep.subr.bf16.mxu0 %v1560
    %2018 = vmatpush1.bf16.msra.mxu0 %v1559
    %2019 = vmatprep.subr.bf16.mxu0 %v1566
    %2020 = vmatpush1.bf16.msra.mxu0 %v1565
    %2021 = vmatprep.subr.bf16.mxu0 %v1572
    %2022 = vmatpush1.bf16.msra.mxu0 %v1571
    %2023 = vmatprep.subr.bf16.mxu0 %v1578
    %2024 = vmatpush1.bf16.msra.mxu0 %v1577
    %2025 = vmatprep.subr.bf16.mxu0 %v1584
    %2026 = vmatpush1.bf16.msra.mxu0 %v1583
    %2027 = vmatprep.subr.bf16.mxu0 %v1590
    %2028 = vmatpush1.bf16.msra.mxu0 %v1589
    %2029 = vmatprep.subr.bf16.mxu0 %v1596
    %2030 = vmatpush1.bf16.msra.mxu0 %v1595
    %2031 = vmatprep.subr.bf16.mxu0 %v1602
    %2032 = vmatpush1.bf16.msra.mxu0 %v1601
    %2033 = vmatprep.subr.bf16.mxu0 %v1608
    %2034 = vmatpush1.bf16.msra.mxu0 %v1607
    %2035 = vmatprep.subr.bf16.mxu0 %v1614
    %2036 = vmatpush1.bf16.msra.mxu0 %v1613
    %2037 = vmatprep.subr.bf16.mxu0 %v1620
    %2038 = vmatpush1.bf16.msra.mxu0 %v1619
    %2039 = vmatprep.subr.bf16.mxu0 %v1626
    %2040 = vmatpush1.bf16.msra.mxu0 %v1625
    %2041 = vmatprep.subr.bf16.mxu0 %v1632
    %2042 = vmatpush1.bf16.msra.mxu0 %v1631
    %2043 = vmatprep.mubr.bf16.mxu0 %v164
    %2044 = vmatmul.mubr.bf16.gmra.mrb[0].mxu0 %v163
    %v2045 = vpop.f32.mrb[0].mxu0
    %v2046 = vadd.f32 %v2003, %v2045
    %v2047 = vpop.f32.mrb[0].mxu0
    %v2048 = vadd.f32 %v2005, %v2047
    %v2049 = vpop.f32.mrb[0].mxu0
    %v2050 = vadd.f32 %v2007, %v2049
    %v2051 = vpop.f32.mrb[0].mxu0
    %v2052 = vadd.f32 %v2009, %v2051
    %2053 = vdwg.mxu0
    %2054 = vmatprep.subr.bf16.mxu0 %v1352
    %2055 = vmatpush1.bf16.msra.mxu0 %v1351
    %2056 = vmatprep.subr.bf16.mxu0 %v1358
    %2057 = vmatpush1.bf16.msra.mxu0 %v1357
    %2058 = vmatprep.subr.bf16.mxu0 %v1364
    %2059 = vmatpush1.bf16.msra.mxu0 %v1363
    %2060 = vmatprep.subr.bf16.mxu0 %v1370
    %2061 = vmatpush1.bf16.msra.mxu0 %v1369
    %2062 = vmatprep.subr.bf16.mxu0 %v1376
    %2063 = vmatpush1.bf16.msra.mxu0 %v1375
    %2064 = vmatprep.subr.bf16.mxu0 %v1382
    %2065 = vmatpush1.bf16.msra.mxu0 %v1381
    %2066 = vmatprep.subr.bf16.mxu0 %v1388
    %2067 = vmatpush1.bf16.msra.mxu0 %v1387
    %2068 = vmatprep.subr.bf16.mxu0 %v1394
    %2069 = vmatpush1.bf16.msra.mxu0 %v1393
    %2070 = vmatprep.subr.bf16.mxu0 %v1400
    %2071 = vmatpush1.bf16.msra.mxu0 %v1399
    %2072 = vmatprep.subr.bf16.mxu0 %v1406
    %2073 = vmatpush1.bf16.msra.mxu0 %v1405
    %2074 = vmatprep.subr.bf16.mxu0 %v1412
    %2075 = vmatpush1.bf16.msra.mxu0 %v1411
    %2076 = vmatprep.subr.bf16.mxu0 %v1418
    %2077 = vmatpush1.bf16.msra.mxu0 %v1417
    %2078 = vmatprep.subr.bf16.mxu0 %v1424
    %2079 = vmatpush1.bf16.msra.mxu0 %v1423
    %2080 = vmatprep.subr.bf16.mxu0 %v1430
    %2081 = vmatpush1.bf16.msra.mxu0 %v1429
    %2082 = vmatprep.subr.bf16.mxu0 %v1436
    %2083 = vmatpush1.bf16.msra.mxu0 %v1435
    %2084 = vmatprep.subr.bf16.mxu0 %v1442
    %2085 = vmatpush1.bf16.msra.mxu0 %v1441
    %2086 = vmatprep.mubr.bf16.mxu0 %v160
    %2087 = vmatmul.mubr.bf16.gmra.mrb[0].mxu0 %v159
    %v2088 = vpop.f32.mrb[0].mxu0
    %v2089 = vadd.f32 %v466, %v2088
    %v2090 = vpop.f32.mrb[0].mxu0
    %v2091 = vadd.f32 %v470, %v2090
    %v2092 = vpop.f32.mrb[0].mxu0
    %v2093 = vadd.f32 %v466, %v2092
    %v2094 = vpop.f32.mrb[0].mxu0
    %v2095 = vadd.f32 %v470, %v2094
    %2096 = vdwg.mxu0
    %2097 = vmatprep.subr.bf16.mxu0 %v1448
    %2098 = vmatpush1.bf16.msra.mxu0 %v1447
    %2099 = vmatprep.subr.bf16.mxu0 %v1454
    %2100 = vmatpush1.bf16.msra.mxu0 %v1453
    %2101 = vmatprep.subr.bf16.mxu0 %v1460
    %2102 = vmatpush1.bf16.msra.mxu0 %v1459
    %2103 = vmatprep.subr.bf16.mxu0 %v1466
    %2104 = vmatpush1.bf16.msra.mxu0 %v1465
    %2105 = vmatprep.subr.bf16.mxu0 %v1472
    %2106 = vmatpush1.bf16.msra.mxu0 %v1471
    %2107 = vmatprep.subr.bf16.mxu0 %v1478
    %2108 = vmatpush1.bf16.msra.mxu0 %v1477
    %2109 = vmatprep.subr.bf16.mxu0 %v1484
    %2110 = vmatpush1.bf16.msra.mxu0 %v1483
    %2111 = vmatprep.subr.bf16.mxu0 %v1490
    %2112 = vmatpush1.bf16.msra.mxu0 %v1489
    %2113 = vmatprep.subr.bf16.mxu0 %v1496
    %2114 = vmatpush1.bf16.msra.mxu0 %v1495
    %2115 = vmatprep.subr.bf16.mxu0 %v1502
    %2116 = vmatpush1.bf16.msra.mxu0 %v1501
    %2117 = vmatprep.subr.bf16.mxu0 %v1508
    %2118 = vmatpush1.bf16.msra.mxu0 %v1507
    %2119 = vmatprep.subr.bf16.mxu0 %v1514
    %2120 = vmatpush1.bf16.msra.mxu0 %v1513
    %2121 = vmatprep.subr.bf16.mxu0 %v1520
    %2122 = vmatpush1.bf16.msra.mxu0 %v1519
    %2123 = vmatprep.subr.bf16.mxu0 %v1526
    %2124 = vmatpush1.bf16.msra.mxu0 %v1525
    %2125 = vmatprep.subr.bf16.mxu0 %v1532
    %2126 = vmatpush1.bf16.msra.mxu0 %v1531
    %2127 = vmatprep.subr.bf16.mxu0 %v1538
    %2128 = vmatpush1.bf16.msra.mxu0 %v1537
    %2129 = vmatprep.mubr.bf16.mxu0 %v162
    %2130 = vmatmul.mubr.bf16.gmra.mrb[0].mxu0 %v161
    %v2131 = vpop.f32.mrb[0].mxu0
    %v2132 = vadd.f32 %v2089, %v2131
    %v2133 = vpop.f32.mrb[0].mxu0
    %v2134 = vadd.f32 %v2091, %v2133
    %v2135 = vpop.f32.mrb[0].mxu0
    %v2136 = vadd.f32 %v2093, %v2135
    %v2137 = vpop.f32.mrb[0].mxu0
    %v2138 = vadd.f32 %v2095, %v2137
    %2139 = vdwg.mxu0
    %2140 = vmatprep.subr.bf16.mxu0 %v1544
    %2141 = vmatpush1.bf16.msra.mxu0 %v1543
    %2142 = vmatprep.subr.bf16.mxu0 %v1550
    %2143 = vmatpush1.bf16.msra.mxu0 %v1549
    %2144 = vmatprep.subr.bf16.mxu0 %v1556
    %2145 = vmatpush1.bf16.msra.mxu0 %v1555
    %2146 = vmatprep.subr.bf16.mxu0 %v1562
    %2147 = vmatpush1.bf16.msra.mxu0 %v1561
    %2148 = vmatprep.subr.bf16.mxu0 %v1568
    %2149 = vmatpush1.bf16.msra.mxu0 %v1567
    %2150 = vmatprep.subr.bf16.mxu0 %v1574
    %2151 = vmatpush1.bf16.msra.mxu0 %v1573
    %2152 = vmatprep.subr.bf16.mxu0 %v1580
    %2153 = vmatpush1.bf16.msra.mxu0 %v1579
    %2154 = vmatprep.subr.bf16.mxu0 %v1586
    %2155 = vmatpush1.bf16.msra.mxu0 %v1585
    %2156 = vmatprep.subr.bf16.mxu0 %v1592
    %2157 = vmatpush1.bf16.msra.mxu0 %v1591
    %2158 = vmatprep.subr.bf16.mxu0 %v1598
    %2159 = vmatpush1.bf16.msra.mxu0 %v1597
    %2160 = vmatprep.subr.bf16.mxu0 %v1604
    %2161 = vmatpush1.bf16.msra.mxu0 %v1603
    %2162 = vmatprep.subr.bf16.mxu0 %v1610
    %2163 = vmatpush1.bf16.msra.mxu0 %v1609
    %2164 = vmatprep.subr.bf16.mxu0 %v1616
    %2165 = vmatpush1.bf16.msra.mxu0 %v1615
    %2166 = vmatprep.subr.bf16.mxu0 %v1622
    %2167 = vmatpush1.bf16.msra.mxu0 %v1621
    %2168 = vmatprep.subr.bf16.mxu0 %v1628
    %2169 = vmatpush1.bf16.msra.mxu0 %v1627
    %2170 = vmatprep.subr.bf16.mxu0 %v1634
    %2171 = vmatpush1.bf16.msra.mxu0 %v1633
    %2172 = vmatprep.mubr.bf16.mxu0 %v164
    %2173 = vmatmul.mubr.bf16.gmra.mrb[0].mxu0 %v163
    %v2174 = vpop.f32.mrb[0].mxu0
    %v2175 = vadd.f32 %v2132, %v2174
    %v2176 = vpop.f32.mrb[0].mxu0
    %v2177 = vadd.f32 %v2134, %v2176
    %v2178 = vpop.f32.mrb[0].mxu0
    %v2179 = vadd.f32 %v2136, %v2178
    %v2180 = vpop.f32.mrb[0].mxu0
    %v2181 = vadd.f32 %v2138, %v2180
    %2182 = vdwg.mxu0
    %2183 = vmatprep.subr.bf16.mxu0 %v1354
    %2184 = vmatpush1.bf16.msra.mxu0 %v1353
    %2185 = vmatprep.subr.bf16.mxu0 %v1360
    %2186 = vmatpush1.bf16.msra.mxu0 %v1359
    %2187 = vmatprep.subr.bf16.mxu0 %v1366
    %2188 = vmatpush1.bf16.msra.mxu0 %v1365
    %2189 = vmatprep.subr.bf16.mxu0 %v1372
    %2190 = vmatpush1.bf16.msra.mxu0 %v1371
    %2191 = vmatprep.subr.bf16.mxu0 %v1378
    %2192 = vmatpush1.bf16.msra.mxu0 %v1377
    %2193 = vmatprep.subr.bf16.mxu0 %v1384
    %2194 = vmatpush1.bf16.msra.mxu0 %v1383
    %2195 = vmatprep.subr.bf16.mxu0 %v1390
    %2196 = vmatpush1.bf16.msra.mxu0 %v1389
    %2197 = vmatprep.subr.bf16.mxu0 %v1396
    %2198 = vmatpush1.bf16.msra.mxu0 %v1395
    %2199 = vmatprep.subr.bf16.mxu0 %v1402
    %2200 = vmatpush1.bf16.msra.mxu0 %v1401
    %2201 = vmatprep.subr.bf16.mxu0 %v1408
    %2202 = vmatpush1.bf16.msra.mxu0 %v1407
    %2203 = vmatprep.subr.bf16.mxu0 %v1414
    %2204 = vmatpush1.bf16.msra.mxu0 %v1413
    %2205 = vmatprep.subr.bf16.mxu0 %v1420
    %2206 = vmatpush1.bf16.msra.mxu0 %v1419
    %2207 = vmatprep.subr.bf16.mxu0 %v1426
    %2208 = vmatpush1.bf16.msra.mxu0 %v1425
    %2209 = vmatprep.subr.bf16.mxu0 %v1432
    %2210 = vmatpush1.bf16.msra.mxu0 %v1431
    %2211 = vmatprep.subr.bf16.mxu0 %v1438
    %2212 = vmatpush1.bf16.msra.mxu0 %v1437
    %2213 = vmatprep.subr.bf16.mxu0 %v1444
    %2214 = vmatpush1.bf16.msra.mxu0 %v1443
    %2215 = vmatprep.mubr.bf16.mxu0 %v160
    %2216 = vmatmul.mubr.bf16.gmra.mrb[0].mxu0 %v159
    %v2217 = vpop.f32.mrb[0].mxu0
    %v2218 = vadd.f32 %v474, %v2217
    %v2219 = vpop.f32.mrb[0].mxu0
    %v2220 = vadd.f32 %v478, %v2219
    %v2221 = vpop.f32.mrb[0].mxu0
    %v2222 = vadd.f32 %v474, %v2221
    %v2223 = vpop.f32.mrb[0].mxu0
    %v2224 = vadd.f32 %v478, %v2223
    %2225 = vdwg.mxu0
    %2226 = vmatprep.subr.bf16.mxu0 %v1450
    %2227 = vmatpush1.bf16.msra.mxu0 %v1449
    %2228 = vmatprep.subr.bf16.mxu0 %v1456
    %2229 = vmatpush1.bf16.msra.mxu0 %v1455
    %2230 = vmatprep.subr.bf16.mxu0 %v1462
    %2231 = vmatpush1.bf16.msra.mxu0 %v1461
    %2232 = vmatprep.subr.bf16.mxu0 %v1468
    %2233 = vmatpush1.bf16.msra.mxu0 %v1467
    %2234 = vmatprep.subr.bf16.mxu0 %v1474
    %2235 = vmatpush1.bf16.msra.mxu0 %v1473
    %2236 = vmatprep.subr.bf16.mxu0 %v1480
    %2237 = vmatpush1.bf16.msra.mxu0 %v1479
    %2238 = vmatprep.subr.bf16.mxu0 %v1486
    %2239 = vmatpush1.bf16.msra.mxu0 %v1485
    %2240 = vmatprep.subr.bf16.mxu0 %v1492
    %2241 = vmatpush1.bf16.msra.mxu0 %v1491
    %2242 = vmatprep.subr.bf16.mxu0 %v1498
    %2243 = vmatpush1.bf16.msra.mxu0 %v1497
    %2244 = vmatprep.subr.bf16.mxu0 %v1504
    %2245 = vmatpush1.bf16.msra.mxu0 %v1503
    %2246 = vmatprep.subr.bf16.mxu0 %v1510
    %2247 = vmatpush1.bf16.msra.mxu0 %v1509
    %2248 = vmatprep.subr.bf16.mxu0 %v1516
    %2249 = vmatpush1.bf16.msra.mxu0 %v1515
    %2250 = vmatprep.subr.bf16.mxu0 %v1522
    %2251 = vmatpush1.bf16.msra.mxu0 %v1521
    %2252 = vmatprep.subr.bf16.mxu0 %v1528
    %2253 = vmatpush1.bf16.msra.mxu0 %v1527
    %2254 = vmatprep.subr.bf16.mxu0 %v1534
    %2255 = vmatpush1.bf16.msra.mxu0 %v1533
    %2256 = vmatprep.subr.bf16.mxu0 %v1540
    %2257 = vmatpush1.bf16.msra.mxu0 %v1539
    %2258 = vmatprep.mubr.bf16.mxu0 %v162
    %2259 = vmatmul.mubr.bf16.gmra.mrb[0].mxu0 %v161
    %v2260 = vpop.f32.mrb[0].mxu0
    %v2261 = vadd.f32 %v2218, %v2260
    %v2262 = vpop.f32.mrb[0].mxu0
    %v2263 = vadd.f32 %v2220, %v2262
    %v2264 = vpop.f32.mrb[0].mxu0
    %v2265 = vadd.f32 %v2222, %v2264
    %v2266 = vpop.f32.mrb[0].mxu0
    %v2267 = vadd.f32 %v2224, %v2266
    %2268 = vdwg.mxu0
    %2269 = vmatprep.subr.bf16.mxu0 %v1546
    %2270 = vmatpush1.bf16.msra.mxu0 %v1545
    %2271 = vmatprep.subr.bf16.mxu0 %v1552
    %2272 = vmatpush1.bf16.msra.mxu0 %v1551
    %2273 = vmatprep.subr.bf16.mxu0 %v1558
    %2274 = vmatpush1.bf16.msra.mxu0 %v1557
    %2275 = vmatprep.subr.bf16.mxu0 %v1564
    %2276 = vmatpush1.bf16.msra.mxu0 %v1563
    %2277 = vmatprep.subr.bf16.mxu0 %v1570
    %2278 = vmatpush1.bf16.msra.mxu0 %v1569
    %2279 = vmatprep.subr.bf16.mxu0 %v1576
    %2280 = vmatpush1.bf16.msra.mxu0 %v1575
    %2281 = vmatprep.subr.bf16.mxu0 %v1582
    %2282 = vmatpush1.bf16.msra.mxu0 %v1581
    %2283 = vmatprep.subr.bf16.mxu0 %v1588
    %2284 = vmatpush1.bf16.msra.mxu0 %v1587
    %2285 = vmatprep.subr.bf16.mxu0 %v1594
    %2286 = vmatpush1.bf16.msra.mxu0 %v1593
    %2287 = vmatprep.subr.bf16.mxu0 %v1600
    %2288 = vmatpush1.bf16.msra.mxu0 %v1599
    %2289 = vmatprep.subr.bf16.mxu0 %v1606
    %2290 = vmatpush1.bf16.msra.mxu0 %v1605
    %2291 = vmatprep.subr.bf16.mxu0 %v1612
    %2292 = vmatpush1.bf16.msra.mxu0 %v1611
    %2293 = vmatprep.subr.bf16.mxu0 %v1618
    %2294 = vmatpush1.bf16.msra.mxu0 %v1617
    %2295 = vmatprep.subr.bf16.mxu0 %v1624
    %2296 = vmatpush1.bf16.msra.mxu0 %v1623
    %2297 = vmatprep.subr.bf16.mxu0 %v1630
    %2298 = vmatpush1.bf16.msra.mxu0 %v1629
    %2299 = vmatprep.subr.bf16.mxu0 %v1636
    %2300 = vmatpush1.bf16.msra.mxu0 %v1635
    %2301 = vmatprep.mubr.bf16.mxu0 %v164
    %2302 = vmatmul.mubr.bf16.gmra.mrb[0].mxu0 %v163
    %v2303 = vpop.f32.mrb[0].mxu0
    %v2304 = vadd.f32 %v2261, %v2303
    %v2305 = vpop.f32.mrb[0].mxu0
    %v2306 = vadd.f32 %v2263, %v2305
    %v2307 = vpop.f32.mrb[0].mxu0
    %v2308 = vadd.f32 %v2265, %v2307
    %v2309 = vpop.f32.mrb[0].mxu0
    %v2310 = vadd.f32 %v2267, %v2309
    %2311 = vdwg.mxu0
    %v2312 = vmul.f32 %v2046, 0.5
    %v2313 = vmul.f32 %v2048, 0.5
    %v2314 = vmul.f32 %v2175, 0.5
    %v2315 = vmul.f32 %v2177, 0.5
    %v2316 = vmul.f32 %v2304, 0.5
    %v2317 = vmul.f32 %v2306, 0.5
    %v2318 = vmul.f32 %v2050, 0.5
    %v2319 = vmul.f32 %v2052, 0.5
    %v2320 = vmul.f32 %v2179, 0.5
    %v2321 = vmul.f32 %v2181, 0.5
    %v2322 = vmul.f32 %v2308, 0.5
    %v2323 = vmul.f32 %v2310, 0.5
    %v2324 = vmul.f32 %v2046, %v2046
    %v2325 = vmul.f32 %v2048, %v2048
    %v2326 = vmul.f32 %v2175, %v2175
    %v2327 = vmul.f32 %v2177, %v2177
    %v2328 = vmul.f32 %v2304, %v2304
    %v2329 = vmul.f32 %v2306, %v2306
    %v2330 = vmul.f32 %v2050, %v2050
    %v2331 = vmul.f32 %v2052, %v2052
    %v2332 = vmul.f32 %v2179, %v2179
    %v2333 = vmul.f32 %v2181, %v2181
    %v2334 = vmul.f32 %v2308, %v2308
    %v2335 = vmul.f32 %v2310, %v2310
    %v2336 = vmul.f32 %v2324, %v2046
    %v2337 = vmul.f32 %v2325, %v2048
    %v2338 = vmul.f32 %v2326, %v2175
    %v2339 = vmul.f32 %v2327, %v2177
    %v2340 = vmul.f32 %v2328, %v2304
    %v2341 = vmul.f32 %v2329, %v2306
    %v2342 = vmul.f32 %v2330, %v2050
    %v2343 = vmul.f32 %v2331, %v2052
    %v2344 = vmul.f32 %v2332, %v2179
    %v2345 = vmul.f32 %v2333, %v2181
    %v2346 = vmul.f32 %v2334, %v2308
    %v2347 = vmul.f32 %v2335, %v2310
    %v2348 = vmul.f32 %v2336, 0.044715
    %v2349 = vmul.f32 %v2337, 0.044715
    %v2350 = vmul.f32 %v2338, 0.044715
    %v2351 = vmul.f32 %v2339, 0.044715
    %v2352 = vmul.f32 %v2340, 0.044715
    %v2353 = vmul.f32 %v2341, 0.044715
    %v2354 = vmul.f32 %v2342, 0.044715
    %v2355 = vmul.f32 %v2343, 0.044715
    %v2356 = vmul.f32 %v2344, 0.044715
    %v2357 = vmul.f32 %v2345, 0.044715
    %v2358 = vmul.f32 %v2346, 0.044715
    %v2359 = vmul.f32 %v2347, 0.044715
    %v2360 = vadd.f32 %v2046, %v2348
    %v2361 = vadd.f32 %v2048, %v2349
    %v2362 = vadd.f32 %v2175, %v2350
    %v2363 = vadd.f32 %v2177, %v2351
    %v2364 = vadd.f32 %v2304, %v2352
    %v2365 = vadd.f32 %v2306, %v2353
    %v2366 = vadd.f32 %v2050, %v2354
    %v2367 = vadd.f32 %v2052, %v2355
    %v2368 = vadd.f32 %v2179, %v2356
    %v2369 = vadd.f32 %v2181, %v2357
    %v2370 = vadd.f32 %v2308, %v2358
    %v2371 = vadd.f32 %v2310, %v2359
    %v2372 = vmul.f32 %v2360, 0.7978846
    %v2373 = vmul.f32 %v2361, 0.7978846
    %v2374 = vmul.f32 %v2362, 0.7978846
    %v2375 = vmul.f32 %v2363, 0.7978846
    %v2376 = vmul.f32 %v2364, 0.7978846
    %v2377 = vmul.f32 %v2365, 0.7978846
    %v2378 = vmul.f32 %v2366, 0.7978846
    %v2379 = vmul.f32 %v2367, 0.7978846
    %v2380 = vmul.f32 %v2368, 0.7978846
    %v2381 = vmul.f32 %v2369, 0.7978846
    %v2382 = vmul.f32 %v2370, 0.7978846
    %v2383 = vmul.f32 %v2371, 0.7978846
    %v2384 = vtanh.pop %v2372
    %v2385 = vtanh.pop %v2373
    %v2386 = vtanh.pop %v2374
    %v2387 = vtanh.pop %v2375
    %v2388 = vtanh.pop %v2376
    %v2389 = vtanh.pop %v2377
    %v2390 = vtanh.pop %v2378
    %v2391 = vtanh.pop %v2379
    %v2392 = vtanh.pop %v2380
    %v2393 = vtanh.pop %v2381
    %v2394 = vtanh.pop %v2382
    %v2395 = vtanh.pop %v2383
    %v2396 = vadd.f32 %v2384, 1.0
    %v2397 = vadd.f32 %v2385, 1.0
    %v2398 = vadd.f32 %v2386, 1.0
    %v2399 = vadd.f32 %v2387, 1.0
    %v2400 = vadd.f32 %v2388, 1.0
    %v2401 = vadd.f32 %v2389, 1.0
    %v2402 = vadd.f32 %v2390, 1.0
    %v2403 = vadd.f32 %v2391, 1.0
    %v2404 = vadd.f32 %v2392, 1.0
    %v2405 = vadd.f32 %v2393, 1.0
    %v2406 = vadd.f32 %v2394, 1.0
    %v2407 = vadd.f32 %v2395, 1.0
    %v2408 = vmul.f32 %v2312, %v2396
    %v2409 = vmul.f32 %v2313, %v2397
    %v2410 = vmul.f32 %v2314, %v2398
    %v2411 = vmul.f32 %v2315, %v2399
    %v2412 = vmul.f32 %v2316, %v2400
    %v2413 = vmul.f32 %v2317, %v2401
    %v2414 = vmul.f32 %v2318, %v2402
    %v2415 = vmul.f32 %v2319, %v2403
    %v2416 = vmul.f32 %v2320, %v2404
    %v2417 = vmul.f32 %v2321, %v2405
    %v2418 = vmul.f32 %v2322, %v2406
    %v2419 = vmul.f32 %v2323, %v2407
    %v2420 = vpack.c.bf16 %v2414, %v2408
    %v2421 = vpack.c.bf16 %v2415, %v2409
    %v2422 = vpack.c.bf16 %v2416, %v2410
    %v2423 = vpack.c.bf16 %v2417, %v2411
    %v2424 = vpack.c.bf16 %v2418, %v2412
    %v2425 = vpack.c.bf16 %v2419, %v2413
    %v2426 = vld [vmem:[#allocation8] sm:$0xff]
    %v2427 = vld [vmem:[#allocation8 + $0x8] sm:$0xff]
    %v2428 = vld [vmem:[#allocation8 + $0x10] sm:$0xff]
    %v2429 = vld [vmem:[#allocation8 + $0x18] sm:$0xff]
    %v2430 = vld [vmem:[#allocation8 + $0x20] sm:$0xff]
    %v2431 = vld [vmem:[#allocation8 + $0x28] sm:$0xff]
    %v2432 = vld [vmem:[#allocation8 + $0x30] sm:$0xff]
    %v2433 = vld [vmem:[#allocation8 + $0x38] sm:$0xff]
    %v2434 = vld [vmem:[#allocation8 + $0x40] sm:$0xff]
    %v2435 = vld [vmem:[#allocation8 + $0x48] sm:$0xff]
    %v2436 = vld [vmem:[#allocation8 + $0x50] sm:$0xff]
    %v2437 = vld [vmem:[#allocation8 + $0x58] sm:$0xff]
    %v2438 = vld [vmem:[#allocation8 + $0x60] sm:$0xff]
    %v2439 = vld [vmem:[#allocation8 + $0x68] sm:$0xff]
    %v2440 = vld [vmem:[#allocation8 + $0x70] sm:$0xff]
    %v2441 = vld [vmem:[#allocation8 + $0x78] sm:$0xff]
    %v2442 = vld [vmem:[#allocation8 + $0x80] sm:$0xff]
    %v2443 = vld [vmem:[#allocation8 + $0x88] sm:$0xff]
    %v2444 = vld [vmem:[#allocation8 + $0x90] sm:$0xff]
    %v2445 = vld [vmem:[#allocation8 + $0x98] sm:$0xff]
    %v2446 = vld [vmem:[#allocation8 + $0xa0] sm:$0xff]
    %v2447 = vld [vmem:[#allocation8 + $0xa8] sm:$0xff]
    %v2448 = vld [vmem:[#allocation8 + $0xb0] sm:$0xff]
    %v2449 = vld [vmem:[#allocation8 + $0xb8] sm:$0xff]
    %v2450 = vld [vmem:[#allocation8 + $0xc0] sm:$0xff]
    %v2451 = vld [vmem:[#allocation8 + $0xc8] sm:$0xff]
    %v2452 = vld [vmem:[#allocation8 + $0xd0] sm:$0xff]
    %v2453 = vld [vmem:[#allocation8 + $0xd8] sm:$0xff]
    %v2454 = vld [vmem:[#allocation8 + $0xe0] sm:$0xff]
    %v2455 = vld [vmem:[#allocation8 + $0xe8] sm:$0xff]
    %v2456 = vld [vmem:[#allocation8 + $0xf0] sm:$0xff]
    %v2457 = vld [vmem:[#allocation8 + $0xf8] sm:$0xff]
    %v2458 = vld [vmem:[#allocation8 + $0x100] sm:$0xff]
    %v2459 = vld [vmem:[#allocation8 + $0x108] sm:$0xff]
    %v2460 = vld [vmem:[#allocation8 + $0x110] sm:$0xff]
    %v2461 = vld [vmem:[#allocation8 + $0x118] sm:$0xff]
    %v2462 = vld [vmem:[#allocation8 + $0x120] sm:$0xff]
    %v2463 = vld [vmem:[#allocation8 + $0x128] sm:$0xff]
    %v2464 = vld [vmem:[#allocation8 + $0x130] sm:$0xff]
    %v2465 = vld [vmem:[#allocation8 + $0x138] sm:$0xff]
    %v2466 = vld [vmem:[#allocation8 + $0x140] sm:$0xff]
    %v2467 = vld [vmem:[#allocation8 + $0x148] sm:$0xff]
    %v2468 = vld [vmem:[#allocation8 + $0x150] sm:$0xff]
    %v2469 = vld [vmem:[#allocation8 + $0x158] sm:$0xff]
    %v2470 = vld [vmem:[#allocation8 + $0x160] sm:$0xff]
    %v2471 = vld [vmem:[#allocation8 + $0x168] sm:$0xff]
    %v2472 = vld [vmem:[#allocation8 + $0x170] sm:$0xff]
    %v2473 = vld [vmem:[#allocation8 + $0x178] sm:$0xff]
    %v2474 = vld [vmem:[#allocation8 + $0x180] sm:$0xff]
    %v2475 = vld [vmem:[#allocation8 + $0x188] sm:$0xff]
    %v2476 = vld [vmem:[#allocation8 + $0x190] sm:$0xff]
    %v2477 = vld [vmem:[#allocation8 + $0x198] sm:$0xff]
    %v2478 = vld [vmem:[#allocation8 + $0x1a0] sm:$0xff]
    %v2479 = vld [vmem:[#allocation8 + $0x1a8] sm:$0xff]
    %v2480 = vld [vmem:[#allocation8 + $0x1b0] sm:$0xff]
    %v2481 = vld [vmem:[#allocation8 + $0x1b8] sm:$0xff]
    %v2482 = vld [vmem:[#allocation8 + $0x1c0] sm:$0xff]
    %v2483 = vld [vmem:[#allocation8 + $0x1c8] sm:$0xff]
    %v2484 = vld [vmem:[#allocation8 + $0x1d0] sm:$0xff]
    %v2485 = vld [vmem:[#allocation8 + $0x1d8] sm:$0xff]
    %v2486 = vld [vmem:[#allocation8 + $0x1e0] sm:$0xff]
    %v2487 = vld [vmem:[#allocation8 + $0x1e8] sm:$0xff]
    %v2488 = vld [vmem:[#allocation8 + $0x1f0] sm:$0xff]
    %v2489 = vld [vmem:[#allocation8 + $0x1f8] sm:$0xff]
    %v2490 = vld [vmem:[#allocation8 + $0x200] sm:$0xff]
    %v2491 = vld [vmem:[#allocation8 + $0x208] sm:$0xff]
    %v2492 = vld [vmem:[#allocation8 + $0x210] sm:$0xff]
    %v2493 = vld [vmem:[#allocation8 + $0x218] sm:$0xff]
    %v2494 = vld [vmem:[#allocation8 + $0x220] sm:$0xff]
    %v2495 = vld [vmem:[#allocation8 + $0x228] sm:$0xff]
    %v2496 = vld [vmem:[#allocation8 + $0x230] sm:$0xff]
    %v2497 = vld [vmem:[#allocation8 + $0x238] sm:$0xff]
    %v2498 = vld [vmem:[#allocation8 + $0x240] sm:$0xff]
    %v2499 = vld [vmem:[#allocation8 + $0x248] sm:$0xff]
    %v2500 = vld [vmem:[#allocation8 + $0x250] sm:$0xff]
    %v2501 = vld [vmem:[#allocation8 + $0x258] sm:$0xff]
    %v2502 = vld [vmem:[#allocation8 + $0x260] sm:$0xff]
    %v2503 = vld [vmem:[#allocation8 + $0x268] sm:$0xff]
    %v2504 = vld [vmem:[#allocation8 + $0x270] sm:$0xff]
    %v2505 = vld [vmem:[#allocation8 + $0x278] sm:$0xff]
    %v2506 = vld [vmem:[#allocation8 + $0x280] sm:$0xff]
    %v2507 = vld [vmem:[#allocation8 + $0x288] sm:$0xff]
    %v2508 = vld [vmem:[#allocation8 + $0x290] sm:$0xff]
    %v2509 = vld [vmem:[#allocation8 + $0x298] sm:$0xff]
    %v2510 = vld [vmem:[#allocation8 + $0x2a0] sm:$0xff]
    %v2511 = vld [vmem:[#allocation8 + $0x2a8] sm:$0xff]
    %v2512 = vld [vmem:[#allocation8 + $0x2b0] sm:$0xff]
    %v2513 = vld [vmem:[#allocation8 + $0x2b8] sm:$0xff]
    %v2514 = vld [vmem:[#allocation8 + $0x2c0] sm:$0xff]
    %v2515 = vld [vmem:[#allocation8 + $0x2c8] sm:$0xff]
    %v2516 = vld [vmem:[#allocation8 + $0x2d0] sm:$0xff]
    %v2517 = vld [vmem:[#allocation8 + $0x2d8] sm:$0xff]
    %v2518 = vld [vmem:[#allocation8 + $0x2e0] sm:$0xff]
    %v2519 = vld [vmem:[#allocation8 + $0x2e8] sm:$0xff]
    %v2520 = vld [vmem:[#allocation8 + $0x2f0] sm:$0xff]
    %v2521 = vld [vmem:[#allocation8 + $0x2f8] sm:$0xff]
    %v2522 = vld [vmem:[#allocation8 + $0x300] sm:$0xff]
    %v2523 = vld [vmem:[#allocation8 + $0x308] sm:$0xff]
    %v2524 = vld [vmem:[#allocation8 + $0x310] sm:$0xff]
    %v2525 = vld [vmem:[#allocation8 + $0x318] sm:$0xff]
    %v2526 = vld [vmem:[#allocation8 + $0x320] sm:$0xff]
    %v2527 = vld [vmem:[#allocation8 + $0x328] sm:$0xff]
    %v2528 = vld [vmem:[#allocation8 + $0x330] sm:$0xff]
    %v2529 = vld [vmem:[#allocation8 + $0x338] sm:$0xff]
    %v2530 = vld [vmem:[#allocation8 + $0x340] sm:$0xff]
    %v2531 = vld [vmem:[#allocation8 + $0x348] sm:$0xff]
    %v2532 = vld [vmem:[#allocation8 + $0x350] sm:$0xff]
    %v2533 = vld [vmem:[#allocation8 + $0x358] sm:$0xff]
    %v2534 = vld [vmem:[#allocation8 + $0x360] sm:$0xff]
    %v2535 = vld [vmem:[#allocation8 + $0x368] sm:$0xff]
    %v2536 = vld [vmem:[#allocation8 + $0x370] sm:$0xff]
    %v2537 = vld [vmem:[#allocation8 + $0x378] sm:$0xff]
    %v2538 = vld [vmem:[#allocation8 + $0x380] sm:$0xff]
    %v2539 = vld [vmem:[#allocation8 + $0x388] sm:$0xff]
    %v2540 = vld [vmem:[#allocation8 + $0x390] sm:$0xff]
    %v2541 = vld [vmem:[#allocation8 + $0x398] sm:$0xff]
    %v2542 = vld [vmem:[#allocation8 + $0x3a0] sm:$0xff]
    %v2543 = vld [vmem:[#allocation8 + $0x3a8] sm:$0xff]
    %v2544 = vld [vmem:[#allocation8 + $0x3b0] sm:$0xff]
    %v2545 = vld [vmem:[#allocation8 + $0x3b8] sm:$0xff]
    %v2546 = vld [vmem:[#allocation8 + $0x3c0] sm:$0xff]
    %v2547 = vld [vmem:[#allocation8 + $0x3c8] sm:$0xff]
    %v2548 = vld [vmem:[#allocation8 + $0x3d0] sm:$0xff]
    %v2549 = vld [vmem:[#allocation8 + $0x3d8] sm:$0xff]
    %v2550 = vld [vmem:[#allocation8 + $0x3e0] sm:$0xff]
    %v2551 = vld [vmem:[#allocation8 + $0x3e8] sm:$0xff]
    %v2552 = vld [vmem:[#allocation8 + $0x3f0] sm:$0xff]
    %v2553 = vld [vmem:[#allocation8 + $0x3f8] sm:$0xff]
    %v2554 = vld [vmem:[#allocation8 + $0x400] sm:$0xff]
    %v2555 = vld [vmem:[#allocation8 + $0x408] sm:$0xff]
    %v2556 = vld [vmem:[#allocation8 + $0x410] sm:$0xff]
    %v2557 = vld [vmem:[#allocation8 + $0x418] sm:$0xff]
    %v2558 = vld [vmem:[#allocation8 + $0x420] sm:$0xff]
    %v2559 = vld [vmem:[#allocation8 + $0x428] sm:$0xff]
    %v2560 = vld [vmem:[#allocation8 + $0x430] sm:$0xff]
    %v2561 = vld [vmem:[#allocation8 + $0x438] sm:$0xff]
    %v2562 = vld [vmem:[#allocation8 + $0x440] sm:$0xff]
    %v2563 = vld [vmem:[#allocation8 + $0x448] sm:$0xff]
    %v2564 = vld [vmem:[#allocation8 + $0x450] sm:$0xff]
    %v2565 = vld [vmem:[#allocation8 + $0x458] sm:$0xff]
    %v2566 = vld [vmem:[#allocation8 + $0x460] sm:$0xff]
    %v2567 = vld [vmem:[#allocation8 + $0x468] sm:$0xff]
    %v2568 = vld [vmem:[#allocation8 + $0x470] sm:$0xff]
    %v2569 = vld [vmem:[#allocation8 + $0x478] sm:$0xff]
    %v2570 = vld [vmem:[#allocation8 + $0x480] sm:$0xff]
    %v2571 = vld [vmem:[#allocation8 + $0x488] sm:$0xff]
    %v2572 = vld [vmem:[#allocation8 + $0x490] sm:$0xff]
    %v2573 = vld [vmem:[#allocation8 + $0x498] sm:$0xff]
    %v2574 = vld [vmem:[#allocation8 + $0x4a0] sm:$0xff]
    %v2575 = vld [vmem:[#allocation8 + $0x4a8] sm:$0xff]
    %v2576 = vld [vmem:[#allocation8 + $0x4b0] sm:$0xff]
    %v2577 = vld [vmem:[#allocation8 + $0x4b8] sm:$0xff]
    %v2578 = vld [vmem:[#allocation8 + $0x4c0] sm:$0xff]
    %v2579 = vld [vmem:[#allocation8 + $0x4c8] sm:$0xff]
    %v2580 = vld [vmem:[#allocation8 + $0x4d0] sm:$0xff]
    %v2581 = vld [vmem:[#allocation8 + $0x4d8] sm:$0xff]
    %v2582 = vld [vmem:[#allocation8 + $0x4e0] sm:$0xff]
    %v2583 = vld [vmem:[#allocation8 + $0x4e8] sm:$0xff]
    %v2584 = vld [vmem:[#allocation8 + $0x4f0] sm:$0xff]
    %v2585 = vld [vmem:[#allocation8 + $0x4f8] sm:$0xff]
    %v2586 = vld [vmem:[#allocation8 + $0x500] sm:$0xff]
    %v2587 = vld [vmem:[#allocation8 + $0x508] sm:$0xff]
    %v2588 = vld [vmem:[#allocation8 + $0x510] sm:$0xff]
    %v2589 = vld [vmem:[#allocation8 + $0x518] sm:$0xff]
    %v2590 = vld [vmem:[#allocation8 + $0x520] sm:$0xff]
    %v2591 = vld [vmem:[#allocation8 + $0x528] sm:$0xff]
    %v2592 = vld [vmem:[#allocation8 + $0x530] sm:$0xff]
    %v2593 = vld [vmem:[#allocation8 + $0x538] sm:$0xff]
    %v2594 = vld [vmem:[#allocation8 + $0x540] sm:$0xff]
    %v2595 = vld [vmem:[#allocation8 + $0x548] sm:$0xff]
    %v2596 = vld [vmem:[#allocation8 + $0x550] sm:$0xff]
    %v2597 = vld [vmem:[#allocation8 + $0x558] sm:$0xff]
    %v2598 = vld [vmem:[#allocation8 + $0x560] sm:$0xff]
    %v2599 = vld [vmem:[#allocation8 + $0x568] sm:$0xff]
    %v2600 = vld [vmem:[#allocation8 + $0x570] sm:$0xff]
    %v2601 = vld [vmem:[#allocation8 + $0x578] sm:$0xff]
    %v2602 = vld [vmem:[#allocation8 + $0x580] sm:$0xff]
    %v2603 = vld [vmem:[#allocation8 + $0x588] sm:$0xff]
    %v2604 = vld [vmem:[#allocation8 + $0x590] sm:$0xff]
    %v2605 = vld [vmem:[#allocation8 + $0x598] sm:$0xff]
    %v2606 = vld [vmem:[#allocation8 + $0x5a0] sm:$0xff]
    %v2607 = vld [vmem:[#allocation8 + $0x5a8] sm:$0xff]
    %v2608 = vld [vmem:[#allocation8 + $0x5b0] sm:$0xff]
    %v2609 = vld [vmem:[#allocation8 + $0x5b8] sm:$0xff]
    %v2610 = vld [vmem:[#allocation8 + $0x5c0] sm:$0xff]
    %v2611 = vld [vmem:[#allocation8 + $0x5c8] sm:$0xff]
    %v2612 = vld [vmem:[#allocation8 + $0x5d0] sm:$0xff]
    %v2613 = vld [vmem:[#allocation8 + $0x5d8] sm:$0xff]
    %v2614 = vld [vmem:[#allocation8 + $0x5e0] sm:$0xff]
    %v2615 = vld [vmem:[#allocation8 + $0x5e8] sm:$0xff]
    %v2616 = vld [vmem:[#allocation8 + $0x5f0] sm:$0xff]
    %v2617 = vld [vmem:[#allocation8 + $0x5f8] sm:$0xff]
    %v2618 = vld [vmem:[#allocation8 + $0x600] sm:$0xff]
    %v2619 = vld [vmem:[#allocation8 + $0x608] sm:$0xff]
    %v2620 = vld [vmem:[#allocation8 + $0x610] sm:$0xff]
    %v2621 = vld [vmem:[#allocation8 + $0x618] sm:$0xff]
    %v2622 = vld [vmem:[#allocation8 + $0x620] sm:$0xff]
    %v2623 = vld [vmem:[#allocation8 + $0x628] sm:$0xff]
    %v2624 = vld [vmem:[#allocation8 + $0x630] sm:$0xff]
    %v2625 = vld [vmem:[#allocation8 + $0x638] sm:$0xff]
    %v2626 = vld [vmem:[#allocation8 + $0x640] sm:$0xff]
    %v2627 = vld [vmem:[#allocation8 + $0x648] sm:$0xff]
    %v2628 = vld [vmem:[#allocation8 + $0x650] sm:$0xff]
    %v2629 = vld [vmem:[#allocation8 + $0x658] sm:$0xff]
    %v2630 = vld [vmem:[#allocation8 + $0x660] sm:$0xff]
    %v2631 = vld [vmem:[#allocation8 + $0x668] sm:$0xff]
    %v2632 = vld [vmem:[#allocation8 + $0x670] sm:$0xff]
    %v2633 = vld [vmem:[#allocation8 + $0x678] sm:$0xff]
    %v2634 = vld [vmem:[#allocation8 + $0x680] sm:$0xff]
    %v2635 = vld [vmem:[#allocation8 + $0x688] sm:$0xff]
    %v2636 = vld [vmem:[#allocation8 + $0x690] sm:$0xff]
    %v2637 = vld [vmem:[#allocation8 + $0x698] sm:$0xff]
    %v2638 = vld [vmem:[#allocation8 + $0x6a0] sm:$0xff]
    %v2639 = vld [vmem:[#allocation8 + $0x6a8] sm:$0xff]
    %v2640 = vld [vmem:[#allocation8 + $0x6b0] sm:$0xff]
    %v2641 = vld [vmem:[#allocation8 + $0x6b8] sm:$0xff]
    %v2642 = vld [vmem:[#allocation8 + $0x6c0] sm:$0xff]
    %v2643 = vld [vmem:[#allocation8 + $0x6c8] sm:$0xff]
    %v2644 = vld [vmem:[#allocation8 + $0x6d0] sm:$0xff]
    %v2645 = vld [vmem:[#allocation8 + $0x6d8] sm:$0xff]
    %v2646 = vld [vmem:[#allocation8 + $0x6e0] sm:$0xff]
    %v2647 = vld [vmem:[#allocation8 + $0x6e8] sm:$0xff]
    %v2648 = vld [vmem:[#allocation8 + $0x6f0] sm:$0xff]
    %v2649 = vld [vmem:[#allocation8 + $0x6f8] sm:$0xff]
    %v2650 = vld [vmem:[#allocation8 + $0x700] sm:$0xff]
    %v2651 = vld [vmem:[#allocation8 + $0x708] sm:$0xff]
    %v2652 = vld [vmem:[#allocation8 + $0x710] sm:$0xff]
    %v2653 = vld [vmem:[#allocation8 + $0x718] sm:$0xff]
    %v2654 = vld [vmem:[#allocation8 + $0x720] sm:$0xff]
    %v2655 = vld [vmem:[#allocation8 + $0x728] sm:$0xff]
    %v2656 = vld [vmem:[#allocation8 + $0x730] sm:$0xff]
    %v2657 = vld [vmem:[#allocation8 + $0x738] sm:$0xff]
    %v2658 = vld [vmem:[#allocation8 + $0x740] sm:$0xff]
    %v2659 = vld [vmem:[#allocation8 + $0x748] sm:$0xff]
    %v2660 = vld [vmem:[#allocation8 + $0x750] sm:$0xff]
    %v2661 = vld [vmem:[#allocation8 + $0x758] sm:$0xff]
    %v2662 = vld [vmem:[#allocation8 + $0x760] sm:$0xff]
    %v2663 = vld [vmem:[#allocation8 + $0x768] sm:$0xff]
    %v2664 = vld [vmem:[#allocation8 + $0x770] sm:$0xff]
    %v2665 = vld [vmem:[#allocation8 + $0x778] sm:$0xff]
    %v2666 = vld [vmem:[#allocation8 + $0x780] sm:$0xff]
    %v2667 = vld [vmem:[#allocation8 + $0x788] sm:$0xff]
    %v2668 = vld [vmem:[#allocation8 + $0x790] sm:$0xff]
    %v2669 = vld [vmem:[#allocation8 + $0x798] sm:$0xff]
    %v2670 = vld [vmem:[#allocation8 + $0x7a0] sm:$0xff]
    %v2671 = vld [vmem:[#allocation8 + $0x7a8] sm:$0xff]
    %v2672 = vld [vmem:[#allocation8 + $0x7b0] sm:$0xff]
    %v2673 = vld [vmem:[#allocation8 + $0x7b8] sm:$0xff]
    %v2674 = vld [vmem:[#allocation8 + $0x7c0] sm:$0xff]
    %v2675 = vld [vmem:[#allocation8 + $0x7c8] sm:$0xff]
    %v2676 = vld [vmem:[#allocation8 + $0x7d0] sm:$0xff]
    %v2677 = vld [vmem:[#allocation8 + $0x7d8] sm:$0xff]
    %v2678 = vld [vmem:[#allocation8 + $0x7e0] sm:$0xff]
    %v2679 = vld [vmem:[#allocation8 + $0x7e8] sm:$0xff]
    %v2680 = vld [vmem:[#allocation8 + $0x7f0] sm:$0xff]
    %v2681 = vld [vmem:[#allocation8 + $0x7f8] sm:$0xff]
    %v2682 = vld [vmem:[#allocation8 + $0x800] sm:$0xff]
    %v2683 = vld [vmem:[#allocation8 + $0x808] sm:$0xff]
    %v2684 = vld [vmem:[#allocation8 + $0x810] sm:$0xff]
    %v2685 = vld [vmem:[#allocation8 + $0x818] sm:$0xff]
    %v2686 = vld [vmem:[#allocation8 + $0x820] sm:$0xff]
    %v2687 = vld [vmem:[#allocation8 + $0x828] sm:$0xff]
    %v2688 = vld [vmem:[#allocation8 + $0x830] sm:$0xff]
    %v2689 = vld [vmem:[#allocation8 + $0x838] sm:$0xff]
    %v2690 = vld [vmem:[#allocation8 + $0x840] sm:$0xff]
    %v2691 = vld [vmem:[#allocation8 + $0x848] sm:$0xff]
    %v2692 = vld [vmem:[#allocation8 + $0x850] sm:$0xff]
    %v2693 = vld [vmem:[#allocation8 + $0x858] sm:$0xff]
    %v2694 = vld [vmem:[#allocation8 + $0x860] sm:$0xff]
    %v2695 = vld [vmem:[#allocation8 + $0x868] sm:$0xff]
    %v2696 = vld [vmem:[#allocation8 + $0x870] sm:$0xff]
    %v2697 = vld [vmem:[#allocation8 + $0x878] sm:$0xff]
    %v2698 = vld [vmem:[#allocation8 + $0x880] sm:$0xff]
    %v2699 = vld [vmem:[#allocation8 + $0x888] sm:$0xff]
    %v2700 = vld [vmem:[#allocation8 + $0x890] sm:$0xff]
    %v2701 = vld [vmem:[#allocation8 + $0x898] sm:$0xff]
    %v2702 = vld [vmem:[#allocation8 + $0x8a0] sm:$0xff]
    %v2703 = vld [vmem:[#allocation8 + $0x8a8] sm:$0xff]
    %v2704 = vld [vmem:[#allocation8 + $0x8b0] sm:$0xff]
    %v2705 = vld [vmem:[#allocation8 + $0x8b8] sm:$0xff]
    %v2706 = vld [vmem:[#allocation8 + $0x8c0] sm:$0xff]
    %v2707 = vld [vmem:[#allocation8 + $0x8c8] sm:$0xff]
    %v2708 = vld [vmem:[#allocation8 + $0x8d0] sm:$0xff]
    %v2709 = vld [vmem:[#allocation8 + $0x8d8] sm:$0xff]
    %v2710 = vld [vmem:[#allocation8 + $0x8e0] sm:$0xff]
    %v2711 = vld [vmem:[#allocation8 + $0x8e8] sm:$0xff]
    %v2712 = vld [vmem:[#allocation8 + $0x8f0] sm:$0xff]
    %v2713 = vld [vmem:[#allocation8 + $0x8f8] sm:$0xff]
    %v2714 = vld [vmem:[#allocation10] sm:$0x3f]
    %v2716 = vlaneseq
    %v2717 = vshrl.u32 %v2716, 7
    %v2718 = vsub.s32 0, %v2717
    %v2719 = vrot.slane %v2714, %v2718
    %v2720 = vlaneseq
    %v2721 = vshrl.u32 %v2720, 7
    %v2722 = vsub.s32 1, %v2721
    %v2723 = vrot.slane %v2714, %v2722
    %v2724 = vlaneseq
    %v2725 = vshrl.u32 %v2724, 7
    %v2726 = vsub.s32 2, %v2725
    %v2727 = vrot.slane %v2714, %v2726
    %v2728 = vlaneseq
    %v2729 = vshrl.u32 %v2728, 7
    %v2730 = vsub.s32 3, %v2729
    %v2731 = vrot.slane %v2714, %v2730
    %v2732 = vlaneseq
    %v2733 = vshrl.u32 %v2732, 7
    %v2734 = vsub.s32 4, %v2733
    %v2735 = vrot.slane %v2714, %v2734
    %v2736 = vlaneseq
    %v2737 = vshrl.u32 %v2736, 7
    %v2738 = vsub.s32 5, %v2737
    %v2739 = vrot.slane %v2714, %v2738
    %v3034 = vunpack.c.l.b16 %v2426
    %v3035 = vunpack.c.h.b16 %v2426
    %v3036 = vunpack.c.l.b16 %v2427
    %v3037 = vunpack.c.h.b16 %v2427
    %v3038 = vunpack.c.l.b16 %v2428
    %v3039 = vunpack.c.h.b16 %v2428
    %v3040 = vunpack.c.l.b16 %v2429
    %v3041 = vunpack.c.h.b16 %v2429
    %v3042 = vunpack.c.l.b16 %v2430
    %v3043 = vunpack.c.h.b16 %v2430
    %v3044 = vunpack.c.l.b16 %v2431
    %v3045 = vunpack.c.h.b16 %v2431
    %v3046 = vunpack.c.l.b16 %v2432
    %v3047 = vunpack.c.h.b16 %v2432
    %v3048 = vunpack.c.l.b16 %v2433
    %v3049 = vunpack.c.h.b16 %v2433
    %v3050 = vunpack.c.l.b16 %v2434
    %v3051 = vunpack.c.h.b16 %v2434
    %v3052 = vunpack.c.l.b16 %v2435
    %v3053 = vunpack.c.h.b16 %v2435
    %v3054 = vunpack.c.l.b16 %v2436
    %v3055 = vunpack.c.h.b16 %v2436
    %v3056 = vunpack.c.l.b16 %v2437
    %v3057 = vunpack.c.h.b16 %v2437
    %v3058 = vunpack.c.l.b16 %v2438
    %v3059 = vunpack.c.h.b16 %v2438
    %v3060 = vunpack.c.l.b16 %v2439
    %v3061 = vunpack.c.h.b16 %v2439
    %v3062 = vunpack.c.l.b16 %v2440
    %v3063 = vunpack.c.h.b16 %v2440
    %v3064 = vunpack.c.l.b16 %v2441
    %v3065 = vunpack.c.h.b16 %v2441
    %v3066 = vunpack.c.l.b16 %v2442
    %v3067 = vunpack.c.h.b16 %v2442
    %v3068 = vunpack.c.l.b16 %v2443
    %v3069 = vunpack.c.h.b16 %v2443
    %v3070 = vunpack.c.l.b16 %v2444
    %v3071 = vunpack.c.h.b16 %v2444
    %v3072 = vunpack.c.l.b16 %v2445
    %v3073 = vunpack.c.h.b16 %v2445
    %v3074 = vunpack.c.l.b16 %v2446
    %v3075 = vunpack.c.h.b16 %v2446
    %v3076 = vunpack.c.l.b16 %v2447
    %v3077 = vunpack.c.h.b16 %v2447
    %v3078 = vunpack.c.l.b16 %v2448
    %v3079 = vunpack.c.h.b16 %v2448
    %v3080 = vunpack.c.l.b16 %v2449
    %v3081 = vunpack.c.h.b16 %v2449
    %v3082 = vunpack.c.l.b16 %v2450
    %v3083 = vunpack.c.h.b16 %v2450
    %v3084 = vunpack.c.l.b16 %v2451
    %v3085 = vunpack.c.h.b16 %v2451
    %v3086 = vunpack.c.l.b16 %v2452
    %v3087 = vunpack.c.h.b16 %v2452
    %v3088 = vunpack.c.l.b16 %v2453
    %v3089 = vunpack.c.h.b16 %v2453
    %v3090 = vunpack.c.l.b16 %v2454
    %v3091 = vunpack.c.h.b16 %v2454
    %v3092 = vunpack.c.l.b16 %v2455
    %v3093 = vunpack.c.h.b16 %v2455
    %v3094 = vunpack.c.l.b16 %v2456
    %v3095 = vunpack.c.h.b16 %v2456
    %v3096 = vunpack.c.l.b16 %v2457
    %v3097 = vunpack.c.h.b16 %v2457
    %v3098 = vunpack.c.l.b16 %v2458
    %v3099 = vunpack.c.h.b16 %v2458
    %v3100 = vunpack.c.l.b16 %v2459
    %v3101 = vunpack.c.h.b16 %v2459
    %v3102 = vunpack.c.l.b16 %v2460
    %v3103 = vunpack.c.h.b16 %v2460
    %v3104 = vunpack.c.l.b16 %v2461
    %v3105 = vunpack.c.h.b16 %v2461
    %v3106 = vunpack.c.l.b16 %v2462
    %v3107 = vunpack.c.h.b16 %v2462
    %v3108 = vunpack.c.l.b16 %v2463
    %v3109 = vunpack.c.h.b16 %v2463
    %v3110 = vunpack.c.l.b16 %v2464
    %v3111 = vunpack.c.h.b16 %v2464
    %v3112 = vunpack.c.l.b16 %v2465
    %v3113 = vunpack.c.h.b16 %v2465
    %v3114 = vunpack.c.l.b16 %v2466
    %v3115 = vunpack.c.h.b16 %v2466
    %v3116 = vunpack.c.l.b16 %v2467
    %v3117 = vunpack.c.h.b16 %v2467
    %v3118 = vunpack.c.l.b16 %v2468
    %v3119 = vunpack.c.h.b16 %v2468
    %v3120 = vunpack.c.l.b16 %v2469
    %v3121 = vunpack.c.h.b16 %v2469
    %v3122 = vunpack.c.l.b16 %v2470
    %v3123 = vunpack.c.h.b16 %v2470
    %v3124 = vunpack.c.l.b16 %v2471
    %v3125 = vunpack.c.h.b16 %v2471
    %v3126 = vunpack.c.l.b16 %v2472
    %v3127 = vunpack.c.h.b16 %v2472
    %v3128 = vunpack.c.l.b16 %v2473
    %v3129 = vunpack.c.h.b16 %v2473
    %v3130 = vunpack.c.l.b16 %v2474
    %v3131 = vunpack.c.h.b16 %v2474
    %v3132 = vunpack.c.l.b16 %v2475
    %v3133 = vunpack.c.h.b16 %v2475
    %v3134 = vunpack.c.l.b16 %v2476
    %v3135 = vunpack.c.h.b16 %v2476
    %v3136 = vunpack.c.l.b16 %v2477
    %v3137 = vunpack.c.h.b16 %v2477
    %v3138 = vunpack.c.l.b16 %v2478
    %v3139 = vunpack.c.h.b16 %v2478
    %v3140 = vunpack.c.l.b16 %v2479
    %v3141 = vunpack.c.h.b16 %v2479
    %v3142 = vunpack.c.l.b16 %v2480
    %v3143 = vunpack.c.h.b16 %v2480
    %v3144 = vunpack.c.l.b16 %v2481
    %v3145 = vunpack.c.h.b16 %v2481
    %v3146 = vunpack.c.l.b16 %v2482
    %v3147 = vunpack.c.h.b16 %v2482
    %v3148 = vunpack.c.l.b16 %v2483
    %v3149 = vunpack.c.h.b16 %v2483
    %v3150 = vunpack.c.l.b16 %v2484
    %v3151 = vunpack.c.h.b16 %v2484
    %v3152 = vunpack.c.l.b16 %v2485
    %v3153 = vunpack.c.h.b16 %v2485
    %v3154 = vunpack.c.l.b16 %v2486
    %v3155 = vunpack.c.h.b16 %v2486
    %v3156 = vunpack.c.l.b16 %v2487
    %v3157 = vunpack.c.h.b16 %v2487
    %v3158 = vunpack.c.l.b16 %v2488
    %v3159 = vunpack.c.h.b16 %v2488
    %v3160 = vunpack.c.l.b16 %v2489
    %v3161 = vunpack.c.h.b16 %v2489
    %v3162 = vunpack.c.l.b16 %v2490
    %v3163 = vunpack.c.h.b16 %v2490
    %v3164 = vunpack.c.l.b16 %v2491
    %v3165 = vunpack.c.h.b16 %v2491
    %v3166 = vunpack.c.l.b16 %v2492
    %v3167 = vunpack.c.h.b16 %v2492
    %v3168 = vunpack.c.l.b16 %v2493
    %v3169 = vunpack.c.h.b16 %v2493
    %v3170 = vunpack.c.l.b16 %v2494
    %v3171 = vunpack.c.h.b16 %v2494
    %v3172 = vunpack.c.l.b16 %v2495
    %v3173 = vunpack.c.h.b16 %v2495
    %v3174 = vunpack.c.l.b16 %v2496
    %v3175 = vunpack.c.h.b16 %v2496
    %v3176 = vunpack.c.l.b16 %v2497
    %v3177 = vunpack.c.h.b16 %v2497
    %v3178 = vunpack.c.l.b16 %v2498
    %v3179 = vunpack.c.h.b16 %v2498
    %v3180 = vunpack.c.l.b16 %v2499
    %v3181 = vunpack.c.h.b16 %v2499
    %v3182 = vunpack.c.l.b16 %v2500
    %v3183 = vunpack.c.h.b16 %v2500
    %v3184 = vunpack.c.l.b16 %v2501
    %v3185 = vunpack.c.h.b16 %v2501
    %v3186 = vunpack.c.l.b16 %v2502
    %v3187 = vunpack.c.h.b16 %v2502
    %v3188 = vunpack.c.l.b16 %v2503
    %v3189 = vunpack.c.h.b16 %v2503
    %v3190 = vunpack.c.l.b16 %v2504
    %v3191 = vunpack.c.h.b16 %v2504
    %v3192 = vunpack.c.l.b16 %v2505
    %v3193 = vunpack.c.h.b16 %v2505
    %v3194 = vunpack.c.l.b16 %v2506
    %v3195 = vunpack.c.h.b16 %v2506
    %v3196 = vunpack.c.l.b16 %v2507
    %v3197 = vunpack.c.h.b16 %v2507
    %v3198 = vunpack.c.l.b16 %v2508
    %v3199 = vunpack.c.h.b16 %v2508
    %v3200 = vunpack.c.l.b16 %v2509
    %v3201 = vunpack.c.h.b16 %v2509
    %v3202 = vunpack.c.l.b16 %v2510
    %v3203 = vunpack.c.h.b16 %v2510
    %v3204 = vunpack.c.l.b16 %v2511
    %v3205 = vunpack.c.h.b16 %v2511
    %v3206 = vunpack.c.l.b16 %v2512
    %v3207 = vunpack.c.h.b16 %v2512
    %v3208 = vunpack.c.l.b16 %v2513
    %v3209 = vunpack.c.h.b16 %v2513
    %v3210 = vunpack.c.l.b16 %v2514
    %v3211 = vunpack.c.h.b16 %v2514
    %v3212 = vunpack.c.l.b16 %v2515
    %v3213 = vunpack.c.h.b16 %v2515
    %v3214 = vunpack.c.l.b16 %v2516
    %v3215 = vunpack.c.h.b16 %v2516
    %v3216 = vunpack.c.l.b16 %v2517
    %v3217 = vunpack.c.h.b16 %v2517
    %v3218 = vunpack.c.l.b16 %v2518
    %v3219 = vunpack.c.h.b16 %v2518
    %v3220 = vunpack.c.l.b16 %v2519
    %v3221 = vunpack.c.h.b16 %v2519
    %v3222 = vunpack.c.l.b16 %v2520
    %v3223 = vunpack.c.h.b16 %v2520
    %v3224 = vunpack.c.l.b16 %v2521
    %v3225 = vunpack.c.h.b16 %v2521
    %v3226 = vunpack.c.l.b16 %v2522
    %v3227 = vunpack.c.h.b16 %v2522
    %v3228 = vunpack.c.l.b16 %v2523
    %v3229 = vunpack.c.h.b16 %v2523
    %v3230 = vunpack.c.l.b16 %v2524
    %v3231 = vunpack.c.h.b16 %v2524
    %v3232 = vunpack.c.l.b16 %v2525
    %v3233 = vunpack.c.h.b16 %v2525
    %v3234 = vunpack.c.l.b16 %v2526
    %v3235 = vunpack.c.h.b16 %v2526
    %v3236 = vunpack.c.l.b16 %v2527
    %v3237 = vunpack.c.h.b16 %v2527
    %v3238 = vunpack.c.l.b16 %v2528
    %v3239 = vunpack.c.h.b16 %v2528
    %v3240 = vunpack.c.l.b16 %v2529
    %v3241 = vunpack.c.h.b16 %v2529
    %v3242 = vunpack.c.l.b16 %v2530
    %v3243 = vunpack.c.h.b16 %v2530
    %v3244 = vunpack.c.l.b16 %v2531
    %v3245 = vunpack.c.h.b16 %v2531
    %v3246 = vunpack.c.l.b16 %v2532
    %v3247 = vunpack.c.h.b16 %v2532
    %v3248 = vunpack.c.l.b16 %v2533
    %v3249 = vunpack.c.h.b16 %v2533
    %v3250 = vunpack.c.l.b16 %v2534
    %v3251 = vunpack.c.h.b16 %v2534
    %v3252 = vunpack.c.l.b16 %v2535
    %v3253 = vunpack.c.h.b16 %v2535
    %v3254 = vunpack.c.l.b16 %v2536
    %v3255 = vunpack.c.h.b16 %v2536
    %v3256 = vunpack.c.l.b16 %v2537
    %v3257 = vunpack.c.h.b16 %v2537
    %v3258 = vunpack.c.l.b16 %v2538
    %v3259 = vunpack.c.h.b16 %v2538
    %v3260 = vunpack.c.l.b16 %v2539
    %v3261 = vunpack.c.h.b16 %v2539
    %v3262 = vunpack.c.l.b16 %v2540
    %v3263 = vunpack.c.h.b16 %v2540
    %v3264 = vunpack.c.l.b16 %v2541
    %v3265 = vunpack.c.h.b16 %v2541
    %v3266 = vunpack.c.l.b16 %v2542
    %v3267 = vunpack.c.h.b16 %v2542
    %v3268 = vunpack.c.l.b16 %v2543
    %v3269 = vunpack.c.h.b16 %v2543
    %v3270 = vunpack.c.l.b16 %v2544
    %v3271 = vunpack.c.h.b16 %v2544
    %v3272 = vunpack.c.l.b16 %v2545
    %v3273 = vunpack.c.h.b16 %v2545
    %v3274 = vunpack.c.l.b16 %v2546
    %v3275 = vunpack.c.h.b16 %v2546
    %v3276 = vunpack.c.l.b16 %v2547
    %v3277 = vunpack.c.h.b16 %v2547
    %v3278 = vunpack.c.l.b16 %v2548
    %v3279 = vunpack.c.h.b16 %v2548
    %v3280 = vunpack.c.l.b16 %v2549
    %v3281 = vunpack.c.h.b16 %v2549
    %v3282 = vunpack.c.l.b16 %v2550
    %v3283 = vunpack.c.h.b16 %v2550
    %v3284 = vunpack.c.l.b16 %v2551
    %v3285 = vunpack.c.h.b16 %v2551
    %v3286 = vunpack.c.l.b16 %v2552
    %v3287 = vunpack.c.h.b16 %v2552
    %v3288 = vunpack.c.l.b16 %v2553
    %v3289 = vunpack.c.h.b16 %v2553
    %v3290 = vunpack.c.l.b16 %v2554
    %v3291 = vunpack.c.h.b16 %v2554
    %v3292 = vunpack.c.l.b16 %v2555
    %v3293 = vunpack.c.h.b16 %v2555
    %v3294 = vunpack.c.l.b16 %v2556
    %v3295 = vunpack.c.h.b16 %v2556
    %v3296 = vunpack.c.l.b16 %v2557
    %v3297 = vunpack.c.h.b16 %v2557
    %v3298 = vunpack.c.l.b16 %v2558
    %v3299 = vunpack.c.h.b16 %v2558
    %v3300 = vunpack.c.l.b16 %v2559
    %v3301 = vunpack.c.h.b16 %v2559
    %v3302 = vunpack.c.l.b16 %v2560
    %v3303 = vunpack.c.h.b16 %v2560
    %v3304 = vunpack.c.l.b16 %v2561
    %v3305 = vunpack.c.h.b16 %v2561
    %v3306 = vunpack.c.l.b16 %v2562
    %v3307 = vunpack.c.h.b16 %v2562
    %v3308 = vunpack.c.l.b16 %v2563
    %v3309 = vunpack.c.h.b16 %v2563
    %v3310 = vunpack.c.l.b16 %v2564
    %v3311 = vunpack.c.h.b16 %v2564
    %v3312 = vunpack.c.l.b16 %v2565
    %v3313 = vunpack.c.h.b16 %v2565
    %v3314 = vunpack.c.l.b16 %v2566
    %v3315 = vunpack.c.h.b16 %v2566
    %v3316 = vunpack.c.l.b16 %v2567
    %v3317 = vunpack.c.h.b16 %v2567
    %v3318 = vunpack.c.l.b16 %v2568
    %v3319 = vunpack.c.h.b16 %v2568
    %v3320 = vunpack.c.l.b16 %v2569
    %v3321 = vunpack.c.h.b16 %v2569
    %v3322 = vunpack.c.l.b16 %v2570
    %v3323 = vunpack.c.h.b16 %v2570
    %v3324 = vunpack.c.l.b16 %v2571
    %v3325 = vunpack.c.h.b16 %v2571
    %v3326 = vunpack.c.l.b16 %v2572
    %v3327 = vunpack.c.h.b16 %v2572
    %v3328 = vunpack.c.l.b16 %v2573
    %v3329 = vunpack.c.h.b16 %v2573
    %v3330 = vunpack.c.l.b16 %v2574
    %v3331 = vunpack.c.h.b16 %v2574
    %v3332 = vunpack.c.l.b16 %v2575
    %v3333 = vunpack.c.h.b16 %v2575
    %v3334 = vunpack.c.l.b16 %v2576
    %v3335 = vunpack.c.h.b16 %v2576
    %v3336 = vunpack.c.l.b16 %v2577
    %v3337 = vunpack.c.h.b16 %v2577
    %v3338 = vunpack.c.l.b16 %v2578
    %v3339 = vunpack.c.h.b16 %v2578
    %v3340 = vunpack.c.l.b16 %v2579
    %v3341 = vunpack.c.h.b16 %v2579
    %v3342 = vunpack.c.l.b16 %v2580
    %v3343 = vunpack.c.h.b16 %v2580
    %v3344 = vunpack.c.l.b16 %v2581
    %v3345 = vunpack.c.h.b16 %v2581
    %v3346 = vunpack.c.l.b16 %v2582
    %v3347 = vunpack.c.h.b16 %v2582
    %v3348 = vunpack.c.l.b16 %v2583
    %v3349 = vunpack.c.h.b16 %v2583
    %v3350 = vunpack.c.l.b16 %v2584
    %v3351 = vunpack.c.h.b16 %v2584
    %v3352 = vunpack.c.l.b16 %v2585
    %v3353 = vunpack.c.h.b16 %v2585
    %v3354 = vunpack.c.l.b16 %v2586
    %v3355 = vunpack.c.h.b16 %v2586
    %v3356 = vunpack.c.l.b16 %v2587
    %v3357 = vunpack.c.h.b16 %v2587
    %v3358 = vunpack.c.l.b16 %v2588
    %v3359 = vunpack.c.h.b16 %v2588
    %v3360 = vunpack.c.l.b16 %v2589
    %v3361 = vunpack.c.h.b16 %v2589
    %v3362 = vunpack.c.l.b16 %v2590
    %v3363 = vunpack.c.h.b16 %v2590
    %v3364 = vunpack.c.l.b16 %v2591
    %v3365 = vunpack.c.h.b16 %v2591
    %v3366 = vunpack.c.l.b16 %v2592
    %v3367 = vunpack.c.h.b16 %v2592
    %v3368 = vunpack.c.l.b16 %v2593
    %v3369 = vunpack.c.h.b16 %v2593
    %v3370 = vunpack.c.l.b16 %v2594
    %v3371 = vunpack.c.h.b16 %v2594
    %v3372 = vunpack.c.l.b16 %v2595
    %v3373 = vunpack.c.h.b16 %v2595
    %v3374 = vunpack.c.l.b16 %v2596
    %v3375 = vunpack.c.h.b16 %v2596
    %v3376 = vunpack.c.l.b16 %v2597
    %v3377 = vunpack.c.h.b16 %v2597
    %v3378 = vunpack.c.l.b16 %v2598
    %v3379 = vunpack.c.h.b16 %v2598
    %v3380 = vunpack.c.l.b16 %v2599
    %v3381 = vunpack.c.h.b16 %v2599
    %v3382 = vunpack.c.l.b16 %v2600
    %v3383 = vunpack.c.h.b16 %v2600
    %v3384 = vunpack.c.l.b16 %v2601
    %v3385 = vunpack.c.h.b16 %v2601
    %v3386 = vunpack.c.l.b16 %v2602
    %v3387 = vunpack.c.h.b16 %v2602
    %v3388 = vunpack.c.l.b16 %v2603
    %v3389 = vunpack.c.h.b16 %v2603
    %v3390 = vunpack.c.l.b16 %v2604
    %v3391 = vunpack.c.h.b16 %v2604
    %v3392 = vunpack.c.l.b16 %v2605
    %v3393 = vunpack.c.h.b16 %v2605
    %v3394 = vunpack.c.l.b16 %v2606
    %v3395 = vunpack.c.h.b16 %v2606
    %v3396 = vunpack.c.l.b16 %v2607
    %v3397 = vunpack.c.h.b16 %v2607
    %v3398 = vunpack.c.l.b16 %v2608
    %v3399 = vunpack.c.h.b16 %v2608
    %v3400 = vunpack.c.l.b16 %v2609
    %v3401 = vunpack.c.h.b16 %v2609
    %v3402 = vunpack.c.l.b16 %v2610
    %v3403 = vunpack.c.h.b16 %v2610
    %v3404 = vunpack.c.l.b16 %v2611
    %v3405 = vunpack.c.h.b16 %v2611
    %v3406 = vunpack.c.l.b16 %v2612
    %v3407 = vunpack.c.h.b16 %v2612
    %v3408 = vunpack.c.l.b16 %v2613
    %v3409 = vunpack.c.h.b16 %v2613
    %v3410 = vunpack.c.l.b16 %v2614
    %v3411 = vunpack.c.h.b16 %v2614
    %v3412 = vunpack.c.l.b16 %v2615
    %v3413 = vunpack.c.h.b16 %v2615
    %v3414 = vunpack.c.l.b16 %v2616
    %v3415 = vunpack.c.h.b16 %v2616
    %v3416 = vunpack.c.l.b16 %v2617
    %v3417 = vunpack.c.h.b16 %v2617
    %v3418 = vunpack.c.l.b16 %v2618
    %v3419 = vunpack.c.h.b16 %v2618
    %v3420 = vunpack.c.l.b16 %v2619
    %v3421 = vunpack.c.h.b16 %v2619
    %v3422 = vunpack.c.l.b16 %v2620
    %v3423 = vunpack.c.h.b16 %v2620
    %v3424 = vunpack.c.l.b16 %v2621
    %v3425 = vunpack.c.h.b16 %v2621
    %v3426 = vunpack.c.l.b16 %v2622
    %v3427 = vunpack.c.h.b16 %v2622
    %v3428 = vunpack.c.l.b16 %v2623
    %v3429 = vunpack.c.h.b16 %v2623
    %v3430 = vunpack.c.l.b16 %v2624
    %v3431 = vunpack.c.h.b16 %v2624
    %v3432 = vunpack.c.l.b16 %v2625
    %v3433 = vunpack.c.h.b16 %v2625
    %v3434 = vunpack.c.l.b16 %v2626
    %v3435 = vunpack.c.h.b16 %v2626
    %v3436 = vunpack.c.l.b16 %v2627
    %v3437 = vunpack.c.h.b16 %v2627
    %v3438 = vunpack.c.l.b16 %v2628
    %v3439 = vunpack.c.h.b16 %v2628
    %v3440 = vunpack.c.l.b16 %v2629
    %v3441 = vunpack.c.h.b16 %v2629
    %v3442 = vunpack.c.l.b16 %v2630
    %v3443 = vunpack.c.h.b16 %v2630
    %v3444 = vunpack.c.l.b16 %v2631
    %v3445 = vunpack.c.h.b16 %v2631
    %v3446 = vunpack.c.l.b16 %v2632
    %v3447 = vunpack.c.h.b16 %v2632
    %v3448 = vunpack.c.l.b16 %v2633
    %v3449 = vunpack.c.h.b16 %v2633
    %v3450 = vunpack.c.l.b16 %v2634
    %v3451 = vunpack.c.h.b16 %v2634
    %v3452 = vunpack.c.l.b16 %v2635
    %v3453 = vunpack.c.h.b16 %v2635
    %v3454 = vunpack.c.l.b16 %v2636
    %v3455 = vunpack.c.h.b16 %v2636
    %v3456 = vunpack.c.l.b16 %v2637
    %v3457 = vunpack.c.h.b16 %v2637
    %v3458 = vunpack.c.l.b16 %v2638
    %v3459 = vunpack.c.h.b16 %v2638
    %v3460 = vunpack.c.l.b16 %v2639
    %v3461 = vunpack.c.h.b16 %v2639
    %v3462 = vunpack.c.l.b16 %v2640
    %v3463 = vunpack.c.h.b16 %v2640
    %v3464 = vunpack.c.l.b16 %v2641
    %v3465 = vunpack.c.h.b16 %v2641
    %v3466 = vunpack.c.l.b16 %v2642
    %v3467 = vunpack.c.h.b16 %v2642
    %v3468 = vunpack.c.l.b16 %v2643
    %v3469 = vunpack.c.h.b16 %v2643
    %v3470 = vunpack.c.l.b16 %v2644
    %v3471 = vunpack.c.h.b16 %v2644
    %v3472 = vunpack.c.l.b16 %v2645
    %v3473 = vunpack.c.h.b16 %v2645
    %v3474 = vunpack.c.l.b16 %v2646
    %v3475 = vunpack.c.h.b16 %v2646
    %v3476 = vunpack.c.l.b16 %v2647
    %v3477 = vunpack.c.h.b16 %v2647
    %v3478 = vunpack.c.l.b16 %v2648
    %v3479 = vunpack.c.h.b16 %v2648
    %v3480 = vunpack.c.l.b16 %v2649
    %v3481 = vunpack.c.h.b16 %v2649
    %v3482 = vunpack.c.l.b16 %v2650
    %v3483 = vunpack.c.h.b16 %v2650
    %v3484 = vunpack.c.l.b16 %v2651
    %v3485 = vunpack.c.h.b16 %v2651
    %v3486 = vunpack.c.l.b16 %v2652
    %v3487 = vunpack.c.h.b16 %v2652
    %v3488 = vunpack.c.l.b16 %v2653
    %v3489 = vunpack.c.h.b16 %v2653
    %v3490 = vunpack.c.l.b16 %v2654
    %v3491 = vunpack.c.h.b16 %v2654
    %v3492 = vunpack.c.l.b16 %v2655
    %v3493 = vunpack.c.h.b16 %v2655
    %v3494 = vunpack.c.l.b16 %v2656
    %v3495 = vunpack.c.h.b16 %v2656
    %v3496 = vunpack.c.l.b16 %v2657
    %v3497 = vunpack.c.h.b16 %v2657
    %v3498 = vunpack.c.l.b16 %v2658
    %v3499 = vunpack.c.h.b16 %v2658
    %v3500 = vunpack.c.l.b16 %v2659
    %v3501 = vunpack.c.h.b16 %v2659
    %v3502 = vunpack.c.l.b16 %v2660
    %v3503 = vunpack.c.h.b16 %v2660
    %v3504 = vunpack.c.l.b16 %v2661
    %v3505 = vunpack.c.h.b16 %v2661
    %v3506 = vunpack.c.l.b16 %v2662
    %v3507 = vunpack.c.h.b16 %v2662
    %v3508 = vunpack.c.l.b16 %v2663
    %v3509 = vunpack.c.h.b16 %v2663
    %v3510 = vunpack.c.l.b16 %v2664
    %v3511 = vunpack.c.h.b16 %v2664
    %v3512 = vunpack.c.l.b16 %v2665
    %v3513 = vunpack.c.h.b16 %v2665
    %v3514 = vunpack.c.l.b16 %v2666
    %v3515 = vunpack.c.h.b16 %v2666
    %v3516 = vunpack.c.l.b16 %v2667
    %v3517 = vunpack.c.h.b16 %v2667
    %v3518 = vunpack.c.l.b16 %v2668
    %v3519 = vunpack.c.h.b16 %v2668
    %v3520 = vunpack.c.l.b16 %v2669
    %v3521 = vunpack.c.h.b16 %v2669
    %v3522 = vunpack.c.l.b16 %v2670
    %v3523 = vunpack.c.h.b16 %v2670
    %v3524 = vunpack.c.l.b16 %v2671
    %v3525 = vunpack.c.h.b16 %v2671
    %v3526 = vunpack.c.l.b16 %v2672
    %v3527 = vunpack.c.h.b16 %v2672
    %v3528 = vunpack.c.l.b16 %v2673
    %v3529 = vunpack.c.h.b16 %v2673
    %v3530 = vunpack.c.l.b16 %v2674
    %v3531 = vunpack.c.h.b16 %v2674
    %v3532 = vunpack.c.l.b16 %v2675
    %v3533 = vunpack.c.h.b16 %v2675
    %v3534 = vunpack.c.l.b16 %v2676
    %v3535 = vunpack.c.h.b16 %v2676
    %v3536 = vunpack.c.l.b16 %v2677
    %v3537 = vunpack.c.h.b16 %v2677
    %v3538 = vunpack.c.l.b16 %v2678
    %v3539 = vunpack.c.h.b16 %v2678
    %v3540 = vunpack.c.l.b16 %v2679
    %v3541 = vunpack.c.h.b16 %v2679
    %v3542 = vunpack.c.l.b16 %v2680
    %v3543 = vunpack.c.h.b16 %v2680
    %v3544 = vunpack.c.l.b16 %v2681
    %v3545 = vunpack.c.h.b16 %v2681
    %v3546 = vunpack.c.l.b16 %v2682
    %v3547 = vunpack.c.h.b16 %v2682
    %v3548 = vunpack.c.l.b16 %v2683
    %v3549 = vunpack.c.h.b16 %v2683
    %v3550 = vunpack.c.l.b16 %v2684
    %v3551 = vunpack.c.h.b16 %v2684
    %v3552 = vunpack.c.l.b16 %v2685
    %v3553 = vunpack.c.h.b16 %v2685
    %v3554 = vunpack.c.l.b16 %v2686
    %v3555 = vunpack.c.h.b16 %v2686
    %v3556 = vunpack.c.l.b16 %v2687
    %v3557 = vunpack.c.h.b16 %v2687
    %v3558 = vunpack.c.l.b16 %v2688
    %v3559 = vunpack.c.h.b16 %v2688
    %v3560 = vunpack.c.l.b16 %v2689
    %v3561 = vunpack.c.h.b16 %v2689
    %v3562 = vunpack.c.l.b16 %v2690
    %v3563 = vunpack.c.h.b16 %v2690
    %v3564 = vunpack.c.l.b16 %v2691
    %v3565 = vunpack.c.h.b16 %v2691
    %v3566 = vunpack.c.l.b16 %v2692
    %v3567 = vunpack.c.h.b16 %v2692
    %v3568 = vunpack.c.l.b16 %v2693
    %v3569 = vunpack.c.h.b16 %v2693
    %v3570 = vunpack.c.l.b16 %v2694
    %v3571 = vunpack.c.h.b16 %v2694
    %v3572 = vunpack.c.l.b16 %v2695
    %v3573 = vunpack.c.h.b16 %v2695
    %v3574 = vunpack.c.l.b16 %v2696
    %v3575 = vunpack.c.h.b16 %v2696
    %v3576 = vunpack.c.l.b16 %v2697
    %v3577 = vunpack.c.h.b16 %v2697
    %v3578 = vunpack.c.l.b16 %v2698
    %v3579 = vunpack.c.h.b16 %v2698
    %v3580 = vunpack.c.l.b16 %v2699
    %v3581 = vunpack.c.h.b16 %v2699
    %v3582 = vunpack.c.l.b16 %v2700
    %v3583 = vunpack.c.h.b16 %v2700
    %v3584 = vunpack.c.l.b16 %v2701
    %v3585 = vunpack.c.h.b16 %v2701
    %v3586 = vunpack.c.l.b16 %v2702
    %v3587 = vunpack.c.h.b16 %v2702
    %v3588 = vunpack.c.l.b16 %v2703
    %v3589 = vunpack.c.h.b16 %v2703
    %v3590 = vunpack.c.l.b16 %v2704
    %v3591 = vunpack.c.h.b16 %v2704
    %v3592 = vunpack.c.l.b16 %v2705
    %v3593 = vunpack.c.h.b16 %v2705
    %v3594 = vunpack.c.l.b16 %v2706
    %v3595 = vunpack.c.h.b16 %v2706
    %v3596 = vunpack.c.l.b16 %v2707
    %v3597 = vunpack.c.h.b16 %v2707
    %v3598 = vunpack.c.l.b16 %v2708
    %v3599 = vunpack.c.h.b16 %v2708
    %v3600 = vunpack.c.l.b16 %v2709
    %v3601 = vunpack.c.h.b16 %v2709
    %v3602 = vunpack.c.l.b16 %v2710
    %v3603 = vunpack.c.h.b16 %v2710
    %v3604 = vunpack.c.l.b16 %v2711
    %v3605 = vunpack.c.h.b16 %v2711
    %v3606 = vunpack.c.l.b16 %v2712
    %v3607 = vunpack.c.h.b16 %v2712
    %v3608 = vunpack.c.l.b16 %v2713
    %v3609 = vunpack.c.h.b16 %v2713
    %v3610 = vpack.c.b16 %v3040, %v3034
    %v3611 = vpack.c.b16 %v3041, %v3035
    %v3612 = vpack.c.b16 %v3042, %v3036
    %v3613 = vpack.c.b16 %v3043, %v3037
    %v3614 = vpack.c.b16 %v3044, %v3038
    %v3615 = vpack.c.b16 %v3045, %v3039
    %v3616 = vpack.c.b16 %v3052, %v3046
    %v3617 = vpack.c.b16 %v3053, %v3047
    %v3618 = vpack.c.b16 %v3054, %v3048
    %v3619 = vpack.c.b16 %v3055, %v3049
    %v3620 = vpack.c.b16 %v3056, %v3050
    %v3621 = vpack.c.b16 %v3057, %v3051
    %v3622 = vpack.c.b16 %v3064, %v3058
    %v3623 = vpack.c.b16 %v3065, %v3059
    %v3624 = vpack.c.b16 %v3066, %v3060
    %v3625 = vpack.c.b16 %v3067, %v3061
    %v3626 = vpack.c.b16 %v3068, %v3062
    %v3627 = vpack.c.b16 %v3069, %v3063
    %v3628 = vpack.c.b16 %v3076, %v3070
    %v3629 = vpack.c.b16 %v3077, %v3071
    %v3630 = vpack.c.b16 %v3078, %v3072
    %v3631 = vpack.c.b16 %v3079, %v3073
    %v3632 = vpack.c.b16 %v3080, %v3074
    %v3633 = vpack.c.b16 %v3081, %v3075
    %v3634 = vpack.c.b16 %v3088, %v3082
    %v3635 = vpack.c.b16 %v3089, %v3083
    %v3636 = vpack.c.b16 %v3090, %v3084
    %v3637 = vpack.c.b16 %v3091, %v3085
    %v3638 = vpack.c.b16 %v3092, %v3086
    %v3639 = vpack.c.b16 %v3093, %v3087
    %v3640 = vpack.c.b16 %v3100, %v3094
    %v3641 = vpack.c.b16 %v3101, %v3095
    %v3642 = vpack.c.b16 %v3102, %v3096
    %v3643 = vpack.c.b16 %v3103, %v3097
    %v3644 = vpack.c.b16 %v3104, %v3098
    %v3645 = vpack.c.b16 %v3105, %v3099
    %v3646 = vpack.c.b16 %v3112, %v3106
    %v3647 = vpack.c.b16 %v3113, %v3107
    %v3648 = vpack.c.b16 %v3114, %v3108
    %v3649 = vpack.c.b16 %v3115, %v3109
    %v3650 = vpack.c.b16 %v3116, %v3110
    %v3651 = vpack.c.b16 %v3117, %v3111
    %v3652 = vpack.c.b16 %v3124, %v3118
    %v3653 = vpack.c.b16 %v3125, %v3119
    %v3654 = vpack.c.b16 %v3126, %v3120
    %v3655 = vpack.c.b16 %v3127, %v3121
    %v3656 = vpack.c.b16 %v3128, %v3122
    %v3657 = vpack.c.b16 %v3129, %v3123
    %v3658 = vpack.c.b16 %v3136, %v3130
    %v3659 = vpack.c.b16 %v3137, %v3131
    %v3660 = vpack.c.b16 %v3138, %v3132
    %v3661 = vpack.c.b16 %v3139, %v3133
    %v3662 = vpack.c.b16 %v3140, %v3134
    %v3663 = vpack.c.b16 %v3141, %v3135
    %v3664 = vpack.c.b16 %v3148, %v3142
    %v3665 = vpack.c.b16 %v3149, %v3143
    %v3666 = vpack.c.b16 %v3150, %v3144
    %v3667 = vpack.c.b16 %v3151, %v3145
    %v3668 = vpack.c.b16 %v3152, %v3146
    %v3669 = vpack.c.b16 %v3153, %v3147
    %v3670 = vpack.c.b16 %v3160, %v3154
    %v3671 = vpack.c.b16 %v3161, %v3155
    %v3672 = vpack.c.b16 %v3162, %v3156
    %v3673 = vpack.c.b16 %v3163, %v3157
    %v3674 = vpack.c.b16 %v3164, %v3158
    %v3675 = vpack.c.b16 %v3165, %v3159
    %v3676 = vpack.c.b16 %v3172, %v3166
    %v3677 = vpack.c.b16 %v3173, %v3167
    %v3678 = vpack.c.b16 %v3174, %v3168
    %v3679 = vpack.c.b16 %v3175, %v3169
    %v3680 = vpack.c.b16 %v3176, %v3170
    %v3681 = vpack.c.b16 %v3177, %v3171
    %v3682 = vpack.c.b16 %v3184, %v3178
    %v3683 = vpack.c.b16 %v3185, %v3179
    %v3684 = vpack.c.b16 %v3186, %v3180
    %v3685 = vpack.c.b16 %v3187, %v3181
    %v3686 = vpack.c.b16 %v3188, %v3182
    %v3687 = vpack.c.b16 %v3189, %v3183
    %v3688 = vpack.c.b16 %v3196, %v3190
    %v3689 = vpack.c.b16 %v3197, %v3191
    %v3690 = vpack.c.b16 %v3198, %v3192
    %v3691 = vpack.c.b16 %v3199, %v3193
    %v3692 = vpack.c.b16 %v3200, %v3194
    %v3693 = vpack.c.b16 %v3201, %v3195
    %v3694 = vpack.c.b16 %v3208, %v3202
    %v3695 = vpack.c.b16 %v3209, %v3203
    %v3696 = vpack.c.b16 %v3210, %v3204
    %v3697 = vpack.c.b16 %v3211, %v3205
    %v3698 = vpack.c.b16 %v3212, %v3206
    %v3699 = vpack.c.b16 %v3213, %v3207
    %v3700 = vpack.c.b16 %v3220, %v3214
    %v3701 = vpack.c.b16 %v3221, %v3215
    %v3702 = vpack.c.b16 %v3222, %v3216
    %v3703 = vpack.c.b16 %v3223, %v3217
    %v3704 = vpack.c.b16 %v3224, %v3218
    %v3705 = vpack.c.b16 %v3225, %v3219
    %v3706 = vpack.c.b16 %v3232, %v3226
    %v3707 = vpack.c.b16 %v3233, %v3227
    %v3708 = vpack.c.b16 %v3234, %v3228
    %v3709 = vpack.c.b16 %v3235, %v3229
    %v3710 = vpack.c.b16 %v3236, %v3230
    %v3711 = vpack.c.b16 %v3237, %v3231
    %v3712 = vpack.c.b16 %v3244, %v3238
    %v3713 = vpack.c.b16 %v3245, %v3239
    %v3714 = vpack.c.b16 %v3246, %v3240
    %v3715 = vpack.c.b16 %v3247, %v3241
    %v3716 = vpack.c.b16 %v3248, %v3242
    %v3717 = vpack.c.b16 %v3249, %v3243
    %v3718 = vpack.c.b16 %v3256, %v3250
    %v3719 = vpack.c.b16 %v3257, %v3251
    %v3720 = vpack.c.b16 %v3258, %v3252
    %v3721 = vpack.c.b16 %v3259, %v3253
    %v3722 = vpack.c.b16 %v3260, %v3254
    %v3723 = vpack.c.b16 %v3261, %v3255
    %v3724 = vpack.c.b16 %v3268, %v3262
    %v3725 = vpack.c.b16 %v3269, %v3263
    %v3726 = vpack.c.b16 %v3270, %v3264
    %v3727 = vpack.c.b16 %v3271, %v3265
    %v3728 = vpack.c.b16 %v3272, %v3266
    %v3729 = vpack.c.b16 %v3273, %v3267
    %v3730 = vpack.c.b16 %v3280, %v3274
    %v3731 = vpack.c.b16 %v3281, %v3275
    %v3732 = vpack.c.b16 %v3282, %v3276
    %v3733 = vpack.c.b16 %v3283, %v3277
    %v3734 = vpack.c.b16 %v3284, %v3278
    %v3735 = vpack.c.b16 %v3285, %v3279
    %v3736 = vpack.c.b16 %v3292, %v3286
    %v3737 = vpack.c.b16 %v3293, %v3287
    %v3738 = vpack.c.b16 %v3294, %v3288
    %v3739 = vpack.c.b16 %v3295, %v3289
    %v3740 = vpack.c.b16 %v3296, %v3290
    %v3741 = vpack.c.b16 %v3297, %v3291
    %v3742 = vpack.c.b16 %v3304, %v3298
    %v3743 = vpack.c.b16 %v3305, %v3299
    %v3744 = vpack.c.b16 %v3306, %v3300
    %v3745 = vpack.c.b16 %v3307, %v3301
    %v3746 = vpack.c.b16 %v3308, %v3302
    %v3747 = vpack.c.b16 %v3309, %v3303
    %v3748 = vpack.c.b16 %v3316, %v3310
    %v3749 = vpack.c.b16 %v3317, %v3311
    %v3750 = vpack.c.b16 %v3318, %v3312
    %v3751 = vpack.c.b16 %v3319, %v3313
    %v3752 = vpack.c.b16 %v3320, %v3314
    %v3753 = vpack.c.b16 %v3321, %v3315
    %v3754 = vpack.c.b16 %v3328, %v3322
    %v3755 = vpack.c.b16 %v3329, %v3323
    %v3756 = vpack.c.b16 %v3330, %v3324
    %v3757 = vpack.c.b16 %v3331, %v3325
    %v3758 = vpack.c.b16 %v3332, %v3326
    %v3759 = vpack.c.b16 %v3333, %v3327
    %v3760 = vpack.c.b16 %v3340, %v3334
    %v3761 = vpack.c.b16 %v3341, %v3335
    %v3762 = vpack.c.b16 %v3342, %v3336
    %v3763 = vpack.c.b16 %v3343, %v3337
    %v3764 = vpack.c.b16 %v3344, %v3338
    %v3765 = vpack.c.b16 %v3345, %v3339
    %v3766 = vpack.c.b16 %v3352, %v3346
    %v3767 = vpack.c.b16 %v3353, %v3347
    %v3768 = vpack.c.b16 %v3354, %v3348
    %v3769 = vpack.c.b16 %v3355, %v3349
    %v3770 = vpack.c.b16 %v3356, %v3350
    %v3771 = vpack.c.b16 %v3357, %v3351
    %v3772 = vpack.c.b16 %v3364, %v3358
    %v3773 = vpack.c.b16 %v3365, %v3359
    %v3774 = vpack.c.b16 %v3366, %v3360
    %v3775 = vpack.c.b16 %v3367, %v3361
    %v3776 = vpack.c.b16 %v3368, %v3362
    %v3777 = vpack.c.b16 %v3369, %v3363
    %v3778 = vpack.c.b16 %v3376, %v3370
    %v3779 = vpack.c.b16 %v3377, %v3371
    %v3780 = vpack.c.b16 %v3378, %v3372
    %v3781 = vpack.c.b16 %v3379, %v3373
    %v3782 = vpack.c.b16 %v3380, %v3374
    %v3783 = vpack.c.b16 %v3381, %v3375
    %v3784 = vpack.c.b16 %v3388, %v3382
    %v3785 = vpack.c.b16 %v3389, %v3383
    %v3786 = vpack.c.b16 %v3390, %v3384
    %v3787 = vpack.c.b16 %v3391, %v3385
    %v3788 = vpack.c.b16 %v3392, %v3386
    %v3789 = vpack.c.b16 %v3393, %v3387
    %v3790 = vpack.c.b16 %v3400, %v3394
    %v3791 = vpack.c.b16 %v3401, %v3395
    %v3792 = vpack.c.b16 %v3402, %v3396
    %v3793 = vpack.c.b16 %v3403, %v3397
    %v3794 = vpack.c.b16 %v3404, %v3398
    %v3795 = vpack.c.b16 %v3405, %v3399
    %v3796 = vpack.c.b16 %v3412, %v3406
    %v3797 = vpack.c.b16 %v3413, %v3407
    %v3798 = vpack.c.b16 %v3414, %v3408
    %v3799 = vpack.c.b16 %v3415, %v3409
    %v3800 = vpack.c.b16 %v3416, %v3410
    %v3801 = vpack.c.b16 %v3417, %v3411
    %v3802 = vpack.c.b16 %v3424, %v3418
    %v3803 = vpack.c.b16 %v3425, %v3419
    %v3804 = vpack.c.b16 %v3426, %v3420
    %v3805 = vpack.c.b16 %v3427, %v3421
    %v3806 = vpack.c.b16 %v3428, %v3422
    %v3807 = vpack.c.b16 %v3429, %v3423
    %v3808 = vpack.c.b16 %v3436, %v3430
    %v3809 = vpack.c.b16 %v3437, %v3431
    %v3810 = vpack.c.b16 %v3438, %v3432
    %v3811 = vpack.c.b16 %v3439, %v3433
    %v3812 = vpack.c.b16 %v3440, %v3434
    %v3813 = vpack.c.b16 %v3441, %v3435
    %v3814 = vpack.c.b16 %v3448, %v3442
    %v3815 = vpack.c.b16 %v3449, %v3443
    %v3816 = vpack.c.b16 %v3450, %v3444
    %v3817 = vpack.c.b16 %v3451, %v3445
    %v3818 = vpack.c.b16 %v3452, %v3446
    %v3819 = vpack.c.b16 %v3453, %v3447
    %v3820 = vpack.c.b16 %v3460, %v3454
    %v3821 = vpack.c.b16 %v3461, %v3455
    %v3822 = vpack.c.b16 %v3462, %v3456
    %v3823 = vpack.c.b16 %v3463, %v3457
    %v3824 = vpack.c.b16 %v3464, %v3458
    %v3825 = vpack.c.b16 %v3465, %v3459
    %v3826 = vpack.c.b16 %v3472, %v3466
    %v3827 = vpack.c.b16 %v3473, %v3467
    %v3828 = vpack.c.b16 %v3474, %v3468
    %v3829 = vpack.c.b16 %v3475, %v3469
    %v3830 = vpack.c.b16 %v3476, %v3470
    %v3831 = vpack.c.b16 %v3477, %v3471
    %v3832 = vpack.c.b16 %v3484, %v3478
    %v3833 = vpack.c.b16 %v3485, %v3479
    %v3834 = vpack.c.b16 %v3486, %v3480
    %v3835 = vpack.c.b16 %v3487, %v3481
    %v3836 = vpack.c.b16 %v3488, %v3482
    %v3837 = vpack.c.b16 %v3489, %v3483
    %v3838 = vpack.c.b16 %v3496, %v3490
    %v3839 = vpack.c.b16 %v3497, %v3491
    %v3840 = vpack.c.b16 %v3498, %v3492
    %v3841 = vpack.c.b16 %v3499, %v3493
    %v3842 = vpack.c.b16 %v3500, %v3494
    %v3843 = vpack.c.b16 %v3501, %v3495
    %v3844 = vpack.c.b16 %v3508, %v3502
    %v3845 = vpack.c.b16 %v3509, %v3503
    %v3846 = vpack.c.b16 %v3510, %v3504
    %v3847 = vpack.c.b16 %v3511, %v3505
    %v3848 = vpack.c.b16 %v3512, %v3506
    %v3849 = vpack.c.b16 %v3513, %v3507
    %v3850 = vpack.c.b16 %v3520, %v3514
    %v3851 = vpack.c.b16 %v3521, %v3515
    %v3852 = vpack.c.b16 %v3522, %v3516
    %v3853 = vpack.c.b16 %v3523, %v3517
    %v3854 = vpack.c.b16 %v3524, %v3518
    %v3855 = vpack.c.b16 %v3525, %v3519
    %v3856 = vpack.c.b16 %v3532, %v3526
    %v3857 = vpack.c.b16 %v3533, %v3527
    %v3858 = vpack.c.b16 %v3534, %v3528
    %v3859 = vpack.c.b16 %v3535, %v3529
    %v3860 = vpack.c.b16 %v3536, %v3530
    %v3861 = vpack.c.b16 %v3537, %v3531
    %v3862 = vpack.c.b16 %v3544, %v3538
    %v3863 = vpack.c.b16 %v3545, %v3539
    %v3864 = vpack.c.b16 %v3546, %v3540
    %v3865 = vpack.c.b16 %v3547, %v3541
    %v3866 = vpack.c.b16 %v3548, %v3542
    %v3867 = vpack.c.b16 %v3549, %v3543
    %v3868 = vpack.c.b16 %v3556, %v3550
    %v3869 = vpack.c.b16 %v3557, %v3551
    %v3870 = vpack.c.b16 %v3558, %v3552
    %v3871 = vpack.c.b16 %v3559, %v3553
    %v3872 = vpack.c.b16 %v3560, %v3554
    %v3873 = vpack.c.b16 %v3561, %v3555
    %v3874 = vpack.c.b16 %v3568, %v3562
    %v3875 = vpack.c.b16 %v3569, %v3563
    %v3876 = vpack.c.b16 %v3570, %v3564
    %v3877 = vpack.c.b16 %v3571, %v3565
    %v3878 = vpack.c.b16 %v3572, %v3566
    %v3879 = vpack.c.b16 %v3573, %v3567
    %v3880 = vpack.c.b16 %v3580, %v3574
    %v3881 = vpack.c.b16 %v3581, %v3575
    %v3882 = vpack.c.b16 %v3582, %v3576
    %v3883 = vpack.c.b16 %v3583, %v3577
    %v3884 = vpack.c.b16 %v3584, %v3578
    %v3885 = vpack.c.b16 %v3585, %v3579
    %v3886 = vpack.c.b16 %v3592, %v3586
    %v3887 = vpack.c.b16 %v3593, %v3587
    %v3888 = vpack.c.b16 %v3594, %v3588
    %v3889 = vpack.c.b16 %v3595, %v3589
    %v3890 = vpack.c.b16 %v3596, %v3590
    %v3891 = vpack.c.b16 %v3597, %v3591
    %v3892 = vpack.c.b16 %v3604, %v3598
    %v3893 = vpack.c.b16 %v3605, %v3599
    %v3894 = vpack.c.b16 %v3606, %v3600
    %v3895 = vpack.c.b16 %v3607, %v3601
    %v3896 = vpack.c.b16 %v3608, %v3602
    %v3897 = vpack.c.b16 %v3609, %v3603
    %4186 = vmatprep.subr.bf16.mxu0 %v3611
    %4187 = vmatpush1.bf16.msra.mxu0 %v3610
    %4188 = vmatprep.subr.bf16.mxu0 %v3617
    %4189 = vmatpush1.bf16.msra.mxu0 %v3616
    %4190 = vmatprep.subr.bf16.mxu0 %v3623
    %4191 = vmatpush1.bf16.msra.mxu0 %v3622
    %4192 = vmatprep.subr.bf16.mxu0 %v3629
    %4193 = vmatpush1.bf16.msra.mxu0 %v3628
    %4194 = vmatprep.subr.bf16.mxu0 %v3635
    %4195 = vmatpush1.bf16.msra.mxu0 %v3634
    %4196 = vmatprep.subr.bf16.mxu0 %v3641
    %4197 = vmatpush1.bf16.msra.mxu0 %v3640
    %4198 = vmatprep.subr.bf16.mxu0 %v3647
    %4199 = vmatpush1.bf16.msra.mxu0 %v3646
    %4200 = vmatprep.subr.bf16.mxu0 %v3653
    %4201 = vmatpush1.bf16.msra.mxu0 %v3652
    %4202 = vmatprep.subr.bf16.mxu0 %v3659
    %4203 = vmatpush1.bf16.msra.mxu0 %v3658
    %4204 = vmatprep.subr.bf16.mxu0 %v3665
    %4205 = vmatpush1.bf16.msra.mxu0 %v3664
    %4206 = vmatprep.subr.bf16.mxu0 %v3671
    %4207 = vmatpush1.bf16.msra.mxu0 %v3670
    %4208 = vmatprep.subr.bf16.mxu0 %v3677
    %4209 = vmatpush1.bf16.msra.mxu0 %v3676
    %4210 = vmatprep.subr.bf16.mxu0 %v3683
    %4211 = vmatpush1.bf16.msra.mxu0 %v3682
    %4212 = vmatprep.subr.bf16.mxu0 %v3689
    %4213 = vmatpush1.bf16.msra.mxu0 %v3688
    %4214 = vmatprep.subr.bf16.mxu0 %v3695
    %4215 = vmatpush1.bf16.msra.mxu0 %v3694
    %4216 = vmatprep.subr.bf16.mxu0 %v3701
    %4217 = vmatpush1.bf16.msra.mxu0 %v3700
    %4218 = vmatprep.mubr.bf16.mxu0 %v2421
    %4219 = vmatmul.mubr.bf16.gmra.mrb[0].mxu0 %v2420
    %v4220 = vpop.f32.mrb[0].mxu0
    %v4221 = vadd.f32 %v2719, %v4220
    %v4222 = vpop.f32.mrb[0].mxu0
    %v4223 = vadd.f32 %v2723, %v4222
    %v4224 = vpop.f32.mrb[0].mxu0
    %v4225 = vadd.f32 %v2719, %v4224
    %v4226 = vpop.f32.mrb[0].mxu0
    %v4227 = vadd.f32 %v2723, %v4226
    %4228 = vdwg.mxu0
    %4229 = vmatprep.subr.bf16.mxu0 %v3707
    %4230 = vmatpush1.bf16.msra.mxu0 %v3706
    %4231 = vmatprep.subr.bf16.mxu0 %v3713
    %4232 = vmatpush1.bf16.msra.mxu0 %v3712
    %4233 = vmatprep.subr.bf16.mxu0 %v3719
    %4234 = vmatpush1.bf16.msra.mxu0 %v3718
    %4235 = vmatprep.subr.bf16.mxu0 %v3725
    %4236 = vmatpush1.bf16.msra.mxu0 %v3724
    %4237 = vmatprep.subr.bf16.mxu0 %v3731
    %4238 = vmatpush1.bf16.msra.mxu0 %v3730
    %4239 = vmatprep.subr.bf16.mxu0 %v3737
    %4240 = vmatpush1.bf16.msra.mxu0 %v3736
    %4241 = vmatprep.subr.bf16.mxu0 %v3743
    %4242 = vmatpush1.bf16.msra.mxu0 %v3742
    %4243 = vmatprep.subr.bf16.mxu0 %v3749
    %4244 = vmatpush1.bf16.msra.mxu0 %v3748
    %4245 = vmatprep.subr.bf16.mxu0 %v3755
    %4246 = vmatpush1.bf16.msra.mxu0 %v3754
    %4247 = vmatprep.subr.bf16.mxu0 %v3761
    %4248 = vmatpush1.bf16.msra.mxu0 %v3760
    %4249 = vmatprep.subr.bf16.mxu0 %v3767
    %4250 = vmatpush1.bf16.msra.mxu0 %v3766
    %4251 = vmatprep.subr.bf16.mxu0 %v3773
    %4252 = vmatpush1.bf16.msra.mxu0 %v3772
    %4253 = vmatprep.subr.bf16.mxu0 %v3779
    %4254 = vmatpush1.bf16.msra.mxu0 %v3778
    %4255 = vmatprep.subr.bf16.mxu0 %v3785
    %4256 = vmatpush1.bf16.msra.mxu0 %v3784
    %4257 = vmatprep.subr.bf16.mxu0 %v3791
    %4258 = vmatpush1.bf16.msra.mxu0 %v3790
    %4259 = vmatprep.subr.bf16.mxu0 %v3797
    %4260 = vmatpush1.bf16.msra.mxu0 %v3796
    %4261 = vmatprep.mubr.bf16.mxu0 %v2423
    %4262 = vmatmul.mubr.bf16.gmra.mrb[0].mxu0 %v2422
    %v4263 = vpop.f32.mrb[0].mxu0
    %v4264 = vadd.f32 %v4221, %v4263
    %v4265 = vpop.f32.mrb[0].mxu0
    %v4266 = vadd.f32 %v4223, %v4265
    %v4267 = vpop.f32.mrb[0].mxu0
    %v4268 = vadd.f32 %v4225, %v4267
    %v4269 = vpop.f32.mrb[0].mxu0
    %v4270 = vadd.f32 %v4227, %v4269
    %4271 = vdwg.mxu0
    %4272 = vmatprep.subr.bf16.mxu0 %v3803
    %4273 = vmatpush1.bf16.msra.mxu0 %v3802
    %4274 = vmatprep.subr.bf16.mxu0 %v3809
    %4275 = vmatpush1.bf16.msra.mxu0 %v3808
    %4276 = vmatprep.subr.bf16.mxu0 %v3815
    %4277 = vmatpush1.bf16.msra.mxu0 %v3814
    %4278 = vmatprep.subr.bf16.mxu0 %v3821
    %4279 = vmatpush1.bf16.msra.mxu0 %v3820
    %4280 = vmatprep.subr.bf16.mxu0 %v3827
    %4281 = vmatpush1.bf16.msra.mxu0 %v3826
    %4282 = vmatprep.subr.bf16.mxu0 %v3833
    %4283 = vmatpush1.bf16.msra.mxu0 %v3832
    %4284 = vmatprep.subr.bf16.mxu0 %v3839
    %4285 = vmatpush1.bf16.msra.mxu0 %v3838
    %4286 = vmatprep.subr.bf16.mxu0 %v3845
    %4287 = vmatpush1.bf16.msra.mxu0 %v3844
    %4288 = vmatprep.subr.bf16.mxu0 %v3851
    %4289 = vmatpush1.bf16.msra.mxu0 %v3850
    %4290 = vmatprep.subr.bf16.mxu0 %v3857
    %4291 = vmatpush1.bf16.msra.mxu0 %v3856
    %4292 = vmatprep.subr.bf16.mxu0 %v3863
    %4293 = vmatpush1.bf16.msra.mxu0 %v3862
    %4294 = vmatprep.subr.bf16.mxu0 %v3869
    %4295 = vmatpush1.bf16.msra.mxu0 %v3868
    %4296 = vmatprep.subr.bf16.mxu0 %v3875
    %4297 = vmatpush1.bf16.msra.mxu0 %v3874
    %4298 = vmatprep.subr.bf16.mxu0 %v3881
    %4299 = vmatpush1.bf16.msra.mxu0 %v3880
    %4300 = vmatprep.subr.bf16.mxu0 %v3887
    %4301 = vmatpush1.bf16.msra.mxu0 %v3886
    %4302 = vmatprep.subr.bf16.mxu0 %v3893
    %4303 = vmatpush1.bf16.msra.mxu0 %v3892
    %4304 = vmatprep.mubr.bf16.mxu0 %v2425
    %4305 = vmatmul.mubr.bf16.gmra.mrb[0].mxu0 %v2424
    %v4306 = vpop.f32.mrb[0].mxu0
    %v4307 = vadd.f32 %v4264, %v4306
    %v4308 = vpop.f32.mrb[0].mxu0
    %v4309 = vadd.f32 %v4266, %v4308
    %v4310 = vpop.f32.mrb[0].mxu0
    %v4311 = vadd.f32 %v4268, %v4310
    %v4312 = vpop.f32.mrb[0].mxu0
    %v4313 = vadd.f32 %v4270, %v4312
    %4314 = vdwg.mxu0
    %4315 = vmatprep.subr.bf16.mxu0 %v3613
    %4316 = vmatpush1.bf16.msra.mxu0 %v3612
    %4317 = vmatprep.subr.bf16.mxu0 %v3619
    %4318 = vmatpush1.bf16.msra.mxu0 %v3618
    %4319 = vmatprep.subr.bf16.mxu0 %v3625
    %4320 = vmatpush1.bf16.msra.mxu0 %v3624
    %4321 = vmatprep.subr.bf16.mxu0 %v3631
    %4322 = vmatpush1.bf16.msra.mxu0 %v3630
    %4323 = vmatprep.subr.bf16.mxu0 %v3637
    %4324 = vmatpush1.bf16.msra.mxu0 %v3636
    %4325 = vmatprep.subr.bf16.mxu0 %v3643
    %4326 = vmatpush1.bf16.msra.mxu0 %v3642
    %4327 = vmatprep.subr.bf16.mxu0 %v3649
    %4328 = vmatpush1.bf16.msra.mxu0 %v3648
    %4329 = vmatprep.subr.bf16.mxu0 %v3655
    %4330 = vmatpush1.bf16.msra.mxu0 %v3654
    %4331 = vmatprep.subr.bf16.mxu0 %v3661
    %4332 = vmatpush1.bf16.msra.mxu0 %v3660
    %4333 = vmatprep.subr.bf16.mxu0 %v3667
    %4334 = vmatpush1.bf16.msra.mxu0 %v3666
    %4335 = vmatprep.subr.bf16.mxu0 %v3673
    %4336 = vmatpush1.bf16.msra.mxu0 %v3672
    %4337 = vmatprep.subr.bf16.mxu0 %v3679
    %4338 = vmatpush1.bf16.msra.mxu0 %v3678
    %4339 = vmatprep.subr.bf16.mxu0 %v3685
    %4340 = vmatpush1.bf16.msra.mxu0 %v3684
    %4341 = vmatprep.subr.bf16.mxu0 %v3691
    %4342 = vmatpush1.bf16.msra.mxu0 %v3690
    %4343 = vmatprep.subr.bf16.mxu0 %v3697
    %4344 = vmatpush1.bf16.msra.mxu0 %v3696
    %4345 = vmatprep.subr.bf16.mxu0 %v3703
    %4346 = vmatpush1.bf16.msra.mxu0 %v3702
    %4347 = vmatprep.mubr.bf16.mxu0 %v2421
    %4348 = vmatmul.mubr.bf16.gmra.mrb[0].mxu0 %v2420
    %v4349 = vpop.f32.mrb[0].mxu0
    %v4350 = vadd.f32 %v2727, %v4349
    %v4351 = vpop.f32.mrb[0].mxu0
    %v4352 = vadd.f32 %v2731, %v4351
    %v4353 = vpop.f32.mrb[0].mxu0
    %v4354 = vadd.f32 %v2727, %v4353
    %v4355 = vpop.f32.mrb[0].mxu0
    %v4356 = vadd.f32 %v2731, %v4355
    %4357 = vdwg.mxu0
    %4358 = vmatprep.subr.bf16.mxu0 %v3709
    %4359 = vmatpush1.bf16.msra.mxu0 %v3708
    %4360 = vmatprep.subr.bf16.mxu0 %v3715
    %4361 = vmatpush1.bf16.msra.mxu0 %v3714
    %4362 = vmatprep.subr.bf16.mxu0 %v3721
    %4363 = vmatpush1.bf16.msra.mxu0 %v3720
    %4364 = vmatprep.subr.bf16.mxu0 %v3727
    %4365 = vmatpush1.bf16.msra.mxu0 %v3726
    %4366 = vmatprep.subr.bf16.mxu0 %v3733
    %4367 = vmatpush1.bf16.msra.mxu0 %v3732
    %4368 = vmatprep.subr.bf16.mxu0 %v3739
    %4369 = vmatpush1.bf16.msra.mxu0 %v3738
    %4370 = vmatprep.subr.bf16.mxu0 %v3745
    %4371 = vmatpush1.bf16.msra.mxu0 %v3744
    %4372 = vmatprep.subr.bf16.mxu0 %v3751
    %4373 = vmatpush1.bf16.msra.mxu0 %v3750
    %4374 = vmatprep.subr.bf16.mxu0 %v3757
    %4375 = vmatpush1.bf16.msra.mxu0 %v3756
    %4376 = vmatprep.subr.bf16.mxu0 %v3763
    %4377 = vmatpush1.bf16.msra.mxu0 %v3762
    %4378 = vmatprep.subr.bf16.mxu0 %v3769
    %4379 = vmatpush1.bf16.msra.mxu0 %v3768
    %4380 = vmatprep.subr.bf16.mxu0 %v3775
    %4381 = vmatpush1.bf16.msra.mxu0 %v3774
    %4382 = vmatprep.subr.bf16.mxu0 %v3781
    %4383 = vmatpush1.bf16.msra.mxu0 %v3780
    %4384 = vmatprep.subr.bf16.mxu0 %v3787
    %4385 = vmatpush1.bf16.msra.mxu0 %v3786
    %4386 = vmatprep.subr.bf16.mxu0 %v3793
    %4387 = vmatpush1.bf16.msra.mxu0 %v3792
    %4388 = vmatprep.subr.bf16.mxu0 %v3799
    %4389 = vmatpush1.bf16.msra.mxu0 %v3798
    %4390 = vmatprep.mubr.bf16.mxu0 %v2423
    %4391 = vmatmul.mubr.bf16.gmra.mrb[0].mxu0 %v2422
    %v4392 = vpop.f32.mrb[0].mxu0
    %v4393 = vadd.f32 %v4350, %v4392
    %v4394 = vpop.f32.mrb[0].mxu0
    %v4395 = vadd.f32 %v4352, %v4394
    %v4396 = vpop.f32.mrb[0].mxu0
    %v4397 = vadd.f32 %v4354, %v4396
    %v4398 = vpop.f32.mrb[0].mxu0
    %v4399 = vadd.f32 %v4356, %v4398
    %4400 = vdwg.mxu0
    %4401 = vmatprep.subr.bf16.mxu0 %v3805
    %4402 = vmatpush1.bf16.msra.mxu0 %v3804
    %4403 = vmatprep.subr.bf16.mxu0 %v3811
    %4404 = vmatpush1.bf16.msra.mxu0 %v3810
    %4405 = vmatprep.subr.bf16.mxu0 %v3817
    %4406 = vmatpush1.bf16.msra.mxu0 %v3816
    %4407 = vmatprep.subr.bf16.mxu0 %v3823
    %4408 = vmatpush1.bf16.msra.mxu0 %v3822
    %4409 = vmatprep.subr.bf16.mxu0 %v3829
    %4410 = vmatpush1.bf16.msra.mxu0 %v3828
    %4411 = vmatprep.subr.bf16.mxu0 %v3835
    %4412 = vmatpush1.bf16.msra.mxu0 %v3834
    %4413 = vmatprep.subr.bf16.mxu0 %v3841
    %4414 = vmatpush1.bf16.msra.mxu0 %v3840
    %4415 = vmatprep.subr.bf16.mxu0 %v3847
    %4416 = vmatpush1.bf16.msra.mxu0 %v3846
    %4417 = vmatprep.subr.bf16.mxu0 %v3853
    %4418 = vmatpush1.bf16.msra.mxu0 %v3852
    %4419 = vmatprep.subr.bf16.mxu0 %v3859
    %4420 = vmatpush1.bf16.msra.mxu0 %v3858
    %4421 = vmatprep.subr.bf16.mxu0 %v3865
    %4422 = vmatpush1.bf16.msra.mxu0 %v3864
    %4423 = vmatprep.subr.bf16.mxu0 %v3871
    %4424 = vmatpush1.bf16.msra.mxu0 %v3870
    %4425 = vmatprep.subr.bf16.mxu0 %v3877
    %4426 = vmatpush1.bf16.msra.mxu0 %v3876
    %4427 = vmatprep.subr.bf16.mxu0 %v3883
    %4428 = vmatpush1.bf16.msra.mxu0 %v3882
    %4429 = vmatprep.subr.bf16.mxu0 %v3889
    %4430 = vmatpush1.bf16.msra.mxu0 %v3888
    %4431 = vmatprep.subr.bf16.mxu0 %v3895
    %4432 = vmatpush1.bf16.msra.mxu0 %v3894
    %4433 = vmatprep.mubr.bf16.mxu0 %v2425
    %4434 = vmatmul.mubr.bf16.gmra.mrb[0].mxu0 %v2424
    %v4435 = vpop.f32.mrb[0].mxu0
    %v4436 = vadd.f32 %v4393, %v4435
    %v4437 = vpop.f32.mrb[0].mxu0
    %v4438 = vadd.f32 %v4395, %v4437
    %v4439 = vpop.f32.mrb[0].mxu0
    %v4440 = vadd.f32 %v4397, %v4439
    %v4441 = vpop.f32.mrb[0].mxu0
    %v4442 = vadd.f32 %v4399, %v4441
    %4443 = vdwg.mxu0
    %4444 = vmatprep.subr.bf16.mxu0 %v3615
    %4445 = vmatpush1.bf16.msra.mxu0 %v3614
    %4446 = vmatprep.subr.bf16.mxu0 %v3621
    %4447 = vmatpush1.bf16.msra.mxu0 %v3620
    %4448 = vmatprep.subr.bf16.mxu0 %v3627
    %4449 = vmatpush1.bf16.msra.mxu0 %v3626
    %4450 = vmatprep.subr.bf16.mxu0 %v3633
    %4451 = vmatpush1.bf16.msra.mxu0 %v3632
    %4452 = vmatprep.subr.bf16.mxu0 %v3639
    %4453 = vmatpush1.bf16.msra.mxu0 %v3638
    %4454 = vmatprep.subr.bf16.mxu0 %v3645
    %4455 = vmatpush1.bf16.msra.mxu0 %v3644
    %4456 = vmatprep.subr.bf16.mxu0 %v3651
    %4457 = vmatpush1.bf16.msra.mxu0 %v3650
    %4458 = vmatprep.subr.bf16.mxu0 %v3657
    %4459 = vmatpush1.bf16.msra.mxu0 %v3656
    %4460 = vmatprep.subr.bf16.mxu0 %v3663
    %4461 = vmatpush1.bf16.msra.mxu0 %v3662
    %4462 = vmatprep.subr.bf16.mxu0 %v3669
    %4463 = vmatpush1.bf16.msra.mxu0 %v3668
    %4464 = vmatprep.subr.bf16.mxu0 %v3675
    %4465 = vmatpush1.bf16.msra.mxu0 %v3674
    %4466 = vmatprep.subr.bf16.mxu0 %v3681
    %4467 = vmatpush1.bf16.msra.mxu0 %v3680
    %4468 = vmatprep.subr.bf16.mxu0 %v3687
    %4469 = vmatpush1.bf16.msra.mxu0 %v3686
    %4470 = vmatprep.subr.bf16.mxu0 %v3693
    %4471 = vmatpush1.bf16.msra.mxu0 %v3692
    %4472 = vmatprep.subr.bf16.mxu0 %v3699
    %4473 = vmatpush1.bf16.msra.mxu0 %v3698
    %4474 = vmatprep.subr.bf16.mxu0 %v3705
    %4475 = vmatpush1.bf16.msra.mxu0 %v3704
    %4476 = vmatprep.mubr.bf16.mxu0 %v2421
    %4477 = vmatmul.mubr.bf16.gmra.mrb[0].mxu0 %v2420
    %v4478 = vpop.f32.mrb[0].mxu0
    %v4479 = vadd.f32 %v2735, %v4478
    %v4480 = vpop.f32.mrb[0].mxu0
    %v4481 = vadd.f32 %v2739, %v4480
    %v4482 = vpop.f32.mrb[0].mxu0
    %v4483 = vadd.f32 %v2735, %v4482
    %v4484 = vpop.f32.mrb[0].mxu0
    %v4485 = vadd.f32 %v2739, %v4484
    %4486 = vdwg.mxu0
    %4487 = vmatprep.subr.bf16.mxu0 %v3711
    %4488 = vmatpush1.bf16.msra.mxu0 %v3710
    %4489 = vmatprep.subr.bf16.mxu0 %v3717
    %4490 = vmatpush1.bf16.msra.mxu0 %v3716
    %4491 = vmatprep.subr.bf16.mxu0 %v3723
    %4492 = vmatpush1.bf16.msra.mxu0 %v3722
    %4493 = vmatprep.subr.bf16.mxu0 %v3729
    %4494 = vmatpush1.bf16.msra.mxu0 %v3728
    %4495 = vmatprep.subr.bf16.mxu0 %v3735
    %4496 = vmatpush1.bf16.msra.mxu0 %v3734
    %4497 = vmatprep.subr.bf16.mxu0 %v3741
    %4498 = vmatpush1.bf16.msra.mxu0 %v3740
    %4499 = vmatprep.subr.bf16.mxu0 %v3747
    %4500 = vmatpush1.bf16.msra.mxu0 %v3746
    %4501 = vmatprep.subr.bf16.mxu0 %v3753
    %4502 = vmatpush1.bf16.msra.mxu0 %v3752
    %4503 = vmatprep.subr.bf16.mxu0 %v3759
    %4504 = vmatpush1.bf16.msra.mxu0 %v3758
    %4505 = vmatprep.subr.bf16.mxu0 %v3765
    %4506 = vmatpush1.bf16.msra.mxu0 %v3764
    %4507 = vmatprep.subr.bf16.mxu0 %v3771
    %4508 = vmatpush1.bf16.msra.mxu0 %v3770
    %4509 = vmatprep.subr.bf16.mxu0 %v3777
    %4510 = vmatpush1.bf16.msra.mxu0 %v3776
    %4511 = vmatprep.subr.bf16.mxu0 %v3783
    %4512 = vmatpush1.bf16.msra.mxu0 %v3782
    %4513 = vmatprep.subr.bf16.mxu0 %v3789
    %4514 = vmatpush1.bf16.msra.mxu0 %v3788
    %4515 = vmatprep.subr.bf16.mxu0 %v3795
    %4516 = vmatpush1.bf16.msra.mxu0 %v3794
    %4517 = vmatprep.subr.bf16.mxu0 %v3801
    %4518 = vmatpush1.bf16.msra.mxu0 %v3800
    %4519 = vmatprep.mubr.bf16.mxu0 %v2423
    %4520 = vmatmul.mubr.bf16.gmra.mrb[0].mxu0 %v2422
    %v4521 = vpop.f32.mrb[0].mxu0
    %v4522 = vadd.f32 %v4479, %v4521
    %v4523 = vpop.f32.mrb[0].mxu0
    %v4524 = vadd.f32 %v4481, %v4523
    %v4525 = vpop.f32.mrb[0].mxu0
    %v4526 = vadd.f32 %v4483, %v4525
    %v4527 = vpop.f32.mrb[0].mxu0
    %v4528 = vadd.f32 %v4485, %v4527
    %4529 = vdwg.mxu0
    %4530 = vmatprep.subr.bf16.mxu0 %v3807
    %4531 = vmatpush1.bf16.msra.mxu0 %v3806
    %4532 = vmatprep.subr.bf16.mxu0 %v3813
    %4533 = vmatpush1.bf16.msra.mxu0 %v3812
    %4534 = vmatprep.subr.bf16.mxu0 %v3819
    %4535 = vmatpush1.bf16.msra.mxu0 %v3818
    %4536 = vmatprep.subr.bf16.mxu0 %v3825
    %4537 = vmatpush1.bf16.msra.mxu0 %v3824
    %4538 = vmatprep.subr.bf16.mxu0 %v3831
    %4539 = vmatpush1.bf16.msra.mxu0 %v3830
    %4540 = vmatprep.subr.bf16.mxu0 %v3837
    %4541 = vmatpush1.bf16.msra.mxu0 %v3836
    %4542 = vmatprep.subr.bf16.mxu0 %v3843
    %4543 = vmatpush1.bf16.msra.mxu0 %v3842
    %4544 = vmatprep.subr.bf16.mxu0 %v3849
    %4545 = vmatpush1.bf16.msra.mxu0 %v3848
    %4546 = vmatprep.subr.bf16.mxu0 %v3855
    %4547 = vmatpush1.bf16.msra.mxu0 %v3854
    %4548 = vmatprep.subr.bf16.mxu0 %v3861
    %4549 = vmatpush1.bf16.msra.mxu0 %v3860
    %4550 = vmatprep.subr.bf16.mxu0 %v3867
    %4551 = vmatpush1.bf16.msra.mxu0 %v3866
    %4552 = vmatprep.subr.bf16.mxu0 %v3873
    %4553 = vmatpush1.bf16.msra.mxu0 %v3872
    %4554 = vmatprep.subr.bf16.mxu0 %v3879
    %4555 = vmatpush1.bf16.msra.mxu0 %v3878
    %4556 = vmatprep.subr.bf16.mxu0 %v3885
    %4557 = vmatpush1.bf16.msra.mxu0 %v3884
    %4558 = vmatprep.subr.bf16.mxu0 %v3891
    %4559 = vmatpush1.bf16.msra.mxu0 %v3890
    %4560 = vmatprep.subr.bf16.mxu0 %v3897
    %4561 = vmatpush1.bf16.msra.mxu0 %v3896
    %4562 = vmatprep.mubr.bf16.mxu0 %v2425
    %4563 = vmatmul.mubr.bf16.gmra.mrb[0].mxu0 %v2424
    %v4564 = vpop.f32.mrb[0].mxu0
    %v4565 = vadd.f32 %v4522, %v4564
    %v4566 = vpop.f32.mrb[0].mxu0
    %v4567 = vadd.f32 %v4524, %v4566
    %v4568 = vpop.f32.mrb[0].mxu0
    %v4569 = vadd.f32 %v4526, %v4568
    %v4570 = vpop.f32.mrb[0].mxu0
    %v4571 = vadd.f32 %v4528, %v4570
    %4572 = vdwg.mxu0
    %v4573 = vmul.f32 %v4307, 0.5
    %v4574 = vmul.f32 %v4309, 0.5
    %v4575 = vmul.f32 %v4436, 0.5
    %v4576 = vmul.f32 %v4438, 0.5
    %v4577 = vmul.f32 %v4565, 0.5
    %v4578 = vmul.f32 %v4567, 0.5
    %v4579 = vmul.f32 %v4311, 0.5
    %v4580 = vmul.f32 %v4313, 0.5
    %v4581 = vmul.f32 %v4440, 0.5
    %v4582 = vmul.f32 %v4442, 0.5
    %v4583 = vmul.f32 %v4569, 0.5
    %v4584 = vmul.f32 %v4571, 0.5
    %v4585 = vmul.f32 %v4307, %v4307
    %v4586 = vmul.f32 %v4309, %v4309
    %v4587 = vmul.f32 %v4436, %v4436
    %v4588 = vmul.f32 %v4438, %v4438
    %v4589 = vmul.f32 %v4565, %v4565
    %v4590 = vmul.f32 %v4567, %v4567
    %v4591 = vmul.f32 %v4311, %v4311
    %v4592 = vmul.f32 %v4313, %v4313
    %v4593 = vmul.f32 %v4440, %v4440
    %v4594 = vmul.f32 %v4442, %v4442
    %v4595 = vmul.f32 %v4569, %v4569
    %v4596 = vmul.f32 %v4571, %v4571
    %v4597 = vmul.f32 %v4585, %v4307
    %v4598 = vmul.f32 %v4586, %v4309
    %v4599 = vmul.f32 %v4587, %v4436
    %v4600 = vmul.f32 %v4588, %v4438
    %v4601 = vmul.f32 %v4589, %v4565
    %v4602 = vmul.f32 %v4590, %v4567
    %v4603 = vmul.f32 %v4591, %v4311
    %v4604 = vmul.f32 %v4592, %v4313
    %v4605 = vmul.f32 %v4593, %v4440
    %v4606 = vmul.f32 %v4594, %v4442
    %v4607 = vmul.f32 %v4595, %v4569
    %v4608 = vmul.f32 %v4596, %v4571
    %v4609 = vmul.f32 %v4597, 0.044715
    %v4610 = vmul.f32 %v4598, 0.044715
    %v4611 = vmul.f32 %v4599, 0.044715
    %v4612 = vmul.f32 %v4600, 0.044715
    %v4613 = vmul.f32 %v4601, 0.044715
    %v4614 = vmul.f32 %v4602, 0.044715
    %v4615 = vmul.f32 %v4603, 0.044715
    %v4616 = vmul.f32 %v4604, 0.044715
    %v4617 = vmul.f32 %v4605, 0.044715
    %v4618 = vmul.f32 %v4606, 0.044715
    %v4619 = vmul.f32 %v4607, 0.044715
    %v4620 = vmul.f32 %v4608, 0.044715
    %v4621 = vadd.f32 %v4307, %v4609
    %v4622 = vadd.f32 %v4309, %v4610
    %v4623 = vadd.f32 %v4436, %v4611
    %v4624 = vadd.f32 %v4438, %v4612
    %v4625 = vadd.f32 %v4565, %v4613
    %v4626 = vadd.f32 %v4567, %v4614
    %v4627 = vadd.f32 %v4311, %v4615
    %v4628 = vadd.f32 %v4313, %v4616
    %v4629 = vadd.f32 %v4440, %v4617
    %v4630 = vadd.f32 %v4442, %v4618
    %v4631 = vadd.f32 %v4569, %v4619
    %v4632 = vadd.f32 %v4571, %v4620
    %v4633 = vmul.f32 %v4621, 0.7978846
    %v4634 = vmul.f32 %v4622, 0.7978846
    %v4635 = vmul.f32 %v4623, 0.7978846
    %v4636 = vmul.f32 %v4624, 0.7978846
    %v4637 = vmul.f32 %v4625, 0.7978846
    %v4638 = vmul.f32 %v4626, 0.7978846
    %v4639 = vmul.f32 %v4627, 0.7978846
    %v4640 = vmul.f32 %v4628, 0.7978846
    %v4641 = vmul.f32 %v4629, 0.7978846
    %v4642 = vmul.f32 %v4630, 0.7978846
    %v4643 = vmul.f32 %v4631, 0.7978846
    %v4644 = vmul.f32 %v4632, 0.7978846
    %v4645 = vtanh.pop %v4633
    %v4646 = vtanh.pop %v4634
    %v4647 = vtanh.pop %v4635
    %v4648 = vtanh.pop %v4636
    %v4649 = vtanh.pop %v4637
    %v4650 = vtanh.pop %v4638
    %v4651 = vtanh.pop %v4639
    %v4652 = vtanh.pop %v4640
    %v4653 = vtanh.pop %v4641
    %v4654 = vtanh.pop %v4642
    %v4655 = vtanh.pop %v4643
    %v4656 = vtanh.pop %v4644
    %v4657 = vadd.f32 %v4645, 1.0
    %v4658 = vadd.f32 %v4646, 1.0
    %v4659 = vadd.f32 %v4647, 1.0
    %v4660 = vadd.f32 %v4648, 1.0
    %v4661 = vadd.f32 %v4649, 1.0
    %v4662 = vadd.f32 %v4650, 1.0
    %v4663 = vadd.f32 %v4651, 1.0
    %v4664 = vadd.f32 %v4652, 1.0
    %v4665 = vadd.f32 %v4653, 1.0
    %v4666 = vadd.f32 %v4654, 1.0
    %v4667 = vadd.f32 %v4655, 1.0
    %v4668 = vadd.f32 %v4656, 1.0
    %v4669 = vmul.f32 %v4573, %v4657
    %v4670 = vmul.f32 %v4574, %v4658
    %v4671 = vmul.f32 %v4575, %v4659
    %v4672 = vmul.f32 %v4576, %v4660
    %v4673 = vmul.f32 %v4577, %v4661
    %v4674 = vmul.f32 %v4578, %v4662
    %v4675 = vmul.f32 %v4579, %v4663
    %v4676 = vmul.f32 %v4580, %v4664
    %v4677 = vmul.f32 %v4581, %v4665
    %v4678 = vmul.f32 %v4582, %v4666
    %v4679 = vmul.f32 %v4583, %v4667
    %v4680 = vmul.f32 %v4584, %v4668
    %v4681 = vpack.c.bf16 %v4675, %v4669
    %v4682 = vpack.c.bf16 %v4676, %v4670
    %v4683 = vpack.c.bf16 %v4677, %v4671
    %v4684 = vpack.c.bf16 %v4678, %v4672
    %v4685 = vpack.c.bf16 %v4679, %v4673
    %v4686 = vpack.c.bf16 %v4680, %v4674
    %v4687 = vld [vmem:[#allocation11] sm:$0xff]
    %v4688 = vld [vmem:[#allocation11 + $0x8] sm:$0xff]
    %v4689 = vld [vmem:[#allocation11 + $0x10] sm:$0xff]
    %v4690 = vld [vmem:[#allocation11 + $0x18] sm:$0xff]
    %v4691 = vld [vmem:[#allocation11 + $0x20] sm:$0xff]
    %v4692 = vld [vmem:[#allocation11 + $0x28] sm:$0xff]
    %v4693 = vld [vmem:[#allocation11 + $0x30] sm:$0xff]
    %v4694 = vld [vmem:[#allocation11 + $0x38] sm:$0xff]
    %v4695 = vld [vmem:[#allocation11 + $0x40] sm:$0xff]
    %v4696 = vld [vmem:[#allocation11 + $0x48] sm:$0xff]
    %v4697 = vld [vmem:[#allocation11 + $0x50] sm:$0xff]
    %v4698 = vld [vmem:[#allocation11 + $0x58] sm:$0xff]
    %v4699 = vld [vmem:[#allocation11 + $0x60] sm:$0xff]
    %v4700 = vld [vmem:[#allocation11 + $0x68] sm:$0xff]
    %v4701 = vld [vmem:[#allocation11 + $0x70] sm:$0xff]
    %v4702 = vld [vmem:[#allocation11 + $0x78] sm:$0xff]
    %v4703 = vld [vmem:[#allocation11 + $0x80] sm:$0xff]
    %v4704 = vld [vmem:[#allocation11 + $0x88] sm:$0xff]
    %v4705 = vld [vmem:[#allocation11 + $0x90] sm:$0xff]
    %v4706 = vld [vmem:[#allocation11 + $0x98] sm:$0xff]
    %v4707 = vld [vmem:[#allocation11 + $0xa0] sm:$0xff]
    %v4708 = vld [vmem:[#allocation11 + $0xa8] sm:$0xff]
    %v4709 = vld [vmem:[#allocation11 + $0xb0] sm:$0xff]
    %v4710 = vld [vmem:[#allocation11 + $0xb8] sm:$0xff]
    %v4711 = vld [vmem:[#allocation11 + $0xc0] sm:$0xff]
    %v4712 = vld [vmem:[#allocation11 + $0xc8] sm:$0xff]
    %v4713 = vld [vmem:[#allocation11 + $0xd0] sm:$0xff]
    %v4714 = vld [vmem:[#allocation11 + $0xd8] sm:$0xff]
    %v4715 = vld [vmem:[#allocation11 + $0xe0] sm:$0xff]
    %v4716 = vld [vmem:[#allocation11 + $0xe8] sm:$0xff]
    %v4717 = vld [vmem:[#allocation11 + $0xf0] sm:$0xff]
    %v4718 = vld [vmem:[#allocation11 + $0xf8] sm:$0xff]
    %v4719 = vld [vmem:[#allocation11 + $0x100] sm:$0xff]
    %v4720 = vld [vmem:[#allocation11 + $0x108] sm:$0xff]
    %v4721 = vld [vmem:[#allocation11 + $0x110] sm:$0xff]
    %v4722 = vld [vmem:[#allocation11 + $0x118] sm:$0xff]
    %v4723 = vld [vmem:[#allocation11 + $0x120] sm:$0xff]
    %v4724 = vld [vmem:[#allocation11 + $0x128] sm:$0xff]
    %v4725 = vld [vmem:[#allocation11 + $0x130] sm:$0xff]
    %v4726 = vld [vmem:[#allocation11 + $0x138] sm:$0xff]
    %v4727 = vld [vmem:[#allocation11 + $0x140] sm:$0xff]
    %v4728 = vld [vmem:[#allocation11 + $0x148] sm:$0xff]
    %v4729 = vld [vmem:[#allocation11 + $0x150] sm:$0xff]
    %v4730 = vld [vmem:[#allocation11 + $0x158] sm:$0xff]
    %v4731 = vld [vmem:[#allocation11 + $0x160] sm:$0xff]
    %v4732 = vld [vmem:[#allocation11 + $0x168] sm:$0xff]
    %v4733 = vld [vmem:[#allocation11 + $0x170] sm:$0xff]
    %v4734 = vld [vmem:[#allocation11 + $0x178] sm:$0xff]
    %v4735 = vld [vmem:[#allocation11 + $0x180] sm:$0xff]
    %v4736 = vld [vmem:[#allocation11 + $0x188] sm:$0xff]
    %v4737 = vld [vmem:[#allocation11 + $0x190] sm:$0xff]
    %v4738 = vld [vmem:[#allocation11 + $0x198] sm:$0xff]
    %v4739 = vld [vmem:[#allocation11 + $0x1a0] sm:$0xff]
    %v4740 = vld [vmem:[#allocation11 + $0x1a8] sm:$0xff]
    %v4741 = vld [vmem:[#allocation11 + $0x1b0] sm:$0xff]
    %v4742 = vld [vmem:[#allocation11 + $0x1b8] sm:$0xff]
    %v4743 = vld [vmem:[#allocation11 + $0x1c0] sm:$0xff]
    %v4744 = vld [vmem:[#allocation11 + $0x1c8] sm:$0xff]
    %v4745 = vld [vmem:[#allocation11 + $0x1d0] sm:$0xff]
    %v4746 = vld [vmem:[#allocation11 + $0x1d8] sm:$0xff]
    %v4747 = vld [vmem:[#allocation11 + $0x1e0] sm:$0xff]
    %v4748 = vld [vmem:[#allocation11 + $0x1e8] sm:$0xff]
    %v4749 = vld [vmem:[#allocation11 + $0x1f0] sm:$0xff]
    %v4750 = vld [vmem:[#allocation11 + $0x1f8] sm:$0xff]
    %v4751 = vld [vmem:[#allocation11 + $0x200] sm:$0xff]
    %v4752 = vld [vmem:[#allocation11 + $0x208] sm:$0xff]
    %v4753 = vld [vmem:[#allocation11 + $0x210] sm:$0xff]
    %v4754 = vld [vmem:[#allocation11 + $0x218] sm:$0xff]
    %v4755 = vld [vmem:[#allocation11 + $0x220] sm:$0xff]
    %v4756 = vld [vmem:[#allocation11 + $0x228] sm:$0xff]
    %v4757 = vld [vmem:[#allocation11 + $0x230] sm:$0xff]
    %v4758 = vld [vmem:[#allocation11 + $0x238] sm:$0xff]
    %v4759 = vld [vmem:[#allocation11 + $0x240] sm:$0xff]
    %v4760 = vld [vmem:[#allocation11 + $0x248] sm:$0xff]
    %v4761 = vld [vmem:[#allocation11 + $0x250] sm:$0xff]
    %v4762 = vld [vmem:[#allocation11 + $0x258] sm:$0xff]
    %v4763 = vld [vmem:[#allocation11 + $0x260] sm:$0xff]
    %v4764 = vld [vmem:[#allocation11 + $0x268] sm:$0xff]
    %v4765 = vld [vmem:[#allocation11 + $0x270] sm:$0xff]
    %v4766 = vld [vmem:[#allocation11 + $0x278] sm:$0xff]
    %v4767 = vld [vmem:[#allocation11 + $0x280] sm:$0xff]
    %v4768 = vld [vmem:[#allocation11 + $0x288] sm:$0xff]
    %v4769 = vld [vmem:[#allocation11 + $0x290] sm:$0xff]
    %v4770 = vld [vmem:[#allocation11 + $0x298] sm:$0xff]
    %v4771 = vld [vmem:[#allocation11 + $0x2a0] sm:$0xff]
    %v4772 = vld [vmem:[#allocation11 + $0x2a8] sm:$0xff]
    %v4773 = vld [vmem:[#allocation11 + $0x2b0] sm:$0xff]
    %v4774 = vld [vmem:[#allocation11 + $0x2b8] sm:$0xff]
    %v4775 = vld [vmem:[#allocation11 + $0x2c0] sm:$0xff]
    %v4776 = vld [vmem:[#allocation11 + $0x2c8] sm:$0xff]
    %v4777 = vld [vmem:[#allocation11 + $0x2d0] sm:$0xff]
    %v4778 = vld [vmem:[#allocation11 + $0x2d8] sm:$0xff]
    %v4779 = vld [vmem:[#allocation11 + $0x2e0] sm:$0xff]
    %v4780 = vld [vmem:[#allocation11 + $0x2e8] sm:$0xff]
    %v4781 = vld [vmem:[#allocation11 + $0x2f0] sm:$0xff]
    %v4782 = vld [vmem:[#allocation11 + $0x2f8] sm:$0xff]
    %v4783 = vld [vmem:[#allocation11 + $0x300] sm:$0xff]
    %v4784 = vld [vmem:[#allocation11 + $0x308] sm:$0xff]
    %v4785 = vld [vmem:[#allocation11 + $0x310] sm:$0xff]
    %v4786 = vld [vmem:[#allocation11 + $0x318] sm:$0xff]
    %v4787 = vld [vmem:[#allocation11 + $0x320] sm:$0xff]
    %v4788 = vld [vmem:[#allocation11 + $0x328] sm:$0xff]
    %v4789 = vld [vmem:[#allocation11 + $0x330] sm:$0xff]
    %v4790 = vld [vmem:[#allocation11 + $0x338] sm:$0xff]
    %v4791 = vld [vmem:[#allocation11 + $0x340] sm:$0xff]
    %v4792 = vld [vmem:[#allocation11 + $0x348] sm:$0xff]
    %v4793 = vld [vmem:[#allocation11 + $0x350] sm:$0xff]
    %v4794 = vld [vmem:[#allocation11 + $0x358] sm:$0xff]
    %v4795 = vld [vmem:[#allocation11 + $0x360] sm:$0xff]
    %v4796 = vld [vmem:[#allocation11 + $0x368] sm:$0xff]
    %v4797 = vld [vmem:[#allocation11 + $0x370] sm:$0xff]
    %v4798 = vld [vmem:[#allocation11 + $0x378] sm:$0xff]
    %v4799 = vld [vmem:[#allocation11 + $0x380] sm:$0xff]
    %v4800 = vld [vmem:[#allocation11 + $0x388] sm:$0xff]
    %v4801 = vld [vmem:[#allocation11 + $0x390] sm:$0xff]
    %v4802 = vld [vmem:[#allocation11 + $0x398] sm:$0xff]
    %v4803 = vld [vmem:[#allocation11 + $0x3a0] sm:$0xff]
    %v4804 = vld [vmem:[#allocation11 + $0x3a8] sm:$0xff]
    %v4805 = vld [vmem:[#allocation11 + $0x3b0] sm:$0xff]
    %v4806 = vld [vmem:[#allocation11 + $0x3b8] sm:$0xff]
    %v4807 = vld [vmem:[#allocation11 + $0x3c0] sm:$0xff]
    %v4808 = vld [vmem:[#allocation11 + $0x3c8] sm:$0xff]
    %v4809 = vld [vmem:[#allocation11 + $0x3d0] sm:$0xff]
    %v4810 = vld [vmem:[#allocation11 + $0x3d8] sm:$0xff]
    %v4811 = vld [vmem:[#allocation11 + $0x3e0] sm:$0xff]
    %v4812 = vld [vmem:[#allocation11 + $0x3e8] sm:$0xff]
    %v4813 = vld [vmem:[#allocation11 + $0x3f0] sm:$0xff]
    %v4814 = vld [vmem:[#allocation11 + $0x3f8] sm:$0xff]
    %v4815 = vld [vmem:[#allocation11 + $0x400] sm:$0xff]
    %v4816 = vld [vmem:[#allocation11 + $0x408] sm:$0xff]
    %v4817 = vld [vmem:[#allocation11 + $0x410] sm:$0xff]
    %v4818 = vld [vmem:[#allocation11 + $0x418] sm:$0xff]
    %v4819 = vld [vmem:[#allocation11 + $0x420] sm:$0xff]
    %v4820 = vld [vmem:[#allocation11 + $0x428] sm:$0xff]
    %v4821 = vld [vmem:[#allocation11 + $0x430] sm:$0xff]
    %v4822 = vld [vmem:[#allocation11 + $0x438] sm:$0xff]
    %v4823 = vld [vmem:[#allocation11 + $0x440] sm:$0xff]
    %v4824 = vld [vmem:[#allocation11 + $0x448] sm:$0xff]
    %v4825 = vld [vmem:[#allocation11 + $0x450] sm:$0xff]
    %v4826 = vld [vmem:[#allocation11 + $0x458] sm:$0xff]
    %v4827 = vld [vmem:[#allocation11 + $0x460] sm:$0xff]
    %v4828 = vld [vmem:[#allocation11 + $0x468] sm:$0xff]
    %v4829 = vld [vmem:[#allocation11 + $0x470] sm:$0xff]
    %v4830 = vld [vmem:[#allocation11 + $0x478] sm:$0xff]
    %v4831 = vld [vmem:[#allocation11 + $0x480] sm:$0xff]
    %v4832 = vld [vmem:[#allocation11 + $0x488] sm:$0xff]
    %v4833 = vld [vmem:[#allocation11 + $0x490] sm:$0xff]
    %v4834 = vld [vmem:[#allocation11 + $0x498] sm:$0xff]
    %v4835 = vld [vmem:[#allocation11 + $0x4a0] sm:$0xff]
    %v4836 = vld [vmem:[#allocation11 + $0x4a8] sm:$0xff]
    %v4837 = vld [vmem:[#allocation11 + $0x4b0] sm:$0xff]
    %v4838 = vld [vmem:[#allocation11 + $0x4b8] sm:$0xff]
    %v4839 = vld [vmem:[#allocation11 + $0x4c0] sm:$0xff]
    %v4840 = vld [vmem:[#allocation11 + $0x4c8] sm:$0xff]
    %v4841 = vld [vmem:[#allocation11 + $0x4d0] sm:$0xff]
    %v4842 = vld [vmem:[#allocation11 + $0x4d8] sm:$0xff]
    %v4843 = vld [vmem:[#allocation11 + $0x4e0] sm:$0xff]
    %v4844 = vld [vmem:[#allocation11 + $0x4e8] sm:$0xff]
    %v4845 = vld [vmem:[#allocation11 + $0x4f0] sm:$0xff]
    %v4846 = vld [vmem:[#allocation11 + $0x4f8] sm:$0xff]
    %v4847 = vld [vmem:[#allocation11 + $0x500] sm:$0xff]
    %v4848 = vld [vmem:[#allocation11 + $0x508] sm:$0xff]
    %v4849 = vld [vmem:[#allocation11 + $0x510] sm:$0xff]
    %v4850 = vld [vmem:[#allocation11 + $0x518] sm:$0xff]
    %v4851 = vld [vmem:[#allocation11 + $0x520] sm:$0xff]
    %v4852 = vld [vmem:[#allocation11 + $0x528] sm:$0xff]
    %v4853 = vld [vmem:[#allocation11 + $0x530] sm:$0xff]
    %v4854 = vld [vmem:[#allocation11 + $0x538] sm:$0xff]
    %v4855 = vld [vmem:[#allocation11 + $0x540] sm:$0xff]
    %v4856 = vld [vmem:[#allocation11 + $0x548] sm:$0xff]
    %v4857 = vld [vmem:[#allocation11 + $0x550] sm:$0xff]
    %v4858 = vld [vmem:[#allocation11 + $0x558] sm:$0xff]
    %v4859 = vld [vmem:[#allocation11 + $0x560] sm:$0xff]
    %v4860 = vld [vmem:[#allocation11 + $0x568] sm:$0xff]
    %v4861 = vld [vmem:[#allocation11 + $0x570] sm:$0xff]
    %v4862 = vld [vmem:[#allocation11 + $0x578] sm:$0xff]
    %v4863 = vld [vmem:[#allocation11 + $0x580] sm:$0xff]
    %v4864 = vld [vmem:[#allocation11 + $0x588] sm:$0xff]
    %v4865 = vld [vmem:[#allocation11 + $0x590] sm:$0xff]
    %v4866 = vld [vmem:[#allocation11 + $0x598] sm:$0xff]
    %v4867 = vld [vmem:[#allocation11 + $0x5a0] sm:$0xff]
    %v4868 = vld [vmem:[#allocation11 + $0x5a8] sm:$0xff]
    %v4869 = vld [vmem:[#allocation11 + $0x5b0] sm:$0xff]
    %v4870 = vld [vmem:[#allocation11 + $0x5b8] sm:$0xff]
    %v4871 = vld [vmem:[#allocation11 + $0x5c0] sm:$0xff]
    %v4872 = vld [vmem:[#allocation11 + $0x5c8] sm:$0xff]
    %v4873 = vld [vmem:[#allocation11 + $0x5d0] sm:$0xff]
    %v4874 = vld [vmem:[#allocation11 + $0x5d8] sm:$0xff]
    %v4875 = vld [vmem:[#allocation11 + $0x5e0] sm:$0xff]
    %v4876 = vld [vmem:[#allocation11 + $0x5e8] sm:$0xff]
    %v4877 = vld [vmem:[#allocation11 + $0x5f0] sm:$0xff]
    %v4878 = vld [vmem:[#allocation11 + $0x5f8] sm:$0xff]
    %v4879 = vld [vmem:[#allocation11 + $0x600] sm:$0xff]
    %v4880 = vld [vmem:[#allocation11 + $0x608] sm:$0xff]
    %v4881 = vld [vmem:[#allocation11 + $0x610] sm:$0xff]
    %v4882 = vld [vmem:[#allocation11 + $0x618] sm:$0xff]
    %v4883 = vld [vmem:[#allocation11 + $0x620] sm:$0xff]
    %v4884 = vld [vmem:[#allocation11 + $0x628] sm:$0xff]
    %v4885 = vld [vmem:[#allocation11 + $0x630] sm:$0xff]
    %v4886 = vld [vmem:[#allocation11 + $0x638] sm:$0xff]
    %v4887 = vld [vmem:[#allocation11 + $0x640] sm:$0xff]
    %v4888 = vld [vmem:[#allocation11 + $0x648] sm:$0xff]
    %v4889 = vld [vmem:[#allocation11 + $0x650] sm:$0xff]
    %v4890 = vld [vmem:[#allocation11 + $0x658] sm:$0xff]
    %v4891 = vld [vmem:[#allocation11 + $0x660] sm:$0xff]
    %v4892 = vld [vmem:[#allocation11 + $0x668] sm:$0xff]
    %v4893 = vld [vmem:[#allocation11 + $0x670] sm:$0xff]
    %v4894 = vld [vmem:[#allocation11 + $0x678] sm:$0xff]
    %v4895 = vld [vmem:[#allocation11 + $0x680] sm:$0xff]
    %v4896 = vld [vmem:[#allocation11 + $0x688] sm:$0xff]
    %v4897 = vld [vmem:[#allocation11 + $0x690] sm:$0xff]
    %v4898 = vld [vmem:[#allocation11 + $0x698] sm:$0xff]
    %v4899 = vld [vmem:[#allocation11 + $0x6a0] sm:$0xff]
    %v4900 = vld [vmem:[#allocation11 + $0x6a8] sm:$0xff]
    %v4901 = vld [vmem:[#allocation11 + $0x6b0] sm:$0xff]
    %v4902 = vld [vmem:[#allocation11 + $0x6b8] sm:$0xff]
    %v4903 = vld [vmem:[#allocation11 + $0x6c0] sm:$0xff]
    %v4904 = vld [vmem:[#allocation11 + $0x6c8] sm:$0xff]
    %v4905 = vld [vmem:[#allocation11 + $0x6d0] sm:$0xff]
    %v4906 = vld [vmem:[#allocation11 + $0x6d8] sm:$0xff]
    %v4907 = vld [vmem:[#allocation11 + $0x6e0] sm:$0xff]
    %v4908 = vld [vmem:[#allocation11 + $0x6e8] sm:$0xff]
    %v4909 = vld [vmem:[#allocation11 + $0x6f0] sm:$0xff]
    %v4910 = vld [vmem:[#allocation11 + $0x6f8] sm:$0xff]
    %v4911 = vld [vmem:[#allocation11 + $0x700] sm:$0xff]
    %v4912 = vld [vmem:[#allocation11 + $0x708] sm:$0xff]
    %v4913 = vld [vmem:[#allocation11 + $0x710] sm:$0xff]
    %v4914 = vld [vmem:[#allocation11 + $0x718] sm:$0xff]
    %v4915 = vld [vmem:[#allocation11 + $0x720] sm:$0xff]
    %v4916 = vld [vmem:[#allocation11 + $0x728] sm:$0xff]
    %v4917 = vld [vmem:[#allocation11 + $0x730] sm:$0xff]
    %v4918 = vld [vmem:[#allocation11 + $0x738] sm:$0xff]
    %v4919 = vld [vmem:[#allocation11 + $0x740] sm:$0xff]
    %v4920 = vld [vmem:[#allocation11 + $0x748] sm:$0xff]
    %v4921 = vld [vmem:[#allocation11 + $0x750] sm:$0xff]
    %v4922 = vld [vmem:[#allocation11 + $0x758] sm:$0xff]
    %v4923 = vld [vmem:[#allocation11 + $0x760] sm:$0xff]
    %v4924 = vld [vmem:[#allocation11 + $0x768] sm:$0xff]
    %v4925 = vld [vmem:[#allocation11 + $0x770] sm:$0xff]
    %v4926 = vld [vmem:[#allocation11 + $0x778] sm:$0xff]
    %v4927 = vld [vmem:[#allocation11 + $0x780] sm:$0xff]
    %v4928 = vld [vmem:[#allocation11 + $0x788] sm:$0xff]
    %v4929 = vld [vmem:[#allocation11 + $0x790] sm:$0xff]
    %v4930 = vld [vmem:[#allocation11 + $0x798] sm:$0xff]
    %v4931 = vld [vmem:[#allocation11 + $0x7a0] sm:$0xff]
    %v4932 = vld [vmem:[#allocation11 + $0x7a8] sm:$0xff]
    %v4933 = vld [vmem:[#allocation11 + $0x7b0] sm:$0xff]
    %v4934 = vld [vmem:[#allocation11 + $0x7b8] sm:$0xff]
    %v4935 = vld [vmem:[#allocation11 + $0x7c0] sm:$0xff]
    %v4936 = vld [vmem:[#allocation11 + $0x7c8] sm:$0xff]
    %v4937 = vld [vmem:[#allocation11 + $0x7d0] sm:$0xff]
    %v4938 = vld [vmem:[#allocation11 + $0x7d8] sm:$0xff]
    %v4939 = vld [vmem:[#allocation11 + $0x7e0] sm:$0xff]
    %v4940 = vld [vmem:[#allocation11 + $0x7e8] sm:$0xff]
    %v4941 = vld [vmem:[#allocation11 + $0x7f0] sm:$0xff]
    %v4942 = vld [vmem:[#allocation11 + $0x7f8] sm:$0xff]
    %v4943 = vld [vmem:[#allocation11 + $0x800] sm:$0xff]
    %v4944 = vld [vmem:[#allocation11 + $0x808] sm:$0xff]
    %v4945 = vld [vmem:[#allocation11 + $0x810] sm:$0xff]
    %v4946 = vld [vmem:[#allocation11 + $0x818] sm:$0xff]
    %v4947 = vld [vmem:[#allocation11 + $0x820] sm:$0xff]
    %v4948 = vld [vmem:[#allocation11 + $0x828] sm:$0xff]
    %v4949 = vld [vmem:[#allocation11 + $0x830] sm:$0xff]
    %v4950 = vld [vmem:[#allocation11 + $0x838] sm:$0xff]
    %v4951 = vld [vmem:[#allocation11 + $0x840] sm:$0xff]
    %v4952 = vld [vmem:[#allocation11 + $0x848] sm:$0xff]
    %v4953 = vld [vmem:[#allocation11 + $0x850] sm:$0xff]
    %v4954 = vld [vmem:[#allocation11 + $0x858] sm:$0xff]
    %v4955 = vld [vmem:[#allocation11 + $0x860] sm:$0xff]
    %v4956 = vld [vmem:[#allocation11 + $0x868] sm:$0xff]
    %v4957 = vld [vmem:[#allocation11 + $0x870] sm:$0xff]
    %v4958 = vld [vmem:[#allocation11 + $0x878] sm:$0xff]
    %v4959 = vld [vmem:[#allocation11 + $0x880] sm:$0xff]
    %v4960 = vld [vmem:[#allocation11 + $0x888] sm:$0xff]
    %v4961 = vld [vmem:[#allocation11 + $0x890] sm:$0xff]
    %v4962 = vld [vmem:[#allocation11 + $0x898] sm:$0xff]
    %v4963 = vld [vmem:[#allocation11 + $0x8a0] sm:$0xff]
    %v4964 = vld [vmem:[#allocation11 + $0x8a8] sm:$0xff]
    %v4965 = vld [vmem:[#allocation11 + $0x8b0] sm:$0xff]
    %v4966 = vld [vmem:[#allocation11 + $0x8b8] sm:$0xff]
    %v4967 = vld [vmem:[#allocation11 + $0x8c0] sm:$0xff]
    %v4968 = vld [vmem:[#allocation11 + $0x8c8] sm:$0xff]
    %v4969 = vld [vmem:[#allocation11 + $0x8d0] sm:$0xff]
    %v4970 = vld [vmem:[#allocation11 + $0x8d8] sm:$0xff]
    %v4971 = vld [vmem:[#allocation11 + $0x8e0] sm:$0xff]
    %v4972 = vld [vmem:[#allocation11 + $0x8e8] sm:$0xff]
    %v4973 = vld [vmem:[#allocation11 + $0x8f0] sm:$0xff]
    %v4974 = vld [vmem:[#allocation11 + $0x8f8] sm:$0xff]
    %v4975 = vld [vmem:[#allocation13] sm:$0x3f]
    %v4977 = vlaneseq
    %v4978 = vshrl.u32 %v4977, 7
    %v4979 = vsub.s32 0, %v4978
    %v4980 = vrot.slane %v4975, %v4979
    %v4981 = vlaneseq
    %v4982 = vshrl.u32 %v4981, 7
    %v4983 = vsub.s32 1, %v4982
    %v4984 = vrot.slane %v4975, %v4983
    %v4985 = vlaneseq
    %v4986 = vshrl.u32 %v4985, 7
    %v4987 = vsub.s32 2, %v4986
    %v4988 = vrot.slane %v4975, %v4987
    %v4989 = vlaneseq
    %v4990 = vshrl.u32 %v4989, 7
    %v4991 = vsub.s32 3, %v4990
    %v4992 = vrot.slane %v4975, %v4991
    %v4993 = vlaneseq
    %v4994 = vshrl.u32 %v4993, 7
    %v4995 = vsub.s32 4, %v4994
    %v4996 = vrot.slane %v4975, %v4995
    %v4997 = vlaneseq
    %v4998 = vshrl.u32 %v4997, 7
    %v4999 = vsub.s32 5, %v4998
    %v5000 = vrot.slane %v4975, %v4999
    %v5295 = vunpack.c.l.b16 %v4687
    %v5296 = vunpack.c.h.b16 %v4687
    %v5297 = vunpack.c.l.b16 %v4688
    %v5298 = vunpack.c.h.b16 %v4688
    %v5299 = vunpack.c.l.b16 %v4689
    %v5300 = vunpack.c.h.b16 %v4689
    %v5301 = vunpack.c.l.b16 %v4690
    %v5302 = vunpack.c.h.b16 %v4690
    %v5303 = vunpack.c.l.b16 %v4691
    %v5304 = vunpack.c.h.b16 %v4691
    %v5305 = vunpack.c.l.b16 %v4692
    %v5306 = vunpack.c.h.b16 %v4692
    %v5307 = vunpack.c.l.b16 %v4693
    %v5308 = vunpack.c.h.b16 %v4693
    %v5309 = vunpack.c.l.b16 %v4694
    %v5310 = vunpack.c.h.b16 %v4694
    %v5311 = vunpack.c.l.b16 %v4695
    %v5312 = vunpack.c.h.b16 %v4695
    %v5313 = vunpack.c.l.b16 %v4696
    %v5314 = vunpack.c.h.b16 %v4696
    %v5315 = vunpack.c.l.b16 %v4697
    %v5316 = vunpack.c.h.b16 %v4697
    %v5317 = vunpack.c.l.b16 %v4698
    %v5318 = vunpack.c.h.b16 %v4698
    %v5319 = vunpack.c.l.b16 %v4699
    %v5320 = vunpack.c.h.b16 %v4699
    %v5321 = vunpack.c.l.b16 %v4700
    %v5322 = vunpack.c.h.b16 %v4700
    %v5323 = vunpack.c.l.b16 %v4701
    %v5324 = vunpack.c.h.b16 %v4701
    %v5325 = vunpack.c.l.b16 %v4702
    %v5326 = vunpack.c.h.b16 %v4702
    %v5327 = vunpack.c.l.b16 %v4703
    %v5328 = vunpack.c.h.b16 %v4703
    %v5329 = vunpack.c.l.b16 %v4704
    %v5330 = vunpack.c.h.b16 %v4704
    %v5331 = vunpack.c.l.b16 %v4705
    %v5332 = vunpack.c.h.b16 %v4705
    %v5333 = vunpack.c.l.b16 %v4706
    %v5334 = vunpack.c.h.b16 %v4706
    %v5335 = vunpack.c.l.b16 %v4707
    %v5336 = vunpack.c.h.b16 %v4707
    %v5337 = vunpack.c.l.b16 %v4708
    %v5338 = vunpack.c.h.b16 %v4708
    %v5339 = vunpack.c.l.b16 %v4709
    %v5340 = vunpack.c.h.b16 %v4709
    %v5341 = vunpack.c.l.b16 %v4710
    %v5342 = vunpack.c.h.b16 %v4710
    %v5343 = vunpack.c.l.b16 %v4711
    %v5344 = vunpack.c.h.b16 %v4711
    %v5345 = vunpack.c.l.b16 %v4712
    %v5346 = vunpack.c.h.b16 %v4712
    %v5347 = vunpack.c.l.b16 %v4713
    %v5348 = vunpack.c.h.b16 %v4713
    %v5349 = vunpack.c.l.b16 %v4714
    %v5350 = vunpack.c.h.b16 %v4714
    %v5351 = vunpack.c.l.b16 %v4715
    %v5352 = vunpack.c.h.b16 %v4715
    %v5353 = vunpack.c.l.b16 %v4716
    %v5354 = vunpack.c.h.b16 %v4716
    %v5355 = vunpack.c.l.b16 %v4717
    %v5356 = vunpack.c.h.b16 %v4717
    %v5357 = vunpack.c.l.b16 %v4718
    %v5358 = vunpack.c.h.b16 %v4718
    %v5359 = vunpack.c.l.b16 %v4719
    %v5360 = vunpack.c.h.b16 %v4719
    %v5361 = vunpack.c.l.b16 %v4720
    %v5362 = vunpack.c.h.b16 %v4720
    %v5363 = vunpack.c.l.b16 %v4721
    %v5364 = vunpack.c.h.b16 %v4721
    %v5365 = vunpack.c.l.b16 %v4722
    %v5366 = vunpack.c.h.b16 %v4722
    %v5367 = vunpack.c.l.b16 %v4723
    %v5368 = vunpack.c.h.b16 %v4723
    %v5369 = vunpack.c.l.b16 %v4724
    %v5370 = vunpack.c.h.b16 %v4724
    %v5371 = vunpack.c.l.b16 %v4725
    %v5372 = vunpack.c.h.b16 %v4725
    %v5373 = vunpack.c.l.b16 %v4726
    %v5374 = vunpack.c.h.b16 %v4726
    %v5375 = vunpack.c.l.b16 %v4727
    %v5376 = vunpack.c.h.b16 %v4727
    %v5377 = vunpack.c.l.b16 %v4728
    %v5378 = vunpack.c.h.b16 %v4728
    %v5379 = vunpack.c.l.b16 %v4729
    %v5380 = vunpack.c.h.b16 %v4729
    %v5381 = vunpack.c.l.b16 %v4730
    %v5382 = vunpack.c.h.b16 %v4730
    %v5383 = vunpack.c.l.b16 %v4731
    %v5384 = vunpack.c.h.b16 %v4731
    %v5385 = vunpack.c.l.b16 %v4732
    %v5386 = vunpack.c.h.b16 %v4732
    %v5387 = vunpack.c.l.b16 %v4733
    %v5388 = vunpack.c.h.b16 %v4733
    %v5389 = vunpack.c.l.b16 %v4734
    %v5390 = vunpack.c.h.b16 %v4734
    %v5391 = vunpack.c.l.b16 %v4735
    %v5392 = vunpack.c.h.b16 %v4735
    %v5393 = vunpack.c.l.b16 %v4736
    %v5394 = vunpack.c.h.b16 %v4736
    %v5395 = vunpack.c.l.b16 %v4737
    %v5396 = vunpack.c.h.b16 %v4737
    %v5397 = vunpack.c.l.b16 %v4738
    %v5398 = vunpack.c.h.b16 %v4738
    %v5399 = vunpack.c.l.b16 %v4739
    %v5400 = vunpack.c.h.b16 %v4739
    %v5401 = vunpack.c.l.b16 %v4740
    %v5402 = vunpack.c.h.b16 %v4740
    %v5403 = vunpack.c.l.b16 %v4741
    %v5404 = vunpack.c.h.b16 %v4741
    %v5405 = vunpack.c.l.b16 %v4742
    %v5406 = vunpack.c.h.b16 %v4742
    %v5407 = vunpack.c.l.b16 %v4743
    %v5408 = vunpack.c.h.b16 %v4743
    %v5409 = vunpack.c.l.b16 %v4744
    %v5410 = vunpack.c.h.b16 %v4744
    %v5411 = vunpack.c.l.b16 %v4745
    %v5412 = vunpack.c.h.b16 %v4745
    %v5413 = vunpack.c.l.b16 %v4746
    %v5414 = vunpack.c.h.b16 %v4746
    %v5415 = vunpack.c.l.b16 %v4747
    %v5416 = vunpack.c.h.b16 %v4747
    %v5417 = vunpack.c.l.b16 %v4748
    %v5418 = vunpack.c.h.b16 %v4748
    %v5419 = vunpack.c.l.b16 %v4749
    %v5420 = vunpack.c.h.b16 %v4749
    %v5421 = vunpack.c.l.b16 %v4750
    %v5422 = vunpack.c.h.b16 %v4750
    %v5423 = vunpack.c.l.b16 %v4751
    %v5424 = vunpack.c.h.b16 %v4751
    %v5425 = vunpack.c.l.b16 %v4752
    %v5426 = vunpack.c.h.b16 %v4752
    %v5427 = vunpack.c.l.b16 %v4753
    %v5428 = vunpack.c.h.b16 %v4753
    %v5429 = vunpack.c.l.b16 %v4754
    %v5430 = vunpack.c.h.b16 %v4754
    %v5431 = vunpack.c.l.b16 %v4755
    %v5432 = vunpack.c.h.b16 %v4755
    %v5433 = vunpack.c.l.b16 %v4756
    %v5434 = vunpack.c.h.b16 %v4756
    %v5435 = vunpack.c.l.b16 %v4757
    %v5436 = vunpack.c.h.b16 %v4757
    %v5437 = vunpack.c.l.b16 %v4758
    %v5438 = vunpack.c.h.b16 %v4758
    %v5439 = vunpack.c.l.b16 %v4759
    %v5440 = vunpack.c.h.b16 %v4759
    %v5441 = vunpack.c.l.b16 %v4760
    %v5442 = vunpack.c.h.b16 %v4760
    %v5443 = vunpack.c.l.b16 %v4761
    %v5444 = vunpack.c.h.b16 %v4761
    %v5445 = vunpack.c.l.b16 %v4762
    %v5446 = vunpack.c.h.b16 %v4762
    %v5447 = vunpack.c.l.b16 %v4763
    %v5448 = vunpack.c.h.b16 %v4763
    %v5449 = vunpack.c.l.b16 %v4764
    %v5450 = vunpack.c.h.b16 %v4764
    %v5451 = vunpack.c.l.b16 %v4765
    %v5452 = vunpack.c.h.b16 %v4765
    %v5453 = vunpack.c.l.b16 %v4766
    %v5454 = vunpack.c.h.b16 %v4766
    %v5455 = vunpack.c.l.b16 %v4767
    %v5456 = vunpack.c.h.b16 %v4767
    %v5457 = vunpack.c.l.b16 %v4768
    %v5458 = vunpack.c.h.b16 %v4768
    %v5459 = vunpack.c.l.b16 %v4769
    %v5460 = vunpack.c.h.b16 %v4769
    %v5461 = vunpack.c.l.b16 %v4770
    %v5462 = vunpack.c.h.b16 %v4770
    %v5463 = vunpack.c.l.b16 %v4771
    %v5464 = vunpack.c.h.b16 %v4771
    %v5465 = vunpack.c.l.b16 %v4772
    %v5466 = vunpack.c.h.b16 %v4772
    %v5467 = vunpack.c.l.b16 %v4773
    %v5468 = vunpack.c.h.b16 %v4773
    %v5469 = vunpack.c.l.b16 %v4774
    %v5470 = vunpack.c.h.b16 %v4774
    %v5471 = vunpack.c.l.b16 %v4775
    %v5472 = vunpack.c.h.b16 %v4775
    %v5473 = vunpack.c.l.b16 %v4776
    %v5474 = vunpack.c.h.b16 %v4776
    %v5475 = vunpack.c.l.b16 %v4777
    %v5476 = vunpack.c.h.b16 %v4777
    %v5477 = vunpack.c.l.b16 %v4778
    %v5478 = vunpack.c.h.b16 %v4778
    %v5479 = vunpack.c.l.b16 %v4779
    %v5480 = vunpack.c.h.b16 %v4779
    %v5481 = vunpack.c.l.b16 %v4780
    %v5482 = vunpack.c.h.b16 %v4780
    %v5483 = vunpack.c.l.b16 %v4781
    %v5484 = vunpack.c.h.b16 %v4781
    %v5485 = vunpack.c.l.b16 %v4782
    %v5486 = vunpack.c.h.b16 %v4782
    %v5487 = vunpack.c.l.b16 %v4783
    %v5488 = vunpack.c.h.b16 %v4783
    %v5489 = vunpack.c.l.b16 %v4784
    %v5490 = vunpack.c.h.b16 %v4784
    %v5491 = vunpack.c.l.b16 %v4785
    %v5492 = vunpack.c.h.b16 %v4785
    %v5493 = vunpack.c.l.b16 %v4786
    %v5494 = vunpack.c.h.b16 %v4786
    %v5495 = vunpack.c.l.b16 %v4787
    %v5496 = vunpack.c.h.b16 %v4787
    %v5497 = vunpack.c.l.b16 %v4788
    %v5498 = vunpack.c.h.b16 %v4788
    %v5499 = vunpack.c.l.b16 %v4789
    %v5500 = vunpack.c.h.b16 %v4789
    %v5501 = vunpack.c.l.b16 %v4790
    %v5502 = vunpack.c.h.b16 %v4790
    %v5503 = vunpack.c.l.b16 %v4791
    %v5504 = vunpack.c.h.b16 %v4791
    %v5505 = vunpack.c.l.b16 %v4792
    %v5506 = vunpack.c.h.b16 %v4792
    %v5507 = vunpack.c.l.b16 %v4793
    %v5508 = vunpack.c.h.b16 %v4793
    %v5509 = vunpack.c.l.b16 %v4794
    %v5510 = vunpack.c.h.b16 %v4794
    %v5511 = vunpack.c.l.b16 %v4795
    %v5512 = vunpack.c.h.b16 %v4795
    %v5513 = vunpack.c.l.b16 %v4796
    %v5514 = vunpack.c.h.b16 %v4796
    %v5515 = vunpack.c.l.b16 %v4797
    %v5516 = vunpack.c.h.b16 %v4797
    %v5517 = vunpack.c.l.b16 %v4798
    %v5518 = vunpack.c.h.b16 %v4798
    %v5519 = vunpack.c.l.b16 %v4799
    %v5520 = vunpack.c.h.b16 %v4799
    %v5521 = vunpack.c.l.b16 %v4800
    %v5522 = vunpack.c.h.b16 %v4800
    %v5523 = vunpack.c.l.b16 %v4801
    %v5524 = vunpack.c.h.b16 %v4801
    %v5525 = vunpack.c.l.b16 %v4802
    %v5526 = vunpack.c.h.b16 %v4802
    %v5527 = vunpack.c.l.b16 %v4803
    %v5528 = vunpack.c.h.b16 %v4803
    %v5529 = vunpack.c.l.b16 %v4804
    %v5530 = vunpack.c.h.b16 %v4804
    %v5531 = vunpack.c.l.b16 %v4805
    %v5532 = vunpack.c.h.b16 %v4805
    %v5533 = vunpack.c.l.b16 %v4806
    %v5534 = vunpack.c.h.b16 %v4806
    %v5535 = vunpack.c.l.b16 %v4807
    %v5536 = vunpack.c.h.b16 %v4807
    %v5537 = vunpack.c.l.b16 %v4808
    %v5538 = vunpack.c.h.b16 %v4808
    %v5539 = vunpack.c.l.b16 %v4809
    %v5540 = vunpack.c.h.b16 %v4809
    %v5541 = vunpack.c.l.b16 %v4810
    %v5542 = vunpack.c.h.b16 %v4810
    %v5543 = vunpack.c.l.b16 %v4811
    %v5544 = vunpack.c.h.b16 %v4811
    %v5545 = vunpack.c.l.b16 %v4812
    %v5546 = vunpack.c.h.b16 %v4812
    %v5547 = vunpack.c.l.b16 %v4813
    %v5548 = vunpack.c.h.b16 %v4813
    %v5549 = vunpack.c.l.b16 %v4814
    %v5550 = vunpack.c.h.b16 %v4814
    %v5551 = vunpack.c.l.b16 %v4815
    %v5552 = vunpack.c.h.b16 %v4815
    %v5553 = vunpack.c.l.b16 %v4816
    %v5554 = vunpack.c.h.b16 %v4816
    %v5555 = vunpack.c.l.b16 %v4817
    %v5556 = vunpack.c.h.b16 %v4817
    %v5557 = vunpack.c.l.b16 %v4818
    %v5558 = vunpack.c.h.b16 %v4818
    %v5559 = vunpack.c.l.b16 %v4819
    %v5560 = vunpack.c.h.b16 %v4819
    %v5561 = vunpack.c.l.b16 %v4820
    %v5562 = vunpack.c.h.b16 %v4820
    %v5563 = vunpack.c.l.b16 %v4821
    %v5564 = vunpack.c.h.b16 %v4821
    %v5565 = vunpack.c.l.b16 %v4822
    %v5566 = vunpack.c.h.b16 %v4822
    %v5567 = vunpack.c.l.b16 %v4823
    %v5568 = vunpack.c.h.b16 %v4823
    %v5569 = vunpack.c.l.b16 %v4824
    %v5570 = vunpack.c.h.b16 %v4824
    %v5571 = vunpack.c.l.b16 %v4825
    %v5572 = vunpack.c.h.b16 %v4825
    %v5573 = vunpack.c.l.b16 %v4826
    %v5574 = vunpack.c.h.b16 %v4826
    %v5575 = vunpack.c.l.b16 %v4827
    %v5576 = vunpack.c.h.b16 %v4827
    %v5577 = vunpack.c.l.b16 %v4828
    %v5578 = vunpack.c.h.b16 %v4828
    %v5579 = vunpack.c.l.b16 %v4829
    %v5580 = vunpack.c.h.b16 %v4829
    %v5581 = vunpack.c.l.b16 %v4830
    %v5582 = vunpack.c.h.b16 %v4830
    %v5583 = vunpack.c.l.b16 %v4831
    %v5584 = vunpack.c.h.b16 %v4831
    %v5585 = vunpack.c.l.b16 %v4832
    %v5586 = vunpack.c.h.b16 %v4832
    %v5587 = vunpack.c.l.b16 %v4833
    %v5588 = vunpack.c.h.b16 %v4833
    %v5589 = vunpack.c.l.b16 %v4834
    %v5590 = vunpack.c.h.b16 %v4834
    %v5591 = vunpack.c.l.b16 %v4835
    %v5592 = vunpack.c.h.b16 %v4835
    %v5593 = vunpack.c.l.b16 %v4836
    %v5594 = vunpack.c.h.b16 %v4836
    %v5595 = vunpack.c.l.b16 %v4837
    %v5596 = vunpack.c.h.b16 %v4837
    %v5597 = vunpack.c.l.b16 %v4838
    %v5598 = vunpack.c.h.b16 %v4838
    %v5599 = vunpack.c.l.b16 %v4839
    %v5600 = vunpack.c.h.b16 %v4839
    %v5601 = vunpack.c.l.b16 %v4840
    %v5602 = vunpack.c.h.b16 %v4840
    %v5603 = vunpack.c.l.b16 %v4841
    %v5604 = vunpack.c.h.b16 %v4841
    %v5605 = vunpack.c.l.b16 %v4842
    %v5606 = vunpack.c.h.b16 %v4842
    %v5607 = vunpack.c.l.b16 %v4843
    %v5608 = vunpack.c.h.b16 %v4843
    %v5609 = vunpack.c.l.b16 %v4844
    %v5610 = vunpack.c.h.b16 %v4844
    %v5611 = vunpack.c.l.b16 %v4845
    %v5612 = vunpack.c.h.b16 %v4845
    %v5613 = vunpack.c.l.b16 %v4846
    %v5614 = vunpack.c.h.b16 %v4846
    %v5615 = vunpack.c.l.b16 %v4847
    %v5616 = vunpack.c.h.b16 %v4847
    %v5617 = vunpack.c.l.b16 %v4848
    %v5618 = vunpack.c.h.b16 %v4848
    %v5619 = vunpack.c.l.b16 %v4849
    %v5620 = vunpack.c.h.b16 %v4849
    %v5621 = vunpack.c.l.b16 %v4850
    %v5622 = vunpack.c.h.b16 %v4850
    %v5623 = vunpack.c.l.b16 %v4851
    %v5624 = vunpack.c.h.b16 %v4851
    %v5625 = vunpack.c.l.b16 %v4852
    %v5626 = vunpack.c.h.b16 %v4852
    %v5627 = vunpack.c.l.b16 %v4853
    %v5628 = vunpack.c.h.b16 %v4853
    %v5629 = vunpack.c.l.b16 %v4854
    %v5630 = vunpack.c.h.b16 %v4854
    %v5631 = vunpack.c.l.b16 %v4855
    %v5632 = vunpack.c.h.b16 %v4855
    %v5633 = vunpack.c.l.b16 %v4856
    %v5634 = vunpack.c.h.b16 %v4856
    %v5635 = vunpack.c.l.b16 %v4857
    %v5636 = vunpack.c.h.b16 %v4857
    %v5637 = vunpack.c.l.b16 %v4858
    %v5638 = vunpack.c.h.b16 %v4858
    %v5639 = vunpack.c.l.b16 %v4859
    %v5640 = vunpack.c.h.b16 %v4859
    %v5641 = vunpack.c.l.b16 %v4860
    %v5642 = vunpack.c.h.b16 %v4860
    %v5643 = vunpack.c.l.b16 %v4861
    %v5644 = vunpack.c.h.b16 %v4861
    %v5645 = vunpack.c.l.b16 %v4862
    %v5646 = vunpack.c.h.b16 %v4862
    %v5647 = vunpack.c.l.b16 %v4863
    %v5648 = vunpack.c.h.b16 %v4863
    %v5649 = vunpack.c.l.b16 %v4864
    %v5650 = vunpack.c.h.b16 %v4864
    %v5651 = vunpack.c.l.b16 %v4865
    %v5652 = vunpack.c.h.b16 %v4865
    %v5653 = vunpack.c.l.b16 %v4866
    %v5654 = vunpack.c.h.b16 %v4866
    %v5655 = vunpack.c.l.b16 %v4867
    %v5656 = vunpack.c.h.b16 %v4867
    %v5657 = vunpack.c.l.b16 %v4868
    %v5658 = vunpack.c.h.b16 %v4868
    %v5659 = vunpack.c.l.b16 %v4869
    %v5660 = vunpack.c.h.b16 %v4869
    %v5661 = vunpack.c.l.b16 %v4870
    %v5662 = vunpack.c.h.b16 %v4870
    %v5663 = vunpack.c.l.b16 %v4871
    %v5664 = vunpack.c.h.b16 %v4871
    %v5665 = vunpack.c.l.b16 %v4872
    %v5666 = vunpack.c.h.b16 %v4872
    %v5667 = vunpack.c.l.b16 %v4873
    %v5668 = vunpack.c.h.b16 %v4873
    %v5669 = vunpack.c.l.b16 %v4874
    %v5670 = vunpack.c.h.b16 %v4874
    %v5671 = vunpack.c.l.b16 %v4875
    %v5672 = vunpack.c.h.b16 %v4875
    %v5673 = vunpack.c.l.b16 %v4876
    %v5674 = vunpack.c.h.b16 %v4876
    %v5675 = vunpack.c.l.b16 %v4877
    %v5676 = vunpack.c.h.b16 %v4877
    %v5677 = vunpack.c.l.b16 %v4878
    %v5678 = vunpack.c.h.b16 %v4878
    %v5679 = vunpack.c.l.b16 %v4879
    %v5680 = vunpack.c.h.b16 %v4879
    %v5681 = vunpack.c.l.b16 %v4880
    %v5682 = vunpack.c.h.b16 %v4880
    %v5683 = vunpack.c.l.b16 %v4881
    %v5684 = vunpack.c.h.b16 %v4881
    %v5685 = vunpack.c.l.b16 %v4882
    %v5686 = vunpack.c.h.b16 %v4882
    %v5687 = vunpack.c.l.b16 %v4883
    %v5688 = vunpack.c.h.b16 %v4883
    %v5689 = vunpack.c.l.b16 %v4884
    %v5690 = vunpack.c.h.b16 %v4884
    %v5691 = vunpack.c.l.b16 %v4885
    %v5692 = vunpack.c.h.b16 %v4885
    %v5693 = vunpack.c.l.b16 %v4886
    %v5694 = vunpack.c.h.b16 %v4886
    %v5695 = vunpack.c.l.b16 %v4887
    %v5696 = vunpack.c.h.b16 %v4887
    %v5697 = vunpack.c.l.b16 %v4888
    %v5698 = vunpack.c.h.b16 %v4888
    %v5699 = vunpack.c.l.b16 %v4889
    %v5700 = vunpack.c.h.b16 %v4889
    %v5701 = vunpack.c.l.b16 %v4890
    %v5702 = vunpack.c.h.b16 %v4890
    %v5703 = vunpack.c.l.b16 %v4891
    %v5704 = vunpack.c.h.b16 %v4891
    %v5705 = vunpack.c.l.b16 %v4892
    %v5706 = vunpack.c.h.b16 %v4892
    %v5707 = vunpack.c.l.b16 %v4893
    %v5708 = vunpack.c.h.b16 %v4893
    %v5709 = vunpack.c.l.b16 %v4894
    %v5710 = vunpack.c.h.b16 %v4894
    %v5711 = vunpack.c.l.b16 %v4895
    %v5712 = vunpack.c.h.b16 %v4895
    %v5713 = vunpack.c.l.b16 %v4896
    %v5714 = vunpack.c.h.b16 %v4896
    %v5715 = vunpack.c.l.b16 %v4897
    %v5716 = vunpack.c.h.b16 %v4897
    %v5717 = vunpack.c.l.b16 %v4898
    %v5718 = vunpack.c.h.b16 %v4898
    %v5719 = vunpack.c.l.b16 %v4899
    %v5720 = vunpack.c.h.b16 %v4899
    %v5721 = vunpack.c.l.b16 %v4900
    %v5722 = vunpack.c.h.b16 %v4900
    %v5723 = vunpack.c.l.b16 %v4901
    %v5724 = vunpack.c.h.b16 %v4901
    %v5725 = vunpack.c.l.b16 %v4902
    %v5726 = vunpack.c.h.b16 %v4902
    %v5727 = vunpack.c.l.b16 %v4903
    %v5728 = vunpack.c.h.b16 %v4903
    %v5729 = vunpack.c.l.b16 %v4904
    %v5730 = vunpack.c.h.b16 %v4904
    %v5731 = vunpack.c.l.b16 %v4905
    %v5732 = vunpack.c.h.b16 %v4905
    %v5733 = vunpack.c.l.b16 %v4906
    %v5734 = vunpack.c.h.b16 %v4906
    %v5735 = vunpack.c.l.b16 %v4907
    %v5736 = vunpack.c.h.b16 %v4907
    %v5737 = vunpack.c.l.b16 %v4908
    %v5738 = vunpack.c.h.b16 %v4908
    %v5739 = vunpack.c.l.b16 %v4909
    %v5740 = vunpack.c.h.b16 %v4909
    %v5741 = vunpack.c.l.b16 %v4910
    %v5742 = vunpack.c.h.b16 %v4910
    %v5743 = vunpack.c.l.b16 %v4911
    %v5744 = vunpack.c.h.b16 %v4911
    %v5745 = vunpack.c.l.b16 %v4912
    %v5746 = vunpack.c.h.b16 %v4912
    %v5747 = vunpack.c.l.b16 %v4913
    %v5748 = vunpack.c.h.b16 %v4913
    %v5749 = vunpack.c.l.b16 %v4914
    %v5750 = vunpack.c.h.b16 %v4914
    %v5751 = vunpack.c.l.b16 %v4915
    %v5752 = vunpack.c.h.b16 %v4915
    %v5753 = vunpack.c.l.b16 %v4916
    %v5754 = vunpack.c.h.b16 %v4916
    %v5755 = vunpack.c.l.b16 %v4917
    %v5756 = vunpack.c.h.b16 %v4917
    %v5757 = vunpack.c.l.b16 %v4918
    %v5758 = vunpack.c.h.b16 %v4918
    %v5759 = vunpack.c.l.b16 %v4919
    %v5760 = vunpack.c.h.b16 %v4919
    %v5761 = vunpack.c.l.b16 %v4920
    %v5762 = vunpack.c.h.b16 %v4920
    %v5763 = vunpack.c.l.b16 %v4921
    %v5764 = vunpack.c.h.b16 %v4921
    %v5765 = vunpack.c.l.b16 %v4922
    %v5766 = vunpack.c.h.b16 %v4922
    %v5767 = vunpack.c.l.b16 %v4923
    %v5768 = vunpack.c.h.b16 %v4923
    %v5769 = vunpack.c.l.b16 %v4924
    %v5770 = vunpack.c.h.b16 %v4924
    %v5771 = vunpack.c.l.b16 %v4925
    %v5772 = vunpack.c.h.b16 %v4925
    %v5773 = vunpack.c.l.b16 %v4926
    %v5774 = vunpack.c.h.b16 %v4926
    %v5775 = vunpack.c.l.b16 %v4927
    %v5776 = vunpack.c.h.b16 %v4927
    %v5777 = vunpack.c.l.b16 %v4928
    %v5778 = vunpack.c.h.b16 %v4928
    %v5779 = vunpack.c.l.b16 %v4929
    %v5780 = vunpack.c.h.b16 %v4929
    %v5781 = vunpack.c.l.b16 %v4930
    %v5782 = vunpack.c.h.b16 %v4930
    %v5783 = vunpack.c.l.b16 %v4931
    %v5784 = vunpack.c.h.b16 %v4931
    %v5785 = vunpack.c.l.b16 %v4932
    %v5786 = vunpack.c.h.b16 %v4932
    %v5787 = vunpack.c.l.b16 %v4933
    %v5788 = vunpack.c.h.b16 %v4933
    %v5789 = vunpack.c.l.b16 %v4934
    %v5790 = vunpack.c.h.b16 %v4934
    %v5791 = vunpack.c.l.b16 %v4935
    %v5792 = vunpack.c.h.b16 %v4935
    %v5793 = vunpack.c.l.b16 %v4936
    %v5794 = vunpack.c.h.b16 %v4936
    %v5795 = vunpack.c.l.b16 %v4937
    %v5796 = vunpack.c.h.b16 %v4937
    %v5797 = vunpack.c.l.b16 %v4938
    %v5798 = vunpack.c.h.b16 %v4938
    %v5799 = vunpack.c.l.b16 %v4939
    %v5800 = vunpack.c.h.b16 %v4939
    %v5801 = vunpack.c.l.b16 %v4940
    %v5802 = vunpack.c.h.b16 %v4940
    %v5803 = vunpack.c.l.b16 %v4941
    %v5804 = vunpack.c.h.b16 %v4941
    %v5805 = vunpack.c.l.b16 %v4942
    %v5806 = vunpack.c.h.b16 %v4942
    %v5807 = vunpack.c.l.b16 %v4943
    %v5808 = vunpack.c.h.b16 %v4943
    %v5809 = vunpack.c.l.b16 %v4944
    %v5810 = vunpack.c.h.b16 %v4944
    %v5811 = vunpack.c.l.b16 %v4945
    %v5812 = vunpack.c.h.b16 %v4945
    %v5813 = vunpack.c.l.b16 %v4946
    %v5814 = vunpack.c.h.b16 %v4946
    %v5815 = vunpack.c.l.b16 %v4947
    %v5816 = vunpack.c.h.b16 %v4947
    %v5817 = vunpack.c.l.b16 %v4948
    %v5818 = vunpack.c.h.b16 %v4948
    %v5819 = vunpack.c.l.b16 %v4949
    %v5820 = vunpack.c.h.b16 %v4949
    %v5821 = vunpack.c.l.b16 %v4950
    %v5822 = vunpack.c.h.b16 %v4950
    %v5823 = vunpack.c.l.b16 %v4951
    %v5824 = vunpack.c.h.b16 %v4951
    %v5825 = vunpack.c.l.b16 %v4952
    %v5826 = vunpack.c.h.b16 %v4952
    %v5827 = vunpack.c.l.b16 %v4953
    %v5828 = vunpack.c.h.b16 %v4953
    %v5829 = vunpack.c.l.b16 %v4954
    %v5830 = vunpack.c.h.b16 %v4954
    %v5831 = vunpack.c.l.b16 %v4955
    %v5832 = vunpack.c.h.b16 %v4955
    %v5833 = vunpack.c.l.b16 %v4956
    %v5834 = vunpack.c.h.b16 %v4956
    %v5835 = vunpack.c.l.b16 %v4957
    %v5836 = vunpack.c.h.b16 %v4957
    %v5837 = vunpack.c.l.b16 %v4958
    %v5838 = vunpack.c.h.b16 %v4958
    %v5839 = vunpack.c.l.b16 %v4959
    %v5840 = vunpack.c.h.b16 %v4959
    %v5841 = vunpack.c.l.b16 %v4960
    %v5842 = vunpack.c.h.b16 %v4960
    %v5843 = vunpack.c.l.b16 %v4961
    %v5844 = vunpack.c.h.b16 %v4961
    %v5845 = vunpack.c.l.b16 %v4962
    %v5846 = vunpack.c.h.b16 %v4962
    %v5847 = vunpack.c.l.b16 %v4963
    %v5848 = vunpack.c.h.b16 %v4963
    %v5849 = vunpack.c.l.b16 %v4964
    %v5850 = vunpack.c.h.b16 %v4964
    %v5851 = vunpack.c.l.b16 %v4965
    %v5852 = vunpack.c.h.b16 %v4965
    %v5853 = vunpack.c.l.b16 %v4966
    %v5854 = vunpack.c.h.b16 %v4966
    %v5855 = vunpack.c.l.b16 %v4967
    %v5856 = vunpack.c.h.b16 %v4967
    %v5857 = vunpack.c.l.b16 %v4968
    %v5858 = vunpack.c.h.b16 %v4968
    %v5859 = vunpack.c.l.b16 %v4969
    %v5860 = vunpack.c.h.b16 %v4969
    %v5861 = vunpack.c.l.b16 %v4970
    %v5862 = vunpack.c.h.b16 %v4970
    %v5863 = vunpack.c.l.b16 %v4971
    %v5864 = vunpack.c.h.b16 %v4971
    %v5865 = vunpack.c.l.b16 %v4972
    %v5866 = vunpack.c.h.b16 %v4972
    %v5867 = vunpack.c.l.b16 %v4973
    %v5868 = vunpack.c.h.b16 %v4973
    %v5869 = vunpack.c.l.b16 %v4974
    %v5870 = vunpack.c.h.b16 %v4974
    %v5871 = vpack.c.b16 %v5301, %v5295
    %v5872 = vpack.c.b16 %v5302, %v5296
    %v5873 = vpack.c.b16 %v5303, %v5297
    %v5874 = vpack.c.b16 %v5304, %v5298
    %v5875 = vpack.c.b16 %v5305, %v5299
    %v5876 = vpack.c.b16 %v5306, %v5300
    %v5877 = vpack.c.b16 %v5313, %v5307
    %v5878 = vpack.c.b16 %v5314, %v5308
    %v5879 = vpack.c.b16 %v5315, %v5309
    %v5880 = vpack.c.b16 %v5316, %v5310
    %v5881 = vpack.c.b16 %v5317, %v5311
    %v5882 = vpack.c.b16 %v5318, %v5312
    %v5883 = vpack.c.b16 %v5325, %v5319
    %v5884 = vpack.c.b16 %v5326, %v5320
    %v5885 = vpack.c.b16 %v5327, %v5321
    %v5886 = vpack.c.b16 %v5328, %v5322
    %v5887 = vpack.c.b16 %v5329, %v5323
    %v5888 = vpack.c.b16 %v5330, %v5324
    %v5889 = vpack.c.b16 %v5337, %v5331
    %v5890 = vpack.c.b16 %v5338, %v5332
    %v5891 = vpack.c.b16 %v5339, %v5333
    %v5892 = vpack.c.b16 %v5340, %v5334
    %v5893 = vpack.c.b16 %v5341, %v5335
    %v5894 = vpack.c.b16 %v5342, %v5336
    %v5895 = vpack.c.b16 %v5349, %v5343
    %v5896 = vpack.c.b16 %v5350, %v5344
    %v5897 = vpack.c.b16 %v5351, %v5345
    %v5898 = vpack.c.b16 %v5352, %v5346
    %v5899 = vpack.c.b16 %v5353, %v5347
    %v5900 = vpack.c.b16 %v5354, %v5348
    %v5901 = vpack.c.b16 %v5361, %v5355
    %v5902 = vpack.c.b16 %v5362, %v5356
    %v5903 = vpack.c.b16 %v5363, %v5357
    %v5904 = vpack.c.b16 %v5364, %v5358
    %v5905 = vpack.c.b16 %v5365, %v5359
    %v5906 = vpack.c.b16 %v5366, %v5360
    %v5907 = vpack.c.b16 %v5373, %v5367
    %v5908 = vpack.c.b16 %v5374, %v5368
    %v5909 = vpack.c.b16 %v5375, %v5369
    %v5910 = vpack.c.b16 %v5376, %v5370
    %v5911 = vpack.c.b16 %v5377, %v5371
    %v5912 = vpack.c.b16 %v5378, %v5372
    %v5913 = vpack.c.b16 %v5385, %v5379
    %v5914 = vpack.c.b16 %v5386, %v5380
    %v5915 = vpack.c.b16 %v5387, %v5381
    %v5916 = vpack.c.b16 %v5388, %v5382
    %v5917 = vpack.c.b16 %v5389, %v5383
    %v5918 = vpack.c.b16 %v5390, %v5384
    %v5919 = vpack.c.b16 %v5397, %v5391
    %v5920 = vpack.c.b16 %v5398, %v5392
    %v5921 = vpack.c.b16 %v5399, %v5393
    %v5922 = vpack.c.b16 %v5400, %v5394
    %v5923 = vpack.c.b16 %v5401, %v5395
    %v5924 = vpack.c.b16 %v5402, %v5396
    %v5925 = vpack.c.b16 %v5409, %v5403
    %v5926 = vpack.c.b16 %v5410, %v5404
    %v5927 = vpack.c.b16 %v5411, %v5405
    %v5928 = vpack.c.b16 %v5412, %v5406
    %v5929 = vpack.c.b16 %v5413, %v5407
    %v5930 = vpack.c.b16 %v5414, %v5408
    %v5931 = vpack.c.b16 %v5421, %v5415
    %v5932 = vpack.c.b16 %v5422, %v5416
    %v5933 = vpack.c.b16 %v5423, %v5417
    %v5934 = vpack.c.b16 %v5424, %v5418
    %v5935 = vpack.c.b16 %v5425, %v5419
    %v5936 = vpack.c.b16 %v5426, %v5420
    %v5937 = vpack.c.b16 %v5433, %v5427
    %v5938 = vpack.c.b16 %v5434, %v5428
    %v5939 = vpack.c.b16 %v5435, %v5429
    %v5940 = vpack.c.b16 %v5436, %v5430
    %v5941 = vpack.c.b16 %v5437, %v5431
    %v5942 = vpack.c.b16 %v5438, %v5432
    %v5943 = vpack.c.b16 %v5445, %v5439
    %v5944 = vpack.c.b16 %v5446, %v5440
    %v5945 = vpack.c.b16 %v5447, %v5441
    %v5946 = vpack.c.b16 %v5448, %v5442
    %v5947 = vpack.c.b16 %v5449, %v5443
    %v5948 = vpack.c.b16 %v5450, %v5444
    %v5949 = vpack.c.b16 %v5457, %v5451
    %v5950 = vpack.c.b16 %v5458, %v5452
    %v5951 = vpack.c.b16 %v5459, %v5453
    %v5952 = vpack.c.b16 %v5460, %v5454
    %v5953 = vpack.c.b16 %v5461, %v5455
    %v5954 = vpack.c.b16 %v5462, %v5456
    %v5955 = vpack.c.b16 %v5469, %v5463
    %v5956 = vpack.c.b16 %v5470, %v5464
    %v5957 = vpack.c.b16 %v5471, %v5465
    %v5958 = vpack.c.b16 %v5472, %v5466
    %v5959 = vpack.c.b16 %v5473, %v5467
    %v5960 = vpack.c.b16 %v5474, %v5468
    %v5961 = vpack.c.b16 %v5481, %v5475
    %v5962 = vpack.c.b16 %v5482, %v5476
    %v5963 = vpack.c.b16 %v5483, %v5477
    %v5964 = vpack.c.b16 %v5484, %v5478
    %v5965 = vpack.c.b16 %v5485, %v5479
    %v5966 = vpack.c.b16 %v5486, %v5480
    %v5967 = vpack.c.b16 %v5493, %v5487
    %v5968 = vpack.c.b16 %v5494, %v5488
    %v5969 = vpack.c.b16 %v5495, %v5489
    %v5970 = vpack.c.b16 %v5496, %v5490
    %v5971 = vpack.c.b16 %v5497, %v5491
    %v5972 = vpack.c.b16 %v5498, %v5492
    %v5973 = vpack.c.b16 %v5505, %v5499
    %v5974 = vpack.c.b16 %v5506, %v5500
    %v5975 = vpack.c.b16 %v5507, %v5501
    %v5976 = vpack.c.b16 %v5508, %v5502
    %v5977 = vpack.c.b16 %v5509, %v5503
    %v5978 = vpack.c.b16 %v5510, %v5504
    %v5979 = vpack.c.b16 %v5517, %v5511
    %v5980 = vpack.c.b16 %v5518, %v5512
    %v5981 = vpack.c.b16 %v5519, %v5513
    %v5982 = vpack.c.b16 %v5520, %v5514
    %v5983 = vpack.c.b16 %v5521, %v5515
    %v5984 = vpack.c.b16 %v5522, %v5516
    %v5985 = vpack.c.b16 %v5529, %v5523
    %v5986 = vpack.c.b16 %v5530, %v5524
    %v5987 = vpack.c.b16 %v5531, %v5525
    %v5988 = vpack.c.b16 %v5532, %v5526
    %v5989 = vpack.c.b16 %v5533, %v5527
    %v5990 = vpack.c.b16 %v5534, %v5528
    %v5991 = vpack.c.b16 %v5541, %v5535
    %v5992 = vpack.c.b16 %v5542, %v5536
    %v5993 = vpack.c.b16 %v5543, %v5537
    %v5994 = vpack.c.b16 %v5544, %v5538
    %v5995 = vpack.c.b16 %v5545, %v5539
    %v5996 = vpack.c.b16 %v5546, %v5540
    %v5997 = vpack.c.b16 %v5553, %v5547
    %v5998 = vpack.c.b16 %v5554, %v5548
    %v5999 = vpack.c.b16 %v5555, %v5549
    %v6000 = vpack.c.b16 %v5556, %v5550
    %v6001 = vpack.c.b16 %v5557, %v5551
    %v6002 = vpack.c.b16 %v5558, %v5552
    %v6003 = vpack.c.b16 %v5565, %v5559
    %v6004 = vpack.c.b16 %v5566, %v5560
    %v6005 = vpack.c.b16 %v5567, %v5561
    %v6006 = vpack.c.b16 %v5568, %v5562
    %v6007 = vpack.c.b16 %v5569, %v5563
    %v6008 = vpack.c.b16 %v5570, %v5564
    %v6009 = vpack.c.b16 %v5577, %v5571
    %v6010 = vpack.c.b16 %v5578, %v5572
    %v6011 = vpack.c.b16 %v5579, %v5573
    %v6012 = vpack.c.b16 %v5580, %v5574
    %v6013 = vpack.c.b16 %v5581, %v5575
    %v6014 = vpack.c.b16 %v5582, %v5576
    %v6015 = vpack.c.b16 %v5589, %v5583
    %v6016 = vpack.c.b16 %v5590, %v5584
    %v6017 = vpack.c.b16 %v5591, %v5585
    %v6018 = vpack.c.b16 %v5592, %v5586
    %v6019 = vpack.c.b16 %v5593, %v5587
    %v6020 = vpack.c.b16 %v5594, %v5588
    %v6021 = vpack.c.b16 %v5601, %v5595
    %v6022 = vpack.c.b16 %v5602, %v5596
    %v6023 = vpack.c.b16 %v5603, %v5597
    %v6024 = vpack.c.b16 %v5604, %v5598
    %v6025 = vpack.c.b16 %v5605, %v5599
    %v6026 = vpack.c.b16 %v5606, %v5600
    %v6027 = vpack.c.b16 %v5613, %v5607
    %v6028 = vpack.c.b16 %v5614, %v5608
    %v6029 = vpack.c.b16 %v5615, %v5609
    %v6030 = vpack.c.b16 %v5616, %v5610
    %v6031 = vpack.c.b16 %v5617, %v5611
    %v6032 = vpack.c.b16 %v5618, %v5612
    %v6033 = vpack.c.b16 %v5625, %v5619
    %v6034 = vpack.c.b16 %v5626, %v5620
    %v6035 = vpack.c.b16 %v5627, %v5621
    %v6036 = vpack.c.b16 %v5628, %v5622
    %v6037 = vpack.c.b16 %v5629, %v5623
    %v6038 = vpack.c.b16 %v5630, %v5624
    %v6039 = vpack.c.b16 %v5637, %v5631
    %v6040 = vpack.c.b16 %v5638, %v5632
    %v6041 = vpack.c.b16 %v5639, %v5633
    %v6042 = vpack.c.b16 %v5640, %v5634
    %v6043 = vpack.c.b16 %v5641, %v5635
    %v6044 = vpack.c.b16 %v5642, %v5636
    %v6045 = vpack.c.b16 %v5649, %v5643
    %v6046 = vpack.c.b16 %v5650, %v5644
    %v6047 = vpack.c.b16 %v5651, %v5645
    %v6048 = vpack.c.b16 %v5652, %v5646
    %v6049 = vpack.c.b16 %v5653, %v5647
    %v6050 = vpack.c.b16 %v5654, %v5648
    %v6051 = vpack.c.b16 %v5661, %v5655
    %v6052 = vpack.c.b16 %v5662, %v5656
    %v6053 = vpack.c.b16 %v5663, %v5657
    %v6054 = vpack.c.b16 %v5664, %v5658
    %v6055 = vpack.c.b16 %v5665, %v5659
    %v6056 = vpack.c.b16 %v5666, %v5660
    %v6057 = vpack.c.b16 %v5673, %v5667
    %v6058 = vpack.c.b16 %v5674, %v5668
    %v6059 = vpack.c.b16 %v5675, %v5669
    %v6060 = vpack.c.b16 %v5676, %v5670
    %v6061 = vpack.c.b16 %v5677, %v5671
    %v6062 = vpack.c.b16 %v5678, %v5672
    %v6063 = vpack.c.b16 %v5685, %v5679
    %v6064 = vpack.c.b16 %v5686, %v5680
    %v6065 = vpack.c.b16 %v5687, %v5681
    %v6066 = vpack.c.b16 %v5688, %v5682
    %v6067 = vpack.c.b16 %v5689, %v5683
    %v6068 = vpack.c.b16 %v5690, %v5684
    %v6069 = vpack.c.b16 %v5697, %v5691
    %v6070 = vpack.c.b16 %v5698, %v5692
    %v6071 = vpack.c.b16 %v5699, %v5693
    %v6072 = vpack.c.b16 %v5700, %v5694
    %v6073 = vpack.c.b16 %v5701, %v5695
    %v6074 = vpack.c.b16 %v5702, %v5696
    %v6075 = vpack.c.b16 %v5709, %v5703
    %v6076 = vpack.c.b16 %v5710, %v5704
    %v6077 = vpack.c.b16 %v5711, %v5705
    %v6078 = vpack.c.b16 %v5712, %v5706
    %v6079 = vpack.c.b16 %v5713, %v5707
    %v6080 = vpack.c.b16 %v5714, %v5708
    %v6081 = vpack.c.b16 %v5721, %v5715
    %v6082 = vpack.c.b16 %v5722, %v5716
    %v6083 = vpack.c.b16 %v5723, %v5717
    %v6084 = vpack.c.b16 %v5724, %v5718
    %v6085 = vpack.c.b16 %v5725, %v5719
    %v6086 = vpack.c.b16 %v5726, %v5720
    %v6087 = vpack.c.b16 %v5733, %v5727
    %v6088 = vpack.c.b16 %v5734, %v5728
    %v6089 = vpack.c.b16 %v5735, %v5729
    %v6090 = vpack.c.b16 %v5736, %v5730
    %v6091 = vpack.c.b16 %v5737, %v5731
    %v6092 = vpack.c.b16 %v5738, %v5732
    %v6093 = vpack.c.b16 %v5745, %v5739
    %v6094 = vpack.c.b16 %v5746, %v5740
    %v6095 = vpack.c.b16 %v5747, %v5741
    %v6096 = vpack.c.b16 %v5748, %v5742
    %v6097 = vpack.c.b16 %v5749, %v5743
    %v6098 = vpack.c.b16 %v5750, %v5744
    %v6099 = vpack.c.b16 %v5757, %v5751
    %v6100 = vpack.c.b16 %v5758, %v5752
    %v6101 = vpack.c.b16 %v5759, %v5753
    %v6102 = vpack.c.b16 %v5760, %v5754
    %v6103 = vpack.c.b16 %v5761, %v5755
    %v6104 = vpack.c.b16 %v5762, %v5756
    %v6105 = vpack.c.b16 %v5769, %v5763
    %v6106 = vpack.c.b16 %v5770, %v5764
    %v6107 = vpack.c.b16 %v5771, %v5765
    %v6108 = vpack.c.b16 %v5772, %v5766
    %v6109 = vpack.c.b16 %v5773, %v5767
    %v6110 = vpack.c.b16 %v5774, %v5768
    %v6111 = vpack.c.b16 %v5781, %v5775
    %v6112 = vpack.c.b16 %v5782, %v5776
    %v6113 = vpack.c.b16 %v5783, %v5777
    %v6114 = vpack.c.b16 %v5784, %v5778
    %v6115 = vpack.c.b16 %v5785, %v5779
    %v6116 = vpack.c.b16 %v5786, %v5780
    %v6117 = vpack.c.b16 %v5793, %v5787
    %v6118 = vpack.c.b16 %v5794, %v5788
    %v6119 = vpack.c.b16 %v5795, %v5789
    %v6120 = vpack.c.b16 %v5796, %v5790
    %v6121 = vpack.c.b16 %v5797, %v5791
    %v6122 = vpack.c.b16 %v5798, %v5792
    %v6123 = vpack.c.b16 %v5805, %v5799
    %v6124 = vpack.c.b16 %v5806, %v5800
    %v6125 = vpack.c.b16 %v5807, %v5801
    %v6126 = vpack.c.b16 %v5808, %v5802
    %v6127 = vpack.c.b16 %v5809, %v5803
    %v6128 = vpack.c.b16 %v5810, %v5804
    %v6129 = vpack.c.b16 %v5817, %v5811
    %v6130 = vpack.c.b16 %v5818, %v5812
    %v6131 = vpack.c.b16 %v5819, %v5813
    %v6132 = vpack.c.b16 %v5820, %v5814
    %v6133 = vpack.c.b16 %v5821, %v5815
    %v6134 = vpack.c.b16 %v5822, %v5816
    %v6135 = vpack.c.b16 %v5829, %v5823
    %v6136 = vpack.c.b16 %v5830, %v5824
    %v6137 = vpack.c.b16 %v5831, %v5825
    %v6138 = vpack.c.b16 %v5832, %v5826
    %v6139 = vpack.c.b16 %v5833, %v5827
    %v6140 = vpack.c.b16 %v5834, %v5828
    %v6141 = vpack.c.b16 %v5841, %v5835
    %v6142 = vpack.c.b16 %v5842, %v5836
    %v6143 = vpack.c.b16 %v5843, %v5837
    %v6144 = vpack.c.b16 %v5844, %v5838
    %v6145 = vpack.c.b16 %v5845, %v5839
    %v6146 = vpack.c.b16 %v5846, %v5840
    %v6147 = vpack.c.b16 %v5853, %v5847
    %v6148 = vpack.c.b16 %v5854, %v5848
    %v6149 = vpack.c.b16 %v5855, %v5849
    %v6150 = vpack.c.b16 %v5856, %v5850
    %v6151 = vpack.c.b16 %v5857, %v5851
    %v6152 = vpack.c.b16 %v5858, %v5852
    %v6153 = vpack.c.b16 %v5865, %v5859
    %v6154 = vpack.c.b16 %v5866, %v5860
    %v6155 = vpack.c.b16 %v5867, %v5861
    %v6156 = vpack.c.b16 %v5868, %v5862
    %v6157 = vpack.c.b16 %v5869, %v5863
    %v6158 = vpack.c.b16 %v5870, %v5864
    %6447 = vmatprep.subr.bf16.mxu0 %v5872
    %6448 = vmatpush1.bf16.msra.mxu0 %v5871
    %6449 = vmatprep.subr.bf16.mxu0 %v5878
    %6450 = vmatpush1.bf16.msra.mxu0 %v5877
    %6451 = vmatprep.subr.bf16.mxu0 %v5884
    %6452 = vmatpush1.bf16.msra.mxu0 %v5883
    %6453 = vmatprep.subr.bf16.mxu0 %v5890
    %6454 = vmatpush1.bf16.msra.mxu0 %v5889
    %6455 = vmatprep.subr.bf16.mxu0 %v5896
    %6456 = vmatpush1.bf16.msra.mxu0 %v5895
    %6457 = vmatprep.subr.bf16.mxu0 %v5902
    %6458 = vmatpush1.bf16.msra.mxu0 %v5901
    %6459 = vmatprep.subr.bf16.mxu0 %v5908
    %6460 = vmatpush1.bf16.msra.mxu0 %v5907
    %6461 = vmatprep.subr.bf16.mxu0 %v5914
    %6462 = vmatpush1.bf16.msra.mxu0 %v5913
    %6463 = vmatprep.subr.bf16.mxu0 %v5920
    %6464 = vmatpush1.bf16.msra.mxu0 %v5919
    %6465 = vmatprep.subr.bf16.mxu0 %v5926
    %6466 = vmatpush1.bf16.msra.mxu0 %v5925
    %6467 = vmatprep.subr.bf16.mxu0 %v5932
    %6468 = vmatpush1.bf16.msra.mxu0 %v5931
    %6469 = vmatprep.subr.bf16.mxu0 %v5938
    %6470 = vmatpush1.bf16.msra.mxu0 %v5937
    %6471 = vmatprep.subr.bf16.mxu0 %v5944
    %6472 = vmatpush1.bf16.msra.mxu0 %v5943
    %6473 = vmatprep.subr.bf16.mxu0 %v5950
    %6474 = vmatpush1.bf16.msra.mxu0 %v5949
    %6475 = vmatprep.subr.bf16.mxu0 %v5956
    %6476 = vmatpush1.bf16.msra.mxu0 %v5955
    %6477 = vmatprep.subr.bf16.mxu0 %v5962
    %6478 = vmatpush1.bf16.msra.mxu0 %v5961
    %6479 = vmatprep.mubr.bf16.mxu0 %v4682
    %6480 = vmatmul.mubr.bf16.gmra.mrb[0].mxu0 %v4681
    %v6481 = vpop.f32.mrb[0].mxu0
    %v6482 = vadd.f32 %v4980, %v6481
    %v6483 = vpop.f32.mrb[0].mxu0
    %v6484 = vadd.f32 %v4984, %v6483
    %v6485 = vpop.f32.mrb[0].mxu0
    %v6486 = vadd.f32 %v4980, %v6485
    %v6487 = vpop.f32.mrb[0].mxu0
    %v6488 = vadd.f32 %v4984, %v6487
    %6489 = vdwg.mxu0
    %6490 = vmatprep.subr.bf16.mxu0 %v5968
    %6491 = vmatpush1.bf16.msra.mxu0 %v5967
    %6492 = vmatprep.subr.bf16.mxu0 %v5974
    %6493 = vmatpush1.bf16.msra.mxu0 %v5973
    %6494 = vmatprep.subr.bf16.mxu0 %v5980
    %6495 = vmatpush1.bf16.msra.mxu0 %v5979
    %6496 = vmatprep.subr.bf16.mxu0 %v5986
    %6497 = vmatpush1.bf16.msra.mxu0 %v5985
    %6498 = vmatprep.subr.bf16.mxu0 %v5992
    %6499 = vmatpush1.bf16.msra.mxu0 %v5991
    %6500 = vmatprep.subr.bf16.mxu0 %v5998
    %6501 = vmatpush1.bf16.msra.mxu0 %v5997
    %6502 = vmatprep.subr.bf16.mxu0 %v6004
    %6503 = vmatpush1.bf16.msra.mxu0 %v6003
    %6504 = vmatprep.subr.bf16.mxu0 %v6010
    %6505 = vmatpush1.bf16.msra.mxu0 %v6009
    %6506 = vmatprep.subr.bf16.mxu0 %v6016
    %6507 = vmatpush1.bf16.msra.mxu0 %v6015
    %6508 = vmatprep.subr.bf16.mxu0 %v6022
    %6509 = vmatpush1.bf16.msra.mxu0 %v6021
    %6510 = vmatprep.subr.bf16.mxu0 %v6028
    %6511 = vmatpush1.bf16.msra.mxu0 %v6027
    %6512 = vmatprep.subr.bf16.mxu0 %v6034
    %6513 = vmatpush1.bf16.msra.mxu0 %v6033
    %6514 = vmatprep.subr.bf16.mxu0 %v6040
    %6515 = vmatpush1.bf16.msra.mxu0 %v6039
    %6516 = vmatprep.subr.bf16.mxu0 %v6046
    %6517 = vmatpush1.bf16.msra.mxu0 %v6045
    %6518 = vmatprep.subr.bf16.mxu0 %v6052
    %6519 = vmatpush1.bf16.msra.mxu0 %v6051
    %6520 = vmatprep.subr.bf16.mxu0 %v6058
    %6521 = vmatpush1.bf16.msra.mxu0 %v6057
    %6522 = vmatprep.mubr.bf16.mxu0 %v4684
    %6523 = vmatmul.mubr.bf16.gmra.mrb[0].mxu0 %v4683
    %v6524 = vpop.f32.mrb[0].mxu0
    %v6525 = vadd.f32 %v6482, %v6524
    %v6526 = vpop.f32.mrb[0].mxu0
    %v6527 = vadd.f32 %v6484, %v6526
    %v6528 = vpop.f32.mrb[0].mxu0
    %v6529 = vadd.f32 %v6486, %v6528
    %v6530 = vpop.f32.mrb[0].mxu0
    %v6531 = vadd.f32 %v6488, %v6530
    %6532 = vdwg.mxu0
    %6533 = vmatprep.subr.bf16.mxu0 %v6064
    %6534 = vmatpush1.bf16.msra.mxu0 %v6063
    %6535 = vmatprep.subr.bf16.mxu0 %v6070
    %6536 = vmatpush1.bf16.msra.mxu0 %v6069
    %6537 = vmatprep.subr.bf16.mxu0 %v6076
    %6538 = vmatpush1.bf16.msra.mxu0 %v6075
    %6539 = vmatprep.subr.bf16.mxu0 %v6082
    %6540 = vmatpush1.bf16.msra.mxu0 %v6081
    %6541 = vmatprep.subr.bf16.mxu0 %v6088
    %6542 = vmatpush1.bf16.msra.mxu0 %v6087
    %6543 = vmatprep.subr.bf16.mxu0 %v6094
    %6544 = vmatpush1.bf16.msra.mxu0 %v6093
    %6545 = vmatprep.subr.bf16.mxu0 %v6100
    %6546 = vmatpush1.bf16.msra.mxu0 %v6099
    %6547 = vmatprep.subr.bf16.mxu0 %v6106
    %6548 = vmatpush1.bf16.msra.mxu0 %v6105
    %6549 = vmatprep.subr.bf16.mxu0 %v6112
    %6550 = vmatpush1.bf16.msra.mxu0 %v6111
    %6551 = vmatprep.subr.bf16.mxu0 %v6118
    %6552 = vmatpush1.bf16.msra.mxu0 %v6117
    %6553 = vmatprep.subr.bf16.mxu0 %v6124
    %6554 = vmatpush1.bf16.msra.mxu0 %v6123
    %6555 = vmatprep.subr.bf16.mxu0 %v6130
    %6556 = vmatpush1.bf16.msra.mxu0 %v6129
    %6557 = vmatprep.subr.bf16.mxu0 %v6136
    %6558 = vmatpush1.bf16.msra.mxu0 %v6135
    %6559 = vmatprep.subr.bf16.mxu0 %v6142
    %6560 = vmatpush1.bf16.msra.mxu0 %v6141
    %6561 = vmatprep.subr.bf16.mxu0 %v6148
    %6562 = vmatpush1.bf16.msra.mxu0 %v6147
    %6563 = vmatprep.subr.bf16.mxu0 %v6154
    %6564 = vmatpush1.bf16.msra.mxu0 %v6153
    %6565 = vmatprep.mubr.bf16.mxu0 %v4686
    %6566 = vmatmul.mubr.bf16.gmra.mrb[0].mxu0 %v4685
    %v6567 = vpop.f32.mrb[0].mxu0
    %v6568 = vadd.f32 %v6525, %v6567
    %v6569 = vpop.f32.mrb[0].mxu0
    %v6570 = vadd.f32 %v6527, %v6569
    %v6571 = vpop.f32.mrb[0].mxu0
    %v6572 = vadd.f32 %v6529, %v6571
    %v6573 = vpop.f32.mrb[0].mxu0
    %v6574 = vadd.f32 %v6531, %v6573
    %6575 = vdwg.mxu0
    %6576 = vmatprep.subr.bf16.mxu0 %v5874
    %6577 = vmatpush1.bf16.msra.mxu0 %v5873
    %6578 = vmatprep.subr.bf16.mxu0 %v5880
    %6579 = vmatpush1.bf16.msra.mxu0 %v5879
    %6580 = vmatprep.subr.bf16.mxu0 %v5886
    %6581 = vmatpush1.bf16.msra.mxu0 %v5885
    %6582 = vmatprep.subr.bf16.mxu0 %v5892
    %6583 = vmatpush1.bf16.msra.mxu0 %v5891
    %6584 = vmatprep.subr.bf16.mxu0 %v5898
    %6585 = vmatpush1.bf16.msra.mxu0 %v5897
    %6586 = vmatprep.subr.bf16.mxu0 %v5904
    %6587 = vmatpush1.bf16.msra.mxu0 %v5903
    %6588 = vmatprep.subr.bf16.mxu0 %v5910
    %6589 = vmatpush1.bf16.msra.mxu0 %v5909
    %6590 = vmatprep.subr.bf16.mxu0 %v5916
    %6591 = vmatpush1.bf16.msra.mxu0 %v5915
    %6592 = vmatprep.subr.bf16.mxu0 %v5922
    %6593 = vmatpush1.bf16.msra.mxu0 %v5921
    %6594 = vmatprep.subr.bf16.mxu0 %v5928
    %6595 = vmatpush1.bf16.msra.mxu0 %v5927
    %6596 = vmatprep.subr.bf16.mxu0 %v5934
    %6597 = vmatpush1.bf16.msra.mxu0 %v5933
    %6598 = vmatprep.subr.bf16.mxu0 %v5940
    %6599 = vmatpush1.bf16.msra.mxu0 %v5939
    %6600 = vmatprep.subr.bf16.mxu0 %v5946
    %6601 = vmatpush1.bf16.msra.mxu0 %v5945
    %6602 = vmatprep.subr.bf16.mxu0 %v5952
    %6603 = vmatpush1.bf16.msra.mxu0 %v5951
    %6604 = vmatprep.subr.bf16.mxu0 %v5958
    %6605 = vmatpush1.bf16.msra.mxu0 %v5957
    %6606 = vmatprep.subr.bf16.mxu0 %v5964
    %6607 = vmatpush1.bf16.msra.mxu0 %v5963
    %6608 = vmatprep.mubr.bf16.mxu0 %v4682
    %6609 = vmatmul.mubr.bf16.gmra.mrb[0].mxu0 %v4681
    %v6610 = vpop.f32.mrb[0].mxu0
    %v6611 = vadd.f32 %v4988, %v6610
    %v6612 = vpop.f32.mrb[0].mxu0
    %v6613 = vadd.f32 %v4992, %v6612
    %v6614 = vpop.f32.mrb[0].mxu0
    %v6615 = vadd.f32 %v4988, %v6614
    %v6616 = vpop.f32.mrb[0].mxu0
    %v6617 = vadd.f32 %v4992, %v6616
    %6618 = vdwg.mxu0
    %6619 = vmatprep.subr.bf16.mxu0 %v5970
    %6620 = vmatpush1.bf16.msra.mxu0 %v5969
    %6621 = vmatprep.subr.bf16.mxu0 %v5976
    %6622 = vmatpush1.bf16.msra.mxu0 %v5975
    %6623 = vmatprep.subr.bf16.mxu0 %v5982
    %6624 = vmatpush1.bf16.msra.mxu0 %v5981
    %6625 = vmatprep.subr.bf16.mxu0 %v5988
    %6626 = vmatpush1.bf16.msra.mxu0 %v5987
    %6627 = vmatprep.subr.bf16.mxu0 %v5994
    %6628 = vmatpush1.bf16.msra.mxu0 %v5993
    %6629 = vmatprep.subr.bf16.mxu0 %v6000
    %6630 = vmatpush1.bf16.msra.mxu0 %v5999
    %6631 = vmatprep.subr.bf16.mxu0 %v6006
    %6632 = vmatpush1.bf16.msra.mxu0 %v6005
    %6633 = vmatprep.subr.bf16.mxu0 %v6012
    %6634 = vmatpush1.bf16.msra.mxu0 %v6011
    %6635 = vmatprep.subr.bf16.mxu0 %v6018
    %6636 = vmatpush1.bf16.msra.mxu0 %v6017
    %6637 = vmatprep.subr.bf16.mxu0 %v6024
    %6638 = vmatpush1.bf16.msra.mxu0 %v6023
    %6639 = vmatprep.subr.bf16.mxu0 %v6030
    %6640 = vmatpush1.bf16.msra.mxu0 %v6029
    %6641 = vmatprep.subr.bf16.mxu0 %v6036
    %6642 = vmatpush1.bf16.msra.mxu0 %v6035
    %6643 = vmatprep.subr.bf16.mxu0 %v6042
    %6644 = vmatpush1.bf16.msra.mxu0 %v6041
    %6645 = vmatprep.subr.bf16.mxu0 %v6048
    %6646 = vmatpush1.bf16.msra.mxu0 %v6047
    %6647 = vmatprep.subr.bf16.mxu0 %v6054
    %6648 = vmatpush1.bf16.msra.mxu0 %v6053
    %6649 = vmatprep.subr.bf16.mxu0 %v6060
    %6650 = vmatpush1.bf16.msra.mxu0 %v6059
    %6651 = vmatprep.mubr.bf16.mxu0 %v4684
    %6652 = vmatmul.mubr.bf16.gmra.mrb[0].mxu0 %v4683
    %v6653 = vpop.f32.mrb[0].mxu0
    %v6654 = vadd.f32 %v6611, %v6653
    %v6655 = vpop.f32.mrb[0].mxu0
    %v6656 = vadd.f32 %v6613, %v6655
    %v6657 = vpop.f32.mrb[0].mxu0
    %v6658 = vadd.f32 %v6615, %v6657
    %v6659 = vpop.f32.mrb[0].mxu0
    %v6660 = vadd.f32 %v6617, %v6659
    %6661 = vdwg.mxu0
    %6662 = vmatprep.subr.bf16.mxu0 %v6066
    %6663 = vmatpush1.bf16.msra.mxu0 %v6065
    %6664 = vmatprep.subr.bf16.mxu0 %v6072
    %6665 = vmatpush1.bf16.msra.mxu0 %v6071
    %6666 = vmatprep.subr.bf16.mxu0 %v6078
    %6667 = vmatpush1.bf16.msra.mxu0 %v6077
    %6668 = vmatprep.subr.bf16.mxu0 %v6084
    %6669 = vmatpush1.bf16.msra.mxu0 %v6083
    %6670 = vmatprep.subr.bf16.mxu0 %v6090
    %6671 = vmatpush1.bf16.msra.mxu0 %v6089
    %6672 = vmatprep.subr.bf16.mxu0 %v6096
    %6673 = vmatpush1.bf16.msra.mxu0 %v6095
    %6674 = vmatprep.subr.bf16.mxu0 %v6102
    %6675 = vmatpush1.bf16.msra.mxu0 %v6101
    %6676 = vmatprep.subr.bf16.mxu0 %v6108
    %6677 = vmatpush1.bf16.msra.mxu0 %v6107
    %6678 = vmatprep.subr.bf16.mxu0 %v6114
    %6679 = vmatpush1.bf16.msra.mxu0 %v6113
    %6680 = vmatprep.subr.bf16.mxu0 %v6120
    %6681 = vmatpush1.bf16.msra.mxu0 %v6119
    %6682 = vmatprep.subr.bf16.mxu0 %v6126
    %6683 = vmatpush1.bf16.msra.mxu0 %v6125
    %6684 = vmatprep.subr.bf16.mxu0 %v6132
    %6685 = vmatpush1.bf16.msra.mxu0 %v6131
    %6686 = vmatprep.subr.bf16.mxu0 %v6138
    %6687 = vmatpush1.bf16.msra.mxu0 %v6137
    %6688 = vmatprep.subr.bf16.mxu0 %v6144
    %6689 = vmatpush1.bf16.msra.mxu0 %v6143
    %6690 = vmatprep.subr.bf16.mxu0 %v6150
    %6691 = vmatpush1.bf16.msra.mxu0 %v6149
    %6692 = vmatprep.subr.bf16.mxu0 %v6156
    %6693 = vmatpush1.bf16.msra.mxu0 %v6155
    %6694 = vmatprep.mubr.bf16.mxu0 %v4686
    %6695 = vmatmul.mubr.bf16.gmra.mrb[0].mxu0 %v4685
    %v6696 = vpop.f32.mrb[0].mxu0
    %v6697 = vadd.f32 %v6654, %v6696
    %v6698 = vpop.f32.mrb[0].mxu0
    %v6699 = vadd.f32 %v6656, %v6698
    %v6700 = vpop.f32.mrb[0].mxu0
    %v6701 = vadd.f32 %v6658, %v6700
    %v6702 = vpop.f32.mrb[0].mxu0
    %v6703 = vadd.f32 %v6660, %v6702
    %6704 = vdwg.mxu0
    %6705 = vmatprep.subr.bf16.mxu0 %v5876
    %6706 = vmatpush1.bf16.msra.mxu0 %v5875
    %6707 = vmatprep.subr.bf16.mxu0 %v5882
    %6708 = vmatpush1.bf16.msra.mxu0 %v5881
    %6709 = vmatprep.subr.bf16.mxu0 %v5888
    %6710 = vmatpush1.bf16.msra.mxu0 %v5887
    %6711 = vmatprep.subr.bf16.mxu0 %v5894
    %6712 = vmatpush1.bf16.msra.mxu0 %v5893
    %6713 = vmatprep.subr.bf16.mxu0 %v5900
    %6714 = vmatpush1.bf16.msra.mxu0 %v5899
    %6715 = vmatprep.subr.bf16.mxu0 %v5906
    %6716 = vmatpush1.bf16.msra.mxu0 %v5905
    %6717 = vmatprep.subr.bf16.mxu0 %v5912
    %6718 = vmatpush1.bf16.msra.mxu0 %v5911
    %6719 = vmatprep.subr.bf16.mxu0 %v5918
    %6720 = vmatpush1.bf16.msra.mxu0 %v5917
    %6721 = vmatprep.subr.bf16.mxu0 %v5924
    %6722 = vmatpush1.bf16.msra.mxu0 %v5923
    %6723 = vmatprep.subr.bf16.mxu0 %v5930
    %6724 = vmatpush1.bf16.msra.mxu0 %v5929
    %6725 = vmatprep.subr.bf16.mxu0 %v5936
    %6726 = vmatpush1.bf16.msra.mxu0 %v5935
    %6727 = vmatprep.subr.bf16.mxu0 %v5942
    %6728 = vmatpush1.bf16.msra.mxu0 %v5941
    %6729 = vmatprep.subr.bf16.mxu0 %v5948
    %6730 = vmatpush1.bf16.msra.mxu0 %v5947
    %6731 = vmatprep.subr.bf16.mxu0 %v5954
    %6732 = vmatpush1.bf16.msra.mxu0 %v5953
    %6733 = vmatprep.subr.bf16.mxu0 %v5960
    %6734 = vmatpush1.bf16.msra.mxu0 %v5959
    %6735 = vmatprep.subr.bf16.mxu0 %v5966
    %6736 = vmatpush1.bf16.msra.mxu0 %v5965
    %6737 = vmatprep.mubr.bf16.mxu0 %v4682
    %6738 = vmatmul.mubr.bf16.gmra.mrb[0].mxu0 %v4681
    %v6739 = vpop.f32.mrb[0].mxu0
    %v6740 = vadd.f32 %v4996, %v6739
    %v6741 = vpop.f32.mrb[0].mxu0
    %v6742 = vadd.f32 %v5000, %v6741
    %v6743 = vpop.f32.mrb[0].mxu0
    %v6744 = vadd.f32 %v4996, %v6743
    %v6745 = vpop.f32.mrb[0].mxu0
    %v6746 = vadd.f32 %v5000, %v6745
    %6747 = vdwg.mxu0
    %6748 = vmatprep.subr.bf16.mxu0 %v5972
    %6749 = vmatpush1.bf16.msra.mxu0 %v5971
    %6750 = vmatprep.subr.bf16.mxu0 %v5978
    %6751 = vmatpush1.bf16.msra.mxu0 %v5977
    %6752 = vmatprep.subr.bf16.mxu0 %v5984
    %6753 = vmatpush1.bf16.msra.mxu0 %v5983
    %6754 = vmatprep.subr.bf16.mxu0 %v5990
    %6755 = vmatpush1.bf16.msra.mxu0 %v5989
    %6756 = vmatprep.subr.bf16.mxu0 %v5996
    %6757 = vmatpush1.bf16.msra.mxu0 %v5995
    %6758 = vmatprep.subr.bf16.mxu0 %v6002
    %6759 = vmatpush1.bf16.msra.mxu0 %v6001
    %6760 = vmatprep.subr.bf16.mxu0 %v6008
    %6761 = vmatpush1.bf16.msra.mxu0 %v6007
    %6762 = vmatprep.subr.bf16.mxu0 %v6014
    %6763 = vmatpush1.bf16.msra.mxu0 %v6013
    %6764 = vmatprep.subr.bf16.mxu0 %v6020
    %6765 = vmatpush1.bf16.msra.mxu0 %v6019
    %6766 = vmatprep.subr.bf16.mxu0 %v6026
    %6767 = vmatpush1.bf16.msra.mxu0 %v6025
    %6768 = vmatprep.subr.bf16.mxu0 %v6032
    %6769 = vmatpush1.bf16.msra.mxu0 %v6031
    %6770 = vmatprep.subr.bf16.mxu0 %v6038
    %6771 = vmatpush1.bf16.msra.mxu0 %v6037
    %6772 = vmatprep.subr.bf16.mxu0 %v6044
    %6773 = vmatpush1.bf16.msra.mxu0 %v6043
    %6774 = vmatprep.subr.bf16.mxu0 %v6050
    %6775 = vmatpush1.bf16.msra.mxu0 %v6049
    %6776 = vmatprep.subr.bf16.mxu0 %v6056
    %6777 = vmatpush1.bf16.msra.mxu0 %v6055
    %6778 = vmatprep.subr.bf16.mxu0 %v6062
    %6779 = vmatpush1.bf16.msra.mxu0 %v6061
    %6780 = vmatprep.mubr.bf16.mxu0 %v4684
    %6781 = vmatmul.mubr.bf16.gmra.mrb[0].mxu0 %v4683
    %v6782 = vpop.f32.mrb[0].mxu0
    %v6783 = vadd.f32 %v6740, %v6782
    %v6784 = vpop.f32.mrb[0].mxu0
    %v6785 = vadd.f32 %v6742, %v6784
    %v6786 = vpop.f32.mrb[0].mxu0
    %v6787 = vadd.f32 %v6744, %v6786
    %v6788 = vpop.f32.mrb[0].mxu0
    %v6789 = vadd.f32 %v6746, %v6788
    %6790 = vdwg.mxu0
    %6791 = vmatprep.subr.bf16.mxu0 %v6068
    %6792 = vmatpush1.bf16.msra.mxu0 %v6067
    %6793 = vmatprep.subr.bf16.mxu0 %v6074
    %6794 = vmatpush1.bf16.msra.mxu0 %v6073
    %6795 = vmatprep.subr.bf16.mxu0 %v6080
    %6796 = vmatpush1.bf16.msra.mxu0 %v6079
    %6797 = vmatprep.subr.bf16.mxu0 %v6086
    %6798 = vmatpush1.bf16.msra.mxu0 %v6085
    %6799 = vmatprep.subr.bf16.mxu0 %v6092
    %6800 = vmatpush1.bf16.msra.mxu0 %v6091
    %6801 = vmatprep.subr.bf16.mxu0 %v6098
    %6802 = vmatpush1.bf16.msra.mxu0 %v6097
    %6803 = vmatprep.subr.bf16.mxu0 %v6104
    %6804 = vmatpush1.bf16.msra.mxu0 %v6103
    %6805 = vmatprep.subr.bf16.mxu0 %v6110
    %6806 = vmatpush1.bf16.msra.mxu0 %v6109
    %6807 = vmatprep.subr.bf16.mxu0 %v6116
    %6808 = vmatpush1.bf16.msra.mxu0 %v6115
    %6809 = vmatprep.subr.bf16.mxu0 %v6122
    %6810 = vmatpush1.bf16.msra.mxu0 %v6121
    %6811 = vmatprep.subr.bf16.mxu0 %v6128
    %6812 = vmatpush1.bf16.msra.mxu0 %v6127
    %6813 = vmatprep.subr.bf16.mxu0 %v6134
    %6814 = vmatpush1.bf16.msra.mxu0 %v6133
    %6815 = vmatprep.subr.bf16.mxu0 %v6140
    %6816 = vmatpush1.bf16.msra.mxu0 %v6139
    %6817 = vmatprep.subr.bf16.mxu0 %v6146
    %6818 = vmatpush1.bf16.msra.mxu0 %v6145
    %6819 = vmatprep.subr.bf16.mxu0 %v6152
    %6820 = vmatpush1.bf16.msra.mxu0 %v6151
    %6821 = vmatprep.subr.bf16.mxu0 %v6158
    %6822 = vmatpush1.bf16.msra.mxu0 %v6157
    %6823 = vmatprep.mubr.bf16.mxu0 %v4686
    %6824 = vmatmul.mubr.bf16.gmra.mrb[0].mxu0 %v4685
    %v6825 = vpop.f32.mrb[0].mxu0
    %v6826 = vadd.f32 %v6783, %v6825
    %v6827 = vpop.f32.mrb[0].mxu0
    %v6828 = vadd.f32 %v6785, %v6827
    %v6829 = vpop.f32.mrb[0].mxu0
    %v6830 = vadd.f32 %v6787, %v6829
    %v6831 = vpop.f32.mrb[0].mxu0
    %v6832 = vadd.f32 %v6789, %v6831
    %6833 = vdwg.mxu0
    %v6834 = vmul.f32 %v6568, 0.5
    %v6835 = vmul.f32 %v6570, 0.5
    %v6836 = vmul.f32 %v6697, 0.5
    %v6837 = vmul.f32 %v6699, 0.5
    %v6838 = vmul.f32 %v6826, 0.5
    %v6839 = vmul.f32 %v6828, 0.5
    %v6840 = vmul.f32 %v6572, 0.5
    %v6841 = vmul.f32 %v6574, 0.5
    %v6842 = vmul.f32 %v6701, 0.5
    %v6843 = vmul.f32 %v6703, 0.5
    %v6844 = vmul.f32 %v6830, 0.5
    %v6845 = vmul.f32 %v6832, 0.5
    %v6846 = vmul.f32 %v6568, %v6568
    %v6847 = vmul.f32 %v6570, %v6570
    %v6848 = vmul.f32 %v6697, %v6697
    %v6849 = vmul.f32 %v6699, %v6699
    %v6850 = vmul.f32 %v6826, %v6826
    %v6851 = vmul.f32 %v6828, %v6828
    %v6852 = vmul.f32 %v6572, %v6572
    %v6853 = vmul.f32 %v6574, %v6574
    %v6854 = vmul.f32 %v6701, %v6701
    %v6855 = vmul.f32 %v6703, %v6703
    %v6856 = vmul.f32 %v6830, %v6830
    %v6857 = vmul.f32 %v6832, %v6832
    %v6858 = vmul.f32 %v6846, %v6568
    %v6859 = vmul.f32 %v6847, %v6570
    %v6860 = vmul.f32 %v6848, %v6697
    %v6861 = vmul.f32 %v6849, %v6699
    %v6862 = vmul.f32 %v6850, %v6826
    %v6863 = vmul.f32 %v6851, %v6828
    %v6864 = vmul.f32 %v6852, %v6572
    %v6865 = vmul.f32 %v6853, %v6574
    %v6866 = vmul.f32 %v6854, %v6701
    %v6867 = vmul.f32 %v6855, %v6703
    %v6868 = vmul.f32 %v6856, %v6830
    %v6869 = vmul.f32 %v6857, %v6832
    %v6870 = vmul.f32 %v6858, 0.044715
    %v6871 = vmul.f32 %v6859, 0.044715
    %v6872 = vmul.f32 %v6860, 0.044715
    %v6873 = vmul.f32 %v6861, 0.044715
    %v6874 = vmul.f32 %v6862, 0.044715
    %v6875 = vmul.f32 %v6863, 0.044715
    %v6876 = vmul.f32 %v6864, 0.044715
    %v6877 = vmul.f32 %v6865, 0.044715
    %v6878 = vmul.f32 %v6866, 0.044715
    %v6879 = vmul.f32 %v6867, 0.044715
    %v6880 = vmul.f32 %v6868, 0.044715
    %v6881 = vmul.f32 %v6869, 0.044715
    %v6882 = vadd.f32 %v6568, %v6870
    %v6883 = vadd.f32 %v6570, %v6871
    %v6884 = vadd.f32 %v6697, %v6872
    %v6885 = vadd.f32 %v6699, %v6873
    %v6886 = vadd.f32 %v6826, %v6874
    %v6887 = vadd.f32 %v6828, %v6875
    %v6888 = vadd.f32 %v6572, %v6876
    %v6889 = vadd.f32 %v6574, %v6877
    %v6890 = vadd.f32 %v6701, %v6878
    %v6891 = vadd.f32 %v6703, %v6879
    %v6892 = vadd.f32 %v6830, %v6880
    %v6893 = vadd.f32 %v6832, %v6881
    %v6894 = vmul.f32 %v6882, 0.7978846
    %v6895 = vmul.f32 %v6883, 0.7978846
    %v6896 = vmul.f32 %v6884, 0.7978846
    %v6897 = vmul.f32 %v6885, 0.7978846
    %v6898 = vmul.f32 %v6886, 0.7978846
    %v6899 = vmul.f32 %v6887, 0.7978846
    %v6900 = vmul.f32 %v6888, 0.7978846
    %v6901 = vmul.f32 %v6889, 0.7978846
    %v6902 = vmul.f32 %v6890, 0.7978846
    %v6903 = vmul.f32 %v6891, 0.7978846
    %v6904 = vmul.f32 %v6892, 0.7978846
    %v6905 = vmul.f32 %v6893, 0.7978846
    %v6906 = vtanh.pop %v6894
    %v6907 = vtanh.pop %v6895
    %v6908 = vtanh.pop %v6896
    %v6909 = vtanh.pop %v6897
    %v6910 = vtanh.pop %v6898
    %v6911 = vtanh.pop %v6899
    %v6912 = vtanh.pop %v6900
    %v6913 = vtanh.pop %v6901
    %v6914 = vtanh.pop %v6902
    %v6915 = vtanh.pop %v6903
    %v6916 = vtanh.pop %v6904
    %v6917 = vtanh.pop %v6905
    %v6918 = vadd.f32 %v6906, 1.0
    %v6919 = vadd.f32 %v6907, 1.0
    %v6920 = vadd.f32 %v6908, 1.0
    %v6921 = vadd.f32 %v6909, 1.0
    %v6922 = vadd.f32 %v6910, 1.0
    %v6923 = vadd.f32 %v6911, 1.0
    %v6924 = vadd.f32 %v6912, 1.0
    %v6925 = vadd.f32 %v6913, 1.0
    %v6926 = vadd.f32 %v6914, 1.0
    %v6927 = vadd.f32 %v6915, 1.0
    %v6928 = vadd.f32 %v6916, 1.0
    %v6929 = vadd.f32 %v6917, 1.0
    %v6930 = vmul.f32 %v6834, %v6918
    %v6931 = vmul.f32 %v6835, %v6919
    %v6932 = vmul.f32 %v6836, %v6920
    %v6933 = vmul.f32 %v6837, %v6921
    %v6934 = vmul.f32 %v6838, %v6922
    %v6935 = vmul.f32 %v6839, %v6923
    %v6936 = vmul.f32 %v6840, %v6924
    %v6937 = vmul.f32 %v6841, %v6925
    %v6938 = vmul.f32 %v6842, %v6926
    %v6939 = vmul.f32 %v6843, %v6927
    %v6940 = vmul.f32 %v6844, %v6928
    %v6941 = vmul.f32 %v6845, %v6929
    %v6942 = vpack.c.bf16 %v6936, %v6930
    %v6943 = vpack.c.bf16 %v6937, %v6931
    %v6944 = vpack.c.bf16 %v6938, %v6932
    %v6945 = vpack.c.bf16 %v6939, %v6933
    %v6946 = vpack.c.bf16 %v6940, %v6934
    %v6947 = vpack.c.bf16 %v6941, %v6935
    %v6948 = vld [vmem:[#allocation14] sm:$0xff]
    %v6949 = vld [vmem:[#allocation14 + $0x8] sm:$0xff]
    %v6950 = vld [vmem:[#allocation14 + $0x10] sm:$0xff]
    %v6951 = vld [vmem:[#allocation14 + $0x18] sm:$0xff]
    %v6952 = vld [vmem:[#allocation14 + $0x20] sm:$0xff]
    %v6953 = vld [vmem:[#allocation14 + $0x28] sm:$0xff]
    %v6954 = vld [vmem:[#allocation14 + $0x30] sm:$0xff]
    %v6955 = vld [vmem:[#allocation14 + $0x38] sm:$0xff]
    %v6956 = vld [vmem:[#allocation14 + $0x40] sm:$0xff]
    %v6957 = vld [vmem:[#allocation14 + $0x48] sm:$0xff]
    %v6958 = vld [vmem:[#allocation14 + $0x50] sm:$0xff]
    %v6959 = vld [vmem:[#allocation14 + $0x58] sm:$0xff]
    %v6960 = vld [vmem:[#allocation14 + $0x60] sm:$0xff]
    %v6961 = vld [vmem:[#allocation14 + $0x68] sm:$0xff]
    %v6962 = vld [vmem:[#allocation14 + $0x70] sm:$0xff]
    %v6963 = vld [vmem:[#allocation14 + $0x78] sm:$0xff]
    %v6964 = vld [vmem:[#allocation14 + $0x80] sm:$0xff]
    %v6965 = vld [vmem:[#allocation14 + $0x88] sm:$0xff]
    %v6966 = vld [vmem:[#allocation14 + $0x90] sm:$0xff]
    %v6967 = vld [vmem:[#allocation14 + $0x98] sm:$0xff]
    %v6968 = vld [vmem:[#allocation14 + $0xa0] sm:$0xff]
    %v6969 = vld [vmem:[#allocation14 + $0xa8] sm:$0xff]
    %v6970 = vld [vmem:[#allocation14 + $0xb0] sm:$0xff]
    %v6971 = vld [vmem:[#allocation14 + $0xb8] sm:$0xff]
    %v6972 = vld [vmem:[#allocation14 + $0xc0] sm:$0xff]
    %v6973 = vld [vmem:[#allocation14 + $0xc8] sm:$0xff]
    %v6974 = vld [vmem:[#allocation14 + $0xd0] sm:$0xff]
    %v6975 = vld [vmem:[#allocation14 + $0xd8] sm:$0xff]
    %v6976 = vld [vmem:[#allocation14 + $0xe0] sm:$0xff]
    %v6977 = vld [vmem:[#allocation14 + $0xe8] sm:$0xff]
    %v6978 = vld [vmem:[#allocation14 + $0xf0] sm:$0xff]
    %v6979 = vld [vmem:[#allocation14 + $0xf8] sm:$0xff]
    %v6980 = vld [vmem:[#allocation14 + $0x100] sm:$0xff]
    %v6981 = vld [vmem:[#allocation14 + $0x108] sm:$0xff]
    %v6982 = vld [vmem:[#allocation14 + $0x110] sm:$0xff]
    %v6983 = vld [vmem:[#allocation14 + $0x118] sm:$0xff]
    %v6984 = vld [vmem:[#allocation14 + $0x120] sm:$0xff]
    %v6985 = vld [vmem:[#allocation14 + $0x128] sm:$0xff]
    %v6986 = vld [vmem:[#allocation14 + $0x130] sm:$0xff]
    %v6987 = vld [vmem:[#allocation14 + $0x138] sm:$0xff]
    %v6988 = vld [vmem:[#allocation14 + $0x140] sm:$0xff]
    %v6989 = vld [vmem:[#allocation14 + $0x148] sm:$0xff]
    %v6990 = vld [vmem:[#allocation14 + $0x150] sm:$0xff]
    %v6991 = vld [vmem:[#allocation14 + $0x158] sm:$0xff]
    %v6992 = vld [vmem:[#allocation14 + $0x160] sm:$0xff]
    %v6993 = vld [vmem:[#allocation14 + $0x168] sm:$0xff]
    %v6994 = vld [vmem:[#allocation14 + $0x170] sm:$0xff]
    %v6995 = vld [vmem:[#allocation14 + $0x178] sm:$0xff]
    %v6996 = vld [vmem:[#allocation14 + $0x180] sm:$0xff]
    %v6997 = vld [vmem:[#allocation14 + $0x188] sm:$0xff]
    %v6998 = vld [vmem:[#allocation14 + $0x190] sm:$0xff]
    %v6999 = vld [vmem:[#allocation14 + $0x198] sm:$0xff]
    %v7000 = vld [vmem:[#allocation14 + $0x1a0] sm:$0xff]
    %v7001 = vld [vmem:[#allocation14 + $0x1a8] sm:$0xff]
    %v7002 = vld [vmem:[#allocation14 + $0x1b0] sm:$0xff]
    %v7003 = vld [vmem:[#allocation14 + $0x1b8] sm:$0xff]
    %v7004 = vld [vmem:[#allocation14 + $0x1c0] sm:$0xff]
    %v7005 = vld [vmem:[#allocation14 + $0x1c8] sm:$0xff]
    %v7006 = vld [vmem:[#allocation14 + $0x1d0] sm:$0xff]
    %v7007 = vld [vmem:[#allocation14 + $0x1d8] sm:$0xff]
    %v7008 = vld [vmem:[#allocation14 + $0x1e0] sm:$0xff]
    %v7009 = vld [vmem:[#allocation14 + $0x1e8] sm:$0xff]
    %v7010 = vld [vmem:[#allocation14 + $0x1f0] sm:$0xff]
    %v7011 = vld [vmem:[#allocation14 + $0x1f8] sm:$0xff]
    %v7012 = vld [vmem:[#allocation14 + $0x200] sm:$0xff]
    %v7013 = vld [vmem:[#allocation14 + $0x208] sm:$0xff]
    %v7014 = vld [vmem:[#allocation14 + $0x210] sm:$0xff]
    %v7015 = vld [vmem:[#allocation14 + $0x218] sm:$0xff]
    %v7016 = vld [vmem:[#allocation14 + $0x220] sm:$0xff]
    %v7017 = vld [vmem:[#allocation14 + $0x228] sm:$0xff]
    %v7018 = vld [vmem:[#allocation14 + $0x230] sm:$0xff]
    %v7019 = vld [vmem:[#allocation14 + $0x238] sm:$0xff]
    %v7020 = vld [vmem:[#allocation14 + $0x240] sm:$0xff]
    %v7021 = vld [vmem:[#allocation14 + $0x248] sm:$0xff]
    %v7022 = vld [vmem:[#allocation14 + $0x250] sm:$0xff]
    %v7023 = vld [vmem:[#allocation14 + $0x258] sm:$0xff]
    %v7024 = vld [vmem:[#allocation14 + $0x260] sm:$0xff]
    %v7025 = vld [vmem:[#allocation14 + $0x268] sm:$0xff]
    %v7026 = vld [vmem:[#allocation14 + $0x270] sm:$0xff]
    %v7027 = vld [vmem:[#allocation14 + $0x278] sm:$0xff]
    %v7028 = vld [vmem:[#allocation14 + $0x280] sm:$0xff]
    %v7029 = vld [vmem:[#allocation14 + $0x288] sm:$0xff]
    %v7030 = vld [vmem:[#allocation14 + $0x290] sm:$0xff]
    %v7031 = vld [vmem:[#allocation14 + $0x298] sm:$0xff]
    %v7032 = vld [vmem:[#allocation14 + $0x2a0] sm:$0xff]
    %v7033 = vld [vmem:[#allocation14 + $0x2a8] sm:$0xff]
    %v7034 = vld [vmem:[#allocation14 + $0x2b0] sm:$0xff]
    %v7035 = vld [vmem:[#allocation14 + $0x2b8] sm:$0xff]
    %v7036 = vld [vmem:[#allocation14 + $0x2c0] sm:$0xff]
    %v7037 = vld [vmem:[#allocation14 + $0x2c8] sm:$0xff]
    %v7038 = vld [vmem:[#allocation14 + $0x2d0] sm:$0xff]
    %v7039 = vld [vmem:[#allocation14 + $0x2d8] sm:$0xff]
    %v7040 = vld [vmem:[#allocation14 + $0x2e0] sm:$0xff]
    %v7041 = vld [vmem:[#allocation14 + $0x2e8] sm:$0xff]
    %v7042 = vld [vmem:[#allocation14 + $0x2f0] sm:$0xff]
    %v7043 = vld [vmem:[#allocation14 + $0x2f8] sm:$0xff]
    %v7044 = vld [vmem:[#allocation14 + $0x300] sm:$0xff]
    %v7045 = vld [vmem:[#allocation14 + $0x308] sm:$0xff]
    %v7046 = vld [vmem:[#allocation14 + $0x310] sm:$0xff]
    %v7047 = vld [vmem:[#allocation14 + $0x318] sm:$0xff]
    %v7048 = vld [vmem:[#allocation14 + $0x320] sm:$0xff]
    %v7049 = vld [vmem:[#allocation14 + $0x328] sm:$0xff]
    %v7050 = vld [vmem:[#allocation14 + $0x330] sm:$0xff]
    %v7051 = vld [vmem:[#allocation14 + $0x338] sm:$0xff]
    %v7052 = vld [vmem:[#allocation14 + $0x340] sm:$0xff]
    %v7053 = vld [vmem:[#allocation14 + $0x348] sm:$0xff]
    %v7054 = vld [vmem:[#allocation14 + $0x350] sm:$0xff]
    %v7055 = vld [vmem:[#allocation14 + $0x358] sm:$0xff]
    %v7056 = vld [vmem:[#allocation14 + $0x360] sm:$0xff]
    %v7057 = vld [vmem:[#allocation14 + $0x368] sm:$0xff]
    %v7058 = vld [vmem:[#allocation14 + $0x370] sm:$0xff]
    %v7059 = vld [vmem:[#allocation14 + $0x378] sm:$0xff]
    %v7060 = vld [vmem:[#allocation14 + $0x380] sm:$0xff]
    %v7061 = vld [vmem:[#allocation14 + $0x388] sm:$0xff]
    %v7062 = vld [vmem:[#allocation14 + $0x390] sm:$0xff]
    %v7063 = vld [vmem:[#allocation14 + $0x398] sm:$0xff]
    %v7064 = vld [vmem:[#allocation14 + $0x3a0] sm:$0xff]
    %v7065 = vld [vmem:[#allocation14 + $0x3a8] sm:$0xff]
    %v7066 = vld [vmem:[#allocation14 + $0x3b0] sm:$0xff]
    %v7067 = vld [vmem:[#allocation14 + $0x3b8] sm:$0xff]
    %v7068 = vld [vmem:[#allocation14 + $0x3c0] sm:$0xff]
    %v7069 = vld [vmem:[#allocation14 + $0x3c8] sm:$0xff]
    %v7070 = vld [vmem:[#allocation14 + $0x3d0] sm:$0xff]
    %v7071 = vld [vmem:[#allocation14 + $0x3d8] sm:$0xff]
    %v7072 = vld [vmem:[#allocation14 + $0x3e0] sm:$0xff]
    %v7073 = vld [vmem:[#allocation14 + $0x3e8] sm:$0xff]
    %v7074 = vld [vmem:[#allocation14 + $0x3f0] sm:$0xff]
    %v7075 = vld [vmem:[#allocation14 + $0x3f8] sm:$0xff]
    %v7076 = vld [vmem:[#allocation14 + $0x400] sm:$0xff]
    %v7077 = vld [vmem:[#allocation14 + $0x408] sm:$0xff]
    %v7078 = vld [vmem:[#allocation14 + $0x410] sm:$0xff]
    %v7079 = vld [vmem:[#allocation14 + $0x418] sm:$0xff]
    %v7080 = vld [vmem:[#allocation14 + $0x420] sm:$0xff]
    %v7081 = vld [vmem:[#allocation14 + $0x428] sm:$0xff]
    %v7082 = vld [vmem:[#allocation14 + $0x430] sm:$0xff]
    %v7083 = vld [vmem:[#allocation14 + $0x438] sm:$0xff]
    %v7084 = vld [vmem:[#allocation14 + $0x440] sm:$0xff]
    %v7085 = vld [vmem:[#allocation14 + $0x448] sm:$0xff]
    %v7086 = vld [vmem:[#allocation14 + $0x450] sm:$0xff]
    %v7087 = vld [vmem:[#allocation14 + $0x458] sm:$0xff]
    %v7088 = vld [vmem:[#allocation14 + $0x460] sm:$0xff]
    %v7089 = vld [vmem:[#allocation14 + $0x468] sm:$0xff]
    %v7090 = vld [vmem:[#allocation14 + $0x470] sm:$0xff]
    %v7091 = vld [vmem:[#allocation14 + $0x478] sm:$0xff]
    %v7092 = vld [vmem:[#allocation14 + $0x480] sm:$0xff]
    %v7093 = vld [vmem:[#allocation14 + $0x488] sm:$0xff]
    %v7094 = vld [vmem:[#allocation14 + $0x490] sm:$0xff]
    %v7095 = vld [vmem:[#allocation14 + $0x498] sm:$0xff]
    %v7096 = vld [vmem:[#allocation14 + $0x4a0] sm:$0xff]
    %v7097 = vld [vmem:[#allocation14 + $0x4a8] sm:$0xff]
    %v7098 = vld [vmem:[#allocation14 + $0x4b0] sm:$0xff]
    %v7099 = vld [vmem:[#allocation14 + $0x4b8] sm:$0xff]
    %v7100 = vld [vmem:[#allocation14 + $0x4c0] sm:$0xff]
    %v7101 = vld [vmem:[#allocation14 + $0x4c8] sm:$0xff]
    %v7102 = vld [vmem:[#allocation14 + $0x4d0] sm:$0xff]
    %v7103 = vld [vmem:[#allocation14 + $0x4d8] sm:$0xff]
    %v7104 = vld [vmem:[#allocation14 + $0x4e0] sm:$0xff]
    %v7105 = vld [vmem:[#allocation14 + $0x4e8] sm:$0xff]
    %v7106 = vld [vmem:[#allocation14 + $0x4f0] sm:$0xff]
    %v7107 = vld [vmem:[#allocation14 + $0x4f8] sm:$0xff]
    %v7108 = vld [vmem:[#allocation14 + $0x500] sm:$0xff]
    %v7109 = vld [vmem:[#allocation14 + $0x508] sm:$0xff]
    %v7110 = vld [vmem:[#allocation14 + $0x510] sm:$0xff]
    %v7111 = vld [vmem:[#allocation14 + $0x518] sm:$0xff]
    %v7112 = vld [vmem:[#allocation14 + $0x520] sm:$0xff]
    %v7113 = vld [vmem:[#allocation14 + $0x528] sm:$0xff]
    %v7114 = vld [vmem:[#allocation14 + $0x530] sm:$0xff]
    %v7115 = vld [vmem:[#allocation14 + $0x538] sm:$0xff]
    %v7116 = vld [vmem:[#allocation14 + $0x540] sm:$0xff]
    %v7117 = vld [vmem:[#allocation14 + $0x548] sm:$0xff]
    %v7118 = vld [vmem:[#allocation14 + $0x550] sm:$0xff]
    %v7119 = vld [vmem:[#allocation14 + $0x558] sm:$0xff]
    %v7120 = vld [vmem:[#allocation14 + $0x560] sm:$0xff]
    %v7121 = vld [vmem:[#allocation14 + $0x568] sm:$0xff]
    %v7122 = vld [vmem:[#allocation14 + $0x570] sm:$0xff]
    %v7123 = vld [vmem:[#allocation14 + $0x578] sm:$0xff]
    %v7124 = vld [vmem:[#allocation14 + $0x580] sm:$0xff]
    %v7125 = vld [vmem:[#allocation14 + $0x588] sm:$0xff]
    %v7126 = vld [vmem:[#allocation14 + $0x590] sm:$0xff]
    %v7127 = vld [vmem:[#allocation14 + $0x598] sm:$0xff]
    %v7128 = vld [vmem:[#allocation14 + $0x5a0] sm:$0xff]
    %v7129 = vld [vmem:[#allocation14 + $0x5a8] sm:$0xff]
    %v7130 = vld [vmem:[#allocation14 + $0x5b0] sm:$0xff]
    %v7131 = vld [vmem:[#allocation14 + $0x5b8] sm:$0xff]
    %v7132 = vld [vmem:[#allocation14 + $0x5c0] sm:$0xff]
    %v7133 = vld [vmem:[#allocation14 + $0x5c8] sm:$0xff]
    %v7134 = vld [vmem:[#allocation14 + $0x5d0] sm:$0xff]
    %v7135 = vld [vmem:[#allocation14 + $0x5d8] sm:$0xff]
    %v7136 = vld [vmem:[#allocation14 + $0x5e0] sm:$0xff]
    %v7137 = vld [vmem:[#allocation14 + $0x5e8] sm:$0xff]
    %v7138 = vld [vmem:[#allocation14 + $0x5f0] sm:$0xff]
    %v7139 = vld [vmem:[#allocation14 + $0x5f8] sm:$0xff]
    %v7140 = vld [vmem:[#allocation14 + $0x600] sm:$0xff]
    %v7141 = vld [vmem:[#allocation14 + $0x608] sm:$0xff]
    %v7142 = vld [vmem:[#allocation14 + $0x610] sm:$0xff]
    %v7143 = vld [vmem:[#allocation14 + $0x618] sm:$0xff]
    %v7144 = vld [vmem:[#allocation14 + $0x620] sm:$0xff]
    %v7145 = vld [vmem:[#allocation14 + $0x628] sm:$0xff]
    %v7146 = vld [vmem:[#allocation14 + $0x630] sm:$0xff]
    %v7147 = vld [vmem:[#allocation14 + $0x638] sm:$0xff]
    %v7148 = vld [vmem:[#allocation14 + $0x640] sm:$0xff]
    %v7149 = vld [vmem:[#allocation14 + $0x648] sm:$0xff]
    %v7150 = vld [vmem:[#allocation14 + $0x650] sm:$0xff]
    %v7151 = vld [vmem:[#allocation14 + $0x658] sm:$0xff]
    %v7152 = vld [vmem:[#allocation14 + $0x660] sm:$0xff]
    %v7153 = vld [vmem:[#allocation14 + $0x668] sm:$0xff]
    %v7154 = vld [vmem:[#allocation14 + $0x670] sm:$0xff]
    %v7155 = vld [vmem:[#allocation14 + $0x678] sm:$0xff]
    %v7156 = vld [vmem:[#allocation14 + $0x680] sm:$0xff]
    %v7157 = vld [vmem:[#allocation14 + $0x688] sm:$0xff]
    %v7158 = vld [vmem:[#allocation14 + $0x690] sm:$0xff]
    %v7159 = vld [vmem:[#allocation14 + $0x698] sm:$0xff]
    %v7160 = vld [vmem:[#allocation14 + $0x6a0] sm:$0xff]
    %v7161 = vld [vmem:[#allocation14 + $0x6a8] sm:$0xff]
    %v7162 = vld [vmem:[#allocation14 + $0x6b0] sm:$0xff]
    %v7163 = vld [vmem:[#allocation14 + $0x6b8] sm:$0xff]
    %v7164 = vld [vmem:[#allocation14 + $0x6c0] sm:$0xff]
    %v7165 = vld [vmem:[#allocation14 + $0x6c8] sm:$0xff]
    %v7166 = vld [vmem:[#allocation14 + $0x6d0] sm:$0xff]
    %v7167 = vld [vmem:[#allocation14 + $0x6d8] sm:$0xff]
    %v7168 = vld [vmem:[#allocation14 + $0x6e0] sm:$0xff]
    %v7169 = vld [vmem:[#allocation14 + $0x6e8] sm:$0xff]
    %v7170 = vld [vmem:[#allocation14 + $0x6f0] sm:$0xff]
    %v7171 = vld [vmem:[#allocation14 + $0x6f8] sm:$0xff]
    %v7172 = vld [vmem:[#allocation14 + $0x700] sm:$0xff]
    %v7173 = vld [vmem:[#allocation14 + $0x708] sm:$0xff]
    %v7174 = vld [vmem:[#allocation14 + $0x710] sm:$0xff]
    %v7175 = vld [vmem:[#allocation14 + $0x718] sm:$0xff]
    %v7176 = vld [vmem:[#allocation14 + $0x720] sm:$0xff]
    %v7177 = vld [vmem:[#allocation14 + $0x728] sm:$0xff]
    %v7178 = vld [vmem:[#allocation14 + $0x730] sm:$0xff]
    %v7179 = vld [vmem:[#allocation14 + $0x738] sm:$0xff]
    %v7180 = vld [vmem:[#allocation14 + $0x740] sm:$0xff]
    %v7181 = vld [vmem:[#allocation14 + $0x748] sm:$0xff]
    %v7182 = vld [vmem:[#allocation14 + $0x750] sm:$0xff]
    %v7183 = vld [vmem:[#allocation14 + $0x758] sm:$0xff]
    %v7184 = vld [vmem:[#allocation14 + $0x760] sm:$0xff]
    %v7185 = vld [vmem:[#allocation14 + $0x768] sm:$0xff]
    %v7186 = vld [vmem:[#allocation14 + $0x770] sm:$0xff]
    %v7187 = vld [vmem:[#allocation14 + $0x778] sm:$0xff]
    %v7188 = vld [vmem:[#allocation14 + $0x780] sm:$0xff]
    %v7189 = vld [vmem:[#allocation14 + $0x788] sm:$0xff]
    %v7190 = vld [vmem:[#allocation14 + $0x790] sm:$0xff]
    %v7191 = vld [vmem:[#allocation14 + $0x798] sm:$0xff]
    %v7192 = vld [vmem:[#allocation14 + $0x7a0] sm:$0xff]
    %v7193 = vld [vmem:[#allocation14 + $0x7a8] sm:$0xff]
    %v7194 = vld [vmem:[#allocation14 + $0x7b0] sm:$0xff]
    %v7195 = vld [vmem:[#allocation14 + $0x7b8] sm:$0xff]
    %v7196 = vld [vmem:[#allocation14 + $0x7c0] sm:$0xff]
    %v7197 = vld [vmem:[#allocation14 + $0x7c8] sm:$0xff]
    %v7198 = vld [vmem:[#allocation14 + $0x7d0] sm:$0xff]
    %v7199 = vld [vmem:[#allocation14 + $0x7d8] sm:$0xff]
    %v7200 = vld [vmem:[#allocation14 + $0x7e0] sm:$0xff]
    %v7201 = vld [vmem:[#allocation14 + $0x7e8] sm:$0xff]
    %v7202 = vld [vmem:[#allocation14 + $0x7f0] sm:$0xff]
    %v7203 = vld [vmem:[#allocation14 + $0x7f8] sm:$0xff]
    %v7204 = vld [vmem:[#allocation14 + $0x800] sm:$0xff]
    %v7205 = vld [vmem:[#allocation14 + $0x808] sm:$0xff]
    %v7206 = vld [vmem:[#allocation14 + $0x810] sm:$0xff]
    %v7207 = vld [vmem:[#allocation14 + $0x818] sm:$0xff]
    %v7208 = vld [vmem:[#allocation14 + $0x820] sm:$0xff]
    %v7209 = vld [vmem:[#allocation14 + $0x828] sm:$0xff]
    %v7210 = vld [vmem:[#allocation14 + $0x830] sm:$0xff]
    %v7211 = vld [vmem:[#allocation14 + $0x838] sm:$0xff]
    %v7212 = vld [vmem:[#allocation14 + $0x840] sm:$0xff]
    %v7213 = vld [vmem:[#allocation14 + $0x848] sm:$0xff]
    %v7214 = vld [vmem:[#allocation14 + $0x850] sm:$0xff]
    %v7215 = vld [vmem:[#allocation14 + $0x858] sm:$0xff]
    %v7216 = vld [vmem:[#allocation14 + $0x860] sm:$0xff]
    %v7217 = vld [vmem:[#allocation14 + $0x868] sm:$0xff]
    %v7218 = vld [vmem:[#allocation14 + $0x870] sm:$0xff]
    %v7219 = vld [vmem:[#allocation14 + $0x878] sm:$0xff]
    %v7220 = vld [vmem:[#allocation14 + $0x880] sm:$0xff]
    %v7221 = vld [vmem:[#allocation14 + $0x888] sm:$0xff]
    %v7222 = vld [vmem:[#allocation14 + $0x890] sm:$0xff]
    %v7223 = vld [vmem:[#allocation14 + $0x898] sm:$0xff]
    %v7224 = vld [vmem:[#allocation14 + $0x8a0] sm:$0xff]
    %v7225 = vld [vmem:[#allocation14 + $0x8a8] sm:$0xff]
    %v7226 = vld [vmem:[#allocation14 + $0x8b0] sm:$0xff]
    %v7227 = vld [vmem:[#allocation14 + $0x8b8] sm:$0xff]
    %v7228 = vld [vmem:[#allocation14 + $0x8c0] sm:$0xff]
    %v7229 = vld [vmem:[#allocation14 + $0x8c8] sm:$0xff]
    %v7230 = vld [vmem:[#allocation14 + $0x8d0] sm:$0xff]
    %v7231 = vld [vmem:[#allocation14 + $0x8d8] sm:$0xff]
    %v7232 = vld [vmem:[#allocation14 + $0x8e0] sm:$0xff]
    %v7233 = vld [vmem:[#allocation14 + $0x8e8] sm:$0xff]
    %v7234 = vld [vmem:[#allocation14 + $0x8f0] sm:$0xff]
    %v7235 = vld [vmem:[#allocation14 + $0x8f8] sm:$0xff]
    %v7236 = vld [vmem:[#allocation16] sm:$0x3f]
    %v7238 = vlaneseq
    %v7239 = vshrl.u32 %v7238, 7
    %v7240 = vsub.s32 0, %v7239
    %v7241 = vrot.slane %v7236, %v7240
    %v7242 = vlaneseq
    %v7243 = vshrl.u32 %v7242, 7
    %v7244 = vsub.s32 1, %v7243
    %v7245 = vrot.slane %v7236, %v7244
    %v7246 = vlaneseq
    %v7247 = vshrl.u32 %v7246, 7
    %v7248 = vsub.s32 2, %v7247
    %v7249 = vrot.slane %v7236, %v7248
    %v7250 = vlaneseq
    %v7251 = vshrl.u32 %v7250, 7
    %v7252 = vsub.s32 3, %v7251
    %v7253 = vrot.slane %v7236, %v7252
    %v7254 = vlaneseq
    %v7255 = vshrl.u32 %v7254, 7
    %v7256 = vsub.s32 4, %v7255
    %v7257 = vrot.slane %v7236, %v7256
    %v7258 = vlaneseq
    %v7259 = vshrl.u32 %v7258, 7
    %v7260 = vsub.s32 5, %v7259
    %v7261 = vrot.slane %v7236, %v7260
    %v7556 = vunpack.c.l.b16 %v6948
    %v7557 = vunpack.c.h.b16 %v6948
    %v7558 = vunpack.c.l.b16 %v6949
    %v7559 = vunpack.c.h.b16 %v6949
    %v7560 = vunpack.c.l.b16 %v6950
    %v7561 = vunpack.c.h.b16 %v6950
    %v7562 = vunpack.c.l.b16 %v6951
    %v7563 = vunpack.c.h.b16 %v6951
    %v7564 = vunpack.c.l.b16 %v6952
    %v7565 = vunpack.c.h.b16 %v6952
    %v7566 = vunpack.c.l.b16 %v6953
    %v7567 = vunpack.c.h.b16 %v6953
    %v7568 = vunpack.c.l.b16 %v6954
    %v7569 = vunpack.c.h.b16 %v6954
    %v7570 = vunpack.c.l.b16 %v6955
    %v7571 = vunpack.c.h.b16 %v6955
    %v7572 = vunpack.c.l.b16 %v6956
    %v7573 = vunpack.c.h.b16 %v6956
    %v7574 = vunpack.c.l.b16 %v6957
    %v7575 = vunpack.c.h.b16 %v6957
    %v7576 = vunpack.c.l.b16 %v6958
    %v7577 = vunpack.c.h.b16 %v6958
    %v7578 = vunpack.c.l.b16 %v6959
    %v7579 = vunpack.c.h.b16 %v6959
    %v7580 = vunpack.c.l.b16 %v6960
    %v7581 = vunpack.c.h.b16 %v6960
    %v7582 = vunpack.c.l.b16 %v6961
    %v7583 = vunpack.c.h.b16 %v6961
    %v7584 = vunpack.c.l.b16 %v6962
    %v7585 = vunpack.c.h.b16 %v6962
    %v7586 = vunpack.c.l.b16 %v6963
    %v7587 = vunpack.c.h.b16 %v6963
    %v7588 = vunpack.c.l.b16 %v6964
    %v7589 = vunpack.c.h.b16 %v6964
    %v7590 = vunpack.c.l.b16 %v6965
    %v7591 = vunpack.c.h.b16 %v6965
    %v7592 = vunpack.c.l.b16 %v6966
    %v7593 = vunpack.c.h.b16 %v6966
    %v7594 = vunpack.c.l.b16 %v6967
    %v7595 = vunpack.c.h.b16 %v6967
    %v7596 = vunpack.c.l.b16 %v6968
    %v7597 = vunpack.c.h.b16 %v6968
    %v7598 = vunpack.c.l.b16 %v6969
    %v7599 = vunpack.c.h.b16 %v6969
    %v7600 = vunpack.c.l.b16 %v6970
    %v7601 = vunpack.c.h.b16 %v6970
    %v7602 = vunpack.c.l.b16 %v6971
    %v7603 = vunpack.c.h.b16 %v6971
    %v7604 = vunpack.c.l.b16 %v6972
    %v7605 = vunpack.c.h.b16 %v6972
    %v7606 = vunpack.c.l.b16 %v6973
    %v7607 = vunpack.c.h.b16 %v6973
    %v7608 = vunpack.c.l.b16 %v6974
    %v7609 = vunpack.c.h.b16 %v6974
    %v7610 = vunpack.c.l.b16 %v6975
    %v7611 = vunpack.c.h.b16 %v6975
    %v7612 = vunpack.c.l.b16 %v6976
    %v7613 = vunpack.c.h.b16 %v6976
    %v7614 = vunpack.c.l.b16 %v6977
    %v7615 = vunpack.c.h.b16 %v6977
    %v7616 = vunpack.c.l.b16 %v6978
    %v7617 = vunpack.c.h.b16 %v6978
    %v7618 = vunpack.c.l.b16 %v6979
    %v7619 = vunpack.c.h.b16 %v6979
    %v7620 = vunpack.c.l.b16 %v6980
    %v7621 = vunpack.c.h.b16 %v6980
    %v7622 = vunpack.c.l.b16 %v6981
    %v7623 = vunpack.c.h.b16 %v6981
    %v7624 = vunpack.c.l.b16 %v6982
    %v7625 = vunpack.c.h.b16 %v6982
    %v7626 = vunpack.c.l.b16 %v6983
    %v7627 = vunpack.c.h.b16 %v6983
    %v7628 = vunpack.c.l.b16 %v6984
    %v7629 = vunpack.c.h.b16 %v6984
    %v7630 = vunpack.c.l.b16 %v6985
    %v7631 = vunpack.c.h.b16 %v6985
    %v7632 = vunpack.c.l.b16 %v6986
    %v7633 = vunpack.c.h.b16 %v6986
    %v7634 = vunpack.c.l.b16 %v6987
    %v7635 = vunpack.c.h.b16 %v6987
    %v7636 = vunpack.c.l.b16 %v6988
    %v7637 = vunpack.c.h.b16 %v6988
    %v7638 = vunpack.c.l.b16 %v6989
    %v7639 = vunpack.c.h.b16 %v6989
    %v7640 = vunpack.c.l.b16 %v6990
    %v7641 = vunpack.c.h.b16 %v6990
    %v7642 = vunpack.c.l.b16 %v6991
    %v7643 = vunpack.c.h.b16 %v6991
    %v7644 = vunpack.c.l.b16 %v6992
    %v7645 = vunpack.c.h.b16 %v6992
    %v7646 = vunpack.c.l.b16 %v6993
    %v7647 = vunpack.c.h.b16 %v6993
    %v7648 = vunpack.c.l.b16 %v6994
    %v7649 = vunpack.c.h.b16 %v6994
    %v7650 = vunpack.c.l.b16 %v6995
    %v7651 = vunpack.c.h.b16 %v6995
    %v7652 = vunpack.c.l.b16 %v6996
    %v7653 = vunpack.c.h.b16 %v6996
    %v7654 = vunpack.c.l.b16 %v6997
    %v7655 = vunpack.c.h.b16 %v6997
    %v7656 = vunpack.c.l.b16 %v6998
    %v7657 = vunpack.c.h.b16 %v6998
    %v7658 = vunpack.c.l.b16 %v6999
    %v7659 = vunpack.c.h.b16 %v6999
    %v7660 = vunpack.c.l.b16 %v7000
    %v7661 = vunpack.c.h.b16 %v7000
    %v7662 = vunpack.c.l.b16 %v7001
    %v7663 = vunpack.c.h.b16 %v7001
    %v7664 = vunpack.c.l.b16 %v7002
    %v7665 = vunpack.c.h.b16 %v7002
    %v7666 = vunpack.c.l.b16 %v7003
    %v7667 = vunpack.c.h.b16 %v7003
    %v7668 = vunpack.c.l.b16 %v7004
    %v7669 = vunpack.c.h.b16 %v7004
    %v7670 = vunpack.c.l.b16 %v7005
    %v7671 = vunpack.c.h.b16 %v7005
    %v7672 = vunpack.c.l.b16 %v7006
    %v7673 = vunpack.c.h.b16 %v7006
    %v7674 = vunpack.c.l.b16 %v7007
    %v7675 = vunpack.c.h.b16 %v7007
    %v7676 = vunpack.c.l.b16 %v7008
    %v7677 = vunpack.c.h.b16 %v7008
    %v7678 = vunpack.c.l.b16 %v7009
    %v7679 = vunpack.c.h.b16 %v7009
    %v7680 = vunpack.c.l.b16 %v7010
    %v7681 = vunpack.c.h.b16 %v7010
    %v7682 = vunpack.c.l.b16 %v7011
    %v7683 = vunpack.c.h.b16 %v7011
    %v7684 = vunpack.c.l.b16 %v7012
    %v7685 = vunpack.c.h.b16 %v7012
    %v7686 = vunpack.c.l.b16 %v7013
    %v7687 = vunpack.c.h.b16 %v7013
    %v7688 = vunpack.c.l.b16 %v7014
    %v7689 = vunpack.c.h.b16 %v7014
    %v7690 = vunpack.c.l.b16 %v7015
    %v7691 = vunpack.c.h.b16 %v7015
    %v7692 = vunpack.c.l.b16 %v7016
    %v7693 = vunpack.c.h.b16 %v7016
    %v7694 = vunpack.c.l.b16 %v7017
    %v7695 = vunpack.c.h.b16 %v7017
    %v7696 = vunpack.c.l.b16 %v7018
    %v7697 = vunpack.c.h.b16 %v7018
    %v7698 = vunpack.c.l.b16 %v7019
    %v7699 = vunpack.c.h.b16 %v7019
    %v7700 = vunpack.c.l.b16 %v7020
    %v7701 = vunpack.c.h.b16 %v7020
    %v7702 = vunpack.c.l.b16 %v7021
    %v7703 = vunpack.c.h.b16 %v7021
    %v7704 = vunpack.c.l.b16 %v7022
    %v7705 = vunpack.c.h.b16 %v7022
    %v7706 = vunpack.c.l.b16 %v7023
    %v7707 = vunpack.c.h.b16 %v7023
    %v7708 = vunpack.c.l.b16 %v7024
    %v7709 = vunpack.c.h.b16 %v7024
    %v7710 = vunpack.c.l.b16 %v7025
    %v7711 = vunpack.c.h.b16 %v7025
    %v7712 = vunpack.c.l.b16 %v7026
    %v7713 = vunpack.c.h.b16 %v7026
    %v7714 = vunpack.c.l.b16 %v7027
    %v7715 = vunpack.c.h.b16 %v7027
    %v7716 = vunpack.c.l.b16 %v7028
    %v7717 = vunpack.c.h.b16 %v7028
    %v7718 = vunpack.c.l.b16 %v7029
    %v7719 = vunpack.c.h.b16 %v7029
    %v7720 = vunpack.c.l.b16 %v7030
    %v7721 = vunpack.c.h.b16 %v7030
    %v7722 = vunpack.c.l.b16 %v7031
    %v7723 = vunpack.c.h.b16 %v7031
    %v7724 = vunpack.c.l.b16 %v7032
    %v7725 = vunpack.c.h.b16 %v7032
    %v7726 = vunpack.c.l.b16 %v7033
    %v7727 = vunpack.c.h.b16 %v7033
    %v7728 = vunpack.c.l.b16 %v7034
    %v7729 = vunpack.c.h.b16 %v7034
    %v7730 = vunpack.c.l.b16 %v7035
    %v7731 = vunpack.c.h.b16 %v7035
    %v7732 = vunpack.c.l.b16 %v7036
    %v7733 = vunpack.c.h.b16 %v7036
    %v7734 = vunpack.c.l.b16 %v7037
    %v7735 = vunpack.c.h.b16 %v7037
    %v7736 = vunpack.c.l.b16 %v7038
    %v7737 = vunpack.c.h.b16 %v7038
    %v7738 = vunpack.c.l.b16 %v7039
    %v7739 = vunpack.c.h.b16 %v7039
    %v7740 = vunpack.c.l.b16 %v7040
    %v7741 = vunpack.c.h.b16 %v7040
    %v7742 = vunpack.c.l.b16 %v7041
    %v7743 = vunpack.c.h.b16 %v7041
    %v7744 = vunpack.c.l.b16 %v7042
    %v7745 = vunpack.c.h.b16 %v7042
    %v7746 = vunpack.c.l.b16 %v7043
    %v7747 = vunpack.c.h.b16 %v7043
    %v7748 = vunpack.c.l.b16 %v7044
    %v7749 = vunpack.c.h.b16 %v7044
    %v7750 = vunpack.c.l.b16 %v7045
    %v7751 = vunpack.c.h.b16 %v7045
    %v7752 = vunpack.c.l.b16 %v7046
    %v7753 = vunpack.c.h.b16 %v7046
    %v7754 = vunpack.c.l.b16 %v7047
    %v7755 = vunpack.c.h.b16 %v7047
    %v7756 = vunpack.c.l.b16 %v7048
    %v7757 = vunpack.c.h.b16 %v7048
    %v7758 = vunpack.c.l.b16 %v7049
    %v7759 = vunpack.c.h.b16 %v7049
    %v7760 = vunpack.c.l.b16 %v7050
    %v7761 = vunpack.c.h.b16 %v7050
    %v7762 = vunpack.c.l.b16 %v7051
    %v7763 = vunpack.c.h.b16 %v7051
    %v7764 = vunpack.c.l.b16 %v7052
    %v7765 = vunpack.c.h.b16 %v7052
    %v7766 = vunpack.c.l.b16 %v7053
    %v7767 = vunpack.c.h.b16 %v7053
    %v7768 = vunpack.c.l.b16 %v7054
    %v7769 = vunpack.c.h.b16 %v7054
    %v7770 = vunpack.c.l.b16 %v7055
    %v7771 = vunpack.c.h.b16 %v7055
    %v7772 = vunpack.c.l.b16 %v7056
    %v7773 = vunpack.c.h.b16 %v7056
    %v7774 = vunpack.c.l.b16 %v7057
    %v7775 = vunpack.c.h.b16 %v7057
    %v7776 = vunpack.c.l.b16 %v7058
    %v7777 = vunpack.c.h.b16 %v7058
    %v7778 = vunpack.c.l.b16 %v7059
    %v7779 = vunpack.c.h.b16 %v7059
    %v7780 = vunpack.c.l.b16 %v7060
    %v7781 = vunpack.c.h.b16 %v7060
    %v7782 = vunpack.c.l.b16 %v7061
    %v7783 = vunpack.c.h.b16 %v7061
    %v7784 = vunpack.c.l.b16 %v7062
    %v7785 = vunpack.c.h.b16 %v7062
    %v7786 = vunpack.c.l.b16 %v7063
    %v7787 = vunpack.c.h.b16 %v7063
    %v7788 = vunpack.c.l.b16 %v7064
    %v7789 = vunpack.c.h.b16 %v7064
    %v7790 = vunpack.c.l.b16 %v7065
    %v7791 = vunpack.c.h.b16 %v7065
    %v7792 = vunpack.c.l.b16 %v7066
    %v7793 = vunpack.c.h.b16 %v7066
    %v7794 = vunpack.c.l.b16 %v7067
    %v7795 = vunpack.c.h.b16 %v7067
    %v7796 = vunpack.c.l.b16 %v7068
    %v7797 = vunpack.c.h.b16 %v7068
    %v7798 = vunpack.c.l.b16 %v7069
    %v7799 = vunpack.c.h.b16 %v7069
    %v7800 = vunpack.c.l.b16 %v7070
    %v7801 = vunpack.c.h.b16 %v7070
    %v7802 = vunpack.c.l.b16 %v7071
    %v7803 = vunpack.c.h.b16 %v7071
    %v7804 = vunpack.c.l.b16 %v7072
    %v7805 = vunpack.c.h.b16 %v7072
    %v7806 = vunpack.c.l.b16 %v7073
    %v7807 = vunpack.c.h.b16 %v7073
    %v7808 = vunpack.c.l.b16 %v7074
    %v7809 = vunpack.c.h.b16 %v7074
    %v7810 = vunpack.c.l.b16 %v7075
    %v7811 = vunpack.c.h.b16 %v7075
    %v7812 = vunpack.c.l.b16 %v7076
    %v7813 = vunpack.c.h.b16 %v7076
    %v7814 = vunpack.c.l.b16 %v7077
    %v7815 = vunpack.c.h.b16 %v7077
    %v7816 = vunpack.c.l.b16 %v7078
    %v7817 = vunpack.c.h.b16 %v7078
    %v7818 = vunpack.c.l.b16 %v7079
    %v7819 = vunpack.c.h.b16 %v7079
    %v7820 = vunpack.c.l.b16 %v7080
    %v7821 = vunpack.c.h.b16 %v7080
    %v7822 = vunpack.c.l.b16 %v7081
    %v7823 = vunpack.c.h.b16 %v7081
    %v7824 = vunpack.c.l.b16 %v7082
    %v7825 = vunpack.c.h.b16 %v7082
    %v7826 = vunpack.c.l.b16 %v7083
    %v7827 = vunpack.c.h.b16 %v7083
    %v7828 = vunpack.c.l.b16 %v7084
    %v7829 = vunpack.c.h.b16 %v7084
    %v7830 = vunpack.c.l.b16 %v7085
    %v7831 = vunpack.c.h.b16 %v7085
    %v7832 = vunpack.c.l.b16 %v7086
    %v7833 = vunpack.c.h.b16 %v7086
    %v7834 = vunpack.c.l.b16 %v7087
    %v7835 = vunpack.c.h.b16 %v7087
    %v7836 = vunpack.c.l.b16 %v7088
    %v7837 = vunpack.c.h.b16 %v7088
    %v7838 = vunpack.c.l.b16 %v7089
    %v7839 = vunpack.c.h.b16 %v7089
    %v7840 = vunpack.c.l.b16 %v7090
    %v7841 = vunpack.c.h.b16 %v7090
    %v7842 = vunpack.c.l.b16 %v7091
    %v7843 = vunpack.c.h.b16 %v7091
    %v7844 = vunpack.c.l.b16 %v7092
    %v7845 = vunpack.c.h.b16 %v7092
    %v7846 = vunpack.c.l.b16 %v7093
    %v7847 = vunpack.c.h.b16 %v7093
    %v7848 = vunpack.c.l.b16 %v7094
    %v7849 = vunpack.c.h.b16 %v7094
    %v7850 = vunpack.c.l.b16 %v7095
    %v7851 = vunpack.c.h.b16 %v7095
    %v7852 = vunpack.c.l.b16 %v7096
    %v7853 = vunpack.c.h.b16 %v7096
    %v7854 = vunpack.c.l.b16 %v7097
    %v7855 = vunpack.c.h.b16 %v7097
    %v7856 = vunpack.c.l.b16 %v7098
    %v7857 = vunpack.c.h.b16 %v7098
    %v7858 = vunpack.c.l.b16 %v7099
    %v7859 = vunpack.c.h.b16 %v7099
    %v7860 = vunpack.c.l.b16 %v7100
    %v7861 = vunpack.c.h.b16 %v7100
    %v7862 = vunpack.c.l.b16 %v7101
    %v7863 = vunpack.c.h.b16 %v7101
    %v7864 = vunpack.c.l.b16 %v7102
    %v7865 = vunpack.c.h.b16 %v7102
    %v7866 = vunpack.c.l.b16 %v7103
    %v7867 = vunpack.c.h.b16 %v7103
    %v7868 = vunpack.c.l.b16 %v7104
    %v7869 = vunpack.c.h.b16 %v7104
    %v7870 = vunpack.c.l.b16 %v7105
    %v7871 = vunpack.c.h.b16 %v7105
    %v7872 = vunpack.c.l.b16 %v7106
    %v7873 = vunpack.c.h.b16 %v7106
    %v7874 = vunpack.c.l.b16 %v7107
    %v7875 = vunpack.c.h.b16 %v7107
    %v7876 = vunpack.c.l.b16 %v7108
    %v7877 = vunpack.c.h.b16 %v7108
    %v7878 = vunpack.c.l.b16 %v7109
    %v7879 = vunpack.c.h.b16 %v7109
    %v7880 = vunpack.c.l.b16 %v7110
    %v7881 = vunpack.c.h.b16 %v7110
    %v7882 = vunpack.c.l.b16 %v7111
    %v7883 = vunpack.c.h.b16 %v7111
    %v7884 = vunpack.c.l.b16 %v7112
    %v7885 = vunpack.c.h.b16 %v7112
    %v7886 = vunpack.c.l.b16 %v7113
    %v7887 = vunpack.c.h.b16 %v7113
    %v7888 = vunpack.c.l.b16 %v7114
    %v7889 = vunpack.c.h.b16 %v7114
    %v7890 = vunpack.c.l.b16 %v7115
    %v7891 = vunpack.c.h.b16 %v7115
    %v7892 = vunpack.c.l.b16 %v7116
    %v7893 = vunpack.c.h.b16 %v7116
    %v7894 = vunpack.c.l.b16 %v7117
    %v7895 = vunpack.c.h.b16 %v7117
    %v7896 = vunpack.c.l.b16 %v7118
    %v7897 = vunpack.c.h.b16 %v7118
    %v7898 = vunpack.c.l.b16 %v7119
    %v7899 = vunpack.c.h.b16 %v7119
    %v7900 = vunpack.c.l.b16 %v7120
    %v7901 = vunpack.c.h.b16 %v7120
    %v7902 = vunpack.c.l.b16 %v7121
    %v7903 = vunpack.c.h.b16 %v7121
    %v7904 = vunpack.c.l.b16 %v7122
    %v7905 = vunpack.c.h.b16 %v7122
    %v7906 = vunpack.c.l.b16 %v7123
    %v7907 = vunpack.c.h.b16 %v7123
    %v7908 = vunpack.c.l.b16 %v7124
    %v7909 = vunpack.c.h.b16 %v7124
    %v7910 = vunpack.c.l.b16 %v7125
    %v7911 = vunpack.c.h.b16 %v7125
    %v7912 = vunpack.c.l.b16 %v7126
    %v7913 = vunpack.c.h.b16 %v7126
    %v7914 = vunpack.c.l.b16 %v7127
    %v7915 = vunpack.c.h.b16 %v7127
    %v7916 = vunpack.c.l.b16 %v7128
    %v7917 = vunpack.c.h.b16 %v7128
    %v7918 = vunpack.c.l.b16 %v7129
    %v7919 = vunpack.c.h.b16 %v7129
    %v7920 = vunpack.c.l.b16 %v7130
    %v7921 = vunpack.c.h.b16 %v7130
    %v7922 = vunpack.c.l.b16 %v7131
    %v7923 = vunpack.c.h.b16 %v7131
    %v7924 = vunpack.c.l.b16 %v7132
    %v7925 = vunpack.c.h.b16 %v7132
    %v7926 = vunpack.c.l.b16 %v7133
    %v7927 = vunpack.c.h.b16 %v7133
    %v7928 = vunpack.c.l.b16 %v7134
    %v7929 = vunpack.c.h.b16 %v7134
    %v7930 = vunpack.c.l.b16 %v7135
    %v7931 = vunpack.c.h.b16 %v7135
    %v7932 = vunpack.c.l.b16 %v7136
    %v7933 = vunpack.c.h.b16 %v7136
    %v7934 = vunpack.c.l.b16 %v7137
    %v7935 = vunpack.c.h.b16 %v7137
    %v7936 = vunpack.c.l.b16 %v7138
    %v7937 = vunpack.c.h.b16 %v7138
    %v7938 = vunpack.c.l.b16 %v7139
    %v7939 = vunpack.c.h.b16 %v7139
    %v7940 = vunpack.c.l.b16 %v7140
    %v7941 = vunpack.c.h.b16 %v7140
    %v7942 = vunpack.c.l.b16 %v7141
    %v7943 = vunpack.c.h.b16 %v7141
    %v7944 = vunpack.c.l.b16 %v7142
    %v7945 = vunpack.c.h.b16 %v7142
    %v7946 = vunpack.c.l.b16 %v7143
    %v7947 = vunpack.c.h.b16 %v7143
    %v7948 = vunpack.c.l.b16 %v7144
    %v7949 = vunpack.c.h.b16 %v7144
    %v7950 = vunpack.c.l.b16 %v7145
    %v7951 = vunpack.c.h.b16 %v7145
    %v7952 = vunpack.c.l.b16 %v7146
    %v7953 = vunpack.c.h.b16 %v7146
    %v7954 = vunpack.c.l.b16 %v7147
    %v7955 = vunpack.c.h.b16 %v7147
    %v7956 = vunpack.c.l.b16 %v7148
    %v7957 = vunpack.c.h.b16 %v7148
    %v7958 = vunpack.c.l.b16 %v7149
    %v7959 = vunpack.c.h.b16 %v7149
    %v7960 = vunpack.c.l.b16 %v7150
    %v7961 = vunpack.c.h.b16 %v7150
    %v7962 = vunpack.c.l.b16 %v7151
    %v7963 = vunpack.c.h.b16 %v7151
    %v7964 = vunpack.c.l.b16 %v7152
    %v7965 = vunpack.c.h.b16 %v7152
    %v7966 = vunpack.c.l.b16 %v7153
    %v7967 = vunpack.c.h.b16 %v7153
    %v7968 = vunpack.c.l.b16 %v7154
    %v7969 = vunpack.c.h.b16 %v7154
    %v7970 = vunpack.c.l.b16 %v7155
    %v7971 = vunpack.c.h.b16 %v7155
    %v7972 = vunpack.c.l.b16 %v7156
    %v7973 = vunpack.c.h.b16 %v7156
    %v7974 = vunpack.c.l.b16 %v7157
    %v7975 = vunpack.c.h.b16 %v7157
    %v7976 = vunpack.c.l.b16 %v7158
    %v7977 = vunpack.c.h.b16 %v7158
    %v7978 = vunpack.c.l.b16 %v7159
    %v7979 = vunpack.c.h.b16 %v7159
    %v7980 = vunpack.c.l.b16 %v7160
    %v7981 = vunpack.c.h.b16 %v7160
    %v7982 = vunpack.c.l.b16 %v7161
    %v7983 = vunpack.c.h.b16 %v7161
    %v7984 = vunpack.c.l.b16 %v7162
    %v7985 = vunpack.c.h.b16 %v7162
    %v7986 = vunpack.c.l.b16 %v7163
    %v7987 = vunpack.c.h.b16 %v7163
    %v7988 = vunpack.c.l.b16 %v7164
    %v7989 = vunpack.c.h.b16 %v7164
    %v7990 = vunpack.c.l.b16 %v7165
    %v7991 = vunpack.c.h.b16 %v7165
    %v7992 = vunpack.c.l.b16 %v7166
    %v7993 = vunpack.c.h.b16 %v7166
    %v7994 = vunpack.c.l.b16 %v7167
    %v7995 = vunpack.c.h.b16 %v7167
    %v7996 = vunpack.c.l.b16 %v7168
    %v7997 = vunpack.c.h.b16 %v7168
    %v7998 = vunpack.c.l.b16 %v7169
    %v7999 = vunpack.c.h.b16 %v7169
    %v8000 = vunpack.c.l.b16 %v7170
    %v8001 = vunpack.c.h.b16 %v7170
    %v8002 = vunpack.c.l.b16 %v7171
    %v8003 = vunpack.c.h.b16 %v7171
    %v8004 = vunpack.c.l.b16 %v7172
    %v8005 = vunpack.c.h.b16 %v7172
    %v8006 = vunpack.c.l.b16 %v7173
    %v8007 = vunpack.c.h.b16 %v7173
    %v8008 = vunpack.c.l.b16 %v7174
    %v8009 = vunpack.c.h.b16 %v7174
    %v8010 = vunpack.c.l.b16 %v7175
    %v8011 = vunpack.c.h.b16 %v7175
    %v8012 = vunpack.c.l.b16 %v7176
    %v8013 = vunpack.c.h.b16 %v7176
    %v8014 = vunpack.c.l.b16 %v7177
    %v8015 = vunpack.c.h.b16 %v7177
    %v8016 = vunpack.c.l.b16 %v7178
    %v8017 = vunpack.c.h.b16 %v7178
    %v8018 = vunpack.c.l.b16 %v7179
    %v8019 = vunpack.c.h.b16 %v7179
    %v8020 = vunpack.c.l.b16 %v7180
    %v8021 = vunpack.c.h.b16 %v7180
    %v8022 = vunpack.c.l.b16 %v7181
    %v8023 = vunpack.c.h.b16 %v7181
    %v8024 = vunpack.c.l.b16 %v7182
    %v8025 = vunpack.c.h.b16 %v7182
    %v8026 = vunpack.c.l.b16 %v7183
    %v8027 = vunpack.c.h.b16 %v7183
    %v8028 = vunpack.c.l.b16 %v7184
    %v8029 = vunpack.c.h.b16 %v7184
    %v8030 = vunpack.c.l.b16 %v7185
    %v8031 = vunpack.c.h.b16 %v7185
    %v8032 = vunpack.c.l.b16 %v7186
    %v8033 = vunpack.c.h.b16 %v7186
    %v8034 = vunpack.c.l.b16 %v7187
    %v8035 = vunpack.c.h.b16 %v7187
    %v8036 = vunpack.c.l.b16 %v7188
    %v8037 = vunpack.c.h.b16 %v7188
    %v8038 = vunpack.c.l.b16 %v7189
    %v8039 = vunpack.c.h.b16 %v7189
    %v8040 = vunpack.c.l.b16 %v7190
    %v8041 = vunpack.c.h.b16 %v7190
    %v8042 = vunpack.c.l.b16 %v7191
    %v8043 = vunpack.c.h.b16 %v7191
    %v8044 = vunpack.c.l.b16 %v7192
    %v8045 = vunpack.c.h.b16 %v7192
    %v8046 = vunpack.c.l.b16 %v7193
    %v8047 = vunpack.c.h.b16 %v7193
    %v8048 = vunpack.c.l.b16 %v7194
    %v8049 = vunpack.c.h.b16 %v7194
    %v8050 = vunpack.c.l.b16 %v7195
    %v8051 = vunpack.c.h.b16 %v7195
    %v8052 = vunpack.c.l.b16 %v7196
    %v8053 = vunpack.c.h.b16 %v7196
    %v8054 = vunpack.c.l.b16 %v7197
    %v8055 = vunpack.c.h.b16 %v7197
    %v8056 = vunpack.c.l.b16 %v7198
    %v8057 = vunpack.c.h.b16 %v7198
    %v8058 = vunpack.c.l.b16 %v7199
    %v8059 = vunpack.c.h.b16 %v7199
    %v8060 = vunpack.c.l.b16 %v7200
    %v8061 = vunpack.c.h.b16 %v7200
    %v8062 = vunpack.c.l.b16 %v7201
    %v8063 = vunpack.c.h.b16 %v7201
    %v8064 = vunpack.c.l.b16 %v7202
    %v8065 = vunpack.c.h.b16 %v7202
    %v8066 = vunpack.c.l.b16 %v7203
    %v8067 = vunpack.c.h.b16 %v7203
    %v8068 = vunpack.c.l.b16 %v7204
    %v8069 = vunpack.c.h.b16 %v7204
    %v8070 = vunpack.c.l.b16 %v7205
    %v8071 = vunpack.c.h.b16 %v7205
    %v8072 = vunpack.c.l.b16 %v7206
    %v8073 = vunpack.c.h.b16 %v7206
    %v8074 = vunpack.c.l.b16 %v7207
    %v8075 = vunpack.c.h.b16 %v7207
    %v8076 = vunpack.c.l.b16 %v7208
    %v8077 = vunpack.c.h.b16 %v7208
    %v8078 = vunpack.c.l.b16 %v7209
    %v8079 = vunpack.c.h.b16 %v7209
    %v8080 = vunpack.c.l.b16 %v7210
    %v8081 = vunpack.c.h.b16 %v7210
    %v8082 = vunpack.c.l.b16 %v7211
    %v8083 = vunpack.c.h.b16 %v7211
    %v8084 = vunpack.c.l.b16 %v7212
    %v8085 = vunpack.c.h.b16 %v7212
    %v8086 = vunpack.c.l.b16 %v7213
    %v8087 = vunpack.c.h.b16 %v7213
    %v8088 = vunpack.c.l.b16 %v7214
    %v8089 = vunpack.c.h.b16 %v7214
    %v8090 = vunpack.c.l.b16 %v7215
    %v8091 = vunpack.c.h.b16 %v7215
    %v8092 = vunpack.c.l.b16 %v7216
    %v8093 = vunpack.c.h.b16 %v7216
    %v8094 = vunpack.c.l.b16 %v7217
    %v8095 = vunpack.c.h.b16 %v7217
    %v8096 = vunpack.c.l.b16 %v7218
    %v8097 = vunpack.c.h.b16 %v7218
    %v8098 = vunpack.c.l.b16 %v7219
    %v8099 = vunpack.c.h.b16 %v7219
    %v8100 = vunpack.c.l.b16 %v7220
    %v8101 = vunpack.c.h.b16 %v7220
    %v8102 = vunpack.c.l.b16 %v7221
    %v8103 = vunpack.c.h.b16 %v7221
    %v8104 = vunpack.c.l.b16 %v7222
    %v8105 = vunpack.c.h.b16 %v7222
    %v8106 = vunpack.c.l.b16 %v7223
    %v8107 = vunpack.c.h.b16 %v7223
    %v8108 = vunpack.c.l.b16 %v7224
    %v8109 = vunpack.c.h.b16 %v7224
    %v8110 = vunpack.c.l.b16 %v7225
    %v8111 = vunpack.c.h.b16 %v7225
    %v8112 = vunpack.c.l.b16 %v7226
    %v8113 = vunpack.c.h.b16 %v7226
    %v8114 = vunpack.c.l.b16 %v7227
    %v8115 = vunpack.c.h.b16 %v7227
    %v8116 = vunpack.c.l.b16 %v7228
    %v8117 = vunpack.c.h.b16 %v7228
    %v8118 = vunpack.c.l.b16 %v7229
    %v8119 = vunpack.c.h.b16 %v7229
    %v8120 = vunpack.c.l.b16 %v7230
    %v8121 = vunpack.c.h.b16 %v7230
    %v8122 = vunpack.c.l.b16 %v7231
    %v8123 = vunpack.c.h.b16 %v7231
    %v8124 = vunpack.c.l.b16 %v7232
    %v8125 = vunpack.c.h.b16 %v7232
    %v8126 = vunpack.c.l.b16 %v7233
    %v8127 = vunpack.c.h.b16 %v7233
    %v8128 = vunpack.c.l.b16 %v7234
    %v8129 = vunpack.c.h.b16 %v7234
    %v8130 = vunpack.c.l.b16 %v7235
    %v8131 = vunpack.c.h.b16 %v7235
    %v8132 = vpack.c.b16 %v7562, %v7556
    %v8133 = vpack.c.b16 %v7563, %v7557
    %v8134 = vpack.c.b16 %v7564, %v7558
    %v8135 = vpack.c.b16 %v7565, %v7559
    %v8136 = vpack.c.b16 %v7566, %v7560
    %v8137 = vpack.c.b16 %v7567, %v7561
    %v8138 = vpack.c.b16 %v7574, %v7568
    %v8139 = vpack.c.b16 %v7575, %v7569
    %v8140 = vpack.c.b16 %v7576, %v7570
    %v8141 = vpack.c.b16 %v7577, %v7571
    %v8142 = vpack.c.b16 %v7578, %v7572
    %v8143 = vpack.c.b16 %v7579, %v7573
    %v8144 = vpack.c.b16 %v7586, %v7580
    %v8145 = vpack.c.b16 %v7587, %v7581
    %v8146 = vpack.c.b16 %v7588, %v7582
    %v8147 = vpack.c.b16 %v7589, %v7583
    %v8148 = vpack.c.b16 %v7590, %v7584
    %v8149 = vpack.c.b16 %v7591, %v7585
    %v8150 = vpack.c.b16 %v7598, %v7592
    %v8151 = vpack.c.b16 %v7599, %v7593
    %v8152 = vpack.c.b16 %v7600, %v7594
    %v8153 = vpack.c.b16 %v7601, %v7595
    %v8154 = vpack.c.b16 %v7602, %v7596
    %v8155 = vpack.c.b16 %v7603, %v7597
    %v8156 = vpack.c.b16 %v7610, %v7604
    %v8157 = vpack.c.b16 %v7611, %v7605
    %v8158 = vpack.c.b16 %v7612, %v7606
    %v8159 = vpack.c.b16 %v7613, %v7607
    %v8160 = vpack.c.b16 %v7614, %v7608
    %v8161 = vpack.c.b16 %v7615, %v7609
    %v8162 = vpack.c.b16 %v7622, %v7616
    %v8163 = vpack.c.b16 %v7623, %v7617
    %v8164 = vpack.c.b16 %v7624, %v7618
    %v8165 = vpack.c.b16 %v7625, %v7619
    %v8166 = vpack.c.b16 %v7626, %v7620
    %v8167 = vpack.c.b16 %v7627, %v7621
    %v8168 = vpack.c.b16 %v7634, %v7628
    %v8169 = vpack.c.b16 %v7635, %v7629
    %v8170 = vpack.c.b16 %v7636, %v7630
    %v8171 = vpack.c.b16 %v7637, %v7631
    %v8172 = vpack.c.b16 %v7638, %v7632
    %v8173 = vpack.c.b16 %v7639, %v7633
    %v8174 = vpack.c.b16 %v7646, %v7640
    %v8175 = vpack.c.b16 %v7647, %v7641
    %v8176 = vpack.c.b16 %v7648, %v7642
    %v8177 = vpack.c.b16 %v7649, %v7643
    %v8178 = vpack.c.b16 %v7650, %v7644
    %v8179 = vpack.c.b16 %v7651, %v7645
    %v8180 = vpack.c.b16 %v7658, %v7652
    %v8181 = vpack.c.b16 %v7659, %v7653
    %v8182 = vpack.c.b16 %v7660, %v7654
    %v8183 = vpack.c.b16 %v7661, %v7655
    %v8184 = vpack.c.b16 %v7662, %v7656
    %v8185 = vpack.c.b16 %v7663, %v7657
    %v8186 = vpack.c.b16 %v7670, %v7664
    %v8187 = vpack.c.b16 %v7671, %v7665
    %v8188 = vpack.c.b16 %v7672, %v7666
    %v8189 = vpack.c.b16 %v7673, %v7667
    %v8190 = vpack.c.b16 %v7674, %v7668
    %v8191 = vpack.c.b16 %v7675, %v7669
    %v8192 = vpack.c.b16 %v7682, %v7676
    %v8193 = vpack.c.b16 %v7683, %v7677
    %v8194 = vpack.c.b16 %v7684, %v7678
    %v8195 = vpack.c.b16 %v7685, %v7679
    %v8196 = vpack.c.b16 %v7686, %v7680
    %v8197 = vpack.c.b16 %v7687, %v7681
    %v8198 = vpack.c.b16 %v7694, %v7688
    %v8199 = vpack.c.b16 %v7695, %v7689
    %v8200 = vpack.c.b16 %v7696, %v7690
    %v8201 = vpack.c.b16 %v7697, %v7691
    %v8202 = vpack.c.b16 %v7698, %v7692
    %v8203 = vpack.c.b16 %v7699, %v7693
    %v8204 = vpack.c.b16 %v7706, %v7700
    %v8205 = vpack.c.b16 %v7707, %v7701
    %v8206 = vpack.c.b16 %v7708, %v7702
    %v8207 = vpack.c.b16 %v7709, %v7703
    %v8208 = vpack.c.b16 %v7710, %v7704
    %v8209 = vpack.c.b16 %v7711, %v7705
    %v8210 = vpack.c.b16 %v7718, %v7712
    %v8211 = vpack.c.b16 %v7719, %v7713
    %v8212 = vpack.c.b16 %v7720, %v7714
    %v8213 = vpack.c.b16 %v7721, %v7715
    %v8214 = vpack.c.b16 %v7722, %v7716
    %v8215 = vpack.c.b16 %v7723, %v7717
    %v8216 = vpack.c.b16 %v7730, %v7724
    %v8217 = vpack.c.b16 %v7731, %v7725
    %v8218 = vpack.c.b16 %v7732, %v7726
    %v8219 = vpack.c.b16 %v7733, %v7727
    %v8220 = vpack.c.b16 %v7734, %v7728
    %v8221 = vpack.c.b16 %v7735, %v7729
    %v8222 = vpack.c.b16 %v7742, %v7736
    %v8223 = vpack.c.b16 %v7743, %v7737
    %v8224 = vpack.c.b16 %v7744, %v7738
    %v8225 = vpack.c.b16 %v7745, %v7739
    %v8226 = vpack.c.b16 %v7746, %v7740
    %v8227 = vpack.c.b16 %v7747, %v7741
    %v8228 = vpack.c.b16 %v7754, %v7748
    %v8229 = vpack.c.b16 %v7755, %v7749
    %v8230 = vpack.c.b16 %v7756, %v7750
    %v8231 = vpack.c.b16 %v7757, %v7751
    %v8232 = vpack.c.b16 %v7758, %v7752
    %v8233 = vpack.c.b16 %v7759, %v7753
    %v8234 = vpack.c.b16 %v7766, %v7760
    %v8235 = vpack.c.b16 %v7767, %v7761
    %v8236 = vpack.c.b16 %v7768, %v7762
    %v8237 = vpack.c.b16 %v7769, %v7763
    %v8238 = vpack.c.b16 %v7770, %v7764
    %v8239 = vpack.c.b16 %v7771, %v7765
    %v8240 = vpack.c.b16 %v7778, %v7772
    %v8241 = vpack.c.b16 %v7779, %v7773
    %v8242 = vpack.c.b16 %v7780, %v7774
    %v8243 = vpack.c.b16 %v7781, %v7775
    %v8244 = vpack.c.b16 %v7782, %v7776
    %v8245 = vpack.c.b16 %v7783, %v7777
    %v8246 = vpack.c.b16 %v7790, %v7784
    %v8247 = vpack.c.b16 %v7791, %v7785
    %v8248 = vpack.c.b16 %v7792, %v7786
    %v8249 = vpack.c.b16 %v7793, %v7787
    %v8250 = vpack.c.b16 %v7794, %v7788
    %v8251 = vpack.c.b16 %v7795, %v7789
    %v8252 = vpack.c.b16 %v7802, %v7796
    %v8253 = vpack.c.b16 %v7803, %v7797
    %v8254 = vpack.c.b16 %v7804, %v7798
    %v8255 = vpack.c.b16 %v7805, %v7799
    %v8256 = vpack.c.b16 %v7806, %v7800
    %v8257 = vpack.c.b16 %v7807, %v7801
    %v8258 = vpack.c.b16 %v7814, %v7808
    %v8259 = vpack.c.b16 %v7815, %v7809
    %v8260 = vpack.c.b16 %v7816, %v7810
    %v8261 = vpack.c.b16 %v7817, %v7811
    %v8262 = vpack.c.b16 %v7818, %v7812
    %v8263 = vpack.c.b16 %v7819, %v7813
    %v8264 = vpack.c.b16 %v7826, %v7820
    %v8265 = vpack.c.b16 %v7827, %v7821
    %v8266 = vpack.c.b16 %v7828, %v7822
    %v8267 = vpack.c.b16 %v7829, %v7823
    %v8268 = vpack.c.b16 %v7830, %v7824
    %v8269 = vpack.c.b16 %v7831, %v7825
    %v8270 = vpack.c.b16 %v7838, %v7832
    %v8271 = vpack.c.b16 %v7839, %v7833
    %v8272 = vpack.c.b16 %v7840, %v7834
    %v8273 = vpack.c.b16 %v7841, %v7835
    %v8274 = vpack.c.b16 %v7842, %v7836
    %v8275 = vpack.c.b16 %v7843, %v7837
    %v8276 = vpack.c.b16 %v7850, %v7844
    %v8277 = vpack.c.b16 %v7851, %v7845
    %v8278 = vpack.c.b16 %v7852, %v7846
    %v8279 = vpack.c.b16 %v7853, %v7847
    %v8280 = vpack.c.b16 %v7854, %v7848
    %v8281 = vpack.c.b16 %v7855, %v7849
    %v8282 = vpack.c.b16 %v7862, %v7856
    %v8283 = vpack.c.b16 %v7863, %v7857
    %v8284 = vpack.c.b16 %v7864, %v7858
    %v8285 = vpack.c.b16 %v7865, %v7859
    %v8286 = vpack.c.b16 %v7866, %v7860
    %v8287 = vpack.c.b16 %v7867, %v7861
    %v8288 = vpack.c.b16 %v7874, %v7868
    %v8289 = vpack.c.b16 %v7875, %v7869
    %v8290 = vpack.c.b16 %v7876, %v7870
    %v8291 = vpack.c.b16 %v7877, %v7871
    %v8292 = vpack.c.b16 %v7878, %v7872
    %v8293 = vpack.c.b16 %v7879, %v7873
    %v8294 = vpack.c.b16 %v7886, %v7880
    %v8295 = vpack.c.b16 %v7887, %v7881
    %v8296 = vpack.c.b16 %v7888, %v7882
    %v8297 = vpack.c.b16 %v7889, %v7883
    %v8298 = vpack.c.b16 %v7890, %v7884
    %v8299 = vpack.c.b16 %v7891, %v7885
    %v8300 = vpack.c.b16 %v7898, %v7892
    %v8301 = vpack.c.b16 %v7899, %v7893
    %v8302 = vpack.c.b16 %v7900, %v7894
    %v8303 = vpack.c.b16 %v7901, %v7895
    %v8304 = vpack.c.b16 %v7902, %v7896
    %v8305 = vpack.c.b16 %v7903, %v7897
    %v8306 = vpack.c.b16 %v7910, %v7904
    %v8307 = vpack.c.b16 %v7911, %v7905
    %v8308 = vpack.c.b16 %v7912, %v7906
    %v8309 = vpack.c.b16 %v7913, %v7907
    %v8310 = vpack.c.b16 %v7914, %v7908
    %v8311 = vpack.c.b16 %v7915, %v7909
    %v8312 = vpack.c.b16 %v7922, %v7916
    %v8313 = vpack.c.b16 %v7923, %v7917
    %v8314 = vpack.c.b16 %v7924, %v7918
    %v8315 = vpack.c.b16 %v7925, %v7919
    %v8316 = vpack.c.b16 %v7926, %v7920
    %v8317 = vpack.c.b16 %v7927, %v7921
    %v8318 = vpack.c.b16 %v7934, %v7928
    %v8319 = vpack.c.b16 %v7935, %v7929
    %v8320 = vpack.c.b16 %v7936, %v7930
    %v8321 = vpack.c.b16 %v7937, %v7931
    %v8322 = vpack.c.b16 %v7938, %v7932
    %v8323 = vpack.c.b16 %v7939, %v7933
    %v8324 = vpack.c.b16 %v7946, %v7940
    %v8325 = vpack.c.b16 %v7947, %v7941
    %v8326 = vpack.c.b16 %v7948, %v7942
    %v8327 = vpack.c.b16 %v7949, %v7943
    %v8328 = vpack.c.b16 %v7950, %v7944
    %v8329 = vpack.c.b16 %v7951, %v7945
    %v8330 = vpack.c.b16 %v7958, %v7952
    %v8331 = vpack.c.b16 %v7959, %v7953
    %v8332 = vpack.c.b16 %v7960, %v7954
    %v8333 = vpack.c.b16 %v7961, %v7955
    %v8334 = vpack.c.b16 %v7962, %v7956
    %v8335 = vpack.c.b16 %v7963, %v7957
    %v8336 = vpack.c.b16 %v7970, %v7964
    %v8337 = vpack.c.b16 %v7971, %v7965
    %v8338 = vpack.c.b16 %v7972, %v7966
    %v8339 = vpack.c.b16 %v7973, %v7967
    %v8340 = vpack.c.b16 %v7974, %v7968
    %v8341 = vpack.c.b16 %v7975, %v7969
    %v8342 = vpack.c.b16 %v7982, %v7976
    %v8343 = vpack.c.b16 %v7983, %v7977
    %v8344 = vpack.c.b16 %v7984, %v7978
    %v8345 = vpack.c.b16 %v7985, %v7979
    %v8346 = vpack.c.b16 %v7986, %v7980
    %v8347 = vpack.c.b16 %v7987, %v7981
    %v8348 = vpack.c.b16 %v7994, %v7988
    %v8349 = vpack.c.b16 %v7995, %v7989
    %v8350 = vpack.c.b16 %v7996, %v7990
    %v8351 = vpack.c.b16 %v7997, %v7991
    %v8352 = vpack.c.b16 %v7998, %v7992
    %v8353 = vpack.c.b16 %v7999, %v7993
    %v8354 = vpack.c.b16 %v8006, %v8000
    %v8355 = vpack.c.b16 %v8007, %v8001
    %v8356 = vpack.c.b16 %v8008, %v8002
    %v8357 = vpack.c.b16 %v8009, %v8003
    %v8358 = vpack.c.b16 %v8010, %v8004
    %v8359 = vpack.c.b16 %v8011, %v8005
    %v8360 = vpack.c.b16 %v8018, %v8012
    %v8361 = vpack.c.b16 %v8019, %v8013
    %v8362 = vpack.c.b16 %v8020, %v8014
    %v8363 = vpack.c.b16 %v8021, %v8015
    %v8364 = vpack.c.b16 %v8022, %v8016
    %v8365 = vpack.c.b16 %v8023, %v8017
    %v8366 = vpack.c.b16 %v8030, %v8024
    %v8367 = vpack.c.b16 %v8031, %v8025
    %v8368 = vpack.c.b16 %v8032, %v8026
    %v8369 = vpack.c.b16 %v8033, %v8027
    %v8370 = vpack.c.b16 %v8034, %v8028
    %v8371 = vpack.c.b16 %v8035, %v8029
    %v8372 = vpack.c.b16 %v8042, %v8036
    %v8373 = vpack.c.b16 %v8043, %v8037
    %v8374 = vpack.c.b16 %v8044, %v8038
    %v8375 = vpack.c.b16 %v8045, %v8039
    %v8376 = vpack.c.b16 %v8046, %v8040
    %v8377 = vpack.c.b16 %v8047, %v8041
    %v8378 = vpack.c.b16 %v8054, %v8048
    %v8379 = vpack.c.b16 %v8055, %v8049
    %v8380 = vpack.c.b16 %v8056, %v8050
    %v8381 = vpack.c.b16 %v8057, %v8051
    %v8382 = vpack.c.b16 %v8058, %v8052
    %v8383 = vpack.c.b16 %v8059, %v8053
    %v8384 = vpack.c.b16 %v8066, %v8060
    %v8385 = vpack.c.b16 %v8067, %v8061
    %v8386 = vpack.c.b16 %v8068, %v8062
    %v8387 = vpack.c.b16 %v8069, %v8063
    %v8388 = vpack.c.b16 %v8070, %v8064
    %v8389 = vpack.c.b16 %v8071, %v8065
    %v8390 = vpack.c.b16 %v8078, %v8072
    %v8391 = vpack.c.b16 %v8079, %v8073
    %v8392 = vpack.c.b16 %v8080, %v8074
    %v8393 = vpack.c.b16 %v8081, %v8075
    %v8394 = vpack.c.b16 %v8082, %v8076
    %v8395 = vpack.c.b16 %v8083, %v8077
    %v8396 = vpack.c.b16 %v8090, %v8084
    %v8397 = vpack.c.b16 %v8091, %v8085
    %v8398 = vpack.c.b16 %v8092, %v8086
    %v8399 = vpack.c.b16 %v8093, %v8087
    %v8400 = vpack.c.b16 %v8094, %v8088
    %v8401 = vpack.c.b16 %v8095, %v8089
    %v8402 = vpack.c.b16 %v8102, %v8096
    %v8403 = vpack.c.b16 %v8103, %v8097
    %v8404 = vpack.c.b16 %v8104, %v8098
    %v8405 = vpack.c.b16 %v8105, %v8099
    %v8406 = vpack.c.b16 %v8106, %v8100
    %v8407 = vpack.c.b16 %v8107, %v8101
    %v8408 = vpack.c.b16 %v8114, %v8108
    %v8409 = vpack.c.b16 %v8115, %v8109
    %v8410 = vpack.c.b16 %v8116, %v8110
    %v8411 = vpack.c.b16 %v8117, %v8111
    %v8412 = vpack.c.b16 %v8118, %v8112
    %v8413 = vpack.c.b16 %v8119, %v8113
    %v8414 = vpack.c.b16 %v8126, %v8120
    %v8415 = vpack.c.b16 %v8127, %v8121
    %v8416 = vpack.c.b16 %v8128, %v8122
    %v8417 = vpack.c.b16 %v8129, %v8123
    %v8418 = vpack.c.b16 %v8130, %v8124
    %v8419 = vpack.c.b16 %v8131, %v8125
    %8708 = vmatprep.subr.bf16.mxu0 %v8133
    %8709 = vmatpush1.bf16.msra.mxu0 %v8132
    %8710 = vmatprep.subr.bf16.mxu0 %v8139
    %8711 = vmatpush1.bf16.msra.mxu0 %v8138
    %8712 = vmatprep.subr.bf16.mxu0 %v8145
    %8713 = vmatpush1.bf16.msra.mxu0 %v8144
    %8714 = vmatprep.subr.bf16.mxu0 %v8151
    %8715 = vmatpush1.bf16.msra.mxu0 %v8150
    %8716 = vmatprep.subr.bf16.mxu0 %v8157
    %8717 = vmatpush1.bf16.msra.mxu0 %v8156
    %8718 = vmatprep.subr.bf16.mxu0 %v8163
    %8719 = vmatpush1.bf16.msra.mxu0 %v8162
    %8720 = vmatprep.subr.bf16.mxu0 %v8169
    %8721 = vmatpush1.bf16.msra.mxu0 %v8168
    %8722 = vmatprep.subr.bf16.mxu0 %v8175
    %8723 = vmatpush1.bf16.msra.mxu0 %v8174
    %8724 = vmatprep.subr.bf16.mxu0 %v8181
    %8725 = vmatpush1.bf16.msra.mxu0 %v8180
    %8726 = vmatprep.subr.bf16.mxu0 %v8187
    %8727 = vmatpush1.bf16.msra.mxu0 %v8186
    %8728 = vmatprep.subr.bf16.mxu0 %v8193
    %8729 = vmatpush1.bf16.msra.mxu0 %v8192
    %8730 = vmatprep.subr.bf16.mxu0 %v8199
    %8731 = vmatpush1.bf16.msra.mxu0 %v8198
    %8732 = vmatprep.subr.bf16.mxu0 %v8205
    %8733 = vmatpush1.bf16.msra.mxu0 %v8204
    %8734 = vmatprep.subr.bf16.mxu0 %v8211
    %8735 = vmatpush1.bf16.msra.mxu0 %v8210
    %8736 = vmatprep.subr.bf16.mxu0 %v8217
    %8737 = vmatpush1.bf16.msra.mxu0 %v8216
    %8738 = vmatprep.subr.bf16.mxu0 %v8223
    %8739 = vmatpush1.bf16.msra.mxu0 %v8222
    %8740 = vmatprep.mubr.bf16.mxu0 %v6943
    %8741 = vmatmul.mubr.bf16.gmra.mrb[0].mxu0 %v6942
    %v8742 = vpop.f32.mrb[0].mxu0
    %v8743 = vadd.f32 %v7241, %v8742
    %v8744 = vpop.f32.mrb[0].mxu0
    %v8745 = vadd.f32 %v7245, %v8744
    %v8746 = vpop.f32.mrb[0].mxu0
    %v8747 = vadd.f32 %v7241, %v8746
    %v8748 = vpop.f32.mrb[0].mxu0
    %v8749 = vadd.f32 %v7245, %v8748
    %8750 = vdwg.mxu0
    %8751 = vmatprep.subr.bf16.mxu0 %v8229
    %8752 = vmatpush1.bf16.msra.mxu0 %v8228
    %8753 = vmatprep.subr.bf16.mxu0 %v8235
    %8754 = vmatpush1.bf16.msra.mxu0 %v8234
    %8755 = vmatprep.subr.bf16.mxu0 %v8241
    %8756 = vmatpush1.bf16.msra.mxu0 %v8240
    %8757 = vmatprep.subr.bf16.mxu0 %v8247
    %8758 = vmatpush1.bf16.msra.mxu0 %v8246
    %8759 = vmatprep.subr.bf16.mxu0 %v8253
    %8760 = vmatpush1.bf16.msra.mxu0 %v8252
    %8761 = vmatprep.subr.bf16.mxu0 %v8259
    %8762 = vmatpush1.bf16.msra.mxu0 %v8258
    %8763 = vmatprep.subr.bf16.mxu0 %v8265
    %8764 = vmatpush1.bf16.msra.mxu0 %v8264
    %8765 = vmatprep.subr.bf16.mxu0 %v8271
    %8766 = vmatpush1.bf16.msra.mxu0 %v8270
    %8767 = vmatprep.subr.bf16.mxu0 %v8277
    %8768 = vmatpush1.bf16.msra.mxu0 %v8276
    %8769 = vmatprep.subr.bf16.mxu0 %v8283
    %8770 = vmatpush1.bf16.msra.mxu0 %v8282
    %8771 = vmatprep.subr.bf16.mxu0 %v8289
    %8772 = vmatpush1.bf16.msra.mxu0 %v8288
    %8773 = vmatprep.subr.bf16.mxu0 %v8295
    %8774 = vmatpush1.bf16.msra.mxu0 %v8294
    %8775 = vmatprep.subr.bf16.mxu0 %v8301
    %8776 = vmatpush1.bf16.msra.mxu0 %v8300
    %8777 = vmatprep.subr.bf16.mxu0 %v8307
    %8778 = vmatpush1.bf16.msra.mxu0 %v8306
    %8779 = vmatprep.subr.bf16.mxu0 %v8313
    %8780 = vmatpush1.bf16.msra.mxu0 %v8312
    %8781 = vmatprep.subr.bf16.mxu0 %v8319
    %8782 = vmatpush1.bf16.msra.mxu0 %v8318
    %8783 = vmatprep.mubr.bf16.mxu0 %v6945
    %8784 = vmatmul.mubr.bf16.gmra.mrb[0].mxu0 %v6944
    %v8785 = vpop.f32.mrb[0].mxu0
    %v8786 = vadd.f32 %v8743, %v8785
    %v8787 = vpop.f32.mrb[0].mxu0
    %v8788 = vadd.f32 %v8745, %v8787
    %v8789 = vpop.f32.mrb[0].mxu0
    %v8790 = vadd.f32 %v8747, %v8789
    %v8791 = vpop.f32.mrb[0].mxu0
    %v8792 = vadd.f32 %v8749, %v8791
    %8793 = vdwg.mxu0
    %8794 = vmatprep.subr.bf16.mxu0 %v8325
    %8795 = vmatpush1.bf16.msra.mxu0 %v8324
    %8796 = vmatprep.subr.bf16.mxu0 %v8331
    %8797 = vmatpush1.bf16.msra.mxu0 %v8330
    %8798 = vmatprep.subr.bf16.mxu0 %v8337
    %8799 = vmatpush1.bf16.msra.mxu0 %v8336
    %8800 = vmatprep.subr.bf16.mxu0 %v8343
    %8801 = vmatpush1.bf16.msra.mxu0 %v8342
    %8802 = vmatprep.subr.bf16.mxu0 %v8349
    %8803 = vmatpush1.bf16.msra.mxu0 %v8348
    %8804 = vmatprep.subr.bf16.mxu0 %v8355
    %8805 = vmatpush1.bf16.msra.mxu0 %v8354
    %8806 = vmatprep.subr.bf16.mxu0 %v8361
    %8807 = vmatpush1.bf16.msra.mxu0 %v8360
    %8808 = vmatprep.subr.bf16.mxu0 %v8367
    %8809 = vmatpush1.bf16.msra.mxu0 %v8366
    %8810 = vmatprep.subr.bf16.mxu0 %v8373
    %8811 = vmatpush1.bf16.msra.mxu0 %v8372
    %8812 = vmatprep.subr.bf16.mxu0 %v8379
    %8813 = vmatpush1.bf16.msra.mxu0 %v8378
    %8814 = vmatprep.subr.bf16.mxu0 %v8385
    %8815 = vmatpush1.bf16.msra.mxu0 %v8384
    %8816 = vmatprep.subr.bf16.mxu0 %v8391
    %8817 = vmatpush1.bf16.msra.mxu0 %v8390
    %8818 = vmatprep.subr.bf16.mxu0 %v8397
    %8819 = vmatpush1.bf16.msra.mxu0 %v8396
    %8820 = vmatprep.subr.bf16.mxu0 %v8403
    %8821 = vmatpush1.bf16.msra.mxu0 %v8402
    %8822 = vmatprep.subr.bf16.mxu0 %v8409
    %8823 = vmatpush1.bf16.msra.mxu0 %v8408
    %8824 = vmatprep.subr.bf16.mxu0 %v8415
    %8825 = vmatpush1.bf16.msra.mxu0 %v8414
    %8826 = vmatprep.mubr.bf16.mxu0 %v6947
    %8827 = vmatmul.mubr.bf16.gmra.mrb[0].mxu0 %v6946
    %v8828 = vpop.f32.mrb[0].mxu0
    %v8829 = vadd.f32 %v8786, %v8828
    %v8830 = vpop.f32.mrb[0].mxu0
    %v8831 = vadd.f32 %v8788, %v8830
    %v8832 = vpop.f32.mrb[0].mxu0
    %v8833 = vadd.f32 %v8790, %v8832
    %v8834 = vpop.f32.mrb[0].mxu0
    %v8835 = vadd.f32 %v8792, %v8834
    %8836 = vdwg.mxu0
    %8837 = vmatprep.subr.bf16.mxu0 %v8135
    %8838 = vmatpush1.bf16.msra.mxu0 %v8134
    %8839 = vmatprep.subr.bf16.mxu0 %v8141
    %8840 = vmatpush1.bf16.msra.mxu0 %v8140
    %8841 = vmatprep.subr.bf16.mxu0 %v8147
    %8842 = vmatpush1.bf16.msra.mxu0 %v8146
    %8843 = vmatprep.subr.bf16.mxu0 %v8153
    %8844 = vmatpush1.bf16.msra.mxu0 %v8152
    %8845 = vmatprep.subr.bf16.mxu0 %v8159
    %8846 = vmatpush1.bf16.msra.mxu0 %v8158
    %8847 = vmatprep.subr.bf16.mxu0 %v8165
    %8848 = vmatpush1.bf16.msra.mxu0 %v8164
    %8849 = vmatprep.subr.bf16.mxu0 %v8171
    %8850 = vmatpush1.bf16.msra.mxu0 %v8170
    %8851 = vmatprep.subr.bf16.mxu0 %v8177
    %8852 = vmatpush1.bf16.msra.mxu0 %v8176
    %8853 = vmatprep.subr.bf16.mxu0 %v8183
    %8854 = vmatpush1.bf16.msra.mxu0 %v8182
    %8855 = vmatprep.subr.bf16.mxu0 %v8189
    %8856 = vmatpush1.bf16.msra.mxu0 %v8188
    %8857 = vmatprep.subr.bf16.mxu0 %v8195
    %8858 = vmatpush1.bf16.msra.mxu0 %v8194
    %8859 = vmatprep.subr.bf16.mxu0 %v8201
    %8860 = vmatpush1.bf16.msra.mxu0 %v8200
    %8861 = vmatprep.subr.bf16.mxu0 %v8207
    %8862 = vmatpush1.bf16.msra.mxu0 %v8206
    %8863 = vmatprep.subr.bf16.mxu0 %v8213
    %8864 = vmatpush1.bf16.msra.mxu0 %v8212
    %8865 = vmatprep.subr.bf16.mxu0 %v8219
    %8866 = vmatpush1.bf16.msra.mxu0 %v8218
    %8867 = vmatprep.subr.bf16.mxu0 %v8225
    %8868 = vmatpush1.bf16.msra.mxu0 %v8224
    %8869 = vmatprep.mubr.bf16.mxu0 %v6943
    %8870 = vmatmul.mubr.bf16.gmra.mrb[0].mxu0 %v6942
    %v8871 = vpop.f32.mrb[0].mxu0
    %v8872 = vadd.f32 %v7249, %v8871
    %v8873 = vpop.f32.mrb[0].mxu0
    %v8874 = vadd.f32 %v7253, %v8873
    %v8875 = vpop.f32.mrb[0].mxu0
    %v8876 = vadd.f32 %v7249, %v8875
    %v8877 = vpop.f32.mrb[0].mxu0
    %v8878 = vadd.f32 %v7253, %v8877
    %8879 = vdwg.mxu0
    %8880 = vmatprep.subr.bf16.mxu0 %v8231
    %8881 = vmatpush1.bf16.msra.mxu0 %v8230
    %8882 = vmatprep.subr.bf16.mxu0 %v8237
    %8883 = vmatpush1.bf16.msra.mxu0 %v8236
    %8884 = vmatprep.subr.bf16.mxu0 %v8243
    %8885 = vmatpush1.bf16.msra.mxu0 %v8242
    %8886 = vmatprep.subr.bf16.mxu0 %v8249
    %8887 = vmatpush1.bf16.msra.mxu0 %v8248
    %8888 = vmatprep.subr.bf16.mxu0 %v8255
    %8889 = vmatpush1.bf16.msra.mxu0 %v8254
    %8890 = vmatprep.subr.bf16.mxu0 %v8261
    %8891 = vmatpush1.bf16.msra.mxu0 %v8260
    %8892 = vmatprep.subr.bf16.mxu0 %v8267
    %8893 = vmatpush1.bf16.msra.mxu0 %v8266
    %8894 = vmatprep.subr.bf16.mxu0 %v8273
    %8895 = vmatpush1.bf16.msra.mxu0 %v8272
    %8896 = vmatprep.subr.bf16.mxu0 %v8279
    %8897 = vmatpush1.bf16.msra.mxu0 %v8278
    %8898 = vmatprep.subr.bf16.mxu0 %v8285
    %8899 = vmatpush1.bf16.msra.mxu0 %v8284
    %8900 = vmatprep.subr.bf16.mxu0 %v8291
    %8901 = vmatpush1.bf16.msra.mxu0 %v8290
    %8902 = vmatprep.subr.bf16.mxu0 %v8297
    %8903 = vmatpush1.bf16.msra.mxu0 %v8296
    %8904 = vmatprep.subr.bf16.mxu0 %v8303
    %8905 = vmatpush1.bf16.msra.mxu0 %v8302
    %8906 = vmatprep.subr.bf16.mxu0 %v8309
    %8907 = vmatpush1.bf16.msra.mxu0 %v8308
    %8908 = vmatprep.subr.bf16.mxu0 %v8315
    %8909 = vmatpush1.bf16.msra.mxu0 %v8314
    %8910 = vmatprep.subr.bf16.mxu0 %v8321
    %8911 = vmatpush1.bf16.msra.mxu0 %v8320
    %8912 = vmatprep.mubr.bf16.mxu0 %v6945
    %8913 = vmatmul.mubr.bf16.gmra.mrb[0].mxu0 %v6944
    %v8914 = vpop.f32.mrb[0].mxu0
    %v8915 = vadd.f32 %v8872, %v8914
    %v8916 = vpop.f32.mrb[0].mxu0
    %v8917 = vadd.f32 %v8874, %v8916
    %v8918 = vpop.f32.mrb[0].mxu0
    %v8919 = vadd.f32 %v8876, %v8918
    %v8920 = vpop.f32.mrb[0].mxu0
    %v8921 = vadd.f32 %v8878, %v8920
    %8922 = vdwg.mxu0
    %8923 = vmatprep.subr.bf16.mxu0 %v8327
    %8924 = vmatpush1.bf16.msra.mxu0 %v8326
    %8925 = vmatprep.subr.bf16.mxu0 %v8333
    %8926 = vmatpush1.bf16.msra.mxu0 %v8332
    %8927 = vmatprep.subr.bf16.mxu0 %v8339
    %8928 = vmatpush1.bf16.msra.mxu0 %v8338
    %8929 = vmatprep.subr.bf16.mxu0 %v8345
    %8930 = vmatpush1.bf16.msra.mxu0 %v8344
    %8931 = vmatprep.subr.bf16.mxu0 %v8351
    %8932 = vmatpush1.bf16.msra.mxu0 %v8350
    %8933 = vmatprep.subr.bf16.mxu0 %v8357
    %8934 = vmatpush1.bf16.msra.mxu0 %v8356
    %8935 = vmatprep.subr.bf16.mxu0 %v8363
    %8936 = vmatpush1.bf16.msra.mxu0 %v8362
    %8937 = vmatprep.subr.bf16.mxu0 %v8369
    %8938 = vmatpush1.bf16.msra.mxu0 %v8368
    %8939 = vmatprep.subr.bf16.mxu0 %v8375
    %8940 = vmatpush1.bf16.msra.mxu0 %v8374
    %8941 = vmatprep.subr.bf16.mxu0 %v8381
    %8942 = vmatpush1.bf16.msra.mxu0 %v8380
    %8943 = vmatprep.subr.bf16.mxu0 %v8387
    %8944 = vmatpush1.bf16.msra.mxu0 %v8386
    %8945 = vmatprep.subr.bf16.mxu0 %v8393
    %8946 = vmatpush1.bf16.msra.mxu0 %v8392
    %8947 = vmatprep.subr.bf16.mxu0 %v8399
    %8948 = vmatpush1.bf16.msra.mxu0 %v8398
    %8949 = vmatprep.subr.bf16.mxu0 %v8405
    %8950 = vmatpush1.bf16.msra.mxu0 %v8404
    %8951 = vmatprep.subr.bf16.mxu0 %v8411
    %8952 = vmatpush1.bf16.msra.mxu0 %v8410
    %8953 = vmatprep.subr.bf16.mxu0 %v8417
    %8954 = vmatpush1.bf16.msra.mxu0 %v8416
    %8955 = vmatprep.mubr.bf16.mxu0 %v6947
    %8956 = vmatmul.mubr.bf16.gmra.mrb[0].mxu0 %v6946
    %v8957 = vpop.f32.mrb[0].mxu0
    %v8958 = vadd.f32 %v8915, %v8957
    %v8959 = vpop.f32.mrb[0].mxu0
    %v8960 = vadd.f32 %v8917, %v8959
    %v8961 = vpop.f32.mrb[0].mxu0
    %v8962 = vadd.f32 %v8919, %v8961
    %v8963 = vpop.f32.mrb[0].mxu0
    %v8964 = vadd.f32 %v8921, %v8963
    %8965 = vdwg.mxu0
    %8966 = vmatprep.subr.bf16.mxu0 %v8137
    %8967 = vmatpush1.bf16.msra.mxu0 %v8136
    %8968 = vmatprep.subr.bf16.mxu0 %v8143
    %8969 = vmatpush1.bf16.msra.mxu0 %v8142
    %8970 = vmatprep.subr.bf16.mxu0 %v8149
    %8971 = vmatpush1.bf16.msra.mxu0 %v8148
    %8972 = vmatprep.subr.bf16.mxu0 %v8155
    %8973 = vmatpush1.bf16.msra.mxu0 %v8154
    %8974 = vmatprep.subr.bf16.mxu0 %v8161
    %8975 = vmatpush1.bf16.msra.mxu0 %v8160
    %8976 = vmatprep.subr.bf16.mxu0 %v8167
    %8977 = vmatpush1.bf16.msra.mxu0 %v8166
    %8978 = vmatprep.subr.bf16.mxu0 %v8173
    %8979 = vmatpush1.bf16.msra.mxu0 %v8172
    %8980 = vmatprep.subr.bf16.mxu0 %v8179
    %8981 = vmatpush1.bf16.msra.mxu0 %v8178
    %8982 = vmatprep.subr.bf16.mxu0 %v8185
    %8983 = vmatpush1.bf16.msra.mxu0 %v8184
    %8984 = vmatprep.subr.bf16.mxu0 %v8191
    %8985 = vmatpush1.bf16.msra.mxu0 %v8190
    %8986 = vmatprep.subr.bf16.mxu0 %v8197
    %8987 = vmatpush1.bf16.msra.mxu0 %v8196
    %8988 = vmatprep.subr.bf16.mxu0 %v8203
    %8989 = vmatpush1.bf16.msra.mxu0 %v8202
    %8990 = vmatprep.subr.bf16.mxu0 %v8209
    %8991 = vmatpush1.bf16.msra.mxu0 %v8208
    %8992 = vmatprep.subr.bf16.mxu0 %v8215
    %8993 = vmatpush1.bf16.msra.mxu0 %v8214
    %8994 = vmatprep.subr.bf16.mxu0 %v8221
    %8995 = vmatpush1.bf16.msra.mxu0 %v8220
    %8996 = vmatprep.subr.bf16.mxu0 %v8227
    %8997 = vmatpush1.bf16.msra.mxu0 %v8226
    %8998 = vmatprep.mubr.bf16.mxu0 %v6943
    %8999 = vmatmul.mubr.bf16.gmra.mrb[0].mxu0 %v6942
    %v9000 = vpop.f32.mrb[0].mxu0
    %v9001 = vadd.f32 %v7257, %v9000
    %v9002 = vpop.f32.mrb[0].mxu0
    %v9003 = vadd.f32 %v7261, %v9002
    %v9004 = vpop.f32.mrb[0].mxu0
    %v9005 = vadd.f32 %v7257, %v9004
    %v9006 = vpop.f32.mrb[0].mxu0
    %v9007 = vadd.f32 %v7261, %v9006
    %9008 = vdwg.mxu0
    %9009 = vmatprep.subr.bf16.mxu0 %v8233
    %9010 = vmatpush1.bf16.msra.mxu0 %v8232
    %9011 = vmatprep.subr.bf16.mxu0 %v8239
    %9012 = vmatpush1.bf16.msra.mxu0 %v8238
    %9013 = vmatprep.subr.bf16.mxu0 %v8245
    %9014 = vmatpush1.bf16.msra.mxu0 %v8244
    %9015 = vmatprep.subr.bf16.mxu0 %v8251
    %9016 = vmatpush1.bf16.msra.mxu0 %v8250
    %9017 = vmatprep.subr.bf16.mxu0 %v8257
    %9018 = vmatpush1.bf16.msra.mxu0 %v8256
    %9019 = vmatprep.subr.bf16.mxu0 %v8263
    %9020 = vmatpush1.bf16.msra.mxu0 %v8262
    %9021 = vmatprep.subr.bf16.mxu0 %v8269
    %9022 = vmatpush1.bf16.msra.mxu0 %v8268
    %9023 = vmatprep.subr.bf16.mxu0 %v8275
    %9024 = vmatpush1.bf16.msra.mxu0 %v8274
    %9025 = vmatprep.subr.bf16.mxu0 %v8281
    %9026 = vmatpush1.bf16.msra.mxu0 %v8280
    %9027 = vmatprep.subr.bf16.mxu0 %v8287
    %9028 = vmatpush1.bf16.msra.mxu0 %v8286
    %9029 = vmatprep.subr.bf16.mxu0 %v8293
    %9030 = vmatpush1.bf16.msra.mxu0 %v8292
    %9031 = vmatprep.subr.bf16.mxu0 %v8299
    %9032 = vmatpush1.bf16.msra.mxu0 %v8298
    %9033 = vmatprep.subr.bf16.mxu0 %v8305
    %9034 = vmatpush1.bf16.msra.mxu0 %v8304
    %9035 = vmatprep.subr.bf16.mxu0 %v8311
    %9036 = vmatpush1.bf16.msra.mxu0 %v8310
    %9037 = vmatprep.subr.bf16.mxu0 %v8317
    %9038 = vmatpush1.bf16.msra.mxu0 %v8316
    %9039 = vmatprep.subr.bf16.mxu0 %v8323
    %9040 = vmatpush1.bf16.msra.mxu0 %v8322
    %9041 = vmatprep.mubr.bf16.mxu0 %v6945
    %9042 = vmatmul.mubr.bf16.gmra.mrb[0].mxu0 %v6944
    %v9043 = vpop.f32.mrb[0].mxu0
    %v9044 = vadd.f32 %v9001, %v9043
    %v9045 = vpop.f32.mrb[0].mxu0
    %v9046 = vadd.f32 %v9003, %v9045
    %v9047 = vpop.f32.mrb[0].mxu0
    %v9048 = vadd.f32 %v9005, %v9047
    %v9049 = vpop.f32.mrb[0].mxu0
    %v9050 = vadd.f32 %v9007, %v9049
    %9051 = vdwg.mxu0
    %9052 = vmatprep.subr.bf16.mxu0 %v8329
    %9053 = vmatpush1.bf16.msra.mxu0 %v8328
    %9054 = vmatprep.subr.bf16.mxu0 %v8335
    %9055 = vmatpush1.bf16.msra.mxu0 %v8334
    %9056 = vmatprep.subr.bf16.mxu0 %v8341
    %9057 = vmatpush1.bf16.msra.mxu0 %v8340
    %9058 = vmatprep.subr.bf16.mxu0 %v8347
    %9059 = vmatpush1.bf16.msra.mxu0 %v8346
    %9060 = vmatprep.subr.bf16.mxu0 %v8353
    %9061 = vmatpush1.bf16.msra.mxu0 %v8352
    %9062 = vmatprep.subr.bf16.mxu0 %v8359
    %9063 = vmatpush1.bf16.msra.mxu0 %v8358
    %9064 = vmatprep.subr.bf16.mxu0 %v8365
    %9065 = vmatpush1.bf16.msra.mxu0 %v8364
    %9066 = vmatprep.subr.bf16.mxu0 %v8371
    %9067 = vmatpush1.bf16.msra.mxu0 %v8370
    %9068 = vmatprep.subr.bf16.mxu0 %v8377
    %9069 = vmatpush1.bf16.msra.mxu0 %v8376
    %9070 = vmatprep.subr.bf16.mxu0 %v8383
    %9071 = vmatpush1.bf16.msra.mxu0 %v8382
    %9072 = vmatprep.subr.bf16.mxu0 %v8389
    %9073 = vmatpush1.bf16.msra.mxu0 %v8388
    %9074 = vmatprep.subr.bf16.mxu0 %v8395
    %9075 = vmatpush1.bf16.msra.mxu0 %v8394
    %9076 = vmatprep.subr.bf16.mxu0 %v8401
    %9077 = vmatpush1.bf16.msra.mxu0 %v8400
    %9078 = vmatprep.subr.bf16.mxu0 %v8407
    %9079 = vmatpush1.bf16.msra.mxu0 %v8406
    %9080 = vmatprep.subr.bf16.mxu0 %v8413
    %9081 = vmatpush1.bf16.msra.mxu0 %v8412
    %9082 = vmatprep.subr.bf16.mxu0 %v8419
    %9083 = vmatpush1.bf16.msra.mxu0 %v8418
    %9084 = vmatprep.mubr.bf16.mxu0 %v6947
    %9085 = vmatmul.mubr.bf16.gmra.mrb[0].mxu0 %v6946
    %v9086 = vpop.f32.mrb[0].mxu0
    %v9087 = vadd.f32 %v9044, %v9086
    %v9088 = vpop.f32.mrb[0].mxu0
    %v9089 = vadd.f32 %v9046, %v9088
    %v9090 = vpop.f32.mrb[0].mxu0
    %v9091 = vadd.f32 %v9048, %v9090
    %v9092 = vpop.f32.mrb[0].mxu0
    %v9093 = vadd.f32 %v9050, %v9092
    %9094 = vdwg.mxu0
    %9095 = vst [vmem:[#allocation17] sm:$0xff] %v8829
    %9096 = vst [vmem:[#allocation17 + $0x8] sm:$0xff] %v8831
    %9097 = vst [vmem:[#allocation17 + $0x10] sm:$0xff] %v8958
    %9098 = vst [vmem:[#allocation17 + $0x18] sm:$0xff] %v8960
    %9099 = vst [vmem:[#allocation17 + $0x20] sm:$0xff] %v9087
    %9100 = vst [vmem:[#allocation17 + $0x28] sm:$0xff] %v9089
    %9101 = vst [vmem:[#allocation17 + $0x30] sm:$0xff] %v8833
    %9102 = vst [vmem:[#allocation17 + $0x38] sm:$0xff] %v8835
    %9103 = vst [vmem:[#allocation17 + $0x40] sm:$0xff] %v8962
    %9104 = vst [vmem:[#allocation17 + $0x48] sm:$0xff] %v8964
    %9105 = vst [vmem:[#allocation17 + $0x50] sm:$0xff] %v9091
    %9106 = vst [vmem:[#allocation17 + $0x58] sm:$0xff] %v9093
    // Predicated region
    $region74: #{mlp_forward.1} parent=1 // pred_check
      _
    $region75: #{mlp_forward.1} parent=1 // pred_check_branch
      %9108 = sbr.rel (0) target = $region77
    $region76: #{mlp_forward.1} parent=1 // pred_region
      %s9110 = ssub.s32 1536, 1536
      %9111 = vsyncadd [#allocation4], %s9110
      %s9112 = sshll.u32 [#allocation17], 4
      %s9113 = int_to_ptr.vmem [resolvable:$true] %s9112
      %9118 = dma.vmem_to_hbm [thread:$0]  %s9113, 1536, %s9, [#allocation4], 768, 768, 48
    $region77: #{mlp_forward.1} parent=1 // pred_fallthru
      _
    // Predicated region
    $region78: #{mlp_forward.1} parent=1 // pred_check
      _
    $region79: #{mlp_forward.1} parent=1 // pred_check_branch
      %9120 = sbr.rel (0) target = $region81
    $region80: #{mlp_forward.1} parent=1 // pred_region
      %9121 = dma.done [#allocation4], 1536
    $region81: #{mlp_forward.1} parent=1 // pred_fallthru
      _
    %9122 = vsyncpa [#allocation3], 1
    %9123 = vsyncpa [#allocation6], 1
    %9124 = vsyncpa [#allocation9], 1
    %9125 = vsyncpa [#allocation12], 1
    %9126 = vsyncpa [#allocation15], 1
    %9127 = vsyncpa [#allocation4], 1

</llo_original>
